<compile_context>
chip_gen: v6e
topology: v6e:2x2x1
jax: 0.10.0
libtpu: 0.0.40
codegen_flags: <defaults>
</compile_context>

<pallas_src>
import jax
import jax.numpy as jnp
from jax.experimental import pallas as pl
from jax.experimental.pallas import tpu as pltpu

IMAGE_SIZE = 64
IN_DIM = 3 * IMAGE_SIZE * IMAGE_SIZE  # 12288


def _round_up(x, m):
    return ((x + m - 1) // m) * m


def _choose_tile_b(b_size, max_tile=128):
    """Pick the batch tile (rows per grid step).

    Small batches: one tile of round_up(B, 8) rows.
    Otherwise: multiples of 16 in [64, max_tile]; relative cost model =
    streamed rows (~38 ns/row of HBM) + per-step overhead (~0.35 us ~= 9 rows)
    + a penalty when fewer than 4 grid steps (v7x megacore wants >= 2 steps
    per TensorCore for DMA/compute overlap).
    """
    if b_size <= max_tile:
        return _round_up(b_size, 8)
    best_t, best_cost = None, None
    for t in range(64, max_tile + 1, 16):
        b_pad = _round_up(b_size, t)
        steps = b_pad // t
        cost = b_pad + 9 * steps + (64 if steps < 4 else 0)
        if best_cost is None or cost < best_cost:
            best_t, best_cost = t, cost
    return best_t


def _mlp_kernel(x_ref,
                w1_ref, b1_ref,
                w2_ref, b2_ref,
                w3_ref, b3_ref,
                w4t_ref, b4_ref,
                o_ref):
    # Layer 1: cast the f32 input tile to bf16 in-kernel and run the bf16 MXU
    # path with an f32 accumulator.
    x = x_ref[...].astype(jnp.bfloat16)
    h = jnp.dot(x, w1_ref[...], preferred_element_type=jnp.float32)
    h = jnp.maximum(h + b1_ref[...], 0.0)
    # Layer 2: (tile_b, 64) @ (64, 64) + b2, ReLU (f32, tiny).
    h = jnp.dot(h, w2_ref[...], preferred_element_type=jnp.float32)
    h = jnp.maximum(h + b2_ref[...], 0.0)
    # Layer 3: (tile_b, 64) @ (64, 16) + b3, ReLU (f32, tiny).
    h = jnp.dot(h, w3_ref[...], preferred_element_type=jnp.float32)
    h = jnp.maximum(h + b3_ref[...], 0.0)
    # Layer 4 (K=16, N=1): VPU multiply + lane reduce instead of an MXU matmul,
    # then a cheap XLU transpose so the store is lane-dense (1, tile_b).
    logits = jnp.sum(h * w4t_ref[...], axis=-1, keepdims=True) + b4_ref[...]
    out_row = jnp.transpose(jax.nn.sigmoid(logits), (1, 0))   # (1, tile_b)
    o_ref[...] = out_row[None].astype(o_ref.dtype)            # (1, 1, tile_b)


def discriminator_forward(x_nchw, params, max_tile_b=128):
    """x_nchw: (B, 3, 64, 64) float32 -> (B, 1) float32 sigmoid probabilities."""
    b_size = x_nchw.shape[0]
    x_flat = x_nchw.reshape(b_size, -1)          # contiguous reshape: free
    assert x_flat.shape[1] == IN_DIM

    (w1, b1), (w2, b2), (w3, b3), (w4, b4) = params

    # Only the HBM-resident layer-1 weight goes to bf16 (tiny one-time cast);
    # x stays f32 and is cast inside the kernel.
    w1 = w1.astype(jnp.bfloat16)
    w4t = w4.T                                   # (1, 16)

    tile_b = _choose_tile_b(b_size, max_tile_b)
    b_pad = _round_up(b_size, tile_b)
    if b_pad != b_size:
        # Pad copy only happens when tile_b doesn't divide B; the tile chooser
        # minimizes the number of padded (wasted-bandwidth) rows.
        x_flat = jnp.pad(x_flat, ((0, b_pad - b_size), (0, 0)))
    num_tiles = b_pad // tile_b

    # Weights/biases: constant index_map -> resident in VMEM across the grid.
    def _const(*shape):
        return pl.BlockSpec(shape, lambda i: tuple(0 for _ in shape))

    in_specs = [
        pl.BlockSpec((tile_b, IN_DIM), lambda i: (i, 0)),   # x tile (f32)
        _const(IN_DIM, 64), _const(1, 64),                  # w1 (bf16), b1
        _const(64, 64),     _const(1, 64),                  # w2, b2
        _const(64, 16),     _const(1, 16),                  # w3, b3
        _const(1, 16),      _const(1, 1),                   # w4^T, b4
    ]
    # Lane-dense output: one (1, tile_b) row of probabilities per grid step.
    out_spec = pl.BlockSpec((1, 1, tile_b), lambda i: (i, 0, 0))

    weight_bytes = (w1.size * 2 + (b1.size + w2.size + b2.size + w3.size +
                                   b3.size + w4t.size + b4.size) * 4)
    cost = pl.CostEstimate(
        flops=2 * b_pad * (IN_DIM * 64 + 64 * 64 + 64 * 16 + 16),
        transcendentals=2 * b_pad,               # sigmoid ~ exp + reciprocal
        bytes_accessed=b_pad * IN_DIM * 4 + weight_bytes + b_pad * 4,
    )

    out_tiles = pl.pallas_call(
        _mlp_kernel,
        out_shape=jax.ShapeDtypeStruct((num_tiles, 1, tile_b), jnp.float32),
        grid=(num_tiles,),
        in_specs=in_specs,
        out_specs=out_spec,
        compiler_params=pltpu.CompilerParams(
            dimension_semantics=("parallel",),
            vmem_limit_bytes=32 << 20,
        ),
        cost_estimate=cost,
    )(x_flat, w1, b1, w2, b2, w3, b3, w4t, b4)

    return out_tiles.reshape(b_pad, 1)[:b_size]


def init_params(key):
    """nn.Linear default init: U(-1/sqrt(fan_in), +1/sqrt(fan_in)).
    Weights stored as (in_features, out_features); biases as (1, out_features)."""
    dims = [(IN_DIM, 64), (64, 64), (64, 16), (16, 1)]
    params = []
    for (fan_in, fan_out) in dims:
        key, kw, kb = jax.random.split(key, 3)
        bound = 1.0 / (fan_in ** 0.5)
        w = jax.random.uniform(kw, (fan_in, fan_out), jnp.float32, -bound, bound)
        b = jax.random.uniform(kb, (1, fan_out), jnp.float32, -bound, bound)
        params.append((w, b))
    return params


def _reference_forward(x_nchw, params):
    """Pure-JAX reference mirroring the kernel's bf16 layer-1 precision."""
    x = x_nchw.reshape(x_nchw.shape[0], -1).astype(jnp.bfloat16)
    (w1, b1), (w2, b2), (w3, b3), (w4, b4) = params
    h = jnp.dot(x, w1.astype(jnp.bfloat16), preferred_element_type=jnp.float32)
    h = jnp.maximum(h + b1, 0.0)
    h = jnp.maximum(h @ w2 + b2, 0.0)
    h = jnp.maximum(h @ w3 + b3, 0.0)
    return jax.nn.sigmoid(h @ w4 + b4)


if __name__ == "__main__":
    key = jax.random.PRNGKey(0)
    key, kx = jax.random.split(key)

    b_size = 2
    x = jax.random.normal(kx, (b_size, 3, IMAGE_SIZE, IMAGE_SIZE), jnp.float32)
    params = init_params(key)

    out = discriminator_forward(x, params)
    out = jax.block_until_ready(out)

    ref = _reference_forward(x, params)
    assert out.shape == (b_size, 1), out.shape
    assert jnp.allclose(out, ref, atol=1e-4, rtol=1e-4), (out, ref)

    print("KERNEL_OK")
</pallas_src>

<mosaic_0001>
module attributes {stable_mosaic.version = 11 : i64} {
  func.func @_mlp_kernel(%arg0: i32, %arg1: memref<8x12288xf32, #tpu.memory_space<vmem>>, %arg2: memref<12288x64xbf16, #tpu.memory_space<vmem>>, %arg3: memref<1x64xf32, #tpu.memory_space<vmem>>, %arg4: memref<64x64xf32, #tpu.memory_space<vmem>>, %arg5: memref<1x64xf32, #tpu.memory_space<vmem>>, %arg6: memref<64x16xf32, #tpu.memory_space<vmem>>, %arg7: memref<1x16xf32, #tpu.memory_space<vmem>>, %arg8: memref<1x16xf32, #tpu.memory_space<vmem>>, %arg9: memref<1x1xf32, #tpu.memory_space<vmem>>, %arg10: memref<1x1x8xf32, #tpu.memory_space<vmem>>) attributes {dimension_semantics = [#tpu.dimension_semantics<parallel>], iteration_bounds = array<i64: 1>, scalar_prefetch = 0 : i64, scratch_operands = 0 : i64, tpu.core_type = #tpu.core_type<tc>, window_params = [{transform_indices = @transform_0, window_bounds = array<i64: 8, 12288>}, {pipeline_mode = #tpu.pipeline_mode<synchronous>, transform_indices = @transform_1, window_bounds = array<i64: 12288, 64>}, {pipeline_mode = #tpu.pipeline_mode<synchronous>, transform_indices = @transform_2, window_bounds = array<i64: 1, 64>}, {pipeline_mode = #tpu.pipeline_mode<synchronous>, transform_indices = @transform_3, window_bounds = array<i64: 64, 64>}, {pipeline_mode = #tpu.pipeline_mode<synchronous>, transform_indices = @transform_4, window_bounds = array<i64: 1, 64>}, {pipeline_mode = #tpu.pipeline_mode<synchronous>, transform_indices = @transform_5, window_bounds = array<i64: 64, 16>}, {pipeline_mode = #tpu.pipeline_mode<synchronous>, transform_indices = @transform_6, window_bounds = array<i64: 1, 16>}, {pipeline_mode = #tpu.pipeline_mode<synchronous>, transform_indices = @transform_7, window_bounds = array<i64: 1, 16>}, {pipeline_mode = #tpu.pipeline_mode<synchronous>, transform_indices = @transform_8, window_bounds = array<i64: 1, 1>}, {transform_indices = @transform_9, window_bounds = array<i64: 1, 1, 8>}]} {
    %c0 = arith.constant 0 : index
    %c0_0 = arith.constant 0 : index
    %0 = vector.load %arg1[%c0, %c0_0] : memref<8x12288xf32, #tpu.memory_space<vmem>>, vector<8x12288xf32>
    %1 = arith.truncf %0 : vector<8x12288xf32> to vector<8x12288xbf16>
    %c0_1 = arith.constant 0 : index
    %c0_2 = arith.constant 0 : index
    %2 = vector.load %arg2[%c0_1, %c0_2] : memref<12288x64xbf16, #tpu.memory_space<vmem>>, vector<12288x64xbf16>
    %cst = arith.constant dense<0.000000e+00> : vector<8x64xf32>
    %3 = tpu.matmul %1, %2, %cst {dimension_numbers = #tpu.dot_dimension_numbers<[1], [0], [0], [1], [0, 0, 1, 1], [], []>} : vector<8x12288xbf16>, vector<12288x64xbf16>, vector<8x64xf32> -> vector<8x64xf32>
    %c0_3 = arith.constant 0 : index
    %c0_4 = arith.constant 0 : index
    %4 = vector.load %arg3[%c0_3, %c0_4] : memref<1x64xf32, #tpu.memory_space<vmem>>, vector<1x64xf32>
    %5 = vector.broadcast %4 : vector<1x64xf32> to vector<8x64xf32>
    %6 = arith.addf %3, %5 : vector<8x64xf32>
    %cst_5 = arith.constant 0.000000e+00 : f32
    %7 = vector.broadcast %cst_5 : f32 to vector<8x64xf32>
    %8 = arith.maximumf %6, %7 : vector<8x64xf32>
    %c0_6 = arith.constant 0 : index
    %c0_7 = arith.constant 0 : index
    %9 = vector.load %arg4[%c0_6, %c0_7] : memref<64x64xf32, #tpu.memory_space<vmem>>, vector<64x64xf32>
    %cst_8 = arith.constant dense<0.000000e+00> : vector<8x64xf32>
    %10 = tpu.matmul %8, %9, %cst_8 {dimension_numbers = #tpu.dot_dimension_numbers<[1], [0], [0], [1], [0, 0, 1, 1], [], []>} : vector<8x64xf32>, vector<64x64xf32>, vector<8x64xf32> -> vector<8x64xf32>
    %c0_9 = arith.constant 0 : index
    %c0_10 = arith.constant 0 : index
    %11 = vector.load %arg5[%c0_9, %c0_10] : memref<1x64xf32, #tpu.memory_space<vmem>>, vector<1x64xf32>
    %12 = vector.broadcast %11 : vector<1x64xf32> to vector<8x64xf32>
    %13 = arith.addf %10, %12 : vector<8x64xf32>
    %cst_11 = arith.constant 0.000000e+00 : f32
    %14 = vector.broadcast %cst_11 : f32 to vector<8x64xf32>
    %15 = arith.maximumf %13, %14 : vector<8x64xf32>
    %c0_12 = arith.constant 0 : index
    %c0_13 = arith.constant 0 : index
    %16 = vector.load %arg6[%c0_12, %c0_13] : memref<64x16xf32, #tpu.memory_space<vmem>>, vector<64x16xf32>
    %cst_14 = arith.constant dense<0.000000e+00> : vector<8x16xf32>
    %17 = tpu.matmul %15, %16, %cst_14 {dimension_numbers = #tpu.dot_dimension_numbers<[1], [0], [0], [1], [0, 0, 1, 1], [], []>} : vector<8x64xf32>, vector<64x16xf32>, vector<8x16xf32> -> vector<8x16xf32>
    %c0_15 = arith.constant 0 : index
    %c0_16 = arith.constant 0 : index
    %18 = vector.load %arg7[%c0_15, %c0_16] : memref<1x16xf32, #tpu.memory_space<vmem>>, vector<1x16xf32>
    %19 = vector.broadcast %18 : vector<1x16xf32> to vector<8x16xf32>
    %20 = arith.addf %17, %19 : vector<8x16xf32>
    %cst_17 = arith.constant 0.000000e+00 : f32
    %21 = vector.broadcast %cst_17 : f32 to vector<8x16xf32>
    %22 = arith.maximumf %20, %21 : vector<8x16xf32>
    %c0_18 = arith.constant 0 : index
    %c0_19 = arith.constant 0 : index
    %23 = vector.load %arg8[%c0_18, %c0_19] : memref<1x16xf32, #tpu.memory_space<vmem>>, vector<1x16xf32>
    %24 = vector.broadcast %23 : vector<1x16xf32> to vector<8x16xf32>
    %25 = arith.mulf %22, %24 : vector<8x16xf32>
    %cst_20 = arith.constant dense<0.000000e+00> : vector<8xf32>
    %26 = vector.multi_reduction <add>, %25, %cst_20 [1] : vector<8x16xf32> to vector<8xf32>
    %27 = vector.shape_cast %26 : vector<8xf32> to vector<8x1xf32>
    %c0_21 = arith.constant 0 : index
    %c0_22 = arith.constant 0 : index
    %28 = vector.load %arg9[%c0_21, %c0_22] : memref<1x1xf32, #tpu.memory_space<vmem>>, vector<1x1xf32>
    %29 = vector.broadcast %28 : vector<1x1xf32> to vector<8x1xf32>
    %30 = arith.addf %27, %29 : vector<8x1xf32>
    %31 = arith.negf %30 : vector<8x1xf32>
    %32 = math.exp %31 : vector<8x1xf32>
    %cst_23 = arith.constant 1.000000e+00 : f32
    %33 = vector.broadcast %cst_23 : f32 to vector<8x1xf32>
    %34 = arith.addf %33, %32 : vector<8x1xf32>
    %35 = arith.divf %33, %34 : vector<8x1xf32>
    %36 = tpu.transpose %35, [1, 0] : vector<8x1xf32> -> vector<1x8xf32>
    %37 = vector.shape_cast %36 : vector<1x8xf32> to vector<1x1x8xf32>
    %c0_24 = arith.constant 0 : index
    %c0_25 = arith.constant 0 : index
    %c0_26 = arith.constant 0 : index
    %38 = vector.load %arg10[%c0_24, %c0_25, %c0_26] : memref<1x1x8xf32, #tpu.memory_space<vmem>>, vector<1x1x8xf32>
    tpu.vector_store %arg10[%c0_24, %c0_25, %c0_26], %37 {strides = array<i32>} : memref<1x1x8xf32, #tpu.memory_space<vmem>>, vector<1x1x8xf32>,
    return
  }
  func.func @transform_0(%arg0: i32) -> (i32, i32) {
    %c0_i32 = arith.constant 0 : i32
    %c0_i32_0 = arith.constant 0 : i32
    return %arg0, %c0_i32 : i32, i32
  }
  func.func @transform_1(%arg0: i32) -> (i32, i32) {
    %c0_i32 = arith.constant 0 : i32
    %c0_i32_0 = arith.constant 0 : i32
    %c0_i32_1 = arith.constant 0 : i32
    return %c0_i32, %c0_i32_0 : i32, i32
  }
  func.func @transform_2(%arg0: i32) -> (i32, i32) {
    %c0_i32 = arith.constant 0 : i32
    %c0_i32_0 = arith.constant 0 : i32
    %c0_i32_1 = arith.constant 0 : i32
    return %c0_i32, %c0_i32_0 : i32, i32
  }
  func.func @transform_3(%arg0: i32) -> (i32, i32) {
    %c0_i32 = arith.constant 0 : i32
    %c0_i32_0 = arith.constant 0 : i32
    %c0_i32_1 = arith.constant 0 : i32
    return %c0_i32, %c0_i32_0 : i32, i32
  }
  func.func @transform_4(%arg0: i32) -> (i32, i32) {
    %c0_i32 = arith.constant 0 : i32
    %c0_i32_0 = arith.constant 0 : i32
    %c0_i32_1 = arith.constant 0 : i32
    return %c0_i32, %c0_i32_0 : i32, i32
  }
  func.func @transform_5(%arg0: i32) -> (i32, i32) {
    %c0_i32 = arith.constant 0 : i32
    %c0_i32_0 = arith.constant 0 : i32
    %c0_i32_1 = arith.constant 0 : i32
    return %c0_i32, %c0_i32_0 : i32, i32
  }
  func.func @transform_6(%arg0: i32) -> (i32, i32) {
    %c0_i32 = arith.constant 0 : i32
    %c0_i32_0 = arith.constant 0 : i32
    %c0_i32_1 = arith.constant 0 : i32
    return %c0_i32, %c0_i32_0 : i32, i32
  }
  func.func @transform_7(%arg0: i32) -> (i32, i32) {
    %c0_i32 = arith.constant 0 : i32
    %c0_i32_0 = arith.constant 0 : i32
    %c0_i32_1 = arith.constant 0 : i32
    return %c0_i32, %c0_i32_0 : i32, i32
  }
  func.func @transform_8(%arg0: i32) -> (i32, i32) {
    %c0_i32 = arith.constant 0 : i32
    %c0_i32_0 = arith.constant 0 : i32
    %c0_i32_1 = arith.constant 0 : i32
    return %c0_i32, %c0_i32_0 : i32, i32
  }
  func.func @transform_9(%arg0: i32) -> (i32, i32, i32) {
    %c0_i32 = arith.constant 0 : i32
    %c0_i32_0 = arith.constant 0 : i32
    %c0_i32_1 = arith.constant 0 : i32
    return %arg0, %c0_i32, %c0_i32_0 : i32, i32, i32
  }
}

</mosaic_0001>

<llo_original>
// kernel: tpu_custom_call.1
$region0: #{tpu_custom_call.1}
  #allocation0 [shape = 'u32[]', space=smem, size = 0x4, offset = 0x4, fixed_abs, tag = 'smem constant byte address 0x4 - core index']
  #allocation1 [shape = 'u32[144,128]{1,0:T(1,128)}', space=vmem, size = 0x12000, scoped, tag = 'internal scratch']
  #allocation2 [shape = 'f32[1,1]{1,0:T(1,128)S(1)}', space=vmem, size = 0x200, scoped, tag = 'scoped memory for tpu_custom_call.1']
  %s0 = inlined_call_operand.vmem [shape: f32[8,12288], index: 0, kind: input, shape index: {}]
  %s1 = inlined_call_operand.vmem [shape: bf16[12288,64], index: 1, kind: input, shape index: {}]
  %s2 = inlined_call_operand.vmem [shape: f32[1,64], index: 2, kind: input, shape index: {}]
  %s3 = inlined_call_operand.vmem [shape: f32[64,64], index: 3, kind: input, shape index: {}]
  %s4 = inlined_call_operand.vmem [shape: f32[1,64], index: 4, kind: input, shape index: {}]
  %s5 = inlined_call_operand.vmem [shape: f32[64,16], index: 5, kind: input, shape index: {}]
  %s6 = inlined_call_operand.vmem [shape: f32[1,16], index: 6, kind: input, shape index: {}]
  %s7 = inlined_call_operand.vmem [shape: f32[1,16], index: 7, kind: input, shape index: {}]
  %s8 = inlined_call_operand.<no memory space> [shape: f32[1,1], index: 8, kind: input, shape index: {}]
  %s9 = inlined_call_operand.hbm [shape: f32[1,1,8], index: 9, kind: output, shape index: {}]
  %s10 = sld [smem:[#allocation0]]
  $region46: #{tpu_custom_call.1} parent=0
    _
  %s12 = ssub.s32 1, %s10
  %s13 = scalar_select 0, %s12, %s10
  %v14 = vstv %s8
  %15 = vst [vmem:[#allocation2] sm:$0x1] %v14
  $region1: #{tpu_custom_call.1} parent=0
    #allocation3 [shape = 'u8[512]{0}', space=vmem, size = 0x400, scoped, tag = 'output window, operand 0, single buffered']
    #allocation4 [shape = 's32[1]{0}', space=sflag, size = 0x4, scoped, tag = 'scoped memory for tpu_custom_call.1']
    %16 = vsyncpa [#allocation4], 0
    // Predicated region
    $region2: #{tpu_custom_call.1} parent=1 // pred_check
      _
    $region3: #{tpu_custom_call.1} parent=1 // pred_check_branch
      %18 = sbr.rel (0) target = $region5
    $region4: #{tpu_custom_call.1} parent=1 // pred_region
      _
    $region5: #{tpu_custom_call.1} parent=1 // pred_fallthru
      _
    // Predicated region
    $region6: #{tpu_custom_call.1} parent=1 // pred_check
      _
    $region7: #{tpu_custom_call.1} parent=1 // pred_check_branch
      %20 = sbr.rel (0) target = $region9
    $region8: #{tpu_custom_call.1} parent=1 // pred_region
      _
    $region9: #{tpu_custom_call.1} parent=1 // pred_fallthru
      _
    // Predicated region
    $region10: #{tpu_custom_call.1} parent=1 // pred_check
      _
    $region11: #{tpu_custom_call.1} parent=1 // pred_check_branch
      %22 = sbr.rel (0) target = $region13
    $region12: #{tpu_custom_call.1} parent=1 // pred_region
      _
    $region13: #{tpu_custom_call.1} parent=1 // pred_fallthru
      _
    // Predicated region
    $region14: #{tpu_custom_call.1} parent=1 // pred_check
      _
    $region15: #{tpu_custom_call.1} parent=1 // pred_check_branch
      %24 = sbr.rel (0) target = $region17
    $region16: #{tpu_custom_call.1} parent=1 // pred_region
      _
    $region17: #{tpu_custom_call.1} parent=1 // pred_fallthru
      _
    // Predicated region
    $region18: #{tpu_custom_call.1} parent=1 // pred_check
      _
    $region19: #{tpu_custom_call.1} parent=1 // pred_check_branch
      %26 = sbr.rel (0) target = $region21
    $region20: #{tpu_custom_call.1} parent=1 // pred_region
      _
    $region21: #{tpu_custom_call.1} parent=1 // pred_fallthru
      _
    // Predicated region
    $region22: #{tpu_custom_call.1} parent=1 // pred_check
      _
    $region23: #{tpu_custom_call.1} parent=1 // pred_check_branch
      %28 = sbr.rel (0) target = $region25
    $region24: #{tpu_custom_call.1} parent=1 // pred_region
      _
    $region25: #{tpu_custom_call.1} parent=1 // pred_fallthru
      _
    // Predicated region
    $region26: #{tpu_custom_call.1} parent=1 // pred_check
      _
    $region27: #{tpu_custom_call.1} parent=1 // pred_check_branch
      %30 = sbr.rel (0) target = $region29
    $region28: #{tpu_custom_call.1} parent=1 // pred_region
      _
    $region29: #{tpu_custom_call.1} parent=1 // pred_fallthru
      _
    // Predicated region
    $region30: #{tpu_custom_call.1} parent=1 // pred_check
      _
    $region31: #{tpu_custom_call.1} parent=1 // pred_check_branch
      %32 = sbr.rel (0) target = $region33
    $region32: #{tpu_custom_call.1} parent=1 // pred_region
      _
    $region33: #{tpu_custom_call.1} parent=1 // pred_fallthru
      _
    // Predicated region
    $region34: #{tpu_custom_call.1} parent=1 // pred_check
      _
    $region35: #{tpu_custom_call.1} parent=1 // pred_check_branch
      %34 = sbr.rel (0) target = $region37
    $region36: #{tpu_custom_call.1} parent=1 // pred_region
      _
    $region37: #{tpu_custom_call.1} parent=1 // pred_fallthru
      _
    %v36 = vld [vmem:[%s0] sm:$0xff]
    %v37 = vld [vmem:[%s0 + $0x8] sm:$0xff]
    %v38 = vld [vmem:[%s0 + $0x10] sm:$0xff]
    %v39 = vld [vmem:[%s0 + $0x18] sm:$0xff]
    %v40 = vld [vmem:[%s0 + $0x20] sm:$0xff]
    %v41 = vld [vmem:[%s0 + $0x28] sm:$0xff]
    %v42 = vld [vmem:[%s0 + $0x30] sm:$0xff]
    %v43 = vld [vmem:[%s0 + $0x38] sm:$0xff]
    %v44 = vld [vmem:[%s0 + $0x40] sm:$0xff]
    %v45 = vld [vmem:[%s0 + $0x48] sm:$0xff]
    %v46 = vld [vmem:[%s0 + $0x50] sm:$0xff]
    %v47 = vld [vmem:[%s0 + $0x58] sm:$0xff]
    %v48 = vld [vmem:[%s0 + $0x60] sm:$0xff]
    %v49 = vld [vmem:[%s0 + $0x68] sm:$0xff]
    %v50 = vld [vmem:[%s0 + $0x70] sm:$0xff]
    %v51 = vld [vmem:[%s0 + $0x78] sm:$0xff]
    %v52 = vld [vmem:[%s0 + $0x80] sm:$0xff]
    %v53 = vld [vmem:[%s0 + $0x88] sm:$0xff]
    %v54 = vld [vmem:[%s0 + $0x90] sm:$0xff]
    %v55 = vld [vmem:[%s0 + $0x98] sm:$0xff]
    %v56 = vld [vmem:[%s0 + $0xa0] sm:$0xff]
    %v57 = vld [vmem:[%s0 + $0xa8] sm:$0xff]
    %v58 = vld [vmem:[%s0 + $0xb0] sm:$0xff]
    %v59 = vld [vmem:[%s0 + $0xb8] sm:$0xff]
    %v60 = vld [vmem:[%s0 + $0xc0] sm:$0xff]
    %v61 = vld [vmem:[%s0 + $0xc8] sm:$0xff]
    %v62 = vld [vmem:[%s0 + $0xd0] sm:$0xff]
    %v63 = vld [vmem:[%s0 + $0xd8] sm:$0xff]
    %v64 = vld [vmem:[%s0 + $0xe0] sm:$0xff]
    %v65 = vld [vmem:[%s0 + $0xe8] sm:$0xff]
    %v66 = vld [vmem:[%s0 + $0xf0] sm:$0xff]
    %v67 = vld [vmem:[%s0 + $0xf8] sm:$0xff]
    %v68 = vld [vmem:[%s0 + $0x100] sm:$0xff]
    %v69 = vld [vmem:[%s0 + $0x108] sm:$0xff]
    %v70 = vld [vmem:[%s0 + $0x110] sm:$0xff]
    %v71 = vld [vmem:[%s0 + $0x118] sm:$0xff]
    %v72 = vld [vmem:[%s0 + $0x120] sm:$0xff]
    %v73 = vld [vmem:[%s0 + $0x128] sm:$0xff]
    %v74 = vld [vmem:[%s0 + $0x130] sm:$0xff]
    %v75 = vld [vmem:[%s0 + $0x138] sm:$0xff]
    %v76 = vld [vmem:[%s0 + $0x140] sm:$0xff]
    %v77 = vld [vmem:[%s0 + $0x148] sm:$0xff]
    %v78 = vld [vmem:[%s0 + $0x150] sm:$0xff]
    %v79 = vld [vmem:[%s0 + $0x158] sm:$0xff]
    %v80 = vld [vmem:[%s0 + $0x160] sm:$0xff]
    %v81 = vld [vmem:[%s0 + $0x168] sm:$0xff]
    %v82 = vld [vmem:[%s0 + $0x170] sm:$0xff]
    %v83 = vld [vmem:[%s0 + $0x178] sm:$0xff]
    %v84 = vld [vmem:[%s0 + $0x180] sm:$0xff]
    %v85 = vld [vmem:[%s0 + $0x188] sm:$0xff]
    %v86 = vld [vmem:[%s0 + $0x190] sm:$0xff]
    %v87 = vld [vmem:[%s0 + $0x198] sm:$0xff]
    %v88 = vld [vmem:[%s0 + $0x1a0] sm:$0xff]
    %v89 = vld [vmem:[%s0 + $0x1a8] sm:$0xff]
    %v90 = vld [vmem:[%s0 + $0x1b0] sm:$0xff]
    %v91 = vld [vmem:[%s0 + $0x1b8] sm:$0xff]
    %v92 = vld [vmem:[%s0 + $0x1c0] sm:$0xff]
    %v93 = vld [vmem:[%s0 + $0x1c8] sm:$0xff]
    %v94 = vld [vmem:[%s0 + $0x1d0] sm:$0xff]
    %v95 = vld [vmem:[%s0 + $0x1d8] sm:$0xff]
    %v96 = vld [vmem:[%s0 + $0x1e0] sm:$0xff]
    %v97 = vld [vmem:[%s0 + $0x1e8] sm:$0xff]
    %v98 = vld [vmem:[%s0 + $0x1f0] sm:$0xff]
    %v99 = vld [vmem:[%s0 + $0x1f8] sm:$0xff]
    %v100 = vld [vmem:[%s0 + $0x200] sm:$0xff]
    %v101 = vld [vmem:[%s0 + $0x208] sm:$0xff]
    %v102 = vld [vmem:[%s0 + $0x210] sm:$0xff]
    %v103 = vld [vmem:[%s0 + $0x218] sm:$0xff]
    %v104 = vld [vmem:[%s0 + $0x220] sm:$0xff]
    %v105 = vld [vmem:[%s0 + $0x228] sm:$0xff]
    %v106 = vld [vmem:[%s0 + $0x230] sm:$0xff]
    %v107 = vld [vmem:[%s0 + $0x238] sm:$0xff]
    %v108 = vld [vmem:[%s0 + $0x240] sm:$0xff]
    %v109 = vld [vmem:[%s0 + $0x248] sm:$0xff]
    %v110 = vld [vmem:[%s0 + $0x250] sm:$0xff]
    %v111 = vld [vmem:[%s0 + $0x258] sm:$0xff]
    %v112 = vld [vmem:[%s0 + $0x260] sm:$0xff]
    %v113 = vld [vmem:[%s0 + $0x268] sm:$0xff]
    %v114 = vld [vmem:[%s0 + $0x270] sm:$0xff]
    %v115 = vld [vmem:[%s0 + $0x278] sm:$0xff]
    %v116 = vld [vmem:[%s0 + $0x280] sm:$0xff]
    %v117 = vld [vmem:[%s0 + $0x288] sm:$0xff]
    %v118 = vld [vmem:[%s0 + $0x290] sm:$0xff]
    %v119 = vld [vmem:[%s0 + $0x298] sm:$0xff]
    %v120 = vld [vmem:[%s0 + $0x2a0] sm:$0xff]
    %v121 = vld [vmem:[%s0 + $0x2a8] sm:$0xff]
    %v122 = vld [vmem:[%s0 + $0x2b0] sm:$0xff]
    %v123 = vld [vmem:[%s0 + $0x2b8] sm:$0xff]
    %v124 = vld [vmem:[%s0 + $0x2c0] sm:$0xff]
    %v125 = vld [vmem:[%s0 + $0x2c8] sm:$0xff]
    %v126 = vld [vmem:[%s0 + $0x2d0] sm:$0xff]
    %v127 = vld [vmem:[%s0 + $0x2d8] sm:$0xff]
    %v128 = vld [vmem:[%s0 + $0x2e0] sm:$0xff]
    %v129 = vld [vmem:[%s0 + $0x2e8] sm:$0xff]
    %v130 = vld [vmem:[%s0 + $0x2f0] sm:$0xff]
    %v131 = vld [vmem:[%s0 + $0x2f8] sm:$0xff]
    %v132 = vpack.c.bf16 %v36, %v36
    %v133 = vpack.c.bf16 %v37, %v37
    %v134 = vpack.c.bf16 %v38, %v38
    %v135 = vpack.c.bf16 %v39, %v39
    %v136 = vpack.c.bf16 %v40, %v40
    %v137 = vpack.c.bf16 %v41, %v41
    %v138 = vpack.c.bf16 %v42, %v42
    %v139 = vpack.c.bf16 %v43, %v43
    %v140 = vpack.c.bf16 %v44, %v44
    %v141 = vpack.c.bf16 %v45, %v45
    %v142 = vpack.c.bf16 %v46, %v46
    %v143 = vpack.c.bf16 %v47, %v47
    %v144 = vpack.c.bf16 %v48, %v48
    %v145 = vpack.c.bf16 %v49, %v49
    %v146 = vpack.c.bf16 %v50, %v50
    %v147 = vpack.c.bf16 %v51, %v51
    %v148 = vpack.c.bf16 %v52, %v52
    %v149 = vpack.c.bf16 %v53, %v53
    %v150 = vpack.c.bf16 %v54, %v54
    %v151 = vpack.c.bf16 %v55, %v55
    %v152 = vpack.c.bf16 %v56, %v56
    %v153 = vpack.c.bf16 %v57, %v57
    %v154 = vpack.c.bf16 %v58, %v58
    %v155 = vpack.c.bf16 %v59, %v59
    %v156 = vpack.c.bf16 %v60, %v60
    %v157 = vpack.c.bf16 %v61, %v61
    %v158 = vpack.c.bf16 %v62, %v62
    %v159 = vpack.c.bf16 %v63, %v63
    %v160 = vpack.c.bf16 %v64, %v64
    %v161 = vpack.c.bf16 %v65, %v65
    %v162 = vpack.c.bf16 %v66, %v66
    %v163 = vpack.c.bf16 %v67, %v67
    %v164 = vpack.c.bf16 %v68, %v68
    %v165 = vpack.c.bf16 %v69, %v69
    %v166 = vpack.c.bf16 %v70, %v70
    %v167 = vpack.c.bf16 %v71, %v71
    %v168 = vpack.c.bf16 %v72, %v72
    %v169 = vpack.c.bf16 %v73, %v73
    %v170 = vpack.c.bf16 %v74, %v74
    %v171 = vpack.c.bf16 %v75, %v75
    %v172 = vpack.c.bf16 %v76, %v76
    %v173 = vpack.c.bf16 %v77, %v77
    %v174 = vpack.c.bf16 %v78, %v78
    %v175 = vpack.c.bf16 %v79, %v79
    %v176 = vpack.c.bf16 %v80, %v80
    %v177 = vpack.c.bf16 %v81, %v81
    %v178 = vpack.c.bf16 %v82, %v82
    %v179 = vpack.c.bf16 %v83, %v83
    %v180 = vpack.c.bf16 %v84, %v84
    %v181 = vpack.c.bf16 %v85, %v85
    %v182 = vpack.c.bf16 %v86, %v86
    %v183 = vpack.c.bf16 %v87, %v87
    %v184 = vpack.c.bf16 %v88, %v88
    %v185 = vpack.c.bf16 %v89, %v89
    %v186 = vpack.c.bf16 %v90, %v90
    %v187 = vpack.c.bf16 %v91, %v91
    %v188 = vpack.c.bf16 %v92, %v92
    %v189 = vpack.c.bf16 %v93, %v93
    %v190 = vpack.c.bf16 %v94, %v94
    %v191 = vpack.c.bf16 %v95, %v95
    %v192 = vpack.c.bf16 %v96, %v96
    %v193 = vpack.c.bf16 %v97, %v97
    %v194 = vpack.c.bf16 %v98, %v98
    %v195 = vpack.c.bf16 %v99, %v99
    %v196 = vpack.c.bf16 %v100, %v100
    %v197 = vpack.c.bf16 %v101, %v101
    %v198 = vpack.c.bf16 %v102, %v102
    %v199 = vpack.c.bf16 %v103, %v103
    %v200 = vpack.c.bf16 %v104, %v104
    %v201 = vpack.c.bf16 %v105, %v105
    %v202 = vpack.c.bf16 %v106, %v106
    %v203 = vpack.c.bf16 %v107, %v107
    %v204 = vpack.c.bf16 %v108, %v108
    %v205 = vpack.c.bf16 %v109, %v109
    %v206 = vpack.c.bf16 %v110, %v110
    %v207 = vpack.c.bf16 %v111, %v111
    %v208 = vpack.c.bf16 %v112, %v112
    %v209 = vpack.c.bf16 %v113, %v113
    %v210 = vpack.c.bf16 %v114, %v114
    %v211 = vpack.c.bf16 %v115, %v115
    %v212 = vpack.c.bf16 %v116, %v116
    %v213 = vpack.c.bf16 %v117, %v117
    %v214 = vpack.c.bf16 %v118, %v118
    %v215 = vpack.c.bf16 %v119, %v119
    %v216 = vpack.c.bf16 %v120, %v120
    %v217 = vpack.c.bf16 %v121, %v121
    %v218 = vpack.c.bf16 %v122, %v122
    %v219 = vpack.c.bf16 %v123, %v123
    %v220 = vpack.c.bf16 %v124, %v124
    %v221 = vpack.c.bf16 %v125, %v125
    %v222 = vpack.c.bf16 %v126, %v126
    %v223 = vpack.c.bf16 %v127, %v127
    %v224 = vpack.c.bf16 %v128, %v128
    %v225 = vpack.c.bf16 %v129, %v129
    %v226 = vpack.c.bf16 %v130, %v130
    %v227 = vpack.c.bf16 %v131, %v131
    %v228 = vld [vmem:[%s1] sm:$0xf]
    %v229 = vld [vmem:[%s1 + $0x4] sm:$0xf]
    %v230 = vld [vmem:[%s1 + $0x8] sm:$0xf]
    %v231 = vld [vmem:[%s1 + $0xc] sm:$0xf]
    %v232 = vld [vmem:[%s1 + $0x10] sm:$0xf]
    %v233 = vld [vmem:[%s1 + $0x14] sm:$0xf]
    %v234 = vld [vmem:[%s1 + $0x18] sm:$0xf]
    %v235 = vld [vmem:[%s1 + $0x1c] sm:$0xf]
    %v236 = vld [vmem:[%s1 + $0x20] sm:$0xf]
    %v237 = vld [vmem:[%s1 + $0x24] sm:$0xf]
    %v238 = vld [vmem:[%s1 + $0x28] sm:$0xf]
    %v239 = vld [vmem:[%s1 + $0x2c] sm:$0xf]
    %v240 = vld [vmem:[%s1 + $0x30] sm:$0xf]
    %v241 = vld [vmem:[%s1 + $0x34] sm:$0xf]
    %v242 = vld [vmem:[%s1 + $0x38] sm:$0xf]
    %v243 = vld [vmem:[%s1 + $0x3c] sm:$0xf]
    %v244 = vld [vmem:[%s1 + $0x40] sm:$0xf]
    %v245 = vld [vmem:[%s1 + $0x44] sm:$0xf]
    %v246 = vld [vmem:[%s1 + $0x48] sm:$0xf]
    %v247 = vld [vmem:[%s1 + $0x4c] sm:$0xf]
    %v248 = vld [vmem:[%s1 + $0x50] sm:$0xf]
    %v249 = vld [vmem:[%s1 + $0x54] sm:$0xf]
    %v250 = vld [vmem:[%s1 + $0x58] sm:$0xf]
    %v251 = vld [vmem:[%s1 + $0x5c] sm:$0xf]
    %v252 = vld [vmem:[%s1 + $0x60] sm:$0xf]
    %v253 = vld [vmem:[%s1 + $0x64] sm:$0xf]
    %v254 = vld [vmem:[%s1 + $0x68] sm:$0xf]
    %v255 = vld [vmem:[%s1 + $0x6c] sm:$0xf]
    %v256 = vld [vmem:[%s1 + $0x70] sm:$0xf]
    %v257 = vld [vmem:[%s1 + $0x74] sm:$0xf]
    %v258 = vld [vmem:[%s1 + $0x78] sm:$0xf]
    %v259 = vld [vmem:[%s1 + $0x7c] sm:$0xf]
    %v260 = vld [vmem:[%s1 + $0x80] sm:$0xf]
    %v261 = vld [vmem:[%s1 + $0x84] sm:$0xf]
    %v262 = vld [vmem:[%s1 + $0x88] sm:$0xf]
    %v263 = vld [vmem:[%s1 + $0x8c] sm:$0xf]
    %v264 = vld [vmem:[%s1 + $0x90] sm:$0xf]
    %v265 = vld [vmem:[%s1 + $0x94] sm:$0xf]
    %v266 = vld [vmem:[%s1 + $0x98] sm:$0xf]
    %v267 = vld [vmem:[%s1 + $0x9c] sm:$0xf]
    %v268 = vld [vmem:[%s1 + $0xa0] sm:$0xf]
    %v269 = vld [vmem:[%s1 + $0xa4] sm:$0xf]
    %v270 = vld [vmem:[%s1 + $0xa8] sm:$0xf]
    %v271 = vld [vmem:[%s1 + $0xac] sm:$0xf]
    %v272 = vld [vmem:[%s1 + $0xb0] sm:$0xf]
    %v273 = vld [vmem:[%s1 + $0xb4] sm:$0xf]
    %v274 = vld [vmem:[%s1 + $0xb8] sm:$0xf]
    %v275 = vld [vmem:[%s1 + $0xbc] sm:$0xf]
    %v276 = vld [vmem:[%s1 + $0xc0] sm:$0xf]
    %v277 = vld [vmem:[%s1 + $0xc4] sm:$0xf]
    %v278 = vld [vmem:[%s1 + $0xc8] sm:$0xf]
    %v279 = vld [vmem:[%s1 + $0xcc] sm:$0xf]
    %v280 = vld [vmem:[%s1 + $0xd0] sm:$0xf]
    %v281 = vld [vmem:[%s1 + $0xd4] sm:$0xf]
    %v282 = vld [vmem:[%s1 + $0xd8] sm:$0xf]
    %v283 = vld [vmem:[%s1 + $0xdc] sm:$0xf]
    %v284 = vld [vmem:[%s1 + $0xe0] sm:$0xf]
    %v285 = vld [vmem:[%s1 + $0xe4] sm:$0xf]
    %v286 = vld [vmem:[%s1 + $0xe8] sm:$0xf]
    %v287 = vld [vmem:[%s1 + $0xec] sm:$0xf]
    %v288 = vld [vmem:[%s1 + $0xf0] sm:$0xf]
    %v289 = vld [vmem:[%s1 + $0xf4] sm:$0xf]
    %v290 = vld [vmem:[%s1 + $0xf8] sm:$0xf]
    %v291 = vld [vmem:[%s1 + $0xfc] sm:$0xf]
    %v292 = vld [vmem:[%s1 + $0x100] sm:$0xf]
    %v293 = vld [vmem:[%s1 + $0x104] sm:$0xf]
    %v294 = vld [vmem:[%s1 + $0x108] sm:$0xf]
    %v295 = vld [vmem:[%s1 + $0x10c] sm:$0xf]
    %v296 = vld [vmem:[%s1 + $0x110] sm:$0xf]
    %v297 = vld [vmem:[%s1 + $0x114] sm:$0xf]
    %v298 = vld [vmem:[%s1 + $0x118] sm:$0xf]
    %v299 = vld [vmem:[%s1 + $0x11c] sm:$0xf]
    %v300 = vld [vmem:[%s1 + $0x120] sm:$0xf]
    %v301 = vld [vmem:[%s1 + $0x124] sm:$0xf]
    %v302 = vld [vmem:[%s1 + $0x128] sm:$0xf]
    %v303 = vld [vmem:[%s1 + $0x12c] sm:$0xf]
    %v304 = vld [vmem:[%s1 + $0x130] sm:$0xf]
    %v305 = vld [vmem:[%s1 + $0x134] sm:$0xf]
    %v306 = vld [vmem:[%s1 + $0x138] sm:$0xf]
    %v307 = vld [vmem:[%s1 + $0x13c] sm:$0xf]
    %v308 = vld [vmem:[%s1 + $0x140] sm:$0xf]
    %v309 = vld [vmem:[%s1 + $0x144] sm:$0xf]
    %v310 = vld [vmem:[%s1 + $0x148] sm:$0xf]
    %v311 = vld [vmem:[%s1 + $0x14c] sm:$0xf]
    %v312 = vld [vmem:[%s1 + $0x150] sm:$0xf]
    %v313 = vld [vmem:[%s1 + $0x154] sm:$0xf]
    %v314 = vld [vmem:[%s1 + $0x158] sm:$0xf]
    %v315 = vld [vmem:[%s1 + $0x15c] sm:$0xf]
    %v316 = vld [vmem:[%s1 + $0x160] sm:$0xf]
    %v317 = vld [vmem:[%s1 + $0x164] sm:$0xf]
    %v318 = vld [vmem:[%s1 + $0x168] sm:$0xf]
    %v319 = vld [vmem:[%s1 + $0x16c] sm:$0xf]
    %v320 = vld [vmem:[%s1 + $0x170] sm:$0xf]
    %v321 = vld [vmem:[%s1 + $0x174] sm:$0xf]
    %v322 = vld [vmem:[%s1 + $0x178] sm:$0xf]
    %v323 = vld [vmem:[%s1 + $0x17c] sm:$0xf]
    %v324 = vld [vmem:[%s1 + $0x180] sm:$0xf]
    %v325 = vld [vmem:[%s1 + $0x184] sm:$0xf]
    %v326 = vld [vmem:[%s1 + $0x188] sm:$0xf]
    %v327 = vld [vmem:[%s1 + $0x18c] sm:$0xf]
    %v328 = vld [vmem:[%s1 + $0x190] sm:$0xf]
    %v329 = vld [vmem:[%s1 + $0x194] sm:$0xf]
    %v330 = vld [vmem:[%s1 + $0x198] sm:$0xf]
    %v331 = vld [vmem:[%s1 + $0x19c] sm:$0xf]
    %v332 = vld [vmem:[%s1 + $0x1a0] sm:$0xf]
    %v333 = vld [vmem:[%s1 + $0x1a4] sm:$0xf]
    %v334 = vld [vmem:[%s1 + $0x1a8] sm:$0xf]
    %v335 = vld [vmem:[%s1 + $0x1ac] sm:$0xf]
    %v336 = vld [vmem:[%s1 + $0x1b0] sm:$0xf]
    %v337 = vld [vmem:[%s1 + $0x1b4] sm:$0xf]
    %v338 = vld [vmem:[%s1 + $0x1b8] sm:$0xf]
    %v339 = vld [vmem:[%s1 + $0x1bc] sm:$0xf]
    %v340 = vld [vmem:[%s1 + $0x1c0] sm:$0xf]
    %v341 = vld [vmem:[%s1 + $0x1c4] sm:$0xf]
    %v342 = vld [vmem:[%s1 + $0x1c8] sm:$0xf]
    %v343 = vld [vmem:[%s1 + $0x1cc] sm:$0xf]
    %v344 = vld [vmem:[%s1 + $0x1d0] sm:$0xf]
    %v345 = vld [vmem:[%s1 + $0x1d4] sm:$0xf]
    %v346 = vld [vmem:[%s1 + $0x1d8] sm:$0xf]
    %v347 = vld [vmem:[%s1 + $0x1dc] sm:$0xf]
    %v348 = vld [vmem:[%s1 + $0x1e0] sm:$0xf]
    %v349 = vld [vmem:[%s1 + $0x1e4] sm:$0xf]
    %v350 = vld [vmem:[%s1 + $0x1e8] sm:$0xf]
    %v351 = vld [vmem:[%s1 + $0x1ec] sm:$0xf]
    %v352 = vld [vmem:[%s1 + $0x1f0] sm:$0xf]
    %v353 = vld [vmem:[%s1 + $0x1f4] sm:$0xf]
    %v354 = vld [vmem:[%s1 + $0x1f8] sm:$0xf]
    %v355 = vld [vmem:[%s1 + $0x1fc] sm:$0xf]
    %v356 = vld [vmem:[%s1 + $0x200] sm:$0xf]
    %v357 = vld [vmem:[%s1 + $0x204] sm:$0xf]
    %v358 = vld [vmem:[%s1 + $0x208] sm:$0xf]
    %v359 = vld [vmem:[%s1 + $0x20c] sm:$0xf]
    %v360 = vld [vmem:[%s1 + $0x210] sm:$0xf]
    %v361 = vld [vmem:[%s1 + $0x214] sm:$0xf]
    %v362 = vld [vmem:[%s1 + $0x218] sm:$0xf]
    %v363 = vld [vmem:[%s1 + $0x21c] sm:$0xf]
    %v364 = vld [vmem:[%s1 + $0x220] sm:$0xf]
    %v365 = vld [vmem:[%s1 + $0x224] sm:$0xf]
    %v366 = vld [vmem:[%s1 + $0x228] sm:$0xf]
    %v367 = vld [vmem:[%s1 + $0x22c] sm:$0xf]
    %v368 = vld [vmem:[%s1 + $0x230] sm:$0xf]
    %v369 = vld [vmem:[%s1 + $0x234] sm:$0xf]
    %v370 = vld [vmem:[%s1 + $0x238] sm:$0xf]
    %v371 = vld [vmem:[%s1 + $0x23c] sm:$0xf]
    %v372 = vld [vmem:[%s1 + $0x240] sm:$0xf]
    %v373 = vld [vmem:[%s1 + $0x244] sm:$0xf]
    %v374 = vld [vmem:[%s1 + $0x248] sm:$0xf]
    %v375 = vld [vmem:[%s1 + $0x24c] sm:$0xf]
    %v376 = vld [vmem:[%s1 + $0x250] sm:$0xf]
    %v377 = vld [vmem:[%s1 + $0x254] sm:$0xf]
    %v378 = vld [vmem:[%s1 + $0x258] sm:$0xf]
    %v379 = vld [vmem:[%s1 + $0x25c] sm:$0xf]
    %v380 = vld [vmem:[%s1 + $0x260] sm:$0xf]
    %v381 = vld [vmem:[%s1 + $0x264] sm:$0xf]
    %v382 = vld [vmem:[%s1 + $0x268] sm:$0xf]
    %v383 = vld [vmem:[%s1 + $0x26c] sm:$0xf]
    %v384 = vld [vmem:[%s1 + $0x270] sm:$0xf]
    %v385 = vld [vmem:[%s1 + $0x274] sm:$0xf]
    %v386 = vld [vmem:[%s1 + $0x278] sm:$0xf]
    %v387 = vld [vmem:[%s1 + $0x27c] sm:$0xf]
    %v388 = vld [vmem:[%s1 + $0x280] sm:$0xf]
    %v389 = vld [vmem:[%s1 + $0x284] sm:$0xf]
    %v390 = vld [vmem:[%s1 + $0x288] sm:$0xf]
    %v391 = vld [vmem:[%s1 + $0x28c] sm:$0xf]
    %v392 = vld [vmem:[%s1 + $0x290] sm:$0xf]
    %v393 = vld [vmem:[%s1 + $0x294] sm:$0xf]
    %v394 = vld [vmem:[%s1 + $0x298] sm:$0xf]
    %v395 = vld [vmem:[%s1 + $0x29c] sm:$0xf]
    %v396 = vld [vmem:[%s1 + $0x2a0] sm:$0xf]
    %v397 = vld [vmem:[%s1 + $0x2a4] sm:$0xf]
    %v398 = vld [vmem:[%s1 + $0x2a8] sm:$0xf]
    %v399 = vld [vmem:[%s1 + $0x2ac] sm:$0xf]
    %v400 = vld [vmem:[%s1 + $0x2b0] sm:$0xf]
    %v401 = vld [vmem:[%s1 + $0x2b4] sm:$0xf]
    %v402 = vld [vmem:[%s1 + $0x2b8] sm:$0xf]
    %v403 = vld [vmem:[%s1 + $0x2bc] sm:$0xf]
    %v404 = vld [vmem:[%s1 + $0x2c0] sm:$0xf]
    %v405 = vld [vmem:[%s1 + $0x2c4] sm:$0xf]
    %v406 = vld [vmem:[%s1 + $0x2c8] sm:$0xf]
    %v407 = vld [vmem:[%s1 + $0x2cc] sm:$0xf]
    %v408 = vld [vmem:[%s1 + $0x2d0] sm:$0xf]
    %v409 = vld [vmem:[%s1 + $0x2d4] sm:$0xf]
    %v410 = vld [vmem:[%s1 + $0x2d8] sm:$0xf]
    %v411 = vld [vmem:[%s1 + $0x2dc] sm:$0xf]
    %v412 = vld [vmem:[%s1 + $0x2e0] sm:$0xf]
    %v413 = vld [vmem:[%s1 + $0x2e4] sm:$0xf]
    %v414 = vld [vmem:[%s1 + $0x2e8] sm:$0xf]
    %v415 = vld [vmem:[%s1 + $0x2ec] sm:$0xf]
    %v416 = vld [vmem:[%s1 + $0x2f0] sm:$0xf]
    %v417 = vld [vmem:[%s1 + $0x2f4] sm:$0xf]
    %v418 = vld [vmem:[%s1 + $0x2f8] sm:$0xf]
    %v419 = vld [vmem:[%s1 + $0x2fc] sm:$0xf]
    %v420 = vld [vmem:[%s1 + $0x300] sm:$0xf]
    %v421 = vld [vmem:[%s1 + $0x304] sm:$0xf]
    %v422 = vld [vmem:[%s1 + $0x308] sm:$0xf]
    %v423 = vld [vmem:[%s1 + $0x30c] sm:$0xf]
    %v424 = vld [vmem:[%s1 + $0x310] sm:$0xf]
    %v425 = vld [vmem:[%s1 + $0x314] sm:$0xf]
    %v426 = vld [vmem:[%s1 + $0x318] sm:$0xf]
    %v427 = vld [vmem:[%s1 + $0x31c] sm:$0xf]
    %v428 = vld [vmem:[%s1 + $0x320] sm:$0xf]
    %v429 = vld [vmem:[%s1 + $0x324] sm:$0xf]
    %v430 = vld [vmem:[%s1 + $0x328] sm:$0xf]
    %v431 = vld [vmem:[%s1 + $0x32c] sm:$0xf]
    %v432 = vld [vmem:[%s1 + $0x330] sm:$0xf]
    %v433 = vld [vmem:[%s1 + $0x334] sm:$0xf]
    %v434 = vld [vmem:[%s1 + $0x338] sm:$0xf]
    %v435 = vld [vmem:[%s1 + $0x33c] sm:$0xf]
    %v436 = vld [vmem:[%s1 + $0x340] sm:$0xf]
    %v437 = vld [vmem:[%s1 + $0x344] sm:$0xf]
    %v438 = vld [vmem:[%s1 + $0x348] sm:$0xf]
    %v439 = vld [vmem:[%s1 + $0x34c] sm:$0xf]
    %v440 = vld [vmem:[%s1 + $0x350] sm:$0xf]
    %v441 = vld [vmem:[%s1 + $0x354] sm:$0xf]
    %v442 = vld [vmem:[%s1 + $0x358] sm:$0xf]
    %v443 = vld [vmem:[%s1 + $0x35c] sm:$0xf]
    %v444 = vld [vmem:[%s1 + $0x360] sm:$0xf]
    %v445 = vld [vmem:[%s1 + $0x364] sm:$0xf]
    %v446 = vld [vmem:[%s1 + $0x368] sm:$0xf]
    %v447 = vld [vmem:[%s1 + $0x36c] sm:$0xf]
    %v448 = vld [vmem:[%s1 + $0x370] sm:$0xf]
    %v449 = vld [vmem:[%s1 + $0x374] sm:$0xf]
    %v450 = vld [vmem:[%s1 + $0x378] sm:$0xf]
    %v451 = vld [vmem:[%s1 + $0x37c] sm:$0xf]
    %v452 = vld [vmem:[%s1 + $0x380] sm:$0xf]
    %v453 = vld [vmem:[%s1 + $0x384] sm:$0xf]
    %v454 = vld [vmem:[%s1 + $0x388] sm:$0xf]
    %v455 = vld [vmem:[%s1 + $0x38c] sm:$0xf]
    %v456 = vld [vmem:[%s1 + $0x390] sm:$0xf]
    %v457 = vld [vmem:[%s1 + $0x394] sm:$0xf]
    %v458 = vld [vmem:[%s1 + $0x398] sm:$0xf]
    %v459 = vld [vmem:[%s1 + $0x39c] sm:$0xf]
    %v460 = vld [vmem:[%s1 + $0x3a0] sm:$0xf]
    %v461 = vld [vmem:[%s1 + $0x3a4] sm:$0xf]
    %v462 = vld [vmem:[%s1 + $0x3a8] sm:$0xf]
    %v463 = vld [vmem:[%s1 + $0x3ac] sm:$0xf]
    %v464 = vld [vmem:[%s1 + $0x3b0] sm:$0xf]
    %v465 = vld [vmem:[%s1 + $0x3b4] sm:$0xf]
    %v466 = vld [vmem:[%s1 + $0x3b8] sm:$0xf]
    %v467 = vld [vmem:[%s1 + $0x3bc] sm:$0xf]
    %v468 = vld [vmem:[%s1 + $0x3c0] sm:$0xf]
    %v469 = vld [vmem:[%s1 + $0x3c4] sm:$0xf]
    %v470 = vld [vmem:[%s1 + $0x3c8] sm:$0xf]
    %v471 = vld [vmem:[%s1 + $0x3cc] sm:$0xf]
    %v472 = vld [vmem:[%s1 + $0x3d0] sm:$0xf]
    %v473 = vld [vmem:[%s1 + $0x3d4] sm:$0xf]
    %v474 = vld [vmem:[%s1 + $0x3d8] sm:$0xf]
    %v475 = vld [vmem:[%s1 + $0x3dc] sm:$0xf]
    %v476 = vld [vmem:[%s1 + $0x3e0] sm:$0xf]
    %v477 = vld [vmem:[%s1 + $0x3e4] sm:$0xf]
    %v478 = vld [vmem:[%s1 + $0x3e8] sm:$0xf]
    %v479 = vld [vmem:[%s1 + $0x3ec] sm:$0xf]
    %v480 = vld [vmem:[%s1 + $0x3f0] sm:$0xf]
    %v481 = vld [vmem:[%s1 + $0x3f4] sm:$0xf]
    %v482 = vld [vmem:[%s1 + $0x3f8] sm:$0xf]
    %v483 = vld [vmem:[%s1 + $0x3fc] sm:$0xf]
    %v484 = vld [vmem:[%s1 + $0x400] sm:$0xf]
    %v485 = vld [vmem:[%s1 + $0x404] sm:$0xf]
    %v486 = vld [vmem:[%s1 + $0x408] sm:$0xf]
    %v487 = vld [vmem:[%s1 + $0x40c] sm:$0xf]
    %v488 = vld [vmem:[%s1 + $0x410] sm:$0xf]
    %v489 = vld [vmem:[%s1 + $0x414] sm:$0xf]
    %v490 = vld [vmem:[%s1 + $0x418] sm:$0xf]
    %v491 = vld [vmem:[%s1 + $0x41c] sm:$0xf]
    %v492 = vld [vmem:[%s1 + $0x420] sm:$0xf]
    %v493 = vld [vmem:[%s1 + $0x424] sm:$0xf]
    %v494 = vld [vmem:[%s1 + $0x428] sm:$0xf]
    %v495 = vld [vmem:[%s1 + $0x42c] sm:$0xf]
    %v496 = vld [vmem:[%s1 + $0x430] sm:$0xf]
    %v497 = vld [vmem:[%s1 + $0x434] sm:$0xf]
    %v498 = vld [vmem:[%s1 + $0x438] sm:$0xf]
    %v499 = vld [vmem:[%s1 + $0x43c] sm:$0xf]
    %v500 = vld [vmem:[%s1 + $0x440] sm:$0xf]
    %v501 = vld [vmem:[%s1 + $0x444] sm:$0xf]
    %v502 = vld [vmem:[%s1 + $0x448] sm:$0xf]
    %v503 = vld [vmem:[%s1 + $0x44c] sm:$0xf]
    %v504 = vld [vmem:[%s1 + $0x450] sm:$0xf]
    %v505 = vld [vmem:[%s1 + $0x454] sm:$0xf]
    %v506 = vld [vmem:[%s1 + $0x458] sm:$0xf]
    %v507 = vld [vmem:[%s1 + $0x45c] sm:$0xf]
    %v508 = vld [vmem:[%s1 + $0x460] sm:$0xf]
    %v509 = vld [vmem:[%s1 + $0x464] sm:$0xf]
    %v510 = vld [vmem:[%s1 + $0x468] sm:$0xf]
    %v511 = vld [vmem:[%s1 + $0x46c] sm:$0xf]
    %v512 = vld [vmem:[%s1 + $0x470] sm:$0xf]
    %v513 = vld [vmem:[%s1 + $0x474] sm:$0xf]
    %v514 = vld [vmem:[%s1 + $0x478] sm:$0xf]
    %v515 = vld [vmem:[%s1 + $0x47c] sm:$0xf]
    %v516 = vld [vmem:[%s1 + $0x480] sm:$0xf]
    %v517 = vld [vmem:[%s1 + $0x484] sm:$0xf]
    %v518 = vld [vmem:[%s1 + $0x488] sm:$0xf]
    %v519 = vld [vmem:[%s1 + $0x48c] sm:$0xf]
    %v520 = vld [vmem:[%s1 + $0x490] sm:$0xf]
    %v521 = vld [vmem:[%s1 + $0x494] sm:$0xf]
    %v522 = vld [vmem:[%s1 + $0x498] sm:$0xf]
    %v523 = vld [vmem:[%s1 + $0x49c] sm:$0xf]
    %v524 = vld [vmem:[%s1 + $0x4a0] sm:$0xf]
    %v525 = vld [vmem:[%s1 + $0x4a4] sm:$0xf]
    %v526 = vld [vmem:[%s1 + $0x4a8] sm:$0xf]
    %v527 = vld [vmem:[%s1 + $0x4ac] sm:$0xf]
    %v528 = vld [vmem:[%s1 + $0x4b0] sm:$0xf]
    %v529 = vld [vmem:[%s1 + $0x4b4] sm:$0xf]
    %v530 = vld [vmem:[%s1 + $0x4b8] sm:$0xf]
    %v531 = vld [vmem:[%s1 + $0x4bc] sm:$0xf]
    %v532 = vld [vmem:[%s1 + $0x4c0] sm:$0xf]
    %v533 = vld [vmem:[%s1 + $0x4c4] sm:$0xf]
    %v534 = vld [vmem:[%s1 + $0x4c8] sm:$0xf]
    %v535 = vld [vmem:[%s1 + $0x4cc] sm:$0xf]
    %v536 = vld [vmem:[%s1 + $0x4d0] sm:$0xf]
    %v537 = vld [vmem:[%s1 + $0x4d4] sm:$0xf]
    %v538 = vld [vmem:[%s1 + $0x4d8] sm:$0xf]
    %v539 = vld [vmem:[%s1 + $0x4dc] sm:$0xf]
    %v540 = vld [vmem:[%s1 + $0x4e0] sm:$0xf]
    %v541 = vld [vmem:[%s1 + $0x4e4] sm:$0xf]
    %v542 = vld [vmem:[%s1 + $0x4e8] sm:$0xf]
    %v543 = vld [vmem:[%s1 + $0x4ec] sm:$0xf]
    %v544 = vld [vmem:[%s1 + $0x4f0] sm:$0xf]
    %v545 = vld [vmem:[%s1 + $0x4f4] sm:$0xf]
    %v546 = vld [vmem:[%s1 + $0x4f8] sm:$0xf]
    %v547 = vld [vmem:[%s1 + $0x4fc] sm:$0xf]
    %v548 = vld [vmem:[%s1 + $0x500] sm:$0xf]
    %v549 = vld [vmem:[%s1 + $0x504] sm:$0xf]
    %v550 = vld [vmem:[%s1 + $0x508] sm:$0xf]
    %v551 = vld [vmem:[%s1 + $0x50c] sm:$0xf]
    %v552 = vld [vmem:[%s1 + $0x510] sm:$0xf]
    %v553 = vld [vmem:[%s1 + $0x514] sm:$0xf]
    %v554 = vld [vmem:[%s1 + $0x518] sm:$0xf]
    %v555 = vld [vmem:[%s1 + $0x51c] sm:$0xf]
    %v556 = vld [vmem:[%s1 + $0x520] sm:$0xf]
    %v557 = vld [vmem:[%s1 + $0x524] sm:$0xf]
    %v558 = vld [vmem:[%s1 + $0x528] sm:$0xf]
    %v559 = vld [vmem:[%s1 + $0x52c] sm:$0xf]
    %v560 = vld [vmem:[%s1 + $0x530] sm:$0xf]
    %v561 = vld [vmem:[%s1 + $0x534] sm:$0xf]
    %v562 = vld [vmem:[%s1 + $0x538] sm:$0xf]
    %v563 = vld [vmem:[%s1 + $0x53c] sm:$0xf]
    %v564 = vld [vmem:[%s1 + $0x540] sm:$0xf]
    %v565 = vld [vmem:[%s1 + $0x544] sm:$0xf]
    %v566 = vld [vmem:[%s1 + $0x548] sm:$0xf]
    %v567 = vld [vmem:[%s1 + $0x54c] sm:$0xf]
    %v568 = vld [vmem:[%s1 + $0x550] sm:$0xf]
    %v569 = vld [vmem:[%s1 + $0x554] sm:$0xf]
    %v570 = vld [vmem:[%s1 + $0x558] sm:$0xf]
    %v571 = vld [vmem:[%s1 + $0x55c] sm:$0xf]
    %v572 = vld [vmem:[%s1 + $0x560] sm:$0xf]
    %v573 = vld [vmem:[%s1 + $0x564] sm:$0xf]
    %v574 = vld [vmem:[%s1 + $0x568] sm:$0xf]
    %v575 = vld [vmem:[%s1 + $0x56c] sm:$0xf]
    %v576 = vld [vmem:[%s1 + $0x570] sm:$0xf]
    %v577 = vld [vmem:[%s1 + $0x574] sm:$0xf]
    %v578 = vld [vmem:[%s1 + $0x578] sm:$0xf]
    %v579 = vld [vmem:[%s1 + $0x57c] sm:$0xf]
    %v580 = vld [vmem:[%s1 + $0x580] sm:$0xf]
    %v581 = vld [vmem:[%s1 + $0x584] sm:$0xf]
    %v582 = vld [vmem:[%s1 + $0x588] sm:$0xf]
    %v583 = vld [vmem:[%s1 + $0x58c] sm:$0xf]
    %v584 = vld [vmem:[%s1 + $0x590] sm:$0xf]
    %v585 = vld [vmem:[%s1 + $0x594] sm:$0xf]
    %v586 = vld [vmem:[%s1 + $0x598] sm:$0xf]
    %v587 = vld [vmem:[%s1 + $0x59c] sm:$0xf]
    %v588 = vld [vmem:[%s1 + $0x5a0] sm:$0xf]
    %v589 = vld [vmem:[%s1 + $0x5a4] sm:$0xf]
    %v590 = vld [vmem:[%s1 + $0x5a8] sm:$0xf]
    %v591 = vld [vmem:[%s1 + $0x5ac] sm:$0xf]
    %v592 = vld [vmem:[%s1 + $0x5b0] sm:$0xf]
    %v593 = vld [vmem:[%s1 + $0x5b4] sm:$0xf]
    %v594 = vld [vmem:[%s1 + $0x5b8] sm:$0xf]
    %v595 = vld [vmem:[%s1 + $0x5bc] sm:$0xf]
    %v596 = vld [vmem:[%s1 + $0x5c0] sm:$0xf]
    %v597 = vld [vmem:[%s1 + $0x5c4] sm:$0xf]
    %v598 = vld [vmem:[%s1 + $0x5c8] sm:$0xf]
    %v599 = vld [vmem:[%s1 + $0x5cc] sm:$0xf]
    %v600 = vld [vmem:[%s1 + $0x5d0] sm:$0xf]
    %v601 = vld [vmem:[%s1 + $0x5d4] sm:$0xf]
    %v602 = vld [vmem:[%s1 + $0x5d8] sm:$0xf]
    %v603 = vld [vmem:[%s1 + $0x5dc] sm:$0xf]
    %v604 = vld [vmem:[%s1 + $0x5e0] sm:$0xf]
    %v605 = vld [vmem:[%s1 + $0x5e4] sm:$0xf]
    %v606 = vld [vmem:[%s1 + $0x5e8] sm:$0xf]
    %v607 = vld [vmem:[%s1 + $0x5ec] sm:$0xf]
    %v608 = vld [vmem:[%s1 + $0x5f0] sm:$0xf]
    %v609 = vld [vmem:[%s1 + $0x5f4] sm:$0xf]
    %v610 = vld [vmem:[%s1 + $0x5f8] sm:$0xf]
    %v611 = vld [vmem:[%s1 + $0x5fc] sm:$0xf]
    %v612 = vld [vmem:[%s1 + $0x600] sm:$0xf]
    %v613 = vld [vmem:[%s1 + $0x604] sm:$0xf]
    %v614 = vld [vmem:[%s1 + $0x608] sm:$0xf]
    %v615 = vld [vmem:[%s1 + $0x60c] sm:$0xf]
    %v616 = vld [vmem:[%s1 + $0x610] sm:$0xf]
    %v617 = vld [vmem:[%s1 + $0x614] sm:$0xf]
    %v618 = vld [vmem:[%s1 + $0x618] sm:$0xf]
    %v619 = vld [vmem:[%s1 + $0x61c] sm:$0xf]
    %v620 = vld [vmem:[%s1 + $0x620] sm:$0xf]
    %v621 = vld [vmem:[%s1 + $0x624] sm:$0xf]
    %v622 = vld [vmem:[%s1 + $0x628] sm:$0xf]
    %v623 = vld [vmem:[%s1 + $0x62c] sm:$0xf]
    %v624 = vld [vmem:[%s1 + $0x630] sm:$0xf]
    %v625 = vld [vmem:[%s1 + $0x634] sm:$0xf]
    %v626 = vld [vmem:[%s1 + $0x638] sm:$0xf]
    %v627 = vld [vmem:[%s1 + $0x63c] sm:$0xf]
    %v628 = vld [vmem:[%s1 + $0x640] sm:$0xf]
    %v629 = vld [vmem:[%s1 + $0x644] sm:$0xf]
    %v630 = vld [vmem:[%s1 + $0x648] sm:$0xf]
    %v631 = vld [vmem:[%s1 + $0x64c] sm:$0xf]
    %v632 = vld [vmem:[%s1 + $0x650] sm:$0xf]
    %v633 = vld [vmem:[%s1 + $0x654] sm:$0xf]
    %v634 = vld [vmem:[%s1 + $0x658] sm:$0xf]
    %v635 = vld [vmem:[%s1 + $0x65c] sm:$0xf]
    %v636 = vld [vmem:[%s1 + $0x660] sm:$0xf]
    %v637 = vld [vmem:[%s1 + $0x664] sm:$0xf]
    %v638 = vld [vmem:[%s1 + $0x668] sm:$0xf]
    %v639 = vld [vmem:[%s1 + $0x66c] sm:$0xf]
    %v640 = vld [vmem:[%s1 + $0x670] sm:$0xf]
    %v641 = vld [vmem:[%s1 + $0x674] sm:$0xf]
    %v642 = vld [vmem:[%s1 + $0x678] sm:$0xf]
    %v643 = vld [vmem:[%s1 + $0x67c] sm:$0xf]
    %v644 = vld [vmem:[%s1 + $0x680] sm:$0xf]
    %v645 = vld [vmem:[%s1 + $0x684] sm:$0xf]
    %v646 = vld [vmem:[%s1 + $0x688] sm:$0xf]
    %v647 = vld [vmem:[%s1 + $0x68c] sm:$0xf]
    %v648 = vld [vmem:[%s1 + $0x690] sm:$0xf]
    %v649 = vld [vmem:[%s1 + $0x694] sm:$0xf]
    %v650 = vld [vmem:[%s1 + $0x698] sm:$0xf]
    %v651 = vld [vmem:[%s1 + $0x69c] sm:$0xf]
    %v652 = vld [vmem:[%s1 + $0x6a0] sm:$0xf]
    %v653 = vld [vmem:[%s1 + $0x6a4] sm:$0xf]
    %v654 = vld [vmem:[%s1 + $0x6a8] sm:$0xf]
    %v655 = vld [vmem:[%s1 + $0x6ac] sm:$0xf]
    %v656 = vld [vmem:[%s1 + $0x6b0] sm:$0xf]
    %v657 = vld [vmem:[%s1 + $0x6b4] sm:$0xf]
    %v658 = vld [vmem:[%s1 + $0x6b8] sm:$0xf]
    %v659 = vld [vmem:[%s1 + $0x6bc] sm:$0xf]
    %v660 = vld [vmem:[%s1 + $0x6c0] sm:$0xf]
    %v661 = vld [vmem:[%s1 + $0x6c4] sm:$0xf]
    %v662 = vld [vmem:[%s1 + $0x6c8] sm:$0xf]
    %v663 = vld [vmem:[%s1 + $0x6cc] sm:$0xf]
    %v664 = vld [vmem:[%s1 + $0x6d0] sm:$0xf]
    %v665 = vld [vmem:[%s1 + $0x6d4] sm:$0xf]
    %v666 = vld [vmem:[%s1 + $0x6d8] sm:$0xf]
    %v667 = vld [vmem:[%s1 + $0x6dc] sm:$0xf]
    %v668 = vld [vmem:[%s1 + $0x6e0] sm:$0xf]
    %v669 = vld [vmem:[%s1 + $0x6e4] sm:$0xf]
    %v670 = vld [vmem:[%s1 + $0x6e8] sm:$0xf]
    %v671 = vld [vmem:[%s1 + $0x6ec] sm:$0xf]
    %v672 = vld [vmem:[%s1 + $0x6f0] sm:$0xf]
    %v673 = vld [vmem:[%s1 + $0x6f4] sm:$0xf]
    %v674 = vld [vmem:[%s1 + $0x6f8] sm:$0xf]
    %v675 = vld [vmem:[%s1 + $0x6fc] sm:$0xf]
    %v676 = vld [vmem:[%s1 + $0x700] sm:$0xf]
    %v677 = vld [vmem:[%s1 + $0x704] sm:$0xf]
    %v678 = vld [vmem:[%s1 + $0x708] sm:$0xf]
    %v679 = vld [vmem:[%s1 + $0x70c] sm:$0xf]
    %v680 = vld [vmem:[%s1 + $0x710] sm:$0xf]
    %v681 = vld [vmem:[%s1 + $0x714] sm:$0xf]
    %v682 = vld [vmem:[%s1 + $0x718] sm:$0xf]
    %v683 = vld [vmem:[%s1 + $0x71c] sm:$0xf]
    %v684 = vld [vmem:[%s1 + $0x720] sm:$0xf]
    %v685 = vld [vmem:[%s1 + $0x724] sm:$0xf]
    %v686 = vld [vmem:[%s1 + $0x728] sm:$0xf]
    %v687 = vld [vmem:[%s1 + $0x72c] sm:$0xf]
    %v688 = vld [vmem:[%s1 + $0x730] sm:$0xf]
    %v689 = vld [vmem:[%s1 + $0x734] sm:$0xf]
    %v690 = vld [vmem:[%s1 + $0x738] sm:$0xf]
    %v691 = vld [vmem:[%s1 + $0x73c] sm:$0xf]
    %v692 = vld [vmem:[%s1 + $0x740] sm:$0xf]
    %v693 = vld [vmem:[%s1 + $0x744] sm:$0xf]
    %v694 = vld [vmem:[%s1 + $0x748] sm:$0xf]
    %v695 = vld [vmem:[%s1 + $0x74c] sm:$0xf]
    %v696 = vld [vmem:[%s1 + $0x750] sm:$0xf]
    %v697 = vld [vmem:[%s1 + $0x754] sm:$0xf]
    %v698 = vld [vmem:[%s1 + $0x758] sm:$0xf]
    %v699 = vld [vmem:[%s1 + $0x75c] sm:$0xf]
    %v700 = vld [vmem:[%s1 + $0x760] sm:$0xf]
    %v701 = vld [vmem:[%s1 + $0x764] sm:$0xf]
    %v702 = vld [vmem:[%s1 + $0x768] sm:$0xf]
    %v703 = vld [vmem:[%s1 + $0x76c] sm:$0xf]
    %v704 = vld [vmem:[%s1 + $0x770] sm:$0xf]
    %v705 = vld [vmem:[%s1 + $0x774] sm:$0xf]
    %v706 = vld [vmem:[%s1 + $0x778] sm:$0xf]
    %v707 = vld [vmem:[%s1 + $0x77c] sm:$0xf]
    %v708 = vld [vmem:[%s1 + $0x780] sm:$0xf]
    %v709 = vld [vmem:[%s1 + $0x784] sm:$0xf]
    %v710 = vld [vmem:[%s1 + $0x788] sm:$0xf]
    %v711 = vld [vmem:[%s1 + $0x78c] sm:$0xf]
    %v712 = vld [vmem:[%s1 + $0x790] sm:$0xf]
    %v713 = vld [vmem:[%s1 + $0x794] sm:$0xf]
    %v714 = vld [vmem:[%s1 + $0x798] sm:$0xf]
    %v715 = vld [vmem:[%s1 + $0x79c] sm:$0xf]
    %v716 = vld [vmem:[%s1 + $0x7a0] sm:$0xf]
    %v717 = vld [vmem:[%s1 + $0x7a4] sm:$0xf]
    %v718 = vld [vmem:[%s1 + $0x7a8] sm:$0xf]
    %v719 = vld [vmem:[%s1 + $0x7ac] sm:$0xf]
    %v720 = vld [vmem:[%s1 + $0x7b0] sm:$0xf]
    %v721 = vld [vmem:[%s1 + $0x7b4] sm:$0xf]
    %v722 = vld [vmem:[%s1 + $0x7b8] sm:$0xf]
    %v723 = vld [vmem:[%s1 + $0x7bc] sm:$0xf]
    %v724 = vld [vmem:[%s1 + $0x7c0] sm:$0xf]
    %v725 = vld [vmem:[%s1 + $0x7c4] sm:$0xf]
    %v726 = vld [vmem:[%s1 + $0x7c8] sm:$0xf]
    %v727 = vld [vmem:[%s1 + $0x7cc] sm:$0xf]
    %v728 = vld [vmem:[%s1 + $0x7d0] sm:$0xf]
    %v729 = vld [vmem:[%s1 + $0x7d4] sm:$0xf]
    %v730 = vld [vmem:[%s1 + $0x7d8] sm:$0xf]
    %v731 = vld [vmem:[%s1 + $0x7dc] sm:$0xf]
    %v732 = vld [vmem:[%s1 + $0x7e0] sm:$0xf]
    %v733 = vld [vmem:[%s1 + $0x7e4] sm:$0xf]
    %v734 = vld [vmem:[%s1 + $0x7e8] sm:$0xf]
    %v735 = vld [vmem:[%s1 + $0x7ec] sm:$0xf]
    %v736 = vld [vmem:[%s1 + $0x7f0] sm:$0xf]
    %v737 = vld [vmem:[%s1 + $0x7f4] sm:$0xf]
    %v738 = vld [vmem:[%s1 + $0x7f8] sm:$0xf]
    %v739 = vld [vmem:[%s1 + $0x7fc] sm:$0xf]
    %v740 = vld [vmem:[%s1 + $0x800] sm:$0xf]
    %v741 = vld [vmem:[%s1 + $0x804] sm:$0xf]
    %v742 = vld [vmem:[%s1 + $0x808] sm:$0xf]
    %v743 = vld [vmem:[%s1 + $0x80c] sm:$0xf]
    %v744 = vld [vmem:[%s1 + $0x810] sm:$0xf]
    %v745 = vld [vmem:[%s1 + $0x814] sm:$0xf]
    %v746 = vld [vmem:[%s1 + $0x818] sm:$0xf]
    %v747 = vld [vmem:[%s1 + $0x81c] sm:$0xf]
    %v748 = vld [vmem:[%s1 + $0x820] sm:$0xf]
    %v749 = vld [vmem:[%s1 + $0x824] sm:$0xf]
    %v750 = vld [vmem:[%s1 + $0x828] sm:$0xf]
    %v751 = vld [vmem:[%s1 + $0x82c] sm:$0xf]
    %v752 = vld [vmem:[%s1 + $0x830] sm:$0xf]
    %v753 = vld [vmem:[%s1 + $0x834] sm:$0xf]
    %v754 = vld [vmem:[%s1 + $0x838] sm:$0xf]
    %v755 = vld [vmem:[%s1 + $0x83c] sm:$0xf]
    %v756 = vld [vmem:[%s1 + $0x840] sm:$0xf]
    %v757 = vld [vmem:[%s1 + $0x844] sm:$0xf]
    %v758 = vld [vmem:[%s1 + $0x848] sm:$0xf]
    %v759 = vld [vmem:[%s1 + $0x84c] sm:$0xf]
    %v760 = vld [vmem:[%s1 + $0x850] sm:$0xf]
    %v761 = vld [vmem:[%s1 + $0x854] sm:$0xf]
    %v762 = vld [vmem:[%s1 + $0x858] sm:$0xf]
    %v763 = vld [vmem:[%s1 + $0x85c] sm:$0xf]
    %v764 = vld [vmem:[%s1 + $0x860] sm:$0xf]
    %v765 = vld [vmem:[%s1 + $0x864] sm:$0xf]
    %v766 = vld [vmem:[%s1 + $0x868] sm:$0xf]
    %v767 = vld [vmem:[%s1 + $0x86c] sm:$0xf]
    %v768 = vld [vmem:[%s1 + $0x870] sm:$0xf]
    %v769 = vld [vmem:[%s1 + $0x874] sm:$0xf]
    %v770 = vld [vmem:[%s1 + $0x878] sm:$0xf]
    %v771 = vld [vmem:[%s1 + $0x87c] sm:$0xf]
    %v772 = vld [vmem:[%s1 + $0x880] sm:$0xf]
    %v773 = vld [vmem:[%s1 + $0x884] sm:$0xf]
    %v774 = vld [vmem:[%s1 + $0x888] sm:$0xf]
    %v775 = vld [vmem:[%s1 + $0x88c] sm:$0xf]
    %v776 = vld [vmem:[%s1 + $0x890] sm:$0xf]
    %v777 = vld [vmem:[%s1 + $0x894] sm:$0xf]
    %v778 = vld [vmem:[%s1 + $0x898] sm:$0xf]
    %v779 = vld [vmem:[%s1 + $0x89c] sm:$0xf]
    %v780 = vld [vmem:[%s1 + $0x8a0] sm:$0xf]
    %v781 = vld [vmem:[%s1 + $0x8a4] sm:$0xf]
    %v782 = vld [vmem:[%s1 + $0x8a8] sm:$0xf]
    %v783 = vld [vmem:[%s1 + $0x8ac] sm:$0xf]
    %v784 = vld [vmem:[%s1 + $0x8b0] sm:$0xf]
    %v785 = vld [vmem:[%s1 + $0x8b4] sm:$0xf]
    %v786 = vld [vmem:[%s1 + $0x8b8] sm:$0xf]
    %v787 = vld [vmem:[%s1 + $0x8bc] sm:$0xf]
    %v788 = vld [vmem:[%s1 + $0x8c0] sm:$0xf]
    %v789 = vld [vmem:[%s1 + $0x8c4] sm:$0xf]
    %v790 = vld [vmem:[%s1 + $0x8c8] sm:$0xf]
    %v791 = vld [vmem:[%s1 + $0x8cc] sm:$0xf]
    %v792 = vld [vmem:[%s1 + $0x8d0] sm:$0xf]
    %v793 = vld [vmem:[%s1 + $0x8d4] sm:$0xf]
    %v794 = vld [vmem:[%s1 + $0x8d8] sm:$0xf]
    %v795 = vld [vmem:[%s1 + $0x8dc] sm:$0xf]
    %v796 = vld [vmem:[%s1 + $0x8e0] sm:$0xf]
    %v797 = vld [vmem:[%s1 + $0x8e4] sm:$0xf]
    %v798 = vld [vmem:[%s1 + $0x8e8] sm:$0xf]
    %v799 = vld [vmem:[%s1 + $0x8ec] sm:$0xf]
    %v800 = vld [vmem:[%s1 + $0x8f0] sm:$0xf]
    %v801 = vld [vmem:[%s1 + $0x8f4] sm:$0xf]
    %v802 = vld [vmem:[%s1 + $0x8f8] sm:$0xf]
    %v803 = vld [vmem:[%s1 + $0x8fc] sm:$0xf]
    %v804 = vld [vmem:[%s1 + $0x900] sm:$0xf]
    %v805 = vld [vmem:[%s1 + $0x904] sm:$0xf]
    %v806 = vld [vmem:[%s1 + $0x908] sm:$0xf]
    %v807 = vld [vmem:[%s1 + $0x90c] sm:$0xf]
    %v808 = vld [vmem:[%s1 + $0x910] sm:$0xf]
    %v809 = vld [vmem:[%s1 + $0x914] sm:$0xf]
    %v810 = vld [vmem:[%s1 + $0x918] sm:$0xf]
    %v811 = vld [vmem:[%s1 + $0x91c] sm:$0xf]
    %v812 = vld [vmem:[%s1 + $0x920] sm:$0xf]
    %v813 = vld [vmem:[%s1 + $0x924] sm:$0xf]
    %v814 = vld [vmem:[%s1 + $0x928] sm:$0xf]
    %v815 = vld [vmem:[%s1 + $0x92c] sm:$0xf]
    %v816 = vld [vmem:[%s1 + $0x930] sm:$0xf]
    %v817 = vld [vmem:[%s1 + $0x934] sm:$0xf]
    %v818 = vld [vmem:[%s1 + $0x938] sm:$0xf]
    %v819 = vld [vmem:[%s1 + $0x93c] sm:$0xf]
    %v820 = vld [vmem:[%s1 + $0x940] sm:$0xf]
    %v821 = vld [vmem:[%s1 + $0x944] sm:$0xf]
    %v822 = vld [vmem:[%s1 + $0x948] sm:$0xf]
    %v823 = vld [vmem:[%s1 + $0x94c] sm:$0xf]
    %v824 = vld [vmem:[%s1 + $0x950] sm:$0xf]
    %v825 = vld [vmem:[%s1 + $0x954] sm:$0xf]
    %v826 = vld [vmem:[%s1 + $0x958] sm:$0xf]
    %v827 = vld [vmem:[%s1 + $0x95c] sm:$0xf]
    %v828 = vld [vmem:[%s1 + $0x960] sm:$0xf]
    %v829 = vld [vmem:[%s1 + $0x964] sm:$0xf]
    %v830 = vld [vmem:[%s1 + $0x968] sm:$0xf]
    %v831 = vld [vmem:[%s1 + $0x96c] sm:$0xf]
    %v832 = vld [vmem:[%s1 + $0x970] sm:$0xf]
    %v833 = vld [vmem:[%s1 + $0x974] sm:$0xf]
    %v834 = vld [vmem:[%s1 + $0x978] sm:$0xf]
    %v835 = vld [vmem:[%s1 + $0x97c] sm:$0xf]
    %v836 = vld [vmem:[%s1 + $0x980] sm:$0xf]
    %v837 = vld [vmem:[%s1 + $0x984] sm:$0xf]
    %v838 = vld [vmem:[%s1 + $0x988] sm:$0xf]
    %v839 = vld [vmem:[%s1 + $0x98c] sm:$0xf]
    %v840 = vld [vmem:[%s1 + $0x990] sm:$0xf]
    %v841 = vld [vmem:[%s1 + $0x994] sm:$0xf]
    %v842 = vld [vmem:[%s1 + $0x998] sm:$0xf]
    %v843 = vld [vmem:[%s1 + $0x99c] sm:$0xf]
    %v844 = vld [vmem:[%s1 + $0x9a0] sm:$0xf]
    %v845 = vld [vmem:[%s1 + $0x9a4] sm:$0xf]
    %v846 = vld [vmem:[%s1 + $0x9a8] sm:$0xf]
    %v847 = vld [vmem:[%s1 + $0x9ac] sm:$0xf]
    %v848 = vld [vmem:[%s1 + $0x9b0] sm:$0xf]
    %v849 = vld [vmem:[%s1 + $0x9b4] sm:$0xf]
    %v850 = vld [vmem:[%s1 + $0x9b8] sm:$0xf]
    %v851 = vld [vmem:[%s1 + $0x9bc] sm:$0xf]
    %v852 = vld [vmem:[%s1 + $0x9c0] sm:$0xf]
    %v853 = vld [vmem:[%s1 + $0x9c4] sm:$0xf]
    %v854 = vld [vmem:[%s1 + $0x9c8] sm:$0xf]
    %v855 = vld [vmem:[%s1 + $0x9cc] sm:$0xf]
    %v856 = vld [vmem:[%s1 + $0x9d0] sm:$0xf]
    %v857 = vld [vmem:[%s1 + $0x9d4] sm:$0xf]
    %v858 = vld [vmem:[%s1 + $0x9d8] sm:$0xf]
    %v859 = vld [vmem:[%s1 + $0x9dc] sm:$0xf]
    %v860 = vld [vmem:[%s1 + $0x9e0] sm:$0xf]
    %v861 = vld [vmem:[%s1 + $0x9e4] sm:$0xf]
    %v862 = vld [vmem:[%s1 + $0x9e8] sm:$0xf]
    %v863 = vld [vmem:[%s1 + $0x9ec] sm:$0xf]
    %v864 = vld [vmem:[%s1 + $0x9f0] sm:$0xf]
    %v865 = vld [vmem:[%s1 + $0x9f4] sm:$0xf]
    %v866 = vld [vmem:[%s1 + $0x9f8] sm:$0xf]
    %v867 = vld [vmem:[%s1 + $0x9fc] sm:$0xf]
    %v868 = vld [vmem:[%s1 + $0xa00] sm:$0xf]
    %v869 = vld [vmem:[%s1 + $0xa04] sm:$0xf]
    %v870 = vld [vmem:[%s1 + $0xa08] sm:$0xf]
    %v871 = vld [vmem:[%s1 + $0xa0c] sm:$0xf]
    %v872 = vld [vmem:[%s1 + $0xa10] sm:$0xf]
    %v873 = vld [vmem:[%s1 + $0xa14] sm:$0xf]
    %v874 = vld [vmem:[%s1 + $0xa18] sm:$0xf]
    %v875 = vld [vmem:[%s1 + $0xa1c] sm:$0xf]
    %v876 = vld [vmem:[%s1 + $0xa20] sm:$0xf]
    %v877 = vld [vmem:[%s1 + $0xa24] sm:$0xf]
    %v878 = vld [vmem:[%s1 + $0xa28] sm:$0xf]
    %v879 = vld [vmem:[%s1 + $0xa2c] sm:$0xf]
    %v880 = vld [vmem:[%s1 + $0xa30] sm:$0xf]
    %v881 = vld [vmem:[%s1 + $0xa34] sm:$0xf]
    %v882 = vld [vmem:[%s1 + $0xa38] sm:$0xf]
    %v883 = vld [vmem:[%s1 + $0xa3c] sm:$0xf]
    %v884 = vld [vmem:[%s1 + $0xa40] sm:$0xf]
    %v885 = vld [vmem:[%s1 + $0xa44] sm:$0xf]
    %v886 = vld [vmem:[%s1 + $0xa48] sm:$0xf]
    %v887 = vld [vmem:[%s1 + $0xa4c] sm:$0xf]
    %v888 = vld [vmem:[%s1 + $0xa50] sm:$0xf]
    %v889 = vld [vmem:[%s1 + $0xa54] sm:$0xf]
    %v890 = vld [vmem:[%s1 + $0xa58] sm:$0xf]
    %v891 = vld [vmem:[%s1 + $0xa5c] sm:$0xf]
    %v892 = vld [vmem:[%s1 + $0xa60] sm:$0xf]
    %v893 = vld [vmem:[%s1 + $0xa64] sm:$0xf]
    %v894 = vld [vmem:[%s1 + $0xa68] sm:$0xf]
    %v895 = vld [vmem:[%s1 + $0xa6c] sm:$0xf]
    %v896 = vld [vmem:[%s1 + $0xa70] sm:$0xf]
    %v897 = vld [vmem:[%s1 + $0xa74] sm:$0xf]
    %v898 = vld [vmem:[%s1 + $0xa78] sm:$0xf]
    %v899 = vld [vmem:[%s1 + $0xa7c] sm:$0xf]
    %v900 = vld [vmem:[%s1 + $0xa80] sm:$0xf]
    %v901 = vld [vmem:[%s1 + $0xa84] sm:$0xf]
    %v902 = vld [vmem:[%s1 + $0xa88] sm:$0xf]
    %v903 = vld [vmem:[%s1 + $0xa8c] sm:$0xf]
    %v904 = vld [vmem:[%s1 + $0xa90] sm:$0xf]
    %v905 = vld [vmem:[%s1 + $0xa94] sm:$0xf]
    %v906 = vld [vmem:[%s1 + $0xa98] sm:$0xf]
    %v907 = vld [vmem:[%s1 + $0xa9c] sm:$0xf]
    %v908 = vld [vmem:[%s1 + $0xaa0] sm:$0xf]
    %v909 = vld [vmem:[%s1 + $0xaa4] sm:$0xf]
    %v910 = vld [vmem:[%s1 + $0xaa8] sm:$0xf]
    %v911 = vld [vmem:[%s1 + $0xaac] sm:$0xf]
    %v912 = vld [vmem:[%s1 + $0xab0] sm:$0xf]
    %v913 = vld [vmem:[%s1 + $0xab4] sm:$0xf]
    %v914 = vld [vmem:[%s1 + $0xab8] sm:$0xf]
    %v915 = vld [vmem:[%s1 + $0xabc] sm:$0xf]
    %v916 = vld [vmem:[%s1 + $0xac0] sm:$0xf]
    %v917 = vld [vmem:[%s1 + $0xac4] sm:$0xf]
    %v918 = vld [vmem:[%s1 + $0xac8] sm:$0xf]
    %v919 = vld [vmem:[%s1 + $0xacc] sm:$0xf]
    %v920 = vld [vmem:[%s1 + $0xad0] sm:$0xf]
    %v921 = vld [vmem:[%s1 + $0xad4] sm:$0xf]
    %v922 = vld [vmem:[%s1 + $0xad8] sm:$0xf]
    %v923 = vld [vmem:[%s1 + $0xadc] sm:$0xf]
    %v924 = vld [vmem:[%s1 + $0xae0] sm:$0xf]
    %v925 = vld [vmem:[%s1 + $0xae4] sm:$0xf]
    %v926 = vld [vmem:[%s1 + $0xae8] sm:$0xf]
    %v927 = vld [vmem:[%s1 + $0xaec] sm:$0xf]
    %v928 = vld [vmem:[%s1 + $0xaf0] sm:$0xf]
    %v929 = vld [vmem:[%s1 + $0xaf4] sm:$0xf]
    %v930 = vld [vmem:[%s1 + $0xaf8] sm:$0xf]
    %v931 = vld [vmem:[%s1 + $0xafc] sm:$0xf]
    %v932 = vld [vmem:[%s1 + $0xb00] sm:$0xf]
    %v933 = vld [vmem:[%s1 + $0xb04] sm:$0xf]
    %v934 = vld [vmem:[%s1 + $0xb08] sm:$0xf]
    %v935 = vld [vmem:[%s1 + $0xb0c] sm:$0xf]
    %v936 = vld [vmem:[%s1 + $0xb10] sm:$0xf]
    %v937 = vld [vmem:[%s1 + $0xb14] sm:$0xf]
    %v938 = vld [vmem:[%s1 + $0xb18] sm:$0xf]
    %v939 = vld [vmem:[%s1 + $0xb1c] sm:$0xf]
    %v940 = vld [vmem:[%s1 + $0xb20] sm:$0xf]
    %v941 = vld [vmem:[%s1 + $0xb24] sm:$0xf]
    %v942 = vld [vmem:[%s1 + $0xb28] sm:$0xf]
    %v943 = vld [vmem:[%s1 + $0xb2c] sm:$0xf]
    %v944 = vld [vmem:[%s1 + $0xb30] sm:$0xf]
    %v945 = vld [vmem:[%s1 + $0xb34] sm:$0xf]
    %v946 = vld [vmem:[%s1 + $0xb38] sm:$0xf]
    %v947 = vld [vmem:[%s1 + $0xb3c] sm:$0xf]
    %v948 = vld [vmem:[%s1 + $0xb40] sm:$0xf]
    %v949 = vld [vmem:[%s1 + $0xb44] sm:$0xf]
    %v950 = vld [vmem:[%s1 + $0xb48] sm:$0xf]
    %v951 = vld [vmem:[%s1 + $0xb4c] sm:$0xf]
    %v952 = vld [vmem:[%s1 + $0xb50] sm:$0xf]
    %v953 = vld [vmem:[%s1 + $0xb54] sm:$0xf]
    %v954 = vld [vmem:[%s1 + $0xb58] sm:$0xf]
    %v955 = vld [vmem:[%s1 + $0xb5c] sm:$0xf]
    %v956 = vld [vmem:[%s1 + $0xb60] sm:$0xf]
    %v957 = vld [vmem:[%s1 + $0xb64] sm:$0xf]
    %v958 = vld [vmem:[%s1 + $0xb68] sm:$0xf]
    %v959 = vld [vmem:[%s1 + $0xb6c] sm:$0xf]
    %v960 = vld [vmem:[%s1 + $0xb70] sm:$0xf]
    %v961 = vld [vmem:[%s1 + $0xb74] sm:$0xf]
    %v962 = vld [vmem:[%s1 + $0xb78] sm:$0xf]
    %v963 = vld [vmem:[%s1 + $0xb7c] sm:$0xf]
    %v964 = vld [vmem:[%s1 + $0xb80] sm:$0xf]
    %v965 = vld [vmem:[%s1 + $0xb84] sm:$0xf]
    %v966 = vld [vmem:[%s1 + $0xb88] sm:$0xf]
    %v967 = vld [vmem:[%s1 + $0xb8c] sm:$0xf]
    %v968 = vld [vmem:[%s1 + $0xb90] sm:$0xf]
    %v969 = vld [vmem:[%s1 + $0xb94] sm:$0xf]
    %v970 = vld [vmem:[%s1 + $0xb98] sm:$0xf]
    %v971 = vld [vmem:[%s1 + $0xb9c] sm:$0xf]
    %v972 = vld [vmem:[%s1 + $0xba0] sm:$0xf]
    %v973 = vld [vmem:[%s1 + $0xba4] sm:$0xf]
    %v974 = vld [vmem:[%s1 + $0xba8] sm:$0xf]
    %v975 = vld [vmem:[%s1 + $0xbac] sm:$0xf]
    %v976 = vld [vmem:[%s1 + $0xbb0] sm:$0xf]
    %v977 = vld [vmem:[%s1 + $0xbb4] sm:$0xf]
    %v978 = vld [vmem:[%s1 + $0xbb8] sm:$0xf]
    %v979 = vld [vmem:[%s1 + $0xbbc] sm:$0xf]
    %v980 = vld [vmem:[%s1 + $0xbc0] sm:$0xf]
    %v981 = vld [vmem:[%s1 + $0xbc4] sm:$0xf]
    %v982 = vld [vmem:[%s1 + $0xbc8] sm:$0xf]
    %v983 = vld [vmem:[%s1 + $0xbcc] sm:$0xf]
    %v984 = vld [vmem:[%s1 + $0xbd0] sm:$0xf]
    %v985 = vld [vmem:[%s1 + $0xbd4] sm:$0xf]
    %v986 = vld [vmem:[%s1 + $0xbd8] sm:$0xf]
    %v987 = vld [vmem:[%s1 + $0xbdc] sm:$0xf]
    %v988 = vld [vmem:[%s1 + $0xbe0] sm:$0xf]
    %v989 = vld [vmem:[%s1 + $0xbe4] sm:$0xf]
    %v990 = vld [vmem:[%s1 + $0xbe8] sm:$0xf]
    %v991 = vld [vmem:[%s1 + $0xbec] sm:$0xf]
    %v992 = vld [vmem:[%s1 + $0xbf0] sm:$0xf]
    %v993 = vld [vmem:[%s1 + $0xbf4] sm:$0xf]
    %v994 = vld [vmem:[%s1 + $0xbf8] sm:$0xf]
    %v995 = vld [vmem:[%s1 + $0xbfc] sm:$0xf]
    %v996 = vld [vmem:[%s1 + $0xc00] sm:$0xf]
    %v997 = vld [vmem:[%s1 + $0xc04] sm:$0xf]
    %v998 = vld [vmem:[%s1 + $0xc08] sm:$0xf]
    %v999 = vld [vmem:[%s1 + $0xc0c] sm:$0xf]
    %v1000 = vld [vmem:[%s1 + $0xc10] sm:$0xf]
    %v1001 = vld [vmem:[%s1 + $0xc14] sm:$0xf]
    %v1002 = vld [vmem:[%s1 + $0xc18] sm:$0xf]
    %v1003 = vld [vmem:[%s1 + $0xc1c] sm:$0xf]
    %v1004 = vld [vmem:[%s1 + $0xc20] sm:$0xf]
    %v1005 = vld [vmem:[%s1 + $0xc24] sm:$0xf]
    %v1006 = vld [vmem:[%s1 + $0xc28] sm:$0xf]
    %v1007 = vld [vmem:[%s1 + $0xc2c] sm:$0xf]
    %v1008 = vld [vmem:[%s1 + $0xc30] sm:$0xf]
    %v1009 = vld [vmem:[%s1 + $0xc34] sm:$0xf]
    %v1010 = vld [vmem:[%s1 + $0xc38] sm:$0xf]
    %v1011 = vld [vmem:[%s1 + $0xc3c] sm:$0xf]
    %v1012 = vld [vmem:[%s1 + $0xc40] sm:$0xf]
    %v1013 = vld [vmem:[%s1 + $0xc44] sm:$0xf]
    %v1014 = vld [vmem:[%s1 + $0xc48] sm:$0xf]
    %v1015 = vld [vmem:[%s1 + $0xc4c] sm:$0xf]
    %v1016 = vld [vmem:[%s1 + $0xc50] sm:$0xf]
    %v1017 = vld [vmem:[%s1 + $0xc54] sm:$0xf]
    %v1018 = vld [vmem:[%s1 + $0xc58] sm:$0xf]
    %v1019 = vld [vmem:[%s1 + $0xc5c] sm:$0xf]
    %v1020 = vld [vmem:[%s1 + $0xc60] sm:$0xf]
    %v1021 = vld [vmem:[%s1 + $0xc64] sm:$0xf]
    %v1022 = vld [vmem:[%s1 + $0xc68] sm:$0xf]
    %v1023 = vld [vmem:[%s1 + $0xc6c] sm:$0xf]
    %v1024 = vld [vmem:[%s1 + $0xc70] sm:$0xf]
    %v1025 = vld [vmem:[%s1 + $0xc74] sm:$0xf]
    %v1026 = vld [vmem:[%s1 + $0xc78] sm:$0xf]
    %v1027 = vld [vmem:[%s1 + $0xc7c] sm:$0xf]
    %v1028 = vld [vmem:[%s1 + $0xc80] sm:$0xf]
    %v1029 = vld [vmem:[%s1 + $0xc84] sm:$0xf]
    %v1030 = vld [vmem:[%s1 + $0xc88] sm:$0xf]
    %v1031 = vld [vmem:[%s1 + $0xc8c] sm:$0xf]
    %v1032 = vld [vmem:[%s1 + $0xc90] sm:$0xf]
    %v1033 = vld [vmem:[%s1 + $0xc94] sm:$0xf]
    %v1034 = vld [vmem:[%s1 + $0xc98] sm:$0xf]
    %v1035 = vld [vmem:[%s1 + $0xc9c] sm:$0xf]
    %v1036 = vld [vmem:[%s1 + $0xca0] sm:$0xf]
    %v1037 = vld [vmem:[%s1 + $0xca4] sm:$0xf]
    %v1038 = vld [vmem:[%s1 + $0xca8] sm:$0xf]
    %v1039 = vld [vmem:[%s1 + $0xcac] sm:$0xf]
    %v1040 = vld [vmem:[%s1 + $0xcb0] sm:$0xf]
    %v1041 = vld [vmem:[%s1 + $0xcb4] sm:$0xf]
    %v1042 = vld [vmem:[%s1 + $0xcb8] sm:$0xf]
    %v1043 = vld [vmem:[%s1 + $0xcbc] sm:$0xf]
    %v1044 = vld [vmem:[%s1 + $0xcc0] sm:$0xf]
    %v1045 = vld [vmem:[%s1 + $0xcc4] sm:$0xf]
    %v1046 = vld [vmem:[%s1 + $0xcc8] sm:$0xf]
    %v1047 = vld [vmem:[%s1 + $0xccc] sm:$0xf]
    %v1048 = vld [vmem:[%s1 + $0xcd0] sm:$0xf]
    %v1049 = vld [vmem:[%s1 + $0xcd4] sm:$0xf]
    %v1050 = vld [vmem:[%s1 + $0xcd8] sm:$0xf]
    %v1051 = vld [vmem:[%s1 + $0xcdc] sm:$0xf]
    %v1052 = vld [vmem:[%s1 + $0xce0] sm:$0xf]
    %v1053 = vld [vmem:[%s1 + $0xce4] sm:$0xf]
    %v1054 = vld [vmem:[%s1 + $0xce8] sm:$0xf]
    %v1055 = vld [vmem:[%s1 + $0xcec] sm:$0xf]
    %v1056 = vld [vmem:[%s1 + $0xcf0] sm:$0xf]
    %v1057 = vld [vmem:[%s1 + $0xcf4] sm:$0xf]
    %v1058 = vld [vmem:[%s1 + $0xcf8] sm:$0xf]
    %v1059 = vld [vmem:[%s1 + $0xcfc] sm:$0xf]
    %v1060 = vld [vmem:[%s1 + $0xd00] sm:$0xf]
    %v1061 = vld [vmem:[%s1 + $0xd04] sm:$0xf]
    %v1062 = vld [vmem:[%s1 + $0xd08] sm:$0xf]
    %v1063 = vld [vmem:[%s1 + $0xd0c] sm:$0xf]
    %v1064 = vld [vmem:[%s1 + $0xd10] sm:$0xf]
    %v1065 = vld [vmem:[%s1 + $0xd14] sm:$0xf]
    %v1066 = vld [vmem:[%s1 + $0xd18] sm:$0xf]
    %v1067 = vld [vmem:[%s1 + $0xd1c] sm:$0xf]
    %v1068 = vld [vmem:[%s1 + $0xd20] sm:$0xf]
    %v1069 = vld [vmem:[%s1 + $0xd24] sm:$0xf]
    %v1070 = vld [vmem:[%s1 + $0xd28] sm:$0xf]
    %v1071 = vld [vmem:[%s1 + $0xd2c] sm:$0xf]
    %v1072 = vld [vmem:[%s1 + $0xd30] sm:$0xf]
    %v1073 = vld [vmem:[%s1 + $0xd34] sm:$0xf]
    %v1074 = vld [vmem:[%s1 + $0xd38] sm:$0xf]
    %v1075 = vld [vmem:[%s1 + $0xd3c] sm:$0xf]
    %v1076 = vld [vmem:[%s1 + $0xd40] sm:$0xf]
    %v1077 = vld [vmem:[%s1 + $0xd44] sm:$0xf]
    %v1078 = vld [vmem:[%s1 + $0xd48] sm:$0xf]
    %v1079 = vld [vmem:[%s1 + $0xd4c] sm:$0xf]
    %v1080 = vld [vmem:[%s1 + $0xd50] sm:$0xf]
    %v1081 = vld [vmem:[%s1 + $0xd54] sm:$0xf]
    %v1082 = vld [vmem:[%s1 + $0xd58] sm:$0xf]
    %v1083 = vld [vmem:[%s1 + $0xd5c] sm:$0xf]
    %v1084 = vld [vmem:[%s1 + $0xd60] sm:$0xf]
    %v1085 = vld [vmem:[%s1 + $0xd64] sm:$0xf]
    %v1086 = vld [vmem:[%s1 + $0xd68] sm:$0xf]
    %v1087 = vld [vmem:[%s1 + $0xd6c] sm:$0xf]
    %v1088 = vld [vmem:[%s1 + $0xd70] sm:$0xf]
    %v1089 = vld [vmem:[%s1 + $0xd74] sm:$0xf]
    %v1090 = vld [vmem:[%s1 + $0xd78] sm:$0xf]
    %v1091 = vld [vmem:[%s1 + $0xd7c] sm:$0xf]
    %v1092 = vld [vmem:[%s1 + $0xd80] sm:$0xf]
    %v1093 = vld [vmem:[%s1 + $0xd84] sm:$0xf]
    %v1094 = vld [vmem:[%s1 + $0xd88] sm:$0xf]
    %v1095 = vld [vmem:[%s1 + $0xd8c] sm:$0xf]
    %v1096 = vld [vmem:[%s1 + $0xd90] sm:$0xf]
    %v1097 = vld [vmem:[%s1 + $0xd94] sm:$0xf]
    %v1098 = vld [vmem:[%s1 + $0xd98] sm:$0xf]
    %v1099 = vld [vmem:[%s1 + $0xd9c] sm:$0xf]
    %v1100 = vld [vmem:[%s1 + $0xda0] sm:$0xf]
    %v1101 = vld [vmem:[%s1 + $0xda4] sm:$0xf]
    %v1102 = vld [vmem:[%s1 + $0xda8] sm:$0xf]
    %v1103 = vld [vmem:[%s1 + $0xdac] sm:$0xf]
    %v1104 = vld [vmem:[%s1 + $0xdb0] sm:$0xf]
    %v1105 = vld [vmem:[%s1 + $0xdb4] sm:$0xf]
    %v1106 = vld [vmem:[%s1 + $0xdb8] sm:$0xf]
    %v1107 = vld [vmem:[%s1 + $0xdbc] sm:$0xf]
    %v1108 = vld [vmem:[%s1 + $0xdc0] sm:$0xf]
    %v1109 = vld [vmem:[%s1 + $0xdc4] sm:$0xf]
    %v1110 = vld [vmem:[%s1 + $0xdc8] sm:$0xf]
    %v1111 = vld [vmem:[%s1 + $0xdcc] sm:$0xf]
    %v1112 = vld [vmem:[%s1 + $0xdd0] sm:$0xf]
    %v1113 = vld [vmem:[%s1 + $0xdd4] sm:$0xf]
    %v1114 = vld [vmem:[%s1 + $0xdd8] sm:$0xf]
    %v1115 = vld [vmem:[%s1 + $0xddc] sm:$0xf]
    %v1116 = vld [vmem:[%s1 + $0xde0] sm:$0xf]
    %v1117 = vld [vmem:[%s1 + $0xde4] sm:$0xf]
    %v1118 = vld [vmem:[%s1 + $0xde8] sm:$0xf]
    %v1119 = vld [vmem:[%s1 + $0xdec] sm:$0xf]
    %v1120 = vld [vmem:[%s1 + $0xdf0] sm:$0xf]
    %v1121 = vld [vmem:[%s1 + $0xdf4] sm:$0xf]
    %v1122 = vld [vmem:[%s1 + $0xdf8] sm:$0xf]
    %v1123 = vld [vmem:[%s1 + $0xdfc] sm:$0xf]
    %v1124 = vld [vmem:[%s1 + $0xe00] sm:$0xf]
    %v1125 = vld [vmem:[%s1 + $0xe04] sm:$0xf]
    %v1126 = vld [vmem:[%s1 + $0xe08] sm:$0xf]
    %v1127 = vld [vmem:[%s1 + $0xe0c] sm:$0xf]
    %v1128 = vld [vmem:[%s1 + $0xe10] sm:$0xf]
    %v1129 = vld [vmem:[%s1 + $0xe14] sm:$0xf]
    %v1130 = vld [vmem:[%s1 + $0xe18] sm:$0xf]
    %v1131 = vld [vmem:[%s1 + $0xe1c] sm:$0xf]
    %v1132 = vld [vmem:[%s1 + $0xe20] sm:$0xf]
    %v1133 = vld [vmem:[%s1 + $0xe24] sm:$0xf]
    %v1134 = vld [vmem:[%s1 + $0xe28] sm:$0xf]
    %v1135 = vld [vmem:[%s1 + $0xe2c] sm:$0xf]
    %v1136 = vld [vmem:[%s1 + $0xe30] sm:$0xf]
    %v1137 = vld [vmem:[%s1 + $0xe34] sm:$0xf]
    %v1138 = vld [vmem:[%s1 + $0xe38] sm:$0xf]
    %v1139 = vld [vmem:[%s1 + $0xe3c] sm:$0xf]
    %v1140 = vld [vmem:[%s1 + $0xe40] sm:$0xf]
    %v1141 = vld [vmem:[%s1 + $0xe44] sm:$0xf]
    %v1142 = vld [vmem:[%s1 + $0xe48] sm:$0xf]
    %v1143 = vld [vmem:[%s1 + $0xe4c] sm:$0xf]
    %v1144 = vld [vmem:[%s1 + $0xe50] sm:$0xf]
    %v1145 = vld [vmem:[%s1 + $0xe54] sm:$0xf]
    %v1146 = vld [vmem:[%s1 + $0xe58] sm:$0xf]
    %v1147 = vld [vmem:[%s1 + $0xe5c] sm:$0xf]
    %v1148 = vld [vmem:[%s1 + $0xe60] sm:$0xf]
    %v1149 = vld [vmem:[%s1 + $0xe64] sm:$0xf]
    %v1150 = vld [vmem:[%s1 + $0xe68] sm:$0xf]
    %v1151 = vld [vmem:[%s1 + $0xe6c] sm:$0xf]
    %v1152 = vld [vmem:[%s1 + $0xe70] sm:$0xf]
    %v1153 = vld [vmem:[%s1 + $0xe74] sm:$0xf]
    %v1154 = vld [vmem:[%s1 + $0xe78] sm:$0xf]
    %v1155 = vld [vmem:[%s1 + $0xe7c] sm:$0xf]
    %v1156 = vld [vmem:[%s1 + $0xe80] sm:$0xf]
    %v1157 = vld [vmem:[%s1 + $0xe84] sm:$0xf]
    %v1158 = vld [vmem:[%s1 + $0xe88] sm:$0xf]
    %v1159 = vld [vmem:[%s1 + $0xe8c] sm:$0xf]
    %v1160 = vld [vmem:[%s1 + $0xe90] sm:$0xf]
    %v1161 = vld [vmem:[%s1 + $0xe94] sm:$0xf]
    %v1162 = vld [vmem:[%s1 + $0xe98] sm:$0xf]
    %v1163 = vld [vmem:[%s1 + $0xe9c] sm:$0xf]
    %v1164 = vld [vmem:[%s1 + $0xea0] sm:$0xf]
    %v1165 = vld [vmem:[%s1 + $0xea4] sm:$0xf]
    %v1166 = vld [vmem:[%s1 + $0xea8] sm:$0xf]
    %v1167 = vld [vmem:[%s1 + $0xeac] sm:$0xf]
    %v1168 = vld [vmem:[%s1 + $0xeb0] sm:$0xf]
    %v1169 = vld [vmem:[%s1 + $0xeb4] sm:$0xf]
    %v1170 = vld [vmem:[%s1 + $0xeb8] sm:$0xf]
    %v1171 = vld [vmem:[%s1 + $0xebc] sm:$0xf]
    %v1172 = vld [vmem:[%s1 + $0xec0] sm:$0xf]
    %v1173 = vld [vmem:[%s1 + $0xec4] sm:$0xf]
    %v1174 = vld [vmem:[%s1 + $0xec8] sm:$0xf]
    %v1175 = vld [vmem:[%s1 + $0xecc] sm:$0xf]
    %v1176 = vld [vmem:[%s1 + $0xed0] sm:$0xf]
    %v1177 = vld [vmem:[%s1 + $0xed4] sm:$0xf]
    %v1178 = vld [vmem:[%s1 + $0xed8] sm:$0xf]
    %v1179 = vld [vmem:[%s1 + $0xedc] sm:$0xf]
    %v1180 = vld [vmem:[%s1 + $0xee0] sm:$0xf]
    %v1181 = vld [vmem:[%s1 + $0xee4] sm:$0xf]
    %v1182 = vld [vmem:[%s1 + $0xee8] sm:$0xf]
    %v1183 = vld [vmem:[%s1 + $0xeec] sm:$0xf]
    %v1184 = vld [vmem:[%s1 + $0xef0] sm:$0xf]
    %v1185 = vld [vmem:[%s1 + $0xef4] sm:$0xf]
    %v1186 = vld [vmem:[%s1 + $0xef8] sm:$0xf]
    %v1187 = vld [vmem:[%s1 + $0xefc] sm:$0xf]
    %v1188 = vld [vmem:[%s1 + $0xf00] sm:$0xf]
    %v1189 = vld [vmem:[%s1 + $0xf04] sm:$0xf]
    %v1190 = vld [vmem:[%s1 + $0xf08] sm:$0xf]
    %v1191 = vld [vmem:[%s1 + $0xf0c] sm:$0xf]
    %v1192 = vld [vmem:[%s1 + $0xf10] sm:$0xf]
    %v1193 = vld [vmem:[%s1 + $0xf14] sm:$0xf]
    %v1194 = vld [vmem:[%s1 + $0xf18] sm:$0xf]
    %v1195 = vld [vmem:[%s1 + $0xf1c] sm:$0xf]
    %v1196 = vld [vmem:[%s1 + $0xf20] sm:$0xf]
    %v1197 = vld [vmem:[%s1 + $0xf24] sm:$0xf]
    %v1198 = vld [vmem:[%s1 + $0xf28] sm:$0xf]
    %v1199 = vld [vmem:[%s1 + $0xf2c] sm:$0xf]
    %v1200 = vld [vmem:[%s1 + $0xf30] sm:$0xf]
    %v1201 = vld [vmem:[%s1 + $0xf34] sm:$0xf]
    %v1202 = vld [vmem:[%s1 + $0xf38] sm:$0xf]
    %v1203 = vld [vmem:[%s1 + $0xf3c] sm:$0xf]
    %v1204 = vld [vmem:[%s1 + $0xf40] sm:$0xf]
    %v1205 = vld [vmem:[%s1 + $0xf44] sm:$0xf]
    %v1206 = vld [vmem:[%s1 + $0xf48] sm:$0xf]
    %v1207 = vld [vmem:[%s1 + $0xf4c] sm:$0xf]
    %v1208 = vld [vmem:[%s1 + $0xf50] sm:$0xf]
    %v1209 = vld [vmem:[%s1 + $0xf54] sm:$0xf]
    %v1210 = vld [vmem:[%s1 + $0xf58] sm:$0xf]
    %v1211 = vld [vmem:[%s1 + $0xf5c] sm:$0xf]
    %v1212 = vld [vmem:[%s1 + $0xf60] sm:$0xf]
    %v1213 = vld [vmem:[%s1 + $0xf64] sm:$0xf]
    %v1214 = vld [vmem:[%s1 + $0xf68] sm:$0xf]
    %v1215 = vld [vmem:[%s1 + $0xf6c] sm:$0xf]
    %v1216 = vld [vmem:[%s1 + $0xf70] sm:$0xf]
    %v1217 = vld [vmem:[%s1 + $0xf74] sm:$0xf]
    %v1218 = vld [vmem:[%s1 + $0xf78] sm:$0xf]
    %v1219 = vld [vmem:[%s1 + $0xf7c] sm:$0xf]
    %v1220 = vld [vmem:[%s1 + $0xf80] sm:$0xf]
    %v1221 = vld [vmem:[%s1 + $0xf84] sm:$0xf]
    %v1222 = vld [vmem:[%s1 + $0xf88] sm:$0xf]
    %v1223 = vld [vmem:[%s1 + $0xf8c] sm:$0xf]
    %v1224 = vld [vmem:[%s1 + $0xf90] sm:$0xf]
    %v1225 = vld [vmem:[%s1 + $0xf94] sm:$0xf]
    %v1226 = vld [vmem:[%s1 + $0xf98] sm:$0xf]
    %v1227 = vld [vmem:[%s1 + $0xf9c] sm:$0xf]
    %v1228 = vld [vmem:[%s1 + $0xfa0] sm:$0xf]
    %v1229 = vld [vmem:[%s1 + $0xfa4] sm:$0xf]
    %v1230 = vld [vmem:[%s1 + $0xfa8] sm:$0xf]
    %v1231 = vld [vmem:[%s1 + $0xfac] sm:$0xf]
    %v1232 = vld [vmem:[%s1 + $0xfb0] sm:$0xf]
    %v1233 = vld [vmem:[%s1 + $0xfb4] sm:$0xf]
    %v1234 = vld [vmem:[%s1 + $0xfb8] sm:$0xf]
    %v1235 = vld [vmem:[%s1 + $0xfbc] sm:$0xf]
    %v1236 = vld [vmem:[%s1 + $0xfc0] sm:$0xf]
    %v1237 = vld [vmem:[%s1 + $0xfc4] sm:$0xf]
    %v1238 = vld [vmem:[%s1 + $0xfc8] sm:$0xf]
    %v1239 = vld [vmem:[%s1 + $0xfcc] sm:$0xf]
    %v1240 = vld [vmem:[%s1 + $0xfd0] sm:$0xf]
    %v1241 = vld [vmem:[%s1 + $0xfd4] sm:$0xf]
    %v1242 = vld [vmem:[%s1 + $0xfd8] sm:$0xf]
    %v1243 = vld [vmem:[%s1 + $0xfdc] sm:$0xf]
    %v1244 = vld [vmem:[%s1 + $0xfe0] sm:$0xf]
    %v1245 = vld [vmem:[%s1 + $0xfe4] sm:$0xf]
    %v1246 = vld [vmem:[%s1 + $0xfe8] sm:$0xf]
    %v1247 = vld [vmem:[%s1 + $0xfec] sm:$0xf]
    %v1248 = vld [vmem:[%s1 + $0xff0] sm:$0xf]
    %v1249 = vld [vmem:[%s1 + $0xff4] sm:$0xf]
    %v1250 = vld [vmem:[%s1 + $0xff8] sm:$0xf]
    %v1251 = vld [vmem:[%s1 + $0xffc] sm:$0xf]
    %v1252 = vld [vmem:[%s1 + $0x1000] sm:$0xf]
    %v1253 = vld [vmem:[%s1 + $0x1004] sm:$0xf]
    %v1254 = vld [vmem:[%s1 + $0x1008] sm:$0xf]
    %v1255 = vld [vmem:[%s1 + $0x100c] sm:$0xf]
    %v1256 = vld [vmem:[%s1 + $0x1010] sm:$0xf]
    %v1257 = vld [vmem:[%s1 + $0x1014] sm:$0xf]
    %v1258 = vld [vmem:[%s1 + $0x1018] sm:$0xf]
    %v1259 = vld [vmem:[%s1 + $0x101c] sm:$0xf]
    %v1260 = vld [vmem:[%s1 + $0x1020] sm:$0xf]
    %v1261 = vld [vmem:[%s1 + $0x1024] sm:$0xf]
    %v1262 = vld [vmem:[%s1 + $0x1028] sm:$0xf]
    %v1263 = vld [vmem:[%s1 + $0x102c] sm:$0xf]
    %v1264 = vld [vmem:[%s1 + $0x1030] sm:$0xf]
    %v1265 = vld [vmem:[%s1 + $0x1034] sm:$0xf]
    %v1266 = vld [vmem:[%s1 + $0x1038] sm:$0xf]
    %v1267 = vld [vmem:[%s1 + $0x103c] sm:$0xf]
    %v1268 = vld [vmem:[%s1 + $0x1040] sm:$0xf]
    %v1269 = vld [vmem:[%s1 + $0x1044] sm:$0xf]
    %v1270 = vld [vmem:[%s1 + $0x1048] sm:$0xf]
    %v1271 = vld [vmem:[%s1 + $0x104c] sm:$0xf]
    %v1272 = vld [vmem:[%s1 + $0x1050] sm:$0xf]
    %v1273 = vld [vmem:[%s1 + $0x1054] sm:$0xf]
    %v1274 = vld [vmem:[%s1 + $0x1058] sm:$0xf]
    %v1275 = vld [vmem:[%s1 + $0x105c] sm:$0xf]
    %v1276 = vld [vmem:[%s1 + $0x1060] sm:$0xf]
    %v1277 = vld [vmem:[%s1 + $0x1064] sm:$0xf]
    %v1278 = vld [vmem:[%s1 + $0x1068] sm:$0xf]
    %v1279 = vld [vmem:[%s1 + $0x106c] sm:$0xf]
    %v1280 = vld [vmem:[%s1 + $0x1070] sm:$0xf]
    %v1281 = vld [vmem:[%s1 + $0x1074] sm:$0xf]
    %v1282 = vld [vmem:[%s1 + $0x1078] sm:$0xf]
    %v1283 = vld [vmem:[%s1 + $0x107c] sm:$0xf]
    %v1284 = vld [vmem:[%s1 + $0x1080] sm:$0xf]
    %v1285 = vld [vmem:[%s1 + $0x1084] sm:$0xf]
    %v1286 = vld [vmem:[%s1 + $0x1088] sm:$0xf]
    %v1287 = vld [vmem:[%s1 + $0x108c] sm:$0xf]
    %v1288 = vld [vmem:[%s1 + $0x1090] sm:$0xf]
    %v1289 = vld [vmem:[%s1 + $0x1094] sm:$0xf]
    %v1290 = vld [vmem:[%s1 + $0x1098] sm:$0xf]
    %v1291 = vld [vmem:[%s1 + $0x109c] sm:$0xf]
    %v1292 = vld [vmem:[%s1 + $0x10a0] sm:$0xf]
    %v1293 = vld [vmem:[%s1 + $0x10a4] sm:$0xf]
    %v1294 = vld [vmem:[%s1 + $0x10a8] sm:$0xf]
    %v1295 = vld [vmem:[%s1 + $0x10ac] sm:$0xf]
    %v1296 = vld [vmem:[%s1 + $0x10b0] sm:$0xf]
    %v1297 = vld [vmem:[%s1 + $0x10b4] sm:$0xf]
    %v1298 = vld [vmem:[%s1 + $0x10b8] sm:$0xf]
    %v1299 = vld [vmem:[%s1 + $0x10bc] sm:$0xf]
    %v1300 = vld [vmem:[%s1 + $0x10c0] sm:$0xf]
    %v1301 = vld [vmem:[%s1 + $0x10c4] sm:$0xf]
    %v1302 = vld [vmem:[%s1 + $0x10c8] sm:$0xf]
    %v1303 = vld [vmem:[%s1 + $0x10cc] sm:$0xf]
    %v1304 = vld [vmem:[%s1 + $0x10d0] sm:$0xf]
    %v1305 = vld [vmem:[%s1 + $0x10d4] sm:$0xf]
    %v1306 = vld [vmem:[%s1 + $0x10d8] sm:$0xf]
    %v1307 = vld [vmem:[%s1 + $0x10dc] sm:$0xf]
    %v1308 = vld [vmem:[%s1 + $0x10e0] sm:$0xf]
    %v1309 = vld [vmem:[%s1 + $0x10e4] sm:$0xf]
    %v1310 = vld [vmem:[%s1 + $0x10e8] sm:$0xf]
    %v1311 = vld [vmem:[%s1 + $0x10ec] sm:$0xf]
    %v1312 = vld [vmem:[%s1 + $0x10f0] sm:$0xf]
    %v1313 = vld [vmem:[%s1 + $0x10f4] sm:$0xf]
    %v1314 = vld [vmem:[%s1 + $0x10f8] sm:$0xf]
    %v1315 = vld [vmem:[%s1 + $0x10fc] sm:$0xf]
    %v1316 = vld [vmem:[%s1 + $0x1100] sm:$0xf]
    %v1317 = vld [vmem:[%s1 + $0x1104] sm:$0xf]
    %v1318 = vld [vmem:[%s1 + $0x1108] sm:$0xf]
    %v1319 = vld [vmem:[%s1 + $0x110c] sm:$0xf]
    %v1320 = vld [vmem:[%s1 + $0x1110] sm:$0xf]
    %v1321 = vld [vmem:[%s1 + $0x1114] sm:$0xf]
    %v1322 = vld [vmem:[%s1 + $0x1118] sm:$0xf]
    %v1323 = vld [vmem:[%s1 + $0x111c] sm:$0xf]
    %v1324 = vld [vmem:[%s1 + $0x1120] sm:$0xf]
    %v1325 = vld [vmem:[%s1 + $0x1124] sm:$0xf]
    %v1326 = vld [vmem:[%s1 + $0x1128] sm:$0xf]
    %v1327 = vld [vmem:[%s1 + $0x112c] sm:$0xf]
    %v1328 = vld [vmem:[%s1 + $0x1130] sm:$0xf]
    %v1329 = vld [vmem:[%s1 + $0x1134] sm:$0xf]
    %v1330 = vld [vmem:[%s1 + $0x1138] sm:$0xf]
    %v1331 = vld [vmem:[%s1 + $0x113c] sm:$0xf]
    %v1332 = vld [vmem:[%s1 + $0x1140] sm:$0xf]
    %v1333 = vld [vmem:[%s1 + $0x1144] sm:$0xf]
    %v1334 = vld [vmem:[%s1 + $0x1148] sm:$0xf]
    %v1335 = vld [vmem:[%s1 + $0x114c] sm:$0xf]
    %v1336 = vld [vmem:[%s1 + $0x1150] sm:$0xf]
    %v1337 = vld [vmem:[%s1 + $0x1154] sm:$0xf]
    %v1338 = vld [vmem:[%s1 + $0x1158] sm:$0xf]
    %v1339 = vld [vmem:[%s1 + $0x115c] sm:$0xf]
    %v1340 = vld [vmem:[%s1 + $0x1160] sm:$0xf]
    %v1341 = vld [vmem:[%s1 + $0x1164] sm:$0xf]
    %v1342 = vld [vmem:[%s1 + $0x1168] sm:$0xf]
    %v1343 = vld [vmem:[%s1 + $0x116c] sm:$0xf]
    %v1344 = vld [vmem:[%s1 + $0x1170] sm:$0xf]
    %v1345 = vld [vmem:[%s1 + $0x1174] sm:$0xf]
    %v1346 = vld [vmem:[%s1 + $0x1178] sm:$0xf]
    %v1347 = vld [vmem:[%s1 + $0x117c] sm:$0xf]
    %v1348 = vld [vmem:[%s1 + $0x1180] sm:$0xf]
    %v1349 = vld [vmem:[%s1 + $0x1184] sm:$0xf]
    %v1350 = vld [vmem:[%s1 + $0x1188] sm:$0xf]
    %v1351 = vld [vmem:[%s1 + $0x118c] sm:$0xf]
    %v1352 = vld [vmem:[%s1 + $0x1190] sm:$0xf]
    %v1353 = vld [vmem:[%s1 + $0x1194] sm:$0xf]
    %v1354 = vld [vmem:[%s1 + $0x1198] sm:$0xf]
    %v1355 = vld [vmem:[%s1 + $0x119c] sm:$0xf]
    %v1356 = vld [vmem:[%s1 + $0x11a0] sm:$0xf]
    %v1357 = vld [vmem:[%s1 + $0x11a4] sm:$0xf]
    %v1358 = vld [vmem:[%s1 + $0x11a8] sm:$0xf]
    %v1359 = vld [vmem:[%s1 + $0x11ac] sm:$0xf]
    %v1360 = vld [vmem:[%s1 + $0x11b0] sm:$0xf]
    %v1361 = vld [vmem:[%s1 + $0x11b4] sm:$0xf]
    %v1362 = vld [vmem:[%s1 + $0x11b8] sm:$0xf]
    %v1363 = vld [vmem:[%s1 + $0x11bc] sm:$0xf]
    %v1364 = vld [vmem:[%s1 + $0x11c0] sm:$0xf]
    %v1365 = vld [vmem:[%s1 + $0x11c4] sm:$0xf]
    %v1366 = vld [vmem:[%s1 + $0x11c8] sm:$0xf]
    %v1367 = vld [vmem:[%s1 + $0x11cc] sm:$0xf]
    %v1368 = vld [vmem:[%s1 + $0x11d0] sm:$0xf]
    %v1369 = vld [vmem:[%s1 + $0x11d4] sm:$0xf]
    %v1370 = vld [vmem:[%s1 + $0x11d8] sm:$0xf]
    %v1371 = vld [vmem:[%s1 + $0x11dc] sm:$0xf]
    %v1372 = vld [vmem:[%s1 + $0x11e0] sm:$0xf]
    %v1373 = vld [vmem:[%s1 + $0x11e4] sm:$0xf]
    %v1374 = vld [vmem:[%s1 + $0x11e8] sm:$0xf]
    %v1375 = vld [vmem:[%s1 + $0x11ec] sm:$0xf]
    %v1376 = vld [vmem:[%s1 + $0x11f0] sm:$0xf]
    %v1377 = vld [vmem:[%s1 + $0x11f4] sm:$0xf]
    %v1378 = vld [vmem:[%s1 + $0x11f8] sm:$0xf]
    %v1379 = vld [vmem:[%s1 + $0x11fc] sm:$0xf]
    %v1380 = vld [vmem:[%s1 + $0x1200] sm:$0xf]
    %v1381 = vld [vmem:[%s1 + $0x1204] sm:$0xf]
    %v1382 = vld [vmem:[%s1 + $0x1208] sm:$0xf]
    %v1383 = vld [vmem:[%s1 + $0x120c] sm:$0xf]
    %v1384 = vld [vmem:[%s1 + $0x1210] sm:$0xf]
    %v1385 = vld [vmem:[%s1 + $0x1214] sm:$0xf]
    %v1386 = vld [vmem:[%s1 + $0x1218] sm:$0xf]
    %v1387 = vld [vmem:[%s1 + $0x121c] sm:$0xf]
    %v1388 = vld [vmem:[%s1 + $0x1220] sm:$0xf]
    %v1389 = vld [vmem:[%s1 + $0x1224] sm:$0xf]
    %v1390 = vld [vmem:[%s1 + $0x1228] sm:$0xf]
    %v1391 = vld [vmem:[%s1 + $0x122c] sm:$0xf]
    %v1392 = vld [vmem:[%s1 + $0x1230] sm:$0xf]
    %v1393 = vld [vmem:[%s1 + $0x1234] sm:$0xf]
    %v1394 = vld [vmem:[%s1 + $0x1238] sm:$0xf]
    %v1395 = vld [vmem:[%s1 + $0x123c] sm:$0xf]
    %v1396 = vld [vmem:[%s1 + $0x1240] sm:$0xf]
    %v1397 = vld [vmem:[%s1 + $0x1244] sm:$0xf]
    %v1398 = vld [vmem:[%s1 + $0x1248] sm:$0xf]
    %v1399 = vld [vmem:[%s1 + $0x124c] sm:$0xf]
    %v1400 = vld [vmem:[%s1 + $0x1250] sm:$0xf]
    %v1401 = vld [vmem:[%s1 + $0x1254] sm:$0xf]
    %v1402 = vld [vmem:[%s1 + $0x1258] sm:$0xf]
    %v1403 = vld [vmem:[%s1 + $0x125c] sm:$0xf]
    %v1404 = vld [vmem:[%s1 + $0x1260] sm:$0xf]
    %v1405 = vld [vmem:[%s1 + $0x1264] sm:$0xf]
    %v1406 = vld [vmem:[%s1 + $0x1268] sm:$0xf]
    %v1407 = vld [vmem:[%s1 + $0x126c] sm:$0xf]
    %v1408 = vld [vmem:[%s1 + $0x1270] sm:$0xf]
    %v1409 = vld [vmem:[%s1 + $0x1274] sm:$0xf]
    %v1410 = vld [vmem:[%s1 + $0x1278] sm:$0xf]
    %v1411 = vld [vmem:[%s1 + $0x127c] sm:$0xf]
    %v1412 = vld [vmem:[%s1 + $0x1280] sm:$0xf]
    %v1413 = vld [vmem:[%s1 + $0x1284] sm:$0xf]
    %v1414 = vld [vmem:[%s1 + $0x1288] sm:$0xf]
    %v1415 = vld [vmem:[%s1 + $0x128c] sm:$0xf]
    %v1416 = vld [vmem:[%s1 + $0x1290] sm:$0xf]
    %v1417 = vld [vmem:[%s1 + $0x1294] sm:$0xf]
    %v1418 = vld [vmem:[%s1 + $0x1298] sm:$0xf]
    %v1419 = vld [vmem:[%s1 + $0x129c] sm:$0xf]
    %v1420 = vld [vmem:[%s1 + $0x12a0] sm:$0xf]
    %v1421 = vld [vmem:[%s1 + $0x12a4] sm:$0xf]
    %v1422 = vld [vmem:[%s1 + $0x12a8] sm:$0xf]
    %v1423 = vld [vmem:[%s1 + $0x12ac] sm:$0xf]
    %v1424 = vld [vmem:[%s1 + $0x12b0] sm:$0xf]
    %v1425 = vld [vmem:[%s1 + $0x12b4] sm:$0xf]
    %v1426 = vld [vmem:[%s1 + $0x12b8] sm:$0xf]
    %v1427 = vld [vmem:[%s1 + $0x12bc] sm:$0xf]
    %v1428 = vld [vmem:[%s1 + $0x12c0] sm:$0xf]
    %v1429 = vld [vmem:[%s1 + $0x12c4] sm:$0xf]
    %v1430 = vld [vmem:[%s1 + $0x12c8] sm:$0xf]
    %v1431 = vld [vmem:[%s1 + $0x12cc] sm:$0xf]
    %v1432 = vld [vmem:[%s1 + $0x12d0] sm:$0xf]
    %v1433 = vld [vmem:[%s1 + $0x12d4] sm:$0xf]
    %v1434 = vld [vmem:[%s1 + $0x12d8] sm:$0xf]
    %v1435 = vld [vmem:[%s1 + $0x12dc] sm:$0xf]
    %v1436 = vld [vmem:[%s1 + $0x12e0] sm:$0xf]
    %v1437 = vld [vmem:[%s1 + $0x12e4] sm:$0xf]
    %v1438 = vld [vmem:[%s1 + $0x12e8] sm:$0xf]
    %v1439 = vld [vmem:[%s1 + $0x12ec] sm:$0xf]
    %v1440 = vld [vmem:[%s1 + $0x12f0] sm:$0xf]
    %v1441 = vld [vmem:[%s1 + $0x12f4] sm:$0xf]
    %v1442 = vld [vmem:[%s1 + $0x12f8] sm:$0xf]
    %v1443 = vld [vmem:[%s1 + $0x12fc] sm:$0xf]
    %v1444 = vld [vmem:[%s1 + $0x1300] sm:$0xf]
    %v1445 = vld [vmem:[%s1 + $0x1304] sm:$0xf]
    %v1446 = vld [vmem:[%s1 + $0x1308] sm:$0xf]
    %v1447 = vld [vmem:[%s1 + $0x130c] sm:$0xf]
    %v1448 = vld [vmem:[%s1 + $0x1310] sm:$0xf]
    %v1449 = vld [vmem:[%s1 + $0x1314] sm:$0xf]
    %v1450 = vld [vmem:[%s1 + $0x1318] sm:$0xf]
    %v1451 = vld [vmem:[%s1 + $0x131c] sm:$0xf]
    %v1452 = vld [vmem:[%s1 + $0x1320] sm:$0xf]
    %v1453 = vld [vmem:[%s1 + $0x1324] sm:$0xf]
    %v1454 = vld [vmem:[%s1 + $0x1328] sm:$0xf]
    %v1455 = vld [vmem:[%s1 + $0x132c] sm:$0xf]
    %v1456 = vld [vmem:[%s1 + $0x1330] sm:$0xf]
    %v1457 = vld [vmem:[%s1 + $0x1334] sm:$0xf]
    %v1458 = vld [vmem:[%s1 + $0x1338] sm:$0xf]
    %v1459 = vld [vmem:[%s1 + $0x133c] sm:$0xf]
    %v1460 = vld [vmem:[%s1 + $0x1340] sm:$0xf]
    %v1461 = vld [vmem:[%s1 + $0x1344] sm:$0xf]
    %v1462 = vld [vmem:[%s1 + $0x1348] sm:$0xf]
    %v1463 = vld [vmem:[%s1 + $0x134c] sm:$0xf]
    %v1464 = vld [vmem:[%s1 + $0x1350] sm:$0xf]
    %v1465 = vld [vmem:[%s1 + $0x1354] sm:$0xf]
    %v1466 = vld [vmem:[%s1 + $0x1358] sm:$0xf]
    %v1467 = vld [vmem:[%s1 + $0x135c] sm:$0xf]
    %v1468 = vld [vmem:[%s1 + $0x1360] sm:$0xf]
    %v1469 = vld [vmem:[%s1 + $0x1364] sm:$0xf]
    %v1470 = vld [vmem:[%s1 + $0x1368] sm:$0xf]
    %v1471 = vld [vmem:[%s1 + $0x136c] sm:$0xf]
    %v1472 = vld [vmem:[%s1 + $0x1370] sm:$0xf]
    %v1473 = vld [vmem:[%s1 + $0x1374] sm:$0xf]
    %v1474 = vld [vmem:[%s1 + $0x1378] sm:$0xf]
    %v1475 = vld [vmem:[%s1 + $0x137c] sm:$0xf]
    %v1476 = vld [vmem:[%s1 + $0x1380] sm:$0xf]
    %v1477 = vld [vmem:[%s1 + $0x1384] sm:$0xf]
    %v1478 = vld [vmem:[%s1 + $0x1388] sm:$0xf]
    %v1479 = vld [vmem:[%s1 + $0x138c] sm:$0xf]
    %v1480 = vld [vmem:[%s1 + $0x1390] sm:$0xf]
    %v1481 = vld [vmem:[%s1 + $0x1394] sm:$0xf]
    %v1482 = vld [vmem:[%s1 + $0x1398] sm:$0xf]
    %v1483 = vld [vmem:[%s1 + $0x139c] sm:$0xf]
    %v1484 = vld [vmem:[%s1 + $0x13a0] sm:$0xf]
    %v1485 = vld [vmem:[%s1 + $0x13a4] sm:$0xf]
    %v1486 = vld [vmem:[%s1 + $0x13a8] sm:$0xf]
    %v1487 = vld [vmem:[%s1 + $0x13ac] sm:$0xf]
    %v1488 = vld [vmem:[%s1 + $0x13b0] sm:$0xf]
    %v1489 = vld [vmem:[%s1 + $0x13b4] sm:$0xf]
    %v1490 = vld [vmem:[%s1 + $0x13b8] sm:$0xf]
    %v1491 = vld [vmem:[%s1 + $0x13bc] sm:$0xf]
    %v1492 = vld [vmem:[%s1 + $0x13c0] sm:$0xf]
    %v1493 = vld [vmem:[%s1 + $0x13c4] sm:$0xf]
    %v1494 = vld [vmem:[%s1 + $0x13c8] sm:$0xf]
    %v1495 = vld [vmem:[%s1 + $0x13cc] sm:$0xf]
    %v1496 = vld [vmem:[%s1 + $0x13d0] sm:$0xf]
    %v1497 = vld [vmem:[%s1 + $0x13d4] sm:$0xf]
    %v1498 = vld [vmem:[%s1 + $0x13d8] sm:$0xf]
    %v1499 = vld [vmem:[%s1 + $0x13dc] sm:$0xf]
    %v1500 = vld [vmem:[%s1 + $0x13e0] sm:$0xf]
    %v1501 = vld [vmem:[%s1 + $0x13e4] sm:$0xf]
    %v1502 = vld [vmem:[%s1 + $0x13e8] sm:$0xf]
    %v1503 = vld [vmem:[%s1 + $0x13ec] sm:$0xf]
    %v1504 = vld [vmem:[%s1 + $0x13f0] sm:$0xf]
    %v1505 = vld [vmem:[%s1 + $0x13f4] sm:$0xf]
    %v1506 = vld [vmem:[%s1 + $0x13f8] sm:$0xf]
    %v1507 = vld [vmem:[%s1 + $0x13fc] sm:$0xf]
    %v1508 = vld [vmem:[%s1 + $0x1400] sm:$0xf]
    %v1509 = vld [vmem:[%s1 + $0x1404] sm:$0xf]
    %v1510 = vld [vmem:[%s1 + $0x1408] sm:$0xf]
    %v1511 = vld [vmem:[%s1 + $0x140c] sm:$0xf]
    %v1512 = vld [vmem:[%s1 + $0x1410] sm:$0xf]
    %v1513 = vld [vmem:[%s1 + $0x1414] sm:$0xf]
    %v1514 = vld [vmem:[%s1 + $0x1418] sm:$0xf]
    %v1515 = vld [vmem:[%s1 + $0x141c] sm:$0xf]
    %v1516 = vld [vmem:[%s1 + $0x1420] sm:$0xf]
    %v1517 = vld [vmem:[%s1 + $0x1424] sm:$0xf]
    %v1518 = vld [vmem:[%s1 + $0x1428] sm:$0xf]
    %v1519 = vld [vmem:[%s1 + $0x142c] sm:$0xf]
    %v1520 = vld [vmem:[%s1 + $0x1430] sm:$0xf]
    %v1521 = vld [vmem:[%s1 + $0x1434] sm:$0xf]
    %v1522 = vld [vmem:[%s1 + $0x1438] sm:$0xf]
    %v1523 = vld [vmem:[%s1 + $0x143c] sm:$0xf]
    %v1524 = vld [vmem:[%s1 + $0x1440] sm:$0xf]
    %v1525 = vld [vmem:[%s1 + $0x1444] sm:$0xf]
    %v1526 = vld [vmem:[%s1 + $0x1448] sm:$0xf]
    %v1527 = vld [vmem:[%s1 + $0x144c] sm:$0xf]
    %v1528 = vld [vmem:[%s1 + $0x1450] sm:$0xf]
    %v1529 = vld [vmem:[%s1 + $0x1454] sm:$0xf]
    %v1530 = vld [vmem:[%s1 + $0x1458] sm:$0xf]
    %v1531 = vld [vmem:[%s1 + $0x145c] sm:$0xf]
    %v1532 = vld [vmem:[%s1 + $0x1460] sm:$0xf]
    %v1533 = vld [vmem:[%s1 + $0x1464] sm:$0xf]
    %v1534 = vld [vmem:[%s1 + $0x1468] sm:$0xf]
    %v1535 = vld [vmem:[%s1 + $0x146c] sm:$0xf]
    %v1536 = vld [vmem:[%s1 + $0x1470] sm:$0xf]
    %v1537 = vld [vmem:[%s1 + $0x1474] sm:$0xf]
    %v1538 = vld [vmem:[%s1 + $0x1478] sm:$0xf]
    %v1539 = vld [vmem:[%s1 + $0x147c] sm:$0xf]
    %v1540 = vld [vmem:[%s1 + $0x1480] sm:$0xf]
    %v1541 = vld [vmem:[%s1 + $0x1484] sm:$0xf]
    %v1542 = vld [vmem:[%s1 + $0x1488] sm:$0xf]
    %v1543 = vld [vmem:[%s1 + $0x148c] sm:$0xf]
    %v1544 = vld [vmem:[%s1 + $0x1490] sm:$0xf]
    %v1545 = vld [vmem:[%s1 + $0x1494] sm:$0xf]
    %v1546 = vld [vmem:[%s1 + $0x1498] sm:$0xf]
    %v1547 = vld [vmem:[%s1 + $0x149c] sm:$0xf]
    %v1548 = vld [vmem:[%s1 + $0x14a0] sm:$0xf]
    %v1549 = vld [vmem:[%s1 + $0x14a4] sm:$0xf]
    %v1550 = vld [vmem:[%s1 + $0x14a8] sm:$0xf]
    %v1551 = vld [vmem:[%s1 + $0x14ac] sm:$0xf]
    %v1552 = vld [vmem:[%s1 + $0x14b0] sm:$0xf]
    %v1553 = vld [vmem:[%s1 + $0x14b4] sm:$0xf]
    %v1554 = vld [vmem:[%s1 + $0x14b8] sm:$0xf]
    %v1555 = vld [vmem:[%s1 + $0x14bc] sm:$0xf]
    %v1556 = vld [vmem:[%s1 + $0x14c0] sm:$0xf]
    %v1557 = vld [vmem:[%s1 + $0x14c4] sm:$0xf]
    %v1558 = vld [vmem:[%s1 + $0x14c8] sm:$0xf]
    %v1559 = vld [vmem:[%s1 + $0x14cc] sm:$0xf]
    %v1560 = vld [vmem:[%s1 + $0x14d0] sm:$0xf]
    %v1561 = vld [vmem:[%s1 + $0x14d4] sm:$0xf]
    %v1562 = vld [vmem:[%s1 + $0x14d8] sm:$0xf]
    %v1563 = vld [vmem:[%s1 + $0x14dc] sm:$0xf]
    %v1564 = vld [vmem:[%s1 + $0x14e0] sm:$0xf]
    %v1565 = vld [vmem:[%s1 + $0x14e4] sm:$0xf]
    %v1566 = vld [vmem:[%s1 + $0x14e8] sm:$0xf]
    %v1567 = vld [vmem:[%s1 + $0x14ec] sm:$0xf]
    %v1568 = vld [vmem:[%s1 + $0x14f0] sm:$0xf]
    %v1569 = vld [vmem:[%s1 + $0x14f4] sm:$0xf]
    %v1570 = vld [vmem:[%s1 + $0x14f8] sm:$0xf]
    %v1571 = vld [vmem:[%s1 + $0x14fc] sm:$0xf]
    %v1572 = vld [vmem:[%s1 + $0x1500] sm:$0xf]
    %v1573 = vld [vmem:[%s1 + $0x1504] sm:$0xf]
    %v1574 = vld [vmem:[%s1 + $0x1508] sm:$0xf]
    %v1575 = vld [vmem:[%s1 + $0x150c] sm:$0xf]
    %v1576 = vld [vmem:[%s1 + $0x1510] sm:$0xf]
    %v1577 = vld [vmem:[%s1 + $0x1514] sm:$0xf]
    %v1578 = vld [vmem:[%s1 + $0x1518] sm:$0xf]
    %v1579 = vld [vmem:[%s1 + $0x151c] sm:$0xf]
    %v1580 = vld [vmem:[%s1 + $0x1520] sm:$0xf]
    %v1581 = vld [vmem:[%s1 + $0x1524] sm:$0xf]
    %v1582 = vld [vmem:[%s1 + $0x1528] sm:$0xf]
    %v1583 = vld [vmem:[%s1 + $0x152c] sm:$0xf]
    %v1584 = vld [vmem:[%s1 + $0x1530] sm:$0xf]
    %v1585 = vld [vmem:[%s1 + $0x1534] sm:$0xf]
    %v1586 = vld [vmem:[%s1 + $0x1538] sm:$0xf]
    %v1587 = vld [vmem:[%s1 + $0x153c] sm:$0xf]
    %v1588 = vld [vmem:[%s1 + $0x1540] sm:$0xf]
    %v1589 = vld [vmem:[%s1 + $0x1544] sm:$0xf]
    %v1590 = vld [vmem:[%s1 + $0x1548] sm:$0xf]
    %v1591 = vld [vmem:[%s1 + $0x154c] sm:$0xf]
    %v1592 = vld [vmem:[%s1 + $0x1550] sm:$0xf]
    %v1593 = vld [vmem:[%s1 + $0x1554] sm:$0xf]
    %v1594 = vld [vmem:[%s1 + $0x1558] sm:$0xf]
    %v1595 = vld [vmem:[%s1 + $0x155c] sm:$0xf]
    %v1596 = vld [vmem:[%s1 + $0x1560] sm:$0xf]
    %v1597 = vld [vmem:[%s1 + $0x1564] sm:$0xf]
    %v1598 = vld [vmem:[%s1 + $0x1568] sm:$0xf]
    %v1599 = vld [vmem:[%s1 + $0x156c] sm:$0xf]
    %v1600 = vld [vmem:[%s1 + $0x1570] sm:$0xf]
    %v1601 = vld [vmem:[%s1 + $0x1574] sm:$0xf]
    %v1602 = vld [vmem:[%s1 + $0x1578] sm:$0xf]
    %v1603 = vld [vmem:[%s1 + $0x157c] sm:$0xf]
    %v1604 = vld [vmem:[%s1 + $0x1580] sm:$0xf]
    %v1605 = vld [vmem:[%s1 + $0x1584] sm:$0xf]
    %v1606 = vld [vmem:[%s1 + $0x1588] sm:$0xf]
    %v1607 = vld [vmem:[%s1 + $0x158c] sm:$0xf]
    %v1608 = vld [vmem:[%s1 + $0x1590] sm:$0xf]
    %v1609 = vld [vmem:[%s1 + $0x1594] sm:$0xf]
    %v1610 = vld [vmem:[%s1 + $0x1598] sm:$0xf]
    %v1611 = vld [vmem:[%s1 + $0x159c] sm:$0xf]
    %v1612 = vld [vmem:[%s1 + $0x15a0] sm:$0xf]
    %v1613 = vld [vmem:[%s1 + $0x15a4] sm:$0xf]
    %v1614 = vld [vmem:[%s1 + $0x15a8] sm:$0xf]
    %v1615 = vld [vmem:[%s1 + $0x15ac] sm:$0xf]
    %v1616 = vld [vmem:[%s1 + $0x15b0] sm:$0xf]
    %v1617 = vld [vmem:[%s1 + $0x15b4] sm:$0xf]
    %v1618 = vld [vmem:[%s1 + $0x15b8] sm:$0xf]
    %v1619 = vld [vmem:[%s1 + $0x15bc] sm:$0xf]
    %v1620 = vld [vmem:[%s1 + $0x15c0] sm:$0xf]
    %v1621 = vld [vmem:[%s1 + $0x15c4] sm:$0xf]
    %v1622 = vld [vmem:[%s1 + $0x15c8] sm:$0xf]
    %v1623 = vld [vmem:[%s1 + $0x15cc] sm:$0xf]
    %v1624 = vld [vmem:[%s1 + $0x15d0] sm:$0xf]
    %v1625 = vld [vmem:[%s1 + $0x15d4] sm:$0xf]
    %v1626 = vld [vmem:[%s1 + $0x15d8] sm:$0xf]
    %v1627 = vld [vmem:[%s1 + $0x15dc] sm:$0xf]
    %v1628 = vld [vmem:[%s1 + $0x15e0] sm:$0xf]
    %v1629 = vld [vmem:[%s1 + $0x15e4] sm:$0xf]
    %v1630 = vld [vmem:[%s1 + $0x15e8] sm:$0xf]
    %v1631 = vld [vmem:[%s1 + $0x15ec] sm:$0xf]
    %v1632 = vld [vmem:[%s1 + $0x15f0] sm:$0xf]
    %v1633 = vld [vmem:[%s1 + $0x15f4] sm:$0xf]
    %v1634 = vld [vmem:[%s1 + $0x15f8] sm:$0xf]
    %v1635 = vld [vmem:[%s1 + $0x15fc] sm:$0xf]
    %v1636 = vld [vmem:[%s1 + $0x1600] sm:$0xf]
    %v1637 = vld [vmem:[%s1 + $0x1604] sm:$0xf]
    %v1638 = vld [vmem:[%s1 + $0x1608] sm:$0xf]
    %v1639 = vld [vmem:[%s1 + $0x160c] sm:$0xf]
    %v1640 = vld [vmem:[%s1 + $0x1610] sm:$0xf]
    %v1641 = vld [vmem:[%s1 + $0x1614] sm:$0xf]
    %v1642 = vld [vmem:[%s1 + $0x1618] sm:$0xf]
    %v1643 = vld [vmem:[%s1 + $0x161c] sm:$0xf]
    %v1644 = vld [vmem:[%s1 + $0x1620] sm:$0xf]
    %v1645 = vld [vmem:[%s1 + $0x1624] sm:$0xf]
    %v1646 = vld [vmem:[%s1 + $0x1628] sm:$0xf]
    %v1647 = vld [vmem:[%s1 + $0x162c] sm:$0xf]
    %v1648 = vld [vmem:[%s1 + $0x1630] sm:$0xf]
    %v1649 = vld [vmem:[%s1 + $0x1634] sm:$0xf]
    %v1650 = vld [vmem:[%s1 + $0x1638] sm:$0xf]
    %v1651 = vld [vmem:[%s1 + $0x163c] sm:$0xf]
    %v1652 = vld [vmem:[%s1 + $0x1640] sm:$0xf]
    %v1653 = vld [vmem:[%s1 + $0x1644] sm:$0xf]
    %v1654 = vld [vmem:[%s1 + $0x1648] sm:$0xf]
    %v1655 = vld [vmem:[%s1 + $0x164c] sm:$0xf]
    %v1656 = vld [vmem:[%s1 + $0x1650] sm:$0xf]
    %v1657 = vld [vmem:[%s1 + $0x1654] sm:$0xf]
    %v1658 = vld [vmem:[%s1 + $0x1658] sm:$0xf]
    %v1659 = vld [vmem:[%s1 + $0x165c] sm:$0xf]
    %v1660 = vld [vmem:[%s1 + $0x1660] sm:$0xf]
    %v1661 = vld [vmem:[%s1 + $0x1664] sm:$0xf]
    %v1662 = vld [vmem:[%s1 + $0x1668] sm:$0xf]
    %v1663 = vld [vmem:[%s1 + $0x166c] sm:$0xf]
    %v1664 = vld [vmem:[%s1 + $0x1670] sm:$0xf]
    %v1665 = vld [vmem:[%s1 + $0x1674] sm:$0xf]
    %v1666 = vld [vmem:[%s1 + $0x1678] sm:$0xf]
    %v1667 = vld [vmem:[%s1 + $0x167c] sm:$0xf]
    %v1668 = vld [vmem:[%s1 + $0x1680] sm:$0xf]
    %v1669 = vld [vmem:[%s1 + $0x1684] sm:$0xf]
    %v1670 = vld [vmem:[%s1 + $0x1688] sm:$0xf]
    %v1671 = vld [vmem:[%s1 + $0x168c] sm:$0xf]
    %v1672 = vld [vmem:[%s1 + $0x1690] sm:$0xf]
    %v1673 = vld [vmem:[%s1 + $0x1694] sm:$0xf]
    %v1674 = vld [vmem:[%s1 + $0x1698] sm:$0xf]
    %v1675 = vld [vmem:[%s1 + $0x169c] sm:$0xf]
    %v1676 = vld [vmem:[%s1 + $0x16a0] sm:$0xf]
    %v1677 = vld [vmem:[%s1 + $0x16a4] sm:$0xf]
    %v1678 = vld [vmem:[%s1 + $0x16a8] sm:$0xf]
    %v1679 = vld [vmem:[%s1 + $0x16ac] sm:$0xf]
    %v1680 = vld [vmem:[%s1 + $0x16b0] sm:$0xf]
    %v1681 = vld [vmem:[%s1 + $0x16b4] sm:$0xf]
    %v1682 = vld [vmem:[%s1 + $0x16b8] sm:$0xf]
    %v1683 = vld [vmem:[%s1 + $0x16bc] sm:$0xf]
    %v1684 = vld [vmem:[%s1 + $0x16c0] sm:$0xf]
    %v1685 = vld [vmem:[%s1 + $0x16c4] sm:$0xf]
    %v1686 = vld [vmem:[%s1 + $0x16c8] sm:$0xf]
    %v1687 = vld [vmem:[%s1 + $0x16cc] sm:$0xf]
    %v1688 = vld [vmem:[%s1 + $0x16d0] sm:$0xf]
    %v1689 = vld [vmem:[%s1 + $0x16d4] sm:$0xf]
    %v1690 = vld [vmem:[%s1 + $0x16d8] sm:$0xf]
    %v1691 = vld [vmem:[%s1 + $0x16dc] sm:$0xf]
    %v1692 = vld [vmem:[%s1 + $0x16e0] sm:$0xf]
    %v1693 = vld [vmem:[%s1 + $0x16e4] sm:$0xf]
    %v1694 = vld [vmem:[%s1 + $0x16e8] sm:$0xf]
    %v1695 = vld [vmem:[%s1 + $0x16ec] sm:$0xf]
    %v1696 = vld [vmem:[%s1 + $0x16f0] sm:$0xf]
    %v1697 = vld [vmem:[%s1 + $0x16f4] sm:$0xf]
    %v1698 = vld [vmem:[%s1 + $0x16f8] sm:$0xf]
    %v1699 = vld [vmem:[%s1 + $0x16fc] sm:$0xf]
    %v1700 = vld [vmem:[%s1 + $0x1700] sm:$0xf]
    %v1701 = vld [vmem:[%s1 + $0x1704] sm:$0xf]
    %v1702 = vld [vmem:[%s1 + $0x1708] sm:$0xf]
    %v1703 = vld [vmem:[%s1 + $0x170c] sm:$0xf]
    %v1704 = vld [vmem:[%s1 + $0x1710] sm:$0xf]
    %v1705 = vld [vmem:[%s1 + $0x1714] sm:$0xf]
    %v1706 = vld [vmem:[%s1 + $0x1718] sm:$0xf]
    %v1707 = vld [vmem:[%s1 + $0x171c] sm:$0xf]
    %v1708 = vld [vmem:[%s1 + $0x1720] sm:$0xf]
    %v1709 = vld [vmem:[%s1 + $0x1724] sm:$0xf]
    %v1710 = vld [vmem:[%s1 + $0x1728] sm:$0xf]
    %v1711 = vld [vmem:[%s1 + $0x172c] sm:$0xf]
    %v1712 = vld [vmem:[%s1 + $0x1730] sm:$0xf]
    %v1713 = vld [vmem:[%s1 + $0x1734] sm:$0xf]
    %v1714 = vld [vmem:[%s1 + $0x1738] sm:$0xf]
    %v1715 = vld [vmem:[%s1 + $0x173c] sm:$0xf]
    %v1716 = vld [vmem:[%s1 + $0x1740] sm:$0xf]
    %v1717 = vld [vmem:[%s1 + $0x1744] sm:$0xf]
    %v1718 = vld [vmem:[%s1 + $0x1748] sm:$0xf]
    %v1719 = vld [vmem:[%s1 + $0x174c] sm:$0xf]
    %v1720 = vld [vmem:[%s1 + $0x1750] sm:$0xf]
    %v1721 = vld [vmem:[%s1 + $0x1754] sm:$0xf]
    %v1722 = vld [vmem:[%s1 + $0x1758] sm:$0xf]
    %v1723 = vld [vmem:[%s1 + $0x175c] sm:$0xf]
    %v1724 = vld [vmem:[%s1 + $0x1760] sm:$0xf]
    %v1725 = vld [vmem:[%s1 + $0x1764] sm:$0xf]
    %v1726 = vld [vmem:[%s1 + $0x1768] sm:$0xf]
    %v1727 = vld [vmem:[%s1 + $0x176c] sm:$0xf]
    %v1728 = vld [vmem:[%s1 + $0x1770] sm:$0xf]
    %v1729 = vld [vmem:[%s1 + $0x1774] sm:$0xf]
    %v1730 = vld [vmem:[%s1 + $0x1778] sm:$0xf]
    %v1731 = vld [vmem:[%s1 + $0x177c] sm:$0xf]
    %v1732 = vld [vmem:[%s1 + $0x1780] sm:$0xf]
    %v1733 = vld [vmem:[%s1 + $0x1784] sm:$0xf]
    %v1734 = vld [vmem:[%s1 + $0x1788] sm:$0xf]
    %v1735 = vld [vmem:[%s1 + $0x178c] sm:$0xf]
    %v1736 = vld [vmem:[%s1 + $0x1790] sm:$0xf]
    %v1737 = vld [vmem:[%s1 + $0x1794] sm:$0xf]
    %v1738 = vld [vmem:[%s1 + $0x1798] sm:$0xf]
    %v1739 = vld [vmem:[%s1 + $0x179c] sm:$0xf]
    %v1740 = vld [vmem:[%s1 + $0x17a0] sm:$0xf]
    %v1741 = vld [vmem:[%s1 + $0x17a4] sm:$0xf]
    %v1742 = vld [vmem:[%s1 + $0x17a8] sm:$0xf]
    %v1743 = vld [vmem:[%s1 + $0x17ac] sm:$0xf]
    %v1744 = vld [vmem:[%s1 + $0x17b0] sm:$0xf]
    %v1745 = vld [vmem:[%s1 + $0x17b4] sm:$0xf]
    %v1746 = vld [vmem:[%s1 + $0x17b8] sm:$0xf]
    %v1747 = vld [vmem:[%s1 + $0x17bc] sm:$0xf]
    %v1748 = vld [vmem:[%s1 + $0x17c0] sm:$0xf]
    %v1749 = vld [vmem:[%s1 + $0x17c4] sm:$0xf]
    %v1750 = vld [vmem:[%s1 + $0x17c8] sm:$0xf]
    %v1751 = vld [vmem:[%s1 + $0x17cc] sm:$0xf]
    %v1752 = vld [vmem:[%s1 + $0x17d0] sm:$0xf]
    %v1753 = vld [vmem:[%s1 + $0x17d4] sm:$0xf]
    %v1754 = vld [vmem:[%s1 + $0x17d8] sm:$0xf]
    %v1755 = vld [vmem:[%s1 + $0x17dc] sm:$0xf]
    %v1756 = vld [vmem:[%s1 + $0x17e0] sm:$0xf]
    %v1757 = vld [vmem:[%s1 + $0x17e4] sm:$0xf]
    %v1758 = vld [vmem:[%s1 + $0x17e8] sm:$0xf]
    %v1759 = vld [vmem:[%s1 + $0x17ec] sm:$0xf]
    %v1760 = vld [vmem:[%s1 + $0x17f0] sm:$0xf]
    %v1761 = vld [vmem:[%s1 + $0x17f4] sm:$0xf]
    %v1762 = vld [vmem:[%s1 + $0x17f8] sm:$0xf]
    %v1763 = vld [vmem:[%s1 + $0x17fc] sm:$0xf]
    %v1764 = vld [vmem:[%s2] sm:$0x1]
    %v1766 = vlaneseq
    %v1767 = vshrl.u32 %v1766, 7
    %v1768 = vsub.s32 0, %v1767
    %v1769 = vrot.slane %v1764, %v1768
    %v3307 = vunpack.c.l.b16 %v228
    %v3308 = vunpack.c.l.b16 %v229
    %v3309 = vunpack.c.l.b16 %v230
    %v3310 = vunpack.c.l.b16 %v231
    %v3311 = vunpack.c.l.b16 %v232
    %v3312 = vunpack.c.l.b16 %v233
    %v3313 = vunpack.c.l.b16 %v234
    %v3314 = vunpack.c.l.b16 %v235
    %v3315 = vunpack.c.l.b16 %v236
    %v3316 = vunpack.c.l.b16 %v237
    %v3317 = vunpack.c.l.b16 %v238
    %v3318 = vunpack.c.l.b16 %v239
    %v3319 = vunpack.c.l.b16 %v240
    %v3320 = vunpack.c.l.b16 %v241
    %v3321 = vunpack.c.l.b16 %v242
    %v3322 = vunpack.c.l.b16 %v243
    %v3323 = vunpack.c.l.b16 %v244
    %v3324 = vunpack.c.l.b16 %v245
    %v3325 = vunpack.c.l.b16 %v246
    %v3326 = vunpack.c.l.b16 %v247
    %v3327 = vunpack.c.l.b16 %v248
    %v3328 = vunpack.c.l.b16 %v249
    %v3329 = vunpack.c.l.b16 %v250
    %v3330 = vunpack.c.l.b16 %v251
    %v3331 = vunpack.c.l.b16 %v252
    %v3332 = vunpack.c.l.b16 %v253
    %v3333 = vunpack.c.l.b16 %v254
    %v3334 = vunpack.c.l.b16 %v255
    %v3335 = vunpack.c.l.b16 %v256
    %v3336 = vunpack.c.l.b16 %v257
    %v3337 = vunpack.c.l.b16 %v258
    %v3338 = vunpack.c.l.b16 %v259
    %v3339 = vunpack.c.l.b16 %v260
    %v3340 = vunpack.c.l.b16 %v261
    %v3341 = vunpack.c.l.b16 %v262
    %v3342 = vunpack.c.l.b16 %v263
    %v3343 = vunpack.c.l.b16 %v264
    %v3344 = vunpack.c.l.b16 %v265
    %v3345 = vunpack.c.l.b16 %v266
    %v3346 = vunpack.c.l.b16 %v267
    %v3347 = vunpack.c.l.b16 %v268
    %v3348 = vunpack.c.l.b16 %v269
    %v3349 = vunpack.c.l.b16 %v270
    %v3350 = vunpack.c.l.b16 %v271
    %v3351 = vunpack.c.l.b16 %v272
    %v3352 = vunpack.c.l.b16 %v273
    %v3353 = vunpack.c.l.b16 %v274
    %v3354 = vunpack.c.l.b16 %v275
    %v3355 = vunpack.c.l.b16 %v276
    %v3356 = vunpack.c.l.b16 %v277
    %v3357 = vunpack.c.l.b16 %v278
    %v3358 = vunpack.c.l.b16 %v279
    %v3359 = vunpack.c.l.b16 %v280
    %v3360 = vunpack.c.l.b16 %v281
    %v3361 = vunpack.c.l.b16 %v282
    %v3362 = vunpack.c.l.b16 %v283
    %v3363 = vunpack.c.l.b16 %v284
    %v3364 = vunpack.c.l.b16 %v285
    %v3365 = vunpack.c.l.b16 %v286
    %v3366 = vunpack.c.l.b16 %v287
    %v3367 = vunpack.c.l.b16 %v288
    %v3368 = vunpack.c.l.b16 %v289
    %v3369 = vunpack.c.l.b16 %v290
    %v3370 = vunpack.c.l.b16 %v291
    %v3371 = vunpack.c.l.b16 %v292
    %v3372 = vunpack.c.l.b16 %v293
    %v3373 = vunpack.c.l.b16 %v294
    %v3374 = vunpack.c.l.b16 %v295
    %v3375 = vunpack.c.l.b16 %v296
    %v3376 = vunpack.c.l.b16 %v297
    %v3377 = vunpack.c.l.b16 %v298
    %v3378 = vunpack.c.l.b16 %v299
    %v3379 = vunpack.c.l.b16 %v300
    %v3380 = vunpack.c.l.b16 %v301
    %v3381 = vunpack.c.l.b16 %v302
    %v3382 = vunpack.c.l.b16 %v303
    %v3383 = vunpack.c.l.b16 %v304
    %v3384 = vunpack.c.l.b16 %v305
    %v3385 = vunpack.c.l.b16 %v306
    %v3386 = vunpack.c.l.b16 %v307
    %v3387 = vunpack.c.l.b16 %v308
    %v3388 = vunpack.c.l.b16 %v309
    %v3389 = vunpack.c.l.b16 %v310
    %v3390 = vunpack.c.l.b16 %v311
    %v3391 = vunpack.c.l.b16 %v312
    %v3392 = vunpack.c.l.b16 %v313
    %v3393 = vunpack.c.l.b16 %v314
    %v3394 = vunpack.c.l.b16 %v315
    %v3395 = vunpack.c.l.b16 %v316
    %v3396 = vunpack.c.l.b16 %v317
    %v3397 = vunpack.c.l.b16 %v318
    %v3398 = vunpack.c.l.b16 %v319
    %v3399 = vunpack.c.l.b16 %v320
    %v3400 = vunpack.c.l.b16 %v321
    %v3401 = vunpack.c.l.b16 %v322
    %v3402 = vunpack.c.l.b16 %v323
    %v3403 = vunpack.c.l.b16 %v324
    %v3404 = vunpack.c.l.b16 %v325
    %v3405 = vunpack.c.l.b16 %v326
    %v3406 = vunpack.c.l.b16 %v327
    %v3407 = vunpack.c.l.b16 %v328
    %v3408 = vunpack.c.l.b16 %v329
    %v3409 = vunpack.c.l.b16 %v330
    %v3410 = vunpack.c.l.b16 %v331
    %v3411 = vunpack.c.l.b16 %v332
    %v3412 = vunpack.c.l.b16 %v333
    %v3413 = vunpack.c.l.b16 %v334
    %v3414 = vunpack.c.l.b16 %v335
    %v3415 = vunpack.c.l.b16 %v336
    %v3416 = vunpack.c.l.b16 %v337
    %v3417 = vunpack.c.l.b16 %v338
    %v3418 = vunpack.c.l.b16 %v339
    %v3419 = vunpack.c.l.b16 %v340
    %v3420 = vunpack.c.l.b16 %v341
    %v3421 = vunpack.c.l.b16 %v342
    %v3422 = vunpack.c.l.b16 %v343
    %v3423 = vunpack.c.l.b16 %v344
    %v3424 = vunpack.c.l.b16 %v345
    %v3425 = vunpack.c.l.b16 %v346
    %v3426 = vunpack.c.l.b16 %v347
    %v3427 = vunpack.c.l.b16 %v348
    %v3428 = vunpack.c.l.b16 %v349
    %v3429 = vunpack.c.l.b16 %v350
    %v3430 = vunpack.c.l.b16 %v351
    %v3431 = vunpack.c.l.b16 %v352
    %v3432 = vunpack.c.l.b16 %v353
    %v3433 = vunpack.c.l.b16 %v354
    %v3434 = vunpack.c.l.b16 %v355
    %v3435 = vunpack.c.l.b16 %v356
    %v3436 = vunpack.c.l.b16 %v357
    %v3437 = vunpack.c.l.b16 %v358
    %v3438 = vunpack.c.l.b16 %v359
    %v3439 = vunpack.c.l.b16 %v360
    %v3440 = vunpack.c.l.b16 %v361
    %v3441 = vunpack.c.l.b16 %v362
    %v3442 = vunpack.c.l.b16 %v363
    %v3443 = vunpack.c.l.b16 %v364
    %v3444 = vunpack.c.l.b16 %v365
    %v3445 = vunpack.c.l.b16 %v366
    %v3446 = vunpack.c.l.b16 %v367
    %v3447 = vunpack.c.l.b16 %v368
    %v3448 = vunpack.c.l.b16 %v369
    %v3449 = vunpack.c.l.b16 %v370
    %v3450 = vunpack.c.l.b16 %v371
    %v3451 = vunpack.c.l.b16 %v372
    %v3452 = vunpack.c.l.b16 %v373
    %v3453 = vunpack.c.l.b16 %v374
    %v3454 = vunpack.c.l.b16 %v375
    %v3455 = vunpack.c.l.b16 %v376
    %v3456 = vunpack.c.l.b16 %v377
    %v3457 = vunpack.c.l.b16 %v378
    %v3458 = vunpack.c.l.b16 %v379
    %v3459 = vunpack.c.l.b16 %v380
    %v3460 = vunpack.c.l.b16 %v381
    %v3461 = vunpack.c.l.b16 %v382
    %v3462 = vunpack.c.l.b16 %v383
    %v3463 = vunpack.c.l.b16 %v384
    %v3464 = vunpack.c.l.b16 %v385
    %v3465 = vunpack.c.l.b16 %v386
    %v3466 = vunpack.c.l.b16 %v387
    %v3467 = vunpack.c.l.b16 %v388
    %v3468 = vunpack.c.l.b16 %v389
    %v3469 = vunpack.c.l.b16 %v390
    %v3470 = vunpack.c.l.b16 %v391
    %v3471 = vunpack.c.l.b16 %v392
    %v3472 = vunpack.c.l.b16 %v393
    %v3473 = vunpack.c.l.b16 %v394
    %v3474 = vunpack.c.l.b16 %v395
    %v3475 = vunpack.c.l.b16 %v396
    %v3476 = vunpack.c.l.b16 %v397
    %v3477 = vunpack.c.l.b16 %v398
    %v3478 = vunpack.c.l.b16 %v399
    %v3479 = vunpack.c.l.b16 %v400
    %v3480 = vunpack.c.l.b16 %v401
    %v3481 = vunpack.c.l.b16 %v402
    %v3482 = vunpack.c.l.b16 %v403
    %v3483 = vunpack.c.l.b16 %v404
    %v3484 = vunpack.c.l.b16 %v405
    %v3485 = vunpack.c.l.b16 %v406
    %v3486 = vunpack.c.l.b16 %v407
    %v3487 = vunpack.c.l.b16 %v408
    %v3488 = vunpack.c.l.b16 %v409
    %v3489 = vunpack.c.l.b16 %v410
    %v3490 = vunpack.c.l.b16 %v411
    %v3491 = vunpack.c.l.b16 %v412
    %v3492 = vunpack.c.l.b16 %v413
    %v3493 = vunpack.c.l.b16 %v414
    %v3494 = vunpack.c.l.b16 %v415
    %v3495 = vunpack.c.l.b16 %v416
    %v3496 = vunpack.c.l.b16 %v417
    %v3497 = vunpack.c.l.b16 %v418
    %v3498 = vunpack.c.l.b16 %v419
    %v3499 = vunpack.c.l.b16 %v420
    %v3500 = vunpack.c.l.b16 %v421
    %v3501 = vunpack.c.l.b16 %v422
    %v3502 = vunpack.c.l.b16 %v423
    %v3503 = vunpack.c.l.b16 %v424
    %v3504 = vunpack.c.l.b16 %v425
    %v3505 = vunpack.c.l.b16 %v426
    %v3506 = vunpack.c.l.b16 %v427
    %v3507 = vunpack.c.l.b16 %v428
    %v3508 = vunpack.c.l.b16 %v429
    %v3509 = vunpack.c.l.b16 %v430
    %v3510 = vunpack.c.l.b16 %v431
    %v3511 = vunpack.c.l.b16 %v432
    %v3512 = vunpack.c.l.b16 %v433
    %v3513 = vunpack.c.l.b16 %v434
    %v3514 = vunpack.c.l.b16 %v435
    %v3515 = vunpack.c.l.b16 %v436
    %v3516 = vunpack.c.l.b16 %v437
    %v3517 = vunpack.c.l.b16 %v438
    %v3518 = vunpack.c.l.b16 %v439
    %v3519 = vunpack.c.l.b16 %v440
    %v3520 = vunpack.c.l.b16 %v441
    %v3521 = vunpack.c.l.b16 %v442
    %v3522 = vunpack.c.l.b16 %v443
    %v3523 = vunpack.c.l.b16 %v444
    %v3524 = vunpack.c.l.b16 %v445
    %v3525 = vunpack.c.l.b16 %v446
    %v3526 = vunpack.c.l.b16 %v447
    %v3527 = vunpack.c.l.b16 %v448
    %v3528 = vunpack.c.l.b16 %v449
    %v3529 = vunpack.c.l.b16 %v450
    %v3530 = vunpack.c.l.b16 %v451
    %v3531 = vunpack.c.l.b16 %v452
    %v3532 = vunpack.c.l.b16 %v453
    %v3533 = vunpack.c.l.b16 %v454
    %v3534 = vunpack.c.l.b16 %v455
    %v3535 = vunpack.c.l.b16 %v456
    %v3536 = vunpack.c.l.b16 %v457
    %v3537 = vunpack.c.l.b16 %v458
    %v3538 = vunpack.c.l.b16 %v459
    %v3539 = vunpack.c.l.b16 %v460
    %v3540 = vunpack.c.l.b16 %v461
    %v3541 = vunpack.c.l.b16 %v462
    %v3542 = vunpack.c.l.b16 %v463
    %v3543 = vunpack.c.l.b16 %v464
    %v3544 = vunpack.c.l.b16 %v465
    %v3545 = vunpack.c.l.b16 %v466
    %v3546 = vunpack.c.l.b16 %v467
    %v3547 = vunpack.c.l.b16 %v468
    %v3548 = vunpack.c.l.b16 %v469
    %v3549 = vunpack.c.l.b16 %v470
    %v3550 = vunpack.c.l.b16 %v471
    %v3551 = vunpack.c.l.b16 %v472
    %v3552 = vunpack.c.l.b16 %v473
    %v3553 = vunpack.c.l.b16 %v474
    %v3554 = vunpack.c.l.b16 %v475
    %v3555 = vunpack.c.l.b16 %v476
    %v3556 = vunpack.c.l.b16 %v477
    %v3557 = vunpack.c.l.b16 %v478
    %v3558 = vunpack.c.l.b16 %v479
    %v3559 = vunpack.c.l.b16 %v480
    %v3560 = vunpack.c.l.b16 %v481
    %v3561 = vunpack.c.l.b16 %v482
    %v3562 = vunpack.c.l.b16 %v483
    %v3563 = vunpack.c.l.b16 %v484
    %v3564 = vunpack.c.l.b16 %v485
    %v3565 = vunpack.c.l.b16 %v486
    %v3566 = vunpack.c.l.b16 %v487
    %v3567 = vunpack.c.l.b16 %v488
    %v3568 = vunpack.c.l.b16 %v489
    %v3569 = vunpack.c.l.b16 %v490
    %v3570 = vunpack.c.l.b16 %v491
    %v3571 = vunpack.c.l.b16 %v492
    %v3572 = vunpack.c.l.b16 %v493
    %v3573 = vunpack.c.l.b16 %v494
    %v3574 = vunpack.c.l.b16 %v495
    %v3575 = vunpack.c.l.b16 %v496
    %v3576 = vunpack.c.l.b16 %v497
    %v3577 = vunpack.c.l.b16 %v498
    %v3578 = vunpack.c.l.b16 %v499
    %v3579 = vunpack.c.l.b16 %v500
    %v3580 = vunpack.c.l.b16 %v501
    %v3581 = vunpack.c.l.b16 %v502
    %v3582 = vunpack.c.l.b16 %v503
    %v3583 = vunpack.c.l.b16 %v504
    %v3584 = vunpack.c.l.b16 %v505
    %v3585 = vunpack.c.l.b16 %v506
    %v3586 = vunpack.c.l.b16 %v507
    %v3587 = vunpack.c.l.b16 %v508
    %v3588 = vunpack.c.l.b16 %v509
    %v3589 = vunpack.c.l.b16 %v510
    %v3590 = vunpack.c.l.b16 %v511
    %v3591 = vunpack.c.l.b16 %v512
    %v3592 = vunpack.c.l.b16 %v513
    %v3593 = vunpack.c.l.b16 %v514
    %v3594 = vunpack.c.l.b16 %v515
    %v3595 = vunpack.c.l.b16 %v516
    %v3596 = vunpack.c.l.b16 %v517
    %v3597 = vunpack.c.l.b16 %v518
    %v3598 = vunpack.c.l.b16 %v519
    %v3599 = vunpack.c.l.b16 %v520
    %v3600 = vunpack.c.l.b16 %v521
    %v3601 = vunpack.c.l.b16 %v522
    %v3602 = vunpack.c.l.b16 %v523
    %v3603 = vunpack.c.l.b16 %v524
    %v3604 = vunpack.c.l.b16 %v525
    %v3605 = vunpack.c.l.b16 %v526
    %v3606 = vunpack.c.l.b16 %v527
    %v3607 = vunpack.c.l.b16 %v528
    %v3608 = vunpack.c.l.b16 %v529
    %v3609 = vunpack.c.l.b16 %v530
    %v3610 = vunpack.c.l.b16 %v531
    %v3611 = vunpack.c.l.b16 %v532
    %v3612 = vunpack.c.l.b16 %v533
    %v3613 = vunpack.c.l.b16 %v534
    %v3614 = vunpack.c.l.b16 %v535
    %v3615 = vunpack.c.l.b16 %v536
    %v3616 = vunpack.c.l.b16 %v537
    %v3617 = vunpack.c.l.b16 %v538
    %v3618 = vunpack.c.l.b16 %v539
    %v3619 = vunpack.c.l.b16 %v540
    %v3620 = vunpack.c.l.b16 %v541
    %v3621 = vunpack.c.l.b16 %v542
    %v3622 = vunpack.c.l.b16 %v543
    %v3623 = vunpack.c.l.b16 %v544
    %v3624 = vunpack.c.l.b16 %v545
    %v3625 = vunpack.c.l.b16 %v546
    %v3626 = vunpack.c.l.b16 %v547
    %v3627 = vunpack.c.l.b16 %v548
    %v3628 = vunpack.c.l.b16 %v549
    %v3629 = vunpack.c.l.b16 %v550
    %v3630 = vunpack.c.l.b16 %v551
    %v3631 = vunpack.c.l.b16 %v552
    %v3632 = vunpack.c.l.b16 %v553
    %v3633 = vunpack.c.l.b16 %v554
    %v3634 = vunpack.c.l.b16 %v555
    %v3635 = vunpack.c.l.b16 %v556
    %v3636 = vunpack.c.l.b16 %v557
    %v3637 = vunpack.c.l.b16 %v558
    %v3638 = vunpack.c.l.b16 %v559
    %v3639 = vunpack.c.l.b16 %v560
    %v3640 = vunpack.c.l.b16 %v561
    %v3641 = vunpack.c.l.b16 %v562
    %v3642 = vunpack.c.l.b16 %v563
    %v3643 = vunpack.c.l.b16 %v564
    %v3644 = vunpack.c.l.b16 %v565
    %v3645 = vunpack.c.l.b16 %v566
    %v3646 = vunpack.c.l.b16 %v567
    %v3647 = vunpack.c.l.b16 %v568
    %v3648 = vunpack.c.l.b16 %v569
    %v3649 = vunpack.c.l.b16 %v570
    %v3650 = vunpack.c.l.b16 %v571
    %v3651 = vunpack.c.l.b16 %v572
    %v3652 = vunpack.c.l.b16 %v573
    %v3653 = vunpack.c.l.b16 %v574
    %v3654 = vunpack.c.l.b16 %v575
    %v3655 = vunpack.c.l.b16 %v576
    %v3656 = vunpack.c.l.b16 %v577
    %v3657 = vunpack.c.l.b16 %v578
    %v3658 = vunpack.c.l.b16 %v579
    %v3659 = vunpack.c.l.b16 %v580
    %v3660 = vunpack.c.l.b16 %v581
    %v3661 = vunpack.c.l.b16 %v582
    %v3662 = vunpack.c.l.b16 %v583
    %v3663 = vunpack.c.l.b16 %v584
    %v3664 = vunpack.c.l.b16 %v585
    %v3665 = vunpack.c.l.b16 %v586
    %v3666 = vunpack.c.l.b16 %v587
    %v3667 = vunpack.c.l.b16 %v588
    %v3668 = vunpack.c.l.b16 %v589
    %v3669 = vunpack.c.l.b16 %v590
    %v3670 = vunpack.c.l.b16 %v591
    %v3671 = vunpack.c.l.b16 %v592
    %v3672 = vunpack.c.l.b16 %v593
    %v3673 = vunpack.c.l.b16 %v594
    %v3674 = vunpack.c.l.b16 %v595
    %v3675 = vunpack.c.l.b16 %v596
    %v3676 = vunpack.c.l.b16 %v597
    %v3677 = vunpack.c.l.b16 %v598
    %v3678 = vunpack.c.l.b16 %v599
    %v3679 = vunpack.c.l.b16 %v600
    %v3680 = vunpack.c.l.b16 %v601
    %v3681 = vunpack.c.l.b16 %v602
    %v3682 = vunpack.c.l.b16 %v603
    %v3683 = vunpack.c.l.b16 %v604
    %v3684 = vunpack.c.l.b16 %v605
    %v3685 = vunpack.c.l.b16 %v606
    %v3686 = vunpack.c.l.b16 %v607
    %v3687 = vunpack.c.l.b16 %v608
    %v3688 = vunpack.c.l.b16 %v609
    %v3689 = vunpack.c.l.b16 %v610
    %v3690 = vunpack.c.l.b16 %v611
    %v3691 = vunpack.c.l.b16 %v612
    %v3692 = vunpack.c.l.b16 %v613
    %v3693 = vunpack.c.l.b16 %v614
    %v3694 = vunpack.c.l.b16 %v615
    %v3695 = vunpack.c.l.b16 %v616
    %v3696 = vunpack.c.l.b16 %v617
    %v3697 = vunpack.c.l.b16 %v618
    %v3698 = vunpack.c.l.b16 %v619
    %v3699 = vunpack.c.l.b16 %v620
    %v3700 = vunpack.c.l.b16 %v621
    %v3701 = vunpack.c.l.b16 %v622
    %v3702 = vunpack.c.l.b16 %v623
    %v3703 = vunpack.c.l.b16 %v624
    %v3704 = vunpack.c.l.b16 %v625
    %v3705 = vunpack.c.l.b16 %v626
    %v3706 = vunpack.c.l.b16 %v627
    %v3707 = vunpack.c.l.b16 %v628
    %v3708 = vunpack.c.l.b16 %v629
    %v3709 = vunpack.c.l.b16 %v630
    %v3710 = vunpack.c.l.b16 %v631
    %v3711 = vunpack.c.l.b16 %v632
    %v3712 = vunpack.c.l.b16 %v633
    %v3713 = vunpack.c.l.b16 %v634
    %v3714 = vunpack.c.l.b16 %v635
    %v3715 = vunpack.c.l.b16 %v636
    %v3716 = vunpack.c.l.b16 %v637
    %v3717 = vunpack.c.l.b16 %v638
    %v3718 = vunpack.c.l.b16 %v639
    %v3719 = vunpack.c.l.b16 %v640
    %v3720 = vunpack.c.l.b16 %v641
    %v3721 = vunpack.c.l.b16 %v642
    %v3722 = vunpack.c.l.b16 %v643
    %v3723 = vunpack.c.l.b16 %v644
    %v3724 = vunpack.c.l.b16 %v645
    %v3725 = vunpack.c.l.b16 %v646
    %v3726 = vunpack.c.l.b16 %v647
    %v3727 = vunpack.c.l.b16 %v648
    %v3728 = vunpack.c.l.b16 %v649
    %v3729 = vunpack.c.l.b16 %v650
    %v3730 = vunpack.c.l.b16 %v651
    %v3731 = vunpack.c.l.b16 %v652
    %v3732 = vunpack.c.l.b16 %v653
    %v3733 = vunpack.c.l.b16 %v654
    %v3734 = vunpack.c.l.b16 %v655
    %v3735 = vunpack.c.l.b16 %v656
    %v3736 = vunpack.c.l.b16 %v657
    %v3737 = vunpack.c.l.b16 %v658
    %v3738 = vunpack.c.l.b16 %v659
    %v3739 = vunpack.c.l.b16 %v660
    %v3740 = vunpack.c.l.b16 %v661
    %v3741 = vunpack.c.l.b16 %v662
    %v3742 = vunpack.c.l.b16 %v663
    %v3743 = vunpack.c.l.b16 %v664
    %v3744 = vunpack.c.l.b16 %v665
    %v3745 = vunpack.c.l.b16 %v666
    %v3746 = vunpack.c.l.b16 %v667
    %v3747 = vunpack.c.l.b16 %v668
    %v3748 = vunpack.c.l.b16 %v669
    %v3749 = vunpack.c.l.b16 %v670
    %v3750 = vunpack.c.l.b16 %v671
    %v3751 = vunpack.c.l.b16 %v672
    %v3752 = vunpack.c.l.b16 %v673
    %v3753 = vunpack.c.l.b16 %v674
    %v3754 = vunpack.c.l.b16 %v675
    %v3755 = vunpack.c.l.b16 %v676
    %v3756 = vunpack.c.l.b16 %v677
    %v3757 = vunpack.c.l.b16 %v678
    %v3758 = vunpack.c.l.b16 %v679
    %v3759 = vunpack.c.l.b16 %v680
    %v3760 = vunpack.c.l.b16 %v681
    %v3761 = vunpack.c.l.b16 %v682
    %v3762 = vunpack.c.l.b16 %v683
    %v3763 = vunpack.c.l.b16 %v684
    %v3764 = vunpack.c.l.b16 %v685
    %v3765 = vunpack.c.l.b16 %v686
    %v3766 = vunpack.c.l.b16 %v687
    %v3767 = vunpack.c.l.b16 %v688
    %v3768 = vunpack.c.l.b16 %v689
    %v3769 = vunpack.c.l.b16 %v690
    %v3770 = vunpack.c.l.b16 %v691
    %v3771 = vunpack.c.l.b16 %v692
    %v3772 = vunpack.c.l.b16 %v693
    %v3773 = vunpack.c.l.b16 %v694
    %v3774 = vunpack.c.l.b16 %v695
    %v3775 = vunpack.c.l.b16 %v696
    %v3776 = vunpack.c.l.b16 %v697
    %v3777 = vunpack.c.l.b16 %v698
    %v3778 = vunpack.c.l.b16 %v699
    %v3779 = vunpack.c.l.b16 %v700
    %v3780 = vunpack.c.l.b16 %v701
    %v3781 = vunpack.c.l.b16 %v702
    %v3782 = vunpack.c.l.b16 %v703
    %v3783 = vunpack.c.l.b16 %v704
    %v3784 = vunpack.c.l.b16 %v705
    %v3785 = vunpack.c.l.b16 %v706
    %v3786 = vunpack.c.l.b16 %v707
    %v3787 = vunpack.c.l.b16 %v708
    %v3788 = vunpack.c.l.b16 %v709
    %v3789 = vunpack.c.l.b16 %v710
    %v3790 = vunpack.c.l.b16 %v711
    %v3791 = vunpack.c.l.b16 %v712
    %v3792 = vunpack.c.l.b16 %v713
    %v3793 = vunpack.c.l.b16 %v714
    %v3794 = vunpack.c.l.b16 %v715
    %v3795 = vunpack.c.l.b16 %v716
    %v3796 = vunpack.c.l.b16 %v717
    %v3797 = vunpack.c.l.b16 %v718
    %v3798 = vunpack.c.l.b16 %v719
    %v3799 = vunpack.c.l.b16 %v720
    %v3800 = vunpack.c.l.b16 %v721
    %v3801 = vunpack.c.l.b16 %v722
    %v3802 = vunpack.c.l.b16 %v723
    %v3803 = vunpack.c.l.b16 %v724
    %v3804 = vunpack.c.l.b16 %v725
    %v3805 = vunpack.c.l.b16 %v726
    %v3806 = vunpack.c.l.b16 %v727
    %v3807 = vunpack.c.l.b16 %v728
    %v3808 = vunpack.c.l.b16 %v729
    %v3809 = vunpack.c.l.b16 %v730
    %v3810 = vunpack.c.l.b16 %v731
    %v3811 = vunpack.c.l.b16 %v732
    %v3812 = vunpack.c.l.b16 %v733
    %v3813 = vunpack.c.l.b16 %v734
    %v3814 = vunpack.c.l.b16 %v735
    %v3815 = vunpack.c.l.b16 %v736
    %v3816 = vunpack.c.l.b16 %v737
    %v3817 = vunpack.c.l.b16 %v738
    %v3818 = vunpack.c.l.b16 %v739
    %v3819 = vunpack.c.l.b16 %v740
    %v3820 = vunpack.c.l.b16 %v741
    %v3821 = vunpack.c.l.b16 %v742
    %v3822 = vunpack.c.l.b16 %v743
    %v3823 = vunpack.c.l.b16 %v744
    %v3824 = vunpack.c.l.b16 %v745
    %v3825 = vunpack.c.l.b16 %v746
    %v3826 = vunpack.c.l.b16 %v747
    %v3827 = vunpack.c.l.b16 %v748
    %v3828 = vunpack.c.l.b16 %v749
    %v3829 = vunpack.c.l.b16 %v750
    %v3830 = vunpack.c.l.b16 %v751
    %v3831 = vunpack.c.l.b16 %v752
    %v3832 = vunpack.c.l.b16 %v753
    %v3833 = vunpack.c.l.b16 %v754
    %v3834 = vunpack.c.l.b16 %v755
    %v3835 = vunpack.c.l.b16 %v756
    %v3836 = vunpack.c.l.b16 %v757
    %v3837 = vunpack.c.l.b16 %v758
    %v3838 = vunpack.c.l.b16 %v759
    %v3839 = vunpack.c.l.b16 %v760
    %v3840 = vunpack.c.l.b16 %v761
    %v3841 = vunpack.c.l.b16 %v762
    %v3842 = vunpack.c.l.b16 %v763
    %v3843 = vunpack.c.l.b16 %v764
    %v3844 = vunpack.c.l.b16 %v765
    %v3845 = vunpack.c.l.b16 %v766
    %v3846 = vunpack.c.l.b16 %v767
    %v3847 = vunpack.c.l.b16 %v768
    %v3848 = vunpack.c.l.b16 %v769
    %v3849 = vunpack.c.l.b16 %v770
    %v3850 = vunpack.c.l.b16 %v771
    %v3851 = vunpack.c.l.b16 %v772
    %v3852 = vunpack.c.l.b16 %v773
    %v3853 = vunpack.c.l.b16 %v774
    %v3854 = vunpack.c.l.b16 %v775
    %v3855 = vunpack.c.l.b16 %v776
    %v3856 = vunpack.c.l.b16 %v777
    %v3857 = vunpack.c.l.b16 %v778
    %v3858 = vunpack.c.l.b16 %v779
    %v3859 = vunpack.c.l.b16 %v780
    %v3860 = vunpack.c.l.b16 %v781
    %v3861 = vunpack.c.l.b16 %v782
    %v3862 = vunpack.c.l.b16 %v783
    %v3863 = vunpack.c.l.b16 %v784
    %v3864 = vunpack.c.l.b16 %v785
    %v3865 = vunpack.c.l.b16 %v786
    %v3866 = vunpack.c.l.b16 %v787
    %v3867 = vunpack.c.l.b16 %v788
    %v3868 = vunpack.c.l.b16 %v789
    %v3869 = vunpack.c.l.b16 %v790
    %v3870 = vunpack.c.l.b16 %v791
    %v3871 = vunpack.c.l.b16 %v792
    %v3872 = vunpack.c.l.b16 %v793
    %v3873 = vunpack.c.l.b16 %v794
    %v3874 = vunpack.c.l.b16 %v795
    %v3875 = vunpack.c.l.b16 %v796
    %v3876 = vunpack.c.l.b16 %v797
    %v3877 = vunpack.c.l.b16 %v798
    %v3878 = vunpack.c.l.b16 %v799
    %v3879 = vunpack.c.l.b16 %v800
    %v3880 = vunpack.c.l.b16 %v801
    %v3881 = vunpack.c.l.b16 %v802
    %v3882 = vunpack.c.l.b16 %v803
    %v3883 = vunpack.c.l.b16 %v804
    %v3884 = vunpack.c.l.b16 %v805
    %v3885 = vunpack.c.l.b16 %v806
    %v3886 = vunpack.c.l.b16 %v807
    %v3887 = vunpack.c.l.b16 %v808
    %v3888 = vunpack.c.l.b16 %v809
    %v3889 = vunpack.c.l.b16 %v810
    %v3890 = vunpack.c.l.b16 %v811
    %v3891 = vunpack.c.l.b16 %v812
    %v3892 = vunpack.c.l.b16 %v813
    %v3893 = vunpack.c.l.b16 %v814
    %v3894 = vunpack.c.l.b16 %v815
    %v3895 = vunpack.c.l.b16 %v816
    %v3896 = vunpack.c.l.b16 %v817
    %v3897 = vunpack.c.l.b16 %v818
    %v3898 = vunpack.c.l.b16 %v819
    %v3899 = vunpack.c.l.b16 %v820
    %v3900 = vunpack.c.l.b16 %v821
    %v3901 = vunpack.c.l.b16 %v822
    %v3902 = vunpack.c.l.b16 %v823
    %v3903 = vunpack.c.l.b16 %v824
    %v3904 = vunpack.c.l.b16 %v825
    %v3905 = vunpack.c.l.b16 %v826
    %v3906 = vunpack.c.l.b16 %v827
    %v3907 = vunpack.c.l.b16 %v828
    %v3908 = vunpack.c.l.b16 %v829
    %v3909 = vunpack.c.l.b16 %v830
    %v3910 = vunpack.c.l.b16 %v831
    %v3911 = vunpack.c.l.b16 %v832
    %v3912 = vunpack.c.l.b16 %v833
    %v3913 = vunpack.c.l.b16 %v834
    %v3914 = vunpack.c.l.b16 %v835
    %v3915 = vunpack.c.l.b16 %v836
    %v3916 = vunpack.c.l.b16 %v837
    %v3917 = vunpack.c.l.b16 %v838
    %v3918 = vunpack.c.l.b16 %v839
    %v3919 = vunpack.c.l.b16 %v840
    %v3920 = vunpack.c.l.b16 %v841
    %v3921 = vunpack.c.l.b16 %v842
    %v3922 = vunpack.c.l.b16 %v843
    %v3923 = vunpack.c.l.b16 %v844
    %v3924 = vunpack.c.l.b16 %v845
    %v3925 = vunpack.c.l.b16 %v846
    %v3926 = vunpack.c.l.b16 %v847
    %v3927 = vunpack.c.l.b16 %v848
    %v3928 = vunpack.c.l.b16 %v849
    %v3929 = vunpack.c.l.b16 %v850
    %v3930 = vunpack.c.l.b16 %v851
    %v3931 = vunpack.c.l.b16 %v852
    %v3932 = vunpack.c.l.b16 %v853
    %v3933 = vunpack.c.l.b16 %v854
    %v3934 = vunpack.c.l.b16 %v855
    %v3935 = vunpack.c.l.b16 %v856
    %v3936 = vunpack.c.l.b16 %v857
    %v3937 = vunpack.c.l.b16 %v858
    %v3938 = vunpack.c.l.b16 %v859
    %v3939 = vunpack.c.l.b16 %v860
    %v3940 = vunpack.c.l.b16 %v861
    %v3941 = vunpack.c.l.b16 %v862
    %v3942 = vunpack.c.l.b16 %v863
    %v3943 = vunpack.c.l.b16 %v864
    %v3944 = vunpack.c.l.b16 %v865
    %v3945 = vunpack.c.l.b16 %v866
    %v3946 = vunpack.c.l.b16 %v867
    %v3947 = vunpack.c.l.b16 %v868
    %v3948 = vunpack.c.l.b16 %v869
    %v3949 = vunpack.c.l.b16 %v870
    %v3950 = vunpack.c.l.b16 %v871
    %v3951 = vunpack.c.l.b16 %v872
    %v3952 = vunpack.c.l.b16 %v873
    %v3953 = vunpack.c.l.b16 %v874
    %v3954 = vunpack.c.l.b16 %v875
    %v3955 = vunpack.c.l.b16 %v876
    %v3956 = vunpack.c.l.b16 %v877
    %v3957 = vunpack.c.l.b16 %v878
    %v3958 = vunpack.c.l.b16 %v879
    %v3959 = vunpack.c.l.b16 %v880
    %v3960 = vunpack.c.l.b16 %v881
    %v3961 = vunpack.c.l.b16 %v882
    %v3962 = vunpack.c.l.b16 %v883
    %v3963 = vunpack.c.l.b16 %v884
    %v3964 = vunpack.c.l.b16 %v885
    %v3965 = vunpack.c.l.b16 %v886
    %v3966 = vunpack.c.l.b16 %v887
    %v3967 = vunpack.c.l.b16 %v888
    %v3968 = vunpack.c.l.b16 %v889
    %v3969 = vunpack.c.l.b16 %v890
    %v3970 = vunpack.c.l.b16 %v891
    %v3971 = vunpack.c.l.b16 %v892
    %v3972 = vunpack.c.l.b16 %v893
    %v3973 = vunpack.c.l.b16 %v894
    %v3974 = vunpack.c.l.b16 %v895
    %v3975 = vunpack.c.l.b16 %v896
    %v3976 = vunpack.c.l.b16 %v897
    %v3977 = vunpack.c.l.b16 %v898
    %v3978 = vunpack.c.l.b16 %v899
    %v3979 = vunpack.c.l.b16 %v900
    %v3980 = vunpack.c.l.b16 %v901
    %v3981 = vunpack.c.l.b16 %v902
    %v3982 = vunpack.c.l.b16 %v903
    %v3983 = vunpack.c.l.b16 %v904
    %v3984 = vunpack.c.l.b16 %v905
    %v3985 = vunpack.c.l.b16 %v906
    %v3986 = vunpack.c.l.b16 %v907
    %v3987 = vunpack.c.l.b16 %v908
    %v3988 = vunpack.c.l.b16 %v909
    %v3989 = vunpack.c.l.b16 %v910
    %v3990 = vunpack.c.l.b16 %v911
    %v3991 = vunpack.c.l.b16 %v912
    %v3992 = vunpack.c.l.b16 %v913
    %v3993 = vunpack.c.l.b16 %v914
    %v3994 = vunpack.c.l.b16 %v915
    %v3995 = vunpack.c.l.b16 %v916
    %v3996 = vunpack.c.l.b16 %v917
    %v3997 = vunpack.c.l.b16 %v918
    %v3998 = vunpack.c.l.b16 %v919
    %v3999 = vunpack.c.l.b16 %v920
    %v4000 = vunpack.c.l.b16 %v921
    %v4001 = vunpack.c.l.b16 %v922
    %v4002 = vunpack.c.l.b16 %v923
    %v4003 = vunpack.c.l.b16 %v924
    %v4004 = vunpack.c.l.b16 %v925
    %v4005 = vunpack.c.l.b16 %v926
    %v4006 = vunpack.c.l.b16 %v927
    %v4007 = vunpack.c.l.b16 %v928
    %v4008 = vunpack.c.l.b16 %v929
    %v4009 = vunpack.c.l.b16 %v930
    %v4010 = vunpack.c.l.b16 %v931
    %v4011 = vunpack.c.l.b16 %v932
    %v4012 = vunpack.c.l.b16 %v933
    %v4013 = vunpack.c.l.b16 %v934
    %v4014 = vunpack.c.l.b16 %v935
    %v4015 = vunpack.c.l.b16 %v936
    %v4016 = vunpack.c.l.b16 %v937
    %v4017 = vunpack.c.l.b16 %v938
    %v4018 = vunpack.c.l.b16 %v939
    %v4019 = vunpack.c.l.b16 %v940
    %v4020 = vunpack.c.l.b16 %v941
    %v4021 = vunpack.c.l.b16 %v942
    %v4022 = vunpack.c.l.b16 %v943
    %v4023 = vunpack.c.l.b16 %v944
    %v4024 = vunpack.c.l.b16 %v945
    %v4025 = vunpack.c.l.b16 %v946
    %v4026 = vunpack.c.l.b16 %v947
    %v4027 = vunpack.c.l.b16 %v948
    %v4028 = vunpack.c.l.b16 %v949
    %v4029 = vunpack.c.l.b16 %v950
    %v4030 = vunpack.c.l.b16 %v951
    %v4031 = vunpack.c.l.b16 %v952
    %v4032 = vunpack.c.l.b16 %v953
    %v4033 = vunpack.c.l.b16 %v954
    %v4034 = vunpack.c.l.b16 %v955
    %v4035 = vunpack.c.l.b16 %v956
    %v4036 = vunpack.c.l.b16 %v957
    %v4037 = vunpack.c.l.b16 %v958
    %v4038 = vunpack.c.l.b16 %v959
    %v4039 = vunpack.c.l.b16 %v960
    %v4040 = vunpack.c.l.b16 %v961
    %v4041 = vunpack.c.l.b16 %v962
    %v4042 = vunpack.c.l.b16 %v963
    %v4043 = vunpack.c.l.b16 %v964
    %v4044 = vunpack.c.l.b16 %v965
    %v4045 = vunpack.c.l.b16 %v966
    %v4046 = vunpack.c.l.b16 %v967
    %v4047 = vunpack.c.l.b16 %v968
    %v4048 = vunpack.c.l.b16 %v969
    %v4049 = vunpack.c.l.b16 %v970
    %v4050 = vunpack.c.l.b16 %v971
    %v4051 = vunpack.c.l.b16 %v972
    %v4052 = vunpack.c.l.b16 %v973
    %v4053 = vunpack.c.l.b16 %v974
    %v4054 = vunpack.c.l.b16 %v975
    %v4055 = vunpack.c.l.b16 %v976
    %v4056 = vunpack.c.l.b16 %v977
    %v4057 = vunpack.c.l.b16 %v978
    %v4058 = vunpack.c.l.b16 %v979
    %v4059 = vunpack.c.l.b16 %v980
    %v4060 = vunpack.c.l.b16 %v981
    %v4061 = vunpack.c.l.b16 %v982
    %v4062 = vunpack.c.l.b16 %v983
    %v4063 = vunpack.c.l.b16 %v984
    %v4064 = vunpack.c.l.b16 %v985
    %v4065 = vunpack.c.l.b16 %v986
    %v4066 = vunpack.c.l.b16 %v987
    %v4067 = vunpack.c.l.b16 %v988
    %v4068 = vunpack.c.l.b16 %v989
    %v4069 = vunpack.c.l.b16 %v990
    %v4070 = vunpack.c.l.b16 %v991
    %v4071 = vunpack.c.l.b16 %v992
    %v4072 = vunpack.c.l.b16 %v993
    %v4073 = vunpack.c.l.b16 %v994
    %v4074 = vunpack.c.l.b16 %v995
    %v4075 = vunpack.c.l.b16 %v996
    %v4076 = vunpack.c.l.b16 %v997
    %v4077 = vunpack.c.l.b16 %v998
    %v4078 = vunpack.c.l.b16 %v999
    %v4079 = vunpack.c.l.b16 %v1000
    %v4080 = vunpack.c.l.b16 %v1001
    %v4081 = vunpack.c.l.b16 %v1002
    %v4082 = vunpack.c.l.b16 %v1003
    %v4083 = vunpack.c.l.b16 %v1004
    %v4084 = vunpack.c.l.b16 %v1005
    %v4085 = vunpack.c.l.b16 %v1006
    %v4086 = vunpack.c.l.b16 %v1007
    %v4087 = vunpack.c.l.b16 %v1008
    %v4088 = vunpack.c.l.b16 %v1009
    %v4089 = vunpack.c.l.b16 %v1010
    %v4090 = vunpack.c.l.b16 %v1011
    %v4091 = vunpack.c.l.b16 %v1012
    %v4092 = vunpack.c.l.b16 %v1013
    %v4093 = vunpack.c.l.b16 %v1014
    %v4094 = vunpack.c.l.b16 %v1015
    %v4095 = vunpack.c.l.b16 %v1016
    %v4096 = vunpack.c.l.b16 %v1017
    %v4097 = vunpack.c.l.b16 %v1018
    %v4098 = vunpack.c.l.b16 %v1019
    %v4099 = vunpack.c.l.b16 %v1020
    %v4100 = vunpack.c.l.b16 %v1021
    %v4101 = vunpack.c.l.b16 %v1022
    %v4102 = vunpack.c.l.b16 %v1023
    %v4103 = vunpack.c.l.b16 %v1024
    %v4104 = vunpack.c.l.b16 %v1025
    %v4105 = vunpack.c.l.b16 %v1026
    %v4106 = vunpack.c.l.b16 %v1027
    %v4107 = vunpack.c.l.b16 %v1028
    %v4108 = vunpack.c.l.b16 %v1029
    %v4109 = vunpack.c.l.b16 %v1030
    %v4110 = vunpack.c.l.b16 %v1031
    %v4111 = vunpack.c.l.b16 %v1032
    %v4112 = vunpack.c.l.b16 %v1033
    %v4113 = vunpack.c.l.b16 %v1034
    %v4114 = vunpack.c.l.b16 %v1035
    %v4115 = vunpack.c.l.b16 %v1036
    %v4116 = vunpack.c.l.b16 %v1037
    %v4117 = vunpack.c.l.b16 %v1038
    %v4118 = vunpack.c.l.b16 %v1039
    %v4119 = vunpack.c.l.b16 %v1040
    %v4120 = vunpack.c.l.b16 %v1041
    %v4121 = vunpack.c.l.b16 %v1042
    %v4122 = vunpack.c.l.b16 %v1043
    %v4123 = vunpack.c.l.b16 %v1044
    %v4124 = vunpack.c.l.b16 %v1045
    %v4125 = vunpack.c.l.b16 %v1046
    %v4126 = vunpack.c.l.b16 %v1047
    %v4127 = vunpack.c.l.b16 %v1048
    %v4128 = vunpack.c.l.b16 %v1049
    %v4129 = vunpack.c.l.b16 %v1050
    %v4130 = vunpack.c.l.b16 %v1051
    %v4131 = vunpack.c.l.b16 %v1052
    %v4132 = vunpack.c.l.b16 %v1053
    %v4133 = vunpack.c.l.b16 %v1054
    %v4134 = vunpack.c.l.b16 %v1055
    %v4135 = vunpack.c.l.b16 %v1056
    %v4136 = vunpack.c.l.b16 %v1057
    %v4137 = vunpack.c.l.b16 %v1058
    %v4138 = vunpack.c.l.b16 %v1059
    %v4139 = vunpack.c.l.b16 %v1060
    %v4140 = vunpack.c.l.b16 %v1061
    %v4141 = vunpack.c.l.b16 %v1062
    %v4142 = vunpack.c.l.b16 %v1063
    %v4143 = vunpack.c.l.b16 %v1064
    %v4144 = vunpack.c.l.b16 %v1065
    %v4145 = vunpack.c.l.b16 %v1066
    %v4146 = vunpack.c.l.b16 %v1067
    %v4147 = vunpack.c.l.b16 %v1068
    %v4148 = vunpack.c.l.b16 %v1069
    %v4149 = vunpack.c.l.b16 %v1070
    %v4150 = vunpack.c.l.b16 %v1071
    %v4151 = vunpack.c.l.b16 %v1072
    %v4152 = vunpack.c.l.b16 %v1073
    %v4153 = vunpack.c.l.b16 %v1074
    %v4154 = vunpack.c.l.b16 %v1075
    %v4155 = vunpack.c.l.b16 %v1076
    %v4156 = vunpack.c.l.b16 %v1077
    %v4157 = vunpack.c.l.b16 %v1078
    %v4158 = vunpack.c.l.b16 %v1079
    %v4159 = vunpack.c.l.b16 %v1080
    %v4160 = vunpack.c.l.b16 %v1081
    %v4161 = vunpack.c.l.b16 %v1082
    %v4162 = vunpack.c.l.b16 %v1083
    %v4163 = vunpack.c.l.b16 %v1084
    %v4164 = vunpack.c.l.b16 %v1085
    %v4165 = vunpack.c.l.b16 %v1086
    %v4166 = vunpack.c.l.b16 %v1087
    %v4167 = vunpack.c.l.b16 %v1088
    %v4168 = vunpack.c.l.b16 %v1089
    %v4169 = vunpack.c.l.b16 %v1090
    %v4170 = vunpack.c.l.b16 %v1091
    %v4171 = vunpack.c.l.b16 %v1092
    %v4172 = vunpack.c.l.b16 %v1093
    %v4173 = vunpack.c.l.b16 %v1094
    %v4174 = vunpack.c.l.b16 %v1095
    %v4175 = vunpack.c.l.b16 %v1096
    %v4176 = vunpack.c.l.b16 %v1097
    %v4177 = vunpack.c.l.b16 %v1098
    %v4178 = vunpack.c.l.b16 %v1099
    %v4179 = vunpack.c.l.b16 %v1100
    %v4180 = vunpack.c.l.b16 %v1101
    %v4181 = vunpack.c.l.b16 %v1102
    %v4182 = vunpack.c.l.b16 %v1103
    %v4183 = vunpack.c.l.b16 %v1104
    %v4184 = vunpack.c.l.b16 %v1105
    %v4185 = vunpack.c.l.b16 %v1106
    %v4186 = vunpack.c.l.b16 %v1107
    %v4187 = vunpack.c.l.b16 %v1108
    %v4188 = vunpack.c.l.b16 %v1109
    %v4189 = vunpack.c.l.b16 %v1110
    %v4190 = vunpack.c.l.b16 %v1111
    %v4191 = vunpack.c.l.b16 %v1112
    %v4192 = vunpack.c.l.b16 %v1113
    %v4193 = vunpack.c.l.b16 %v1114
    %v4194 = vunpack.c.l.b16 %v1115
    %v4195 = vunpack.c.l.b16 %v1116
    %v4196 = vunpack.c.l.b16 %v1117
    %v4197 = vunpack.c.l.b16 %v1118
    %v4198 = vunpack.c.l.b16 %v1119
    %v4199 = vunpack.c.l.b16 %v1120
    %v4200 = vunpack.c.l.b16 %v1121
    %v4201 = vunpack.c.l.b16 %v1122
    %v4202 = vunpack.c.l.b16 %v1123
    %v4203 = vunpack.c.l.b16 %v1124
    %v4204 = vunpack.c.l.b16 %v1125
    %v4205 = vunpack.c.l.b16 %v1126
    %v4206 = vunpack.c.l.b16 %v1127
    %v4207 = vunpack.c.l.b16 %v1128
    %v4208 = vunpack.c.l.b16 %v1129
    %v4209 = vunpack.c.l.b16 %v1130
    %v4210 = vunpack.c.l.b16 %v1131
    %v4211 = vunpack.c.l.b16 %v1132
    %v4212 = vunpack.c.l.b16 %v1133
    %v4213 = vunpack.c.l.b16 %v1134
    %v4214 = vunpack.c.l.b16 %v1135
    %v4215 = vunpack.c.l.b16 %v1136
    %v4216 = vunpack.c.l.b16 %v1137
    %v4217 = vunpack.c.l.b16 %v1138
    %v4218 = vunpack.c.l.b16 %v1139
    %v4219 = vunpack.c.l.b16 %v1140
    %v4220 = vunpack.c.l.b16 %v1141
    %v4221 = vunpack.c.l.b16 %v1142
    %v4222 = vunpack.c.l.b16 %v1143
    %v4223 = vunpack.c.l.b16 %v1144
    %v4224 = vunpack.c.l.b16 %v1145
    %v4225 = vunpack.c.l.b16 %v1146
    %v4226 = vunpack.c.l.b16 %v1147
    %v4227 = vunpack.c.l.b16 %v1148
    %v4228 = vunpack.c.l.b16 %v1149
    %v4229 = vunpack.c.l.b16 %v1150
    %v4230 = vunpack.c.l.b16 %v1151
    %v4231 = vunpack.c.l.b16 %v1152
    %v4232 = vunpack.c.l.b16 %v1153
    %v4233 = vunpack.c.l.b16 %v1154
    %v4234 = vunpack.c.l.b16 %v1155
    %v4235 = vunpack.c.l.b16 %v1156
    %v4236 = vunpack.c.l.b16 %v1157
    %v4237 = vunpack.c.l.b16 %v1158
    %v4238 = vunpack.c.l.b16 %v1159
    %v4239 = vunpack.c.l.b16 %v1160
    %v4240 = vunpack.c.l.b16 %v1161
    %v4241 = vunpack.c.l.b16 %v1162
    %v4242 = vunpack.c.l.b16 %v1163
    %v4243 = vunpack.c.l.b16 %v1164
    %v4244 = vunpack.c.l.b16 %v1165
    %v4245 = vunpack.c.l.b16 %v1166
    %v4246 = vunpack.c.l.b16 %v1167
    %v4247 = vunpack.c.l.b16 %v1168
    %v4248 = vunpack.c.l.b16 %v1169
    %v4249 = vunpack.c.l.b16 %v1170
    %v4250 = vunpack.c.l.b16 %v1171
    %v4251 = vunpack.c.l.b16 %v1172
    %v4252 = vunpack.c.l.b16 %v1173
    %v4253 = vunpack.c.l.b16 %v1174
    %v4254 = vunpack.c.l.b16 %v1175
    %v4255 = vunpack.c.l.b16 %v1176
    %v4256 = vunpack.c.l.b16 %v1177
    %v4257 = vunpack.c.l.b16 %v1178
    %v4258 = vunpack.c.l.b16 %v1179
    %v4259 = vunpack.c.l.b16 %v1180
    %v4260 = vunpack.c.l.b16 %v1181
    %v4261 = vunpack.c.l.b16 %v1182
    %v4262 = vunpack.c.l.b16 %v1183
    %v4263 = vunpack.c.l.b16 %v1184
    %v4264 = vunpack.c.l.b16 %v1185
    %v4265 = vunpack.c.l.b16 %v1186
    %v4266 = vunpack.c.l.b16 %v1187
    %v4267 = vunpack.c.l.b16 %v1188
    %v4268 = vunpack.c.l.b16 %v1189
    %v4269 = vunpack.c.l.b16 %v1190
    %v4270 = vunpack.c.l.b16 %v1191
    %v4271 = vunpack.c.l.b16 %v1192
    %v4272 = vunpack.c.l.b16 %v1193
    %v4273 = vunpack.c.l.b16 %v1194
    %v4274 = vunpack.c.l.b16 %v1195
    %v4275 = vunpack.c.l.b16 %v1196
    %v4276 = vunpack.c.l.b16 %v1197
    %v4277 = vunpack.c.l.b16 %v1198
    %v4278 = vunpack.c.l.b16 %v1199
    %v4279 = vunpack.c.l.b16 %v1200
    %v4280 = vunpack.c.l.b16 %v1201
    %v4281 = vunpack.c.l.b16 %v1202
    %v4282 = vunpack.c.l.b16 %v1203
    %v4283 = vunpack.c.l.b16 %v1204
    %v4284 = vunpack.c.l.b16 %v1205
    %v4285 = vunpack.c.l.b16 %v1206
    %v4286 = vunpack.c.l.b16 %v1207
    %v4287 = vunpack.c.l.b16 %v1208
    %v4288 = vunpack.c.l.b16 %v1209
    %v4289 = vunpack.c.l.b16 %v1210
    %v4290 = vunpack.c.l.b16 %v1211
    %v4291 = vunpack.c.l.b16 %v1212
    %v4292 = vunpack.c.l.b16 %v1213
    %v4293 = vunpack.c.l.b16 %v1214
    %v4294 = vunpack.c.l.b16 %v1215
    %v4295 = vunpack.c.l.b16 %v1216
    %v4296 = vunpack.c.l.b16 %v1217
    %v4297 = vunpack.c.l.b16 %v1218
    %v4298 = vunpack.c.l.b16 %v1219
    %v4299 = vunpack.c.l.b16 %v1220
    %v4300 = vunpack.c.l.b16 %v1221
    %v4301 = vunpack.c.l.b16 %v1222
    %v4302 = vunpack.c.l.b16 %v1223
    %v4303 = vunpack.c.l.b16 %v1224
    %v4304 = vunpack.c.l.b16 %v1225
    %v4305 = vunpack.c.l.b16 %v1226
    %v4306 = vunpack.c.l.b16 %v1227
    %v4307 = vunpack.c.l.b16 %v1228
    %v4308 = vunpack.c.l.b16 %v1229
    %v4309 = vunpack.c.l.b16 %v1230
    %v4310 = vunpack.c.l.b16 %v1231
    %v4311 = vunpack.c.l.b16 %v1232
    %v4312 = vunpack.c.l.b16 %v1233
    %v4313 = vunpack.c.l.b16 %v1234
    %v4314 = vunpack.c.l.b16 %v1235
    %v4315 = vunpack.c.l.b16 %v1236
    %v4316 = vunpack.c.l.b16 %v1237
    %v4317 = vunpack.c.l.b16 %v1238
    %v4318 = vunpack.c.l.b16 %v1239
    %v4319 = vunpack.c.l.b16 %v1240
    %v4320 = vunpack.c.l.b16 %v1241
    %v4321 = vunpack.c.l.b16 %v1242
    %v4322 = vunpack.c.l.b16 %v1243
    %v4323 = vunpack.c.l.b16 %v1244
    %v4324 = vunpack.c.l.b16 %v1245
    %v4325 = vunpack.c.l.b16 %v1246
    %v4326 = vunpack.c.l.b16 %v1247
    %v4327 = vunpack.c.l.b16 %v1248
    %v4328 = vunpack.c.l.b16 %v1249
    %v4329 = vunpack.c.l.b16 %v1250
    %v4330 = vunpack.c.l.b16 %v1251
    %v4331 = vunpack.c.l.b16 %v1252
    %v4332 = vunpack.c.l.b16 %v1253
    %v4333 = vunpack.c.l.b16 %v1254
    %v4334 = vunpack.c.l.b16 %v1255
    %v4335 = vunpack.c.l.b16 %v1256
    %v4336 = vunpack.c.l.b16 %v1257
    %v4337 = vunpack.c.l.b16 %v1258
    %v4338 = vunpack.c.l.b16 %v1259
    %v4339 = vunpack.c.l.b16 %v1260
    %v4340 = vunpack.c.l.b16 %v1261
    %v4341 = vunpack.c.l.b16 %v1262
    %v4342 = vunpack.c.l.b16 %v1263
    %v4343 = vunpack.c.l.b16 %v1264
    %v4344 = vunpack.c.l.b16 %v1265
    %v4345 = vunpack.c.l.b16 %v1266
    %v4346 = vunpack.c.l.b16 %v1267
    %v4347 = vunpack.c.l.b16 %v1268
    %v4348 = vunpack.c.l.b16 %v1269
    %v4349 = vunpack.c.l.b16 %v1270
    %v4350 = vunpack.c.l.b16 %v1271
    %v4351 = vunpack.c.l.b16 %v1272
    %v4352 = vunpack.c.l.b16 %v1273
    %v4353 = vunpack.c.l.b16 %v1274
    %v4354 = vunpack.c.l.b16 %v1275
    %v4355 = vunpack.c.l.b16 %v1276
    %v4356 = vunpack.c.l.b16 %v1277
    %v4357 = vunpack.c.l.b16 %v1278
    %v4358 = vunpack.c.l.b16 %v1279
    %v4359 = vunpack.c.l.b16 %v1280
    %v4360 = vunpack.c.l.b16 %v1281
    %v4361 = vunpack.c.l.b16 %v1282
    %v4362 = vunpack.c.l.b16 %v1283
    %v4363 = vunpack.c.l.b16 %v1284
    %v4364 = vunpack.c.l.b16 %v1285
    %v4365 = vunpack.c.l.b16 %v1286
    %v4366 = vunpack.c.l.b16 %v1287
    %v4367 = vunpack.c.l.b16 %v1288
    %v4368 = vunpack.c.l.b16 %v1289
    %v4369 = vunpack.c.l.b16 %v1290
    %v4370 = vunpack.c.l.b16 %v1291
    %v4371 = vunpack.c.l.b16 %v1292
    %v4372 = vunpack.c.l.b16 %v1293
    %v4373 = vunpack.c.l.b16 %v1294
    %v4374 = vunpack.c.l.b16 %v1295
    %v4375 = vunpack.c.l.b16 %v1296
    %v4376 = vunpack.c.l.b16 %v1297
    %v4377 = vunpack.c.l.b16 %v1298
    %v4378 = vunpack.c.l.b16 %v1299
    %v4379 = vunpack.c.l.b16 %v1300
    %v4380 = vunpack.c.l.b16 %v1301
    %v4381 = vunpack.c.l.b16 %v1302
    %v4382 = vunpack.c.l.b16 %v1303
    %v4383 = vunpack.c.l.b16 %v1304
    %v4384 = vunpack.c.l.b16 %v1305
    %v4385 = vunpack.c.l.b16 %v1306
    %v4386 = vunpack.c.l.b16 %v1307
    %v4387 = vunpack.c.l.b16 %v1308
    %v4388 = vunpack.c.l.b16 %v1309
    %v4389 = vunpack.c.l.b16 %v1310
    %v4390 = vunpack.c.l.b16 %v1311
    %v4391 = vunpack.c.l.b16 %v1312
    %v4392 = vunpack.c.l.b16 %v1313
    %v4393 = vunpack.c.l.b16 %v1314
    %v4394 = vunpack.c.l.b16 %v1315
    %v4395 = vunpack.c.l.b16 %v1316
    %v4396 = vunpack.c.l.b16 %v1317
    %v4397 = vunpack.c.l.b16 %v1318
    %v4398 = vunpack.c.l.b16 %v1319
    %v4399 = vunpack.c.l.b16 %v1320
    %v4400 = vunpack.c.l.b16 %v1321
    %v4401 = vunpack.c.l.b16 %v1322
    %v4402 = vunpack.c.l.b16 %v1323
    %v4403 = vunpack.c.l.b16 %v1324
    %v4404 = vunpack.c.l.b16 %v1325
    %v4405 = vunpack.c.l.b16 %v1326
    %v4406 = vunpack.c.l.b16 %v1327
    %v4407 = vunpack.c.l.b16 %v1328
    %v4408 = vunpack.c.l.b16 %v1329
    %v4409 = vunpack.c.l.b16 %v1330
    %v4410 = vunpack.c.l.b16 %v1331
    %v4411 = vunpack.c.l.b16 %v1332
    %v4412 = vunpack.c.l.b16 %v1333
    %v4413 = vunpack.c.l.b16 %v1334
    %v4414 = vunpack.c.l.b16 %v1335
    %v4415 = vunpack.c.l.b16 %v1336
    %v4416 = vunpack.c.l.b16 %v1337
    %v4417 = vunpack.c.l.b16 %v1338
    %v4418 = vunpack.c.l.b16 %v1339
    %v4419 = vunpack.c.l.b16 %v1340
    %v4420 = vunpack.c.l.b16 %v1341
    %v4421 = vunpack.c.l.b16 %v1342
    %v4422 = vunpack.c.l.b16 %v1343
    %v4423 = vunpack.c.l.b16 %v1344
    %v4424 = vunpack.c.l.b16 %v1345
    %v4425 = vunpack.c.l.b16 %v1346
    %v4426 = vunpack.c.l.b16 %v1347
    %v4427 = vunpack.c.l.b16 %v1348
    %v4428 = vunpack.c.l.b16 %v1349
    %v4429 = vunpack.c.l.b16 %v1350
    %v4430 = vunpack.c.l.b16 %v1351
    %v4431 = vunpack.c.l.b16 %v1352
    %v4432 = vunpack.c.l.b16 %v1353
    %v4433 = vunpack.c.l.b16 %v1354
    %v4434 = vunpack.c.l.b16 %v1355
    %v4435 = vunpack.c.l.b16 %v1356
    %v4436 = vunpack.c.l.b16 %v1357
    %v4437 = vunpack.c.l.b16 %v1358
    %v4438 = vunpack.c.l.b16 %v1359
    %v4439 = vunpack.c.l.b16 %v1360
    %v4440 = vunpack.c.l.b16 %v1361
    %v4441 = vunpack.c.l.b16 %v1362
    %v4442 = vunpack.c.l.b16 %v1363
    %v4443 = vunpack.c.l.b16 %v1364
    %v4444 = vunpack.c.l.b16 %v1365
    %v4445 = vunpack.c.l.b16 %v1366
    %v4446 = vunpack.c.l.b16 %v1367
    %v4447 = vunpack.c.l.b16 %v1368
    %v4448 = vunpack.c.l.b16 %v1369
    %v4449 = vunpack.c.l.b16 %v1370
    %v4450 = vunpack.c.l.b16 %v1371
    %v4451 = vunpack.c.l.b16 %v1372
    %v4452 = vunpack.c.l.b16 %v1373
    %v4453 = vunpack.c.l.b16 %v1374
    %v4454 = vunpack.c.l.b16 %v1375
    %v4455 = vunpack.c.l.b16 %v1376
    %v4456 = vunpack.c.l.b16 %v1377
    %v4457 = vunpack.c.l.b16 %v1378
    %v4458 = vunpack.c.l.b16 %v1379
    %v4459 = vunpack.c.l.b16 %v1380
    %v4460 = vunpack.c.l.b16 %v1381
    %v4461 = vunpack.c.l.b16 %v1382
    %v4462 = vunpack.c.l.b16 %v1383
    %v4463 = vunpack.c.l.b16 %v1384
    %v4464 = vunpack.c.l.b16 %v1385
    %v4465 = vunpack.c.l.b16 %v1386
    %v4466 = vunpack.c.l.b16 %v1387
    %v4467 = vunpack.c.l.b16 %v1388
    %v4468 = vunpack.c.l.b16 %v1389
    %v4469 = vunpack.c.l.b16 %v1390
    %v4470 = vunpack.c.l.b16 %v1391
    %v4471 = vunpack.c.l.b16 %v1392
    %v4472 = vunpack.c.l.b16 %v1393
    %v4473 = vunpack.c.l.b16 %v1394
    %v4474 = vunpack.c.l.b16 %v1395
    %v4475 = vunpack.c.l.b16 %v1396
    %v4476 = vunpack.c.l.b16 %v1397
    %v4477 = vunpack.c.l.b16 %v1398
    %v4478 = vunpack.c.l.b16 %v1399
    %v4479 = vunpack.c.l.b16 %v1400
    %v4480 = vunpack.c.l.b16 %v1401
    %v4481 = vunpack.c.l.b16 %v1402
    %v4482 = vunpack.c.l.b16 %v1403
    %v4483 = vunpack.c.l.b16 %v1404
    %v4484 = vunpack.c.l.b16 %v1405
    %v4485 = vunpack.c.l.b16 %v1406
    %v4486 = vunpack.c.l.b16 %v1407
    %v4487 = vunpack.c.l.b16 %v1408
    %v4488 = vunpack.c.l.b16 %v1409
    %v4489 = vunpack.c.l.b16 %v1410
    %v4490 = vunpack.c.l.b16 %v1411
    %v4491 = vunpack.c.l.b16 %v1412
    %v4492 = vunpack.c.l.b16 %v1413
    %v4493 = vunpack.c.l.b16 %v1414
    %v4494 = vunpack.c.l.b16 %v1415
    %v4495 = vunpack.c.l.b16 %v1416
    %v4496 = vunpack.c.l.b16 %v1417
    %v4497 = vunpack.c.l.b16 %v1418
    %v4498 = vunpack.c.l.b16 %v1419
    %v4499 = vunpack.c.l.b16 %v1420
    %v4500 = vunpack.c.l.b16 %v1421
    %v4501 = vunpack.c.l.b16 %v1422
    %v4502 = vunpack.c.l.b16 %v1423
    %v4503 = vunpack.c.l.b16 %v1424
    %v4504 = vunpack.c.l.b16 %v1425
    %v4505 = vunpack.c.l.b16 %v1426
    %v4506 = vunpack.c.l.b16 %v1427
    %v4507 = vunpack.c.l.b16 %v1428
    %v4508 = vunpack.c.l.b16 %v1429
    %v4509 = vunpack.c.l.b16 %v1430
    %v4510 = vunpack.c.l.b16 %v1431
    %v4511 = vunpack.c.l.b16 %v1432
    %v4512 = vunpack.c.l.b16 %v1433
    %v4513 = vunpack.c.l.b16 %v1434
    %v4514 = vunpack.c.l.b16 %v1435
    %v4515 = vunpack.c.l.b16 %v1436
    %v4516 = vunpack.c.l.b16 %v1437
    %v4517 = vunpack.c.l.b16 %v1438
    %v4518 = vunpack.c.l.b16 %v1439
    %v4519 = vunpack.c.l.b16 %v1440
    %v4520 = vunpack.c.l.b16 %v1441
    %v4521 = vunpack.c.l.b16 %v1442
    %v4522 = vunpack.c.l.b16 %v1443
    %v4523 = vunpack.c.l.b16 %v1444
    %v4524 = vunpack.c.l.b16 %v1445
    %v4525 = vunpack.c.l.b16 %v1446
    %v4526 = vunpack.c.l.b16 %v1447
    %v4527 = vunpack.c.l.b16 %v1448
    %v4528 = vunpack.c.l.b16 %v1449
    %v4529 = vunpack.c.l.b16 %v1450
    %v4530 = vunpack.c.l.b16 %v1451
    %v4531 = vunpack.c.l.b16 %v1452
    %v4532 = vunpack.c.l.b16 %v1453
    %v4533 = vunpack.c.l.b16 %v1454
    %v4534 = vunpack.c.l.b16 %v1455
    %v4535 = vunpack.c.l.b16 %v1456
    %v4536 = vunpack.c.l.b16 %v1457
    %v4537 = vunpack.c.l.b16 %v1458
    %v4538 = vunpack.c.l.b16 %v1459
    %v4539 = vunpack.c.l.b16 %v1460
    %v4540 = vunpack.c.l.b16 %v1461
    %v4541 = vunpack.c.l.b16 %v1462
    %v4542 = vunpack.c.l.b16 %v1463
    %v4543 = vunpack.c.l.b16 %v1464
    %v4544 = vunpack.c.l.b16 %v1465
    %v4545 = vunpack.c.l.b16 %v1466
    %v4546 = vunpack.c.l.b16 %v1467
    %v4547 = vunpack.c.l.b16 %v1468
    %v4548 = vunpack.c.l.b16 %v1469
    %v4549 = vunpack.c.l.b16 %v1470
    %v4550 = vunpack.c.l.b16 %v1471
    %v4551 = vunpack.c.l.b16 %v1472
    %v4552 = vunpack.c.l.b16 %v1473
    %v4553 = vunpack.c.l.b16 %v1474
    %v4554 = vunpack.c.l.b16 %v1475
    %v4555 = vunpack.c.l.b16 %v1476
    %v4556 = vunpack.c.l.b16 %v1477
    %v4557 = vunpack.c.l.b16 %v1478
    %v4558 = vunpack.c.l.b16 %v1479
    %v4559 = vunpack.c.l.b16 %v1480
    %v4560 = vunpack.c.l.b16 %v1481
    %v4561 = vunpack.c.l.b16 %v1482
    %v4562 = vunpack.c.l.b16 %v1483
    %v4563 = vunpack.c.l.b16 %v1484
    %v4564 = vunpack.c.l.b16 %v1485
    %v4565 = vunpack.c.l.b16 %v1486
    %v4566 = vunpack.c.l.b16 %v1487
    %v4567 = vunpack.c.l.b16 %v1488
    %v4568 = vunpack.c.l.b16 %v1489
    %v4569 = vunpack.c.l.b16 %v1490
    %v4570 = vunpack.c.l.b16 %v1491
    %v4571 = vunpack.c.l.b16 %v1492
    %v4572 = vunpack.c.l.b16 %v1493
    %v4573 = vunpack.c.l.b16 %v1494
    %v4574 = vunpack.c.l.b16 %v1495
    %v4575 = vunpack.c.l.b16 %v1496
    %v4576 = vunpack.c.l.b16 %v1497
    %v4577 = vunpack.c.l.b16 %v1498
    %v4578 = vunpack.c.l.b16 %v1499
    %v4579 = vunpack.c.l.b16 %v1500
    %v4580 = vunpack.c.l.b16 %v1501
    %v4581 = vunpack.c.l.b16 %v1502
    %v4582 = vunpack.c.l.b16 %v1503
    %v4583 = vunpack.c.l.b16 %v1504
    %v4584 = vunpack.c.l.b16 %v1505
    %v4585 = vunpack.c.l.b16 %v1506
    %v4586 = vunpack.c.l.b16 %v1507
    %v4587 = vunpack.c.l.b16 %v1508
    %v4588 = vunpack.c.l.b16 %v1509
    %v4589 = vunpack.c.l.b16 %v1510
    %v4590 = vunpack.c.l.b16 %v1511
    %v4591 = vunpack.c.l.b16 %v1512
    %v4592 = vunpack.c.l.b16 %v1513
    %v4593 = vunpack.c.l.b16 %v1514
    %v4594 = vunpack.c.l.b16 %v1515
    %v4595 = vunpack.c.l.b16 %v1516
    %v4596 = vunpack.c.l.b16 %v1517
    %v4597 = vunpack.c.l.b16 %v1518
    %v4598 = vunpack.c.l.b16 %v1519
    %v4599 = vunpack.c.l.b16 %v1520
    %v4600 = vunpack.c.l.b16 %v1521
    %v4601 = vunpack.c.l.b16 %v1522
    %v4602 = vunpack.c.l.b16 %v1523
    %v4603 = vunpack.c.l.b16 %v1524
    %v4604 = vunpack.c.l.b16 %v1525
    %v4605 = vunpack.c.l.b16 %v1526
    %v4606 = vunpack.c.l.b16 %v1527
    %v4607 = vunpack.c.l.b16 %v1528
    %v4608 = vunpack.c.l.b16 %v1529
    %v4609 = vunpack.c.l.b16 %v1530
    %v4610 = vunpack.c.l.b16 %v1531
    %v4611 = vunpack.c.l.b16 %v1532
    %v4612 = vunpack.c.l.b16 %v1533
    %v4613 = vunpack.c.l.b16 %v1534
    %v4614 = vunpack.c.l.b16 %v1535
    %v4615 = vunpack.c.l.b16 %v1536
    %v4616 = vunpack.c.l.b16 %v1537
    %v4617 = vunpack.c.l.b16 %v1538
    %v4618 = vunpack.c.l.b16 %v1539
    %v4619 = vunpack.c.l.b16 %v1540
    %v4620 = vunpack.c.l.b16 %v1541
    %v4621 = vunpack.c.l.b16 %v1542
    %v4622 = vunpack.c.l.b16 %v1543
    %v4623 = vunpack.c.l.b16 %v1544
    %v4624 = vunpack.c.l.b16 %v1545
    %v4625 = vunpack.c.l.b16 %v1546
    %v4626 = vunpack.c.l.b16 %v1547
    %v4627 = vunpack.c.l.b16 %v1548
    %v4628 = vunpack.c.l.b16 %v1549
    %v4629 = vunpack.c.l.b16 %v1550
    %v4630 = vunpack.c.l.b16 %v1551
    %v4631 = vunpack.c.l.b16 %v1552
    %v4632 = vunpack.c.l.b16 %v1553
    %v4633 = vunpack.c.l.b16 %v1554
    %v4634 = vunpack.c.l.b16 %v1555
    %v4635 = vunpack.c.l.b16 %v1556
    %v4636 = vunpack.c.l.b16 %v1557
    %v4637 = vunpack.c.l.b16 %v1558
    %v4638 = vunpack.c.l.b16 %v1559
    %v4639 = vunpack.c.l.b16 %v1560
    %v4640 = vunpack.c.l.b16 %v1561
    %v4641 = vunpack.c.l.b16 %v1562
    %v4642 = vunpack.c.l.b16 %v1563
    %v4643 = vunpack.c.l.b16 %v1564
    %v4644 = vunpack.c.l.b16 %v1565
    %v4645 = vunpack.c.l.b16 %v1566
    %v4646 = vunpack.c.l.b16 %v1567
    %v4647 = vunpack.c.l.b16 %v1568
    %v4648 = vunpack.c.l.b16 %v1569
    %v4649 = vunpack.c.l.b16 %v1570
    %v4650 = vunpack.c.l.b16 %v1571
    %v4651 = vunpack.c.l.b16 %v1572
    %v4652 = vunpack.c.l.b16 %v1573
    %v4653 = vunpack.c.l.b16 %v1574
    %v4654 = vunpack.c.l.b16 %v1575
    %v4655 = vunpack.c.l.b16 %v1576
    %v4656 = vunpack.c.l.b16 %v1577
    %v4657 = vunpack.c.l.b16 %v1578
    %v4658 = vunpack.c.l.b16 %v1579
    %v4659 = vunpack.c.l.b16 %v1580
    %v4660 = vunpack.c.l.b16 %v1581
    %v4661 = vunpack.c.l.b16 %v1582
    %v4662 = vunpack.c.l.b16 %v1583
    %v4663 = vunpack.c.l.b16 %v1584
    %v4664 = vunpack.c.l.b16 %v1585
    %v4665 = vunpack.c.l.b16 %v1586
    %v4666 = vunpack.c.l.b16 %v1587
    %v4667 = vunpack.c.l.b16 %v1588
    %v4668 = vunpack.c.l.b16 %v1589
    %v4669 = vunpack.c.l.b16 %v1590
    %v4670 = vunpack.c.l.b16 %v1591
    %v4671 = vunpack.c.l.b16 %v1592
    %v4672 = vunpack.c.l.b16 %v1593
    %v4673 = vunpack.c.l.b16 %v1594
    %v4674 = vunpack.c.l.b16 %v1595
    %v4675 = vunpack.c.l.b16 %v1596
    %v4676 = vunpack.c.l.b16 %v1597
    %v4677 = vunpack.c.l.b16 %v1598
    %v4678 = vunpack.c.l.b16 %v1599
    %v4679 = vunpack.c.l.b16 %v1600
    %v4680 = vunpack.c.l.b16 %v1601
    %v4681 = vunpack.c.l.b16 %v1602
    %v4682 = vunpack.c.l.b16 %v1603
    %v4683 = vunpack.c.l.b16 %v1604
    %v4684 = vunpack.c.l.b16 %v1605
    %v4685 = vunpack.c.l.b16 %v1606
    %v4686 = vunpack.c.l.b16 %v1607
    %v4687 = vunpack.c.l.b16 %v1608
    %v4688 = vunpack.c.l.b16 %v1609
    %v4689 = vunpack.c.l.b16 %v1610
    %v4690 = vunpack.c.l.b16 %v1611
    %v4691 = vunpack.c.l.b16 %v1612
    %v4692 = vunpack.c.l.b16 %v1613
    %v4693 = vunpack.c.l.b16 %v1614
    %v4694 = vunpack.c.l.b16 %v1615
    %v4695 = vunpack.c.l.b16 %v1616
    %v4696 = vunpack.c.l.b16 %v1617
    %v4697 = vunpack.c.l.b16 %v1618
    %v4698 = vunpack.c.l.b16 %v1619
    %v4699 = vunpack.c.l.b16 %v1620
    %v4700 = vunpack.c.l.b16 %v1621
    %v4701 = vunpack.c.l.b16 %v1622
    %v4702 = vunpack.c.l.b16 %v1623
    %v4703 = vunpack.c.l.b16 %v1624
    %v4704 = vunpack.c.l.b16 %v1625
    %v4705 = vunpack.c.l.b16 %v1626
    %v4706 = vunpack.c.l.b16 %v1627
    %v4707 = vunpack.c.l.b16 %v1628
    %v4708 = vunpack.c.l.b16 %v1629
    %v4709 = vunpack.c.l.b16 %v1630
    %v4710 = vunpack.c.l.b16 %v1631
    %v4711 = vunpack.c.l.b16 %v1632
    %v4712 = vunpack.c.l.b16 %v1633
    %v4713 = vunpack.c.l.b16 %v1634
    %v4714 = vunpack.c.l.b16 %v1635
    %v4715 = vunpack.c.l.b16 %v1636
    %v4716 = vunpack.c.l.b16 %v1637
    %v4717 = vunpack.c.l.b16 %v1638
    %v4718 = vunpack.c.l.b16 %v1639
    %v4719 = vunpack.c.l.b16 %v1640
    %v4720 = vunpack.c.l.b16 %v1641
    %v4721 = vunpack.c.l.b16 %v1642
    %v4722 = vunpack.c.l.b16 %v1643
    %v4723 = vunpack.c.l.b16 %v1644
    %v4724 = vunpack.c.l.b16 %v1645
    %v4725 = vunpack.c.l.b16 %v1646
    %v4726 = vunpack.c.l.b16 %v1647
    %v4727 = vunpack.c.l.b16 %v1648
    %v4728 = vunpack.c.l.b16 %v1649
    %v4729 = vunpack.c.l.b16 %v1650
    %v4730 = vunpack.c.l.b16 %v1651
    %v4731 = vunpack.c.l.b16 %v1652
    %v4732 = vunpack.c.l.b16 %v1653
    %v4733 = vunpack.c.l.b16 %v1654
    %v4734 = vunpack.c.l.b16 %v1655
    %v4735 = vunpack.c.l.b16 %v1656
    %v4736 = vunpack.c.l.b16 %v1657
    %v4737 = vunpack.c.l.b16 %v1658
    %v4738 = vunpack.c.l.b16 %v1659
    %v4739 = vunpack.c.l.b16 %v1660
    %v4740 = vunpack.c.l.b16 %v1661
    %v4741 = vunpack.c.l.b16 %v1662
    %v4742 = vunpack.c.l.b16 %v1663
    %v4743 = vunpack.c.l.b16 %v1664
    %v4744 = vunpack.c.l.b16 %v1665
    %v4745 = vunpack.c.l.b16 %v1666
    %v4746 = vunpack.c.l.b16 %v1667
    %v4747 = vunpack.c.l.b16 %v1668
    %v4748 = vunpack.c.l.b16 %v1669
    %v4749 = vunpack.c.l.b16 %v1670
    %v4750 = vunpack.c.l.b16 %v1671
    %v4751 = vunpack.c.l.b16 %v1672
    %v4752 = vunpack.c.l.b16 %v1673
    %v4753 = vunpack.c.l.b16 %v1674
    %v4754 = vunpack.c.l.b16 %v1675
    %v4755 = vunpack.c.l.b16 %v1676
    %v4756 = vunpack.c.l.b16 %v1677
    %v4757 = vunpack.c.l.b16 %v1678
    %v4758 = vunpack.c.l.b16 %v1679
    %v4759 = vunpack.c.l.b16 %v1680
    %v4760 = vunpack.c.l.b16 %v1681
    %v4761 = vunpack.c.l.b16 %v1682
    %v4762 = vunpack.c.l.b16 %v1683
    %v4763 = vunpack.c.l.b16 %v1684
    %v4764 = vunpack.c.l.b16 %v1685
    %v4765 = vunpack.c.l.b16 %v1686
    %v4766 = vunpack.c.l.b16 %v1687
    %v4767 = vunpack.c.l.b16 %v1688
    %v4768 = vunpack.c.l.b16 %v1689
    %v4769 = vunpack.c.l.b16 %v1690
    %v4770 = vunpack.c.l.b16 %v1691
    %v4771 = vunpack.c.l.b16 %v1692
    %v4772 = vunpack.c.l.b16 %v1693
    %v4773 = vunpack.c.l.b16 %v1694
    %v4774 = vunpack.c.l.b16 %v1695
    %v4775 = vunpack.c.l.b16 %v1696
    %v4776 = vunpack.c.l.b16 %v1697
    %v4777 = vunpack.c.l.b16 %v1698
    %v4778 = vunpack.c.l.b16 %v1699
    %v4779 = vunpack.c.l.b16 %v1700
    %v4780 = vunpack.c.l.b16 %v1701
    %v4781 = vunpack.c.l.b16 %v1702
    %v4782 = vunpack.c.l.b16 %v1703
    %v4783 = vunpack.c.l.b16 %v1704
    %v4784 = vunpack.c.l.b16 %v1705
    %v4785 = vunpack.c.l.b16 %v1706
    %v4786 = vunpack.c.l.b16 %v1707
    %v4787 = vunpack.c.l.b16 %v1708
    %v4788 = vunpack.c.l.b16 %v1709
    %v4789 = vunpack.c.l.b16 %v1710
    %v4790 = vunpack.c.l.b16 %v1711
    %v4791 = vunpack.c.l.b16 %v1712
    %v4792 = vunpack.c.l.b16 %v1713
    %v4793 = vunpack.c.l.b16 %v1714
    %v4794 = vunpack.c.l.b16 %v1715
    %v4795 = vunpack.c.l.b16 %v1716
    %v4796 = vunpack.c.l.b16 %v1717
    %v4797 = vunpack.c.l.b16 %v1718
    %v4798 = vunpack.c.l.b16 %v1719
    %v4799 = vunpack.c.l.b16 %v1720
    %v4800 = vunpack.c.l.b16 %v1721
    %v4801 = vunpack.c.l.b16 %v1722
    %v4802 = vunpack.c.l.b16 %v1723
    %v4803 = vunpack.c.l.b16 %v1724
    %v4804 = vunpack.c.l.b16 %v1725
    %v4805 = vunpack.c.l.b16 %v1726
    %v4806 = vunpack.c.l.b16 %v1727
    %v4807 = vunpack.c.l.b16 %v1728
    %v4808 = vunpack.c.l.b16 %v1729
    %v4809 = vunpack.c.l.b16 %v1730
    %v4810 = vunpack.c.l.b16 %v1731
    %v4811 = vunpack.c.l.b16 %v1732
    %v4812 = vunpack.c.l.b16 %v1733
    %v4813 = vunpack.c.l.b16 %v1734
    %v4814 = vunpack.c.l.b16 %v1735
    %v4815 = vunpack.c.l.b16 %v1736
    %v4816 = vunpack.c.l.b16 %v1737
    %v4817 = vunpack.c.l.b16 %v1738
    %v4818 = vunpack.c.l.b16 %v1739
    %v4819 = vunpack.c.l.b16 %v1740
    %v4820 = vunpack.c.l.b16 %v1741
    %v4821 = vunpack.c.l.b16 %v1742
    %v4822 = vunpack.c.l.b16 %v1743
    %v4823 = vunpack.c.l.b16 %v1744
    %v4824 = vunpack.c.l.b16 %v1745
    %v4825 = vunpack.c.l.b16 %v1746
    %v4826 = vunpack.c.l.b16 %v1747
    %v4827 = vunpack.c.l.b16 %v1748
    %v4828 = vunpack.c.l.b16 %v1749
    %v4829 = vunpack.c.l.b16 %v1750
    %v4830 = vunpack.c.l.b16 %v1751
    %v4831 = vunpack.c.l.b16 %v1752
    %v4832 = vunpack.c.l.b16 %v1753
    %v4833 = vunpack.c.l.b16 %v1754
    %v4834 = vunpack.c.l.b16 %v1755
    %v4835 = vunpack.c.l.b16 %v1756
    %v4836 = vunpack.c.l.b16 %v1757
    %v4837 = vunpack.c.l.b16 %v1758
    %v4838 = vunpack.c.l.b16 %v1759
    %v4839 = vunpack.c.l.b16 %v1760
    %v4840 = vunpack.c.l.b16 %v1761
    %v4841 = vunpack.c.l.b16 %v1762
    %v4842 = vunpack.c.l.b16 %v1763
    %v4843 = vpack.c.b16 %v3308, %v3307
    %v4844 = vpack.c.b16 %v3310, %v3309
    %v4845 = vpack.c.b16 %v3312, %v3311
    %v4846 = vpack.c.b16 %v3314, %v3313
    %v4847 = vpack.c.b16 %v3316, %v3315
    %v4848 = vpack.c.b16 %v3318, %v3317
    %v4849 = vpack.c.b16 %v3320, %v3319
    %v4850 = vpack.c.b16 %v3322, %v3321
    %v4851 = vpack.c.b16 %v3324, %v3323
    %v4852 = vpack.c.b16 %v3326, %v3325
    %v4853 = vpack.c.b16 %v3328, %v3327
    %v4854 = vpack.c.b16 %v3330, %v3329
    %v4855 = vpack.c.b16 %v3332, %v3331
    %v4856 = vpack.c.b16 %v3334, %v3333
    %v4857 = vpack.c.b16 %v3336, %v3335
    %v4858 = vpack.c.b16 %v3338, %v3337
    %v4859 = vpack.c.b16 %v3340, %v3339
    %v4860 = vpack.c.b16 %v3342, %v3341
    %v4861 = vpack.c.b16 %v3344, %v3343
    %v4862 = vpack.c.b16 %v3346, %v3345
    %v4863 = vpack.c.b16 %v3348, %v3347
    %v4864 = vpack.c.b16 %v3350, %v3349
    %v4865 = vpack.c.b16 %v3352, %v3351
    %v4866 = vpack.c.b16 %v3354, %v3353
    %v4867 = vpack.c.b16 %v3356, %v3355
    %v4868 = vpack.c.b16 %v3358, %v3357
    %v4869 = vpack.c.b16 %v3360, %v3359
    %v4870 = vpack.c.b16 %v3362, %v3361
    %v4871 = vpack.c.b16 %v3364, %v3363
    %v4872 = vpack.c.b16 %v3366, %v3365
    %v4873 = vpack.c.b16 %v3368, %v3367
    %v4874 = vpack.c.b16 %v3370, %v3369
    %v4875 = vpack.c.b16 %v3372, %v3371
    %v4876 = vpack.c.b16 %v3374, %v3373
    %v4877 = vpack.c.b16 %v3376, %v3375
    %v4878 = vpack.c.b16 %v3378, %v3377
    %v4879 = vpack.c.b16 %v3380, %v3379
    %v4880 = vpack.c.b16 %v3382, %v3381
    %v4881 = vpack.c.b16 %v3384, %v3383
    %v4882 = vpack.c.b16 %v3386, %v3385
    %v4883 = vpack.c.b16 %v3388, %v3387
    %v4884 = vpack.c.b16 %v3390, %v3389
    %v4885 = vpack.c.b16 %v3392, %v3391
    %v4886 = vpack.c.b16 %v3394, %v3393
    %v4887 = vpack.c.b16 %v3396, %v3395
    %v4888 = vpack.c.b16 %v3398, %v3397
    %v4889 = vpack.c.b16 %v3400, %v3399
    %v4890 = vpack.c.b16 %v3402, %v3401
    %v4891 = vpack.c.b16 %v3404, %v3403
    %v4892 = vpack.c.b16 %v3406, %v3405
    %v4893 = vpack.c.b16 %v3408, %v3407
    %v4894 = vpack.c.b16 %v3410, %v3409
    %v4895 = vpack.c.b16 %v3412, %v3411
    %v4896 = vpack.c.b16 %v3414, %v3413
    %v4897 = vpack.c.b16 %v3416, %v3415
    %v4898 = vpack.c.b16 %v3418, %v3417
    %v4899 = vpack.c.b16 %v3420, %v3419
    %v4900 = vpack.c.b16 %v3422, %v3421
    %v4901 = vpack.c.b16 %v3424, %v3423
    %v4902 = vpack.c.b16 %v3426, %v3425
    %v4903 = vpack.c.b16 %v3428, %v3427
    %v4904 = vpack.c.b16 %v3430, %v3429
    %v4905 = vpack.c.b16 %v3432, %v3431
    %v4906 = vpack.c.b16 %v3434, %v3433
    %v4907 = vpack.c.b16 %v3436, %v3435
    %v4908 = vpack.c.b16 %v3438, %v3437
    %v4909 = vpack.c.b16 %v3440, %v3439
    %v4910 = vpack.c.b16 %v3442, %v3441
    %v4911 = vpack.c.b16 %v3444, %v3443
    %v4912 = vpack.c.b16 %v3446, %v3445
    %v4913 = vpack.c.b16 %v3448, %v3447
    %v4914 = vpack.c.b16 %v3450, %v3449
    %v4915 = vpack.c.b16 %v3452, %v3451
    %v4916 = vpack.c.b16 %v3454, %v3453
    %v4917 = vpack.c.b16 %v3456, %v3455
    %v4918 = vpack.c.b16 %v3458, %v3457
    %v4919 = vpack.c.b16 %v3460, %v3459
    %v4920 = vpack.c.b16 %v3462, %v3461
    %v4921 = vpack.c.b16 %v3464, %v3463
    %v4922 = vpack.c.b16 %v3466, %v3465
    %v4923 = vpack.c.b16 %v3468, %v3467
    %v4924 = vpack.c.b16 %v3470, %v3469
    %v4925 = vpack.c.b16 %v3472, %v3471
    %v4926 = vpack.c.b16 %v3474, %v3473
    %v4927 = vpack.c.b16 %v3476, %v3475
    %v4928 = vpack.c.b16 %v3478, %v3477
    %v4929 = vpack.c.b16 %v3480, %v3479
    %v4930 = vpack.c.b16 %v3482, %v3481
    %v4931 = vpack.c.b16 %v3484, %v3483
    %v4932 = vpack.c.b16 %v3486, %v3485
    %v4933 = vpack.c.b16 %v3488, %v3487
    %v4934 = vpack.c.b16 %v3490, %v3489
    %v4935 = vpack.c.b16 %v3492, %v3491
    %v4936 = vpack.c.b16 %v3494, %v3493
    %v4937 = vpack.c.b16 %v3496, %v3495
    %v4938 = vpack.c.b16 %v3498, %v3497
    %v4939 = vpack.c.b16 %v3500, %v3499
    %v4940 = vpack.c.b16 %v3502, %v3501
    %v4941 = vpack.c.b16 %v3504, %v3503
    %v4942 = vpack.c.b16 %v3506, %v3505
    %v4943 = vpack.c.b16 %v3508, %v3507
    %v4944 = vpack.c.b16 %v3510, %v3509
    %v4945 = vpack.c.b16 %v3512, %v3511
    %v4946 = vpack.c.b16 %v3514, %v3513
    %v4947 = vpack.c.b16 %v3516, %v3515
    %v4948 = vpack.c.b16 %v3518, %v3517
    %v4949 = vpack.c.b16 %v3520, %v3519
    %v4950 = vpack.c.b16 %v3522, %v3521
    %v4951 = vpack.c.b16 %v3524, %v3523
    %v4952 = vpack.c.b16 %v3526, %v3525
    %v4953 = vpack.c.b16 %v3528, %v3527
    %v4954 = vpack.c.b16 %v3530, %v3529
    %v4955 = vpack.c.b16 %v3532, %v3531
    %v4956 = vpack.c.b16 %v3534, %v3533
    %v4957 = vpack.c.b16 %v3536, %v3535
    %v4958 = vpack.c.b16 %v3538, %v3537
    %v4959 = vpack.c.b16 %v3540, %v3539
    %v4960 = vpack.c.b16 %v3542, %v3541
    %v4961 = vpack.c.b16 %v3544, %v3543
    %v4962 = vpack.c.b16 %v3546, %v3545
    %v4963 = vpack.c.b16 %v3548, %v3547
    %v4964 = vpack.c.b16 %v3550, %v3549
    %v4965 = vpack.c.b16 %v3552, %v3551
    %v4966 = vpack.c.b16 %v3554, %v3553
    %v4967 = vpack.c.b16 %v3556, %v3555
    %v4968 = vpack.c.b16 %v3558, %v3557
    %v4969 = vpack.c.b16 %v3560, %v3559
    %v4970 = vpack.c.b16 %v3562, %v3561
    %v4971 = vpack.c.b16 %v3564, %v3563
    %v4972 = vpack.c.b16 %v3566, %v3565
    %v4973 = vpack.c.b16 %v3568, %v3567
    %v4974 = vpack.c.b16 %v3570, %v3569
    %v4975 = vpack.c.b16 %v3572, %v3571
    %v4976 = vpack.c.b16 %v3574, %v3573
    %v4977 = vpack.c.b16 %v3576, %v3575
    %v4978 = vpack.c.b16 %v3578, %v3577
    %v4979 = vpack.c.b16 %v3580, %v3579
    %v4980 = vpack.c.b16 %v3582, %v3581
    %v4981 = vpack.c.b16 %v3584, %v3583
    %v4982 = vpack.c.b16 %v3586, %v3585
    %v4983 = vpack.c.b16 %v3588, %v3587
    %v4984 = vpack.c.b16 %v3590, %v3589
    %v4985 = vpack.c.b16 %v3592, %v3591
    %v4986 = vpack.c.b16 %v3594, %v3593
    %v4987 = vpack.c.b16 %v3596, %v3595
    %v4988 = vpack.c.b16 %v3598, %v3597
    %v4989 = vpack.c.b16 %v3600, %v3599
    %v4990 = vpack.c.b16 %v3602, %v3601
    %v4991 = vpack.c.b16 %v3604, %v3603
    %v4992 = vpack.c.b16 %v3606, %v3605
    %v4993 = vpack.c.b16 %v3608, %v3607
    %v4994 = vpack.c.b16 %v3610, %v3609
    %v4995 = vpack.c.b16 %v3612, %v3611
    %v4996 = vpack.c.b16 %v3614, %v3613
    %v4997 = vpack.c.b16 %v3616, %v3615
    %v4998 = vpack.c.b16 %v3618, %v3617
    %v4999 = vpack.c.b16 %v3620, %v3619
    %v5000 = vpack.c.b16 %v3622, %v3621
    %v5001 = vpack.c.b16 %v3624, %v3623
    %v5002 = vpack.c.b16 %v3626, %v3625
    %v5003 = vpack.c.b16 %v3628, %v3627
    %v5004 = vpack.c.b16 %v3630, %v3629
    %v5005 = vpack.c.b16 %v3632, %v3631
    %v5006 = vpack.c.b16 %v3634, %v3633
    %v5007 = vpack.c.b16 %v3636, %v3635
    %v5008 = vpack.c.b16 %v3638, %v3637
    %v5009 = vpack.c.b16 %v3640, %v3639
    %v5010 = vpack.c.b16 %v3642, %v3641
    %v5011 = vpack.c.b16 %v3644, %v3643
    %v5012 = vpack.c.b16 %v3646, %v3645
    %v5013 = vpack.c.b16 %v3648, %v3647
    %v5014 = vpack.c.b16 %v3650, %v3649
    %v5015 = vpack.c.b16 %v3652, %v3651
    %v5016 = vpack.c.b16 %v3654, %v3653
    %v5017 = vpack.c.b16 %v3656, %v3655
    %v5018 = vpack.c.b16 %v3658, %v3657
    %v5019 = vpack.c.b16 %v3660, %v3659
    %v5020 = vpack.c.b16 %v3662, %v3661
    %v5021 = vpack.c.b16 %v3664, %v3663
    %v5022 = vpack.c.b16 %v3666, %v3665
    %v5023 = vpack.c.b16 %v3668, %v3667
    %v5024 = vpack.c.b16 %v3670, %v3669
    %v5025 = vpack.c.b16 %v3672, %v3671
    %v5026 = vpack.c.b16 %v3674, %v3673
    %v5027 = vpack.c.b16 %v3676, %v3675
    %v5028 = vpack.c.b16 %v3678, %v3677
    %v5029 = vpack.c.b16 %v3680, %v3679
    %v5030 = vpack.c.b16 %v3682, %v3681
    %v5031 = vpack.c.b16 %v3684, %v3683
    %v5032 = vpack.c.b16 %v3686, %v3685
    %v5033 = vpack.c.b16 %v3688, %v3687
    %v5034 = vpack.c.b16 %v3690, %v3689
    %v5035 = vpack.c.b16 %v3692, %v3691
    %v5036 = vpack.c.b16 %v3694, %v3693
    %v5037 = vpack.c.b16 %v3696, %v3695
    %v5038 = vpack.c.b16 %v3698, %v3697
    %v5039 = vpack.c.b16 %v3700, %v3699
    %v5040 = vpack.c.b16 %v3702, %v3701
    %v5041 = vpack.c.b16 %v3704, %v3703
    %v5042 = vpack.c.b16 %v3706, %v3705
    %v5043 = vpack.c.b16 %v3708, %v3707
    %v5044 = vpack.c.b16 %v3710, %v3709
    %v5045 = vpack.c.b16 %v3712, %v3711
    %v5046 = vpack.c.b16 %v3714, %v3713
    %v5047 = vpack.c.b16 %v3716, %v3715
    %v5048 = vpack.c.b16 %v3718, %v3717
    %v5049 = vpack.c.b16 %v3720, %v3719
    %v5050 = vpack.c.b16 %v3722, %v3721
    %v5051 = vpack.c.b16 %v3724, %v3723
    %v5052 = vpack.c.b16 %v3726, %v3725
    %v5053 = vpack.c.b16 %v3728, %v3727
    %v5054 = vpack.c.b16 %v3730, %v3729
    %v5055 = vpack.c.b16 %v3732, %v3731
    %v5056 = vpack.c.b16 %v3734, %v3733
    %v5057 = vpack.c.b16 %v3736, %v3735
    %v5058 = vpack.c.b16 %v3738, %v3737
    %v5059 = vpack.c.b16 %v3740, %v3739
    %v5060 = vpack.c.b16 %v3742, %v3741
    %v5061 = vpack.c.b16 %v3744, %v3743
    %v5062 = vpack.c.b16 %v3746, %v3745
    %v5063 = vpack.c.b16 %v3748, %v3747
    %v5064 = vpack.c.b16 %v3750, %v3749
    %v5065 = vpack.c.b16 %v3752, %v3751
    %v5066 = vpack.c.b16 %v3754, %v3753
    %v5067 = vpack.c.b16 %v3756, %v3755
    %v5068 = vpack.c.b16 %v3758, %v3757
    %v5069 = vpack.c.b16 %v3760, %v3759
    %v5070 = vpack.c.b16 %v3762, %v3761
    %v5071 = vpack.c.b16 %v3764, %v3763
    %v5072 = vpack.c.b16 %v3766, %v3765
    %v5073 = vpack.c.b16 %v3768, %v3767
    %v5074 = vpack.c.b16 %v3770, %v3769
    %v5075 = vpack.c.b16 %v3772, %v3771
    %v5076 = vpack.c.b16 %v3774, %v3773
    %v5077 = vpack.c.b16 %v3776, %v3775
    %v5078 = vpack.c.b16 %v3778, %v3777
    %v5079 = vpack.c.b16 %v3780, %v3779
    %v5080 = vpack.c.b16 %v3782, %v3781
    %v5081 = vpack.c.b16 %v3784, %v3783
    %v5082 = vpack.c.b16 %v3786, %v3785
    %v5083 = vpack.c.b16 %v3788, %v3787
    %v5084 = vpack.c.b16 %v3790, %v3789
    %v5085 = vpack.c.b16 %v3792, %v3791
    %v5086 = vpack.c.b16 %v3794, %v3793
    %v5087 = vpack.c.b16 %v3796, %v3795
    %v5088 = vpack.c.b16 %v3798, %v3797
    %v5089 = vpack.c.b16 %v3800, %v3799
    %v5090 = vpack.c.b16 %v3802, %v3801
    %v5091 = vpack.c.b16 %v3804, %v3803
    %v5092 = vpack.c.b16 %v3806, %v3805
    %v5093 = vpack.c.b16 %v3808, %v3807
    %v5094 = vpack.c.b16 %v3810, %v3809
    %v5095 = vpack.c.b16 %v3812, %v3811
    %v5096 = vpack.c.b16 %v3814, %v3813
    %v5097 = vpack.c.b16 %v3816, %v3815
    %v5098 = vpack.c.b16 %v3818, %v3817
    %v5099 = vpack.c.b16 %v3820, %v3819
    %v5100 = vpack.c.b16 %v3822, %v3821
    %v5101 = vpack.c.b16 %v3824, %v3823
    %v5102 = vpack.c.b16 %v3826, %v3825
    %v5103 = vpack.c.b16 %v3828, %v3827
    %v5104 = vpack.c.b16 %v3830, %v3829
    %v5105 = vpack.c.b16 %v3832, %v3831
    %v5106 = vpack.c.b16 %v3834, %v3833
    %v5107 = vpack.c.b16 %v3836, %v3835
    %v5108 = vpack.c.b16 %v3838, %v3837
    %v5109 = vpack.c.b16 %v3840, %v3839
    %v5110 = vpack.c.b16 %v3842, %v3841
    %v5111 = vpack.c.b16 %v3844, %v3843
    %v5112 = vpack.c.b16 %v3846, %v3845
    %v5113 = vpack.c.b16 %v3848, %v3847
    %v5114 = vpack.c.b16 %v3850, %v3849
    %v5115 = vpack.c.b16 %v3852, %v3851
    %v5116 = vpack.c.b16 %v3854, %v3853
    %v5117 = vpack.c.b16 %v3856, %v3855
    %v5118 = vpack.c.b16 %v3858, %v3857
    %v5119 = vpack.c.b16 %v3860, %v3859
    %v5120 = vpack.c.b16 %v3862, %v3861
    %v5121 = vpack.c.b16 %v3864, %v3863
    %v5122 = vpack.c.b16 %v3866, %v3865
    %v5123 = vpack.c.b16 %v3868, %v3867
    %v5124 = vpack.c.b16 %v3870, %v3869
    %v5125 = vpack.c.b16 %v3872, %v3871
    %v5126 = vpack.c.b16 %v3874, %v3873
    %v5127 = vpack.c.b16 %v3876, %v3875
    %v5128 = vpack.c.b16 %v3878, %v3877
    %v5129 = vpack.c.b16 %v3880, %v3879
    %v5130 = vpack.c.b16 %v3882, %v3881
    %v5131 = vpack.c.b16 %v3884, %v3883
    %v5132 = vpack.c.b16 %v3886, %v3885
    %v5133 = vpack.c.b16 %v3888, %v3887
    %v5134 = vpack.c.b16 %v3890, %v3889
    %v5135 = vpack.c.b16 %v3892, %v3891
    %v5136 = vpack.c.b16 %v3894, %v3893
    %v5137 = vpack.c.b16 %v3896, %v3895
    %v5138 = vpack.c.b16 %v3898, %v3897
    %v5139 = vpack.c.b16 %v3900, %v3899
    %v5140 = vpack.c.b16 %v3902, %v3901
    %v5141 = vpack.c.b16 %v3904, %v3903
    %v5142 = vpack.c.b16 %v3906, %v3905
    %v5143 = vpack.c.b16 %v3908, %v3907
    %v5144 = vpack.c.b16 %v3910, %v3909
    %v5145 = vpack.c.b16 %v3912, %v3911
    %v5146 = vpack.c.b16 %v3914, %v3913
    %v5147 = vpack.c.b16 %v3916, %v3915
    %v5148 = vpack.c.b16 %v3918, %v3917
    %v5149 = vpack.c.b16 %v3920, %v3919
    %v5150 = vpack.c.b16 %v3922, %v3921
    %v5151 = vpack.c.b16 %v3924, %v3923
    %v5152 = vpack.c.b16 %v3926, %v3925
    %v5153 = vpack.c.b16 %v3928, %v3927
    %v5154 = vpack.c.b16 %v3930, %v3929
    %v5155 = vpack.c.b16 %v3932, %v3931
    %v5156 = vpack.c.b16 %v3934, %v3933
    %v5157 = vpack.c.b16 %v3936, %v3935
    %v5158 = vpack.c.b16 %v3938, %v3937
    %v5159 = vpack.c.b16 %v3940, %v3939
    %v5160 = vpack.c.b16 %v3942, %v3941
    %v5161 = vpack.c.b16 %v3944, %v3943
    %v5162 = vpack.c.b16 %v3946, %v3945
    %v5163 = vpack.c.b16 %v3948, %v3947
    %v5164 = vpack.c.b16 %v3950, %v3949
    %v5165 = vpack.c.b16 %v3952, %v3951
    %v5166 = vpack.c.b16 %v3954, %v3953
    %v5167 = vpack.c.b16 %v3956, %v3955
    %v5168 = vpack.c.b16 %v3958, %v3957
    %v5169 = vpack.c.b16 %v3960, %v3959
    %v5170 = vpack.c.b16 %v3962, %v3961
    %v5171 = vpack.c.b16 %v3964, %v3963
    %v5172 = vpack.c.b16 %v3966, %v3965
    %v5173 = vpack.c.b16 %v3968, %v3967
    %v5174 = vpack.c.b16 %v3970, %v3969
    %v5175 = vpack.c.b16 %v3972, %v3971
    %v5176 = vpack.c.b16 %v3974, %v3973
    %v5177 = vpack.c.b16 %v3976, %v3975
    %v5178 = vpack.c.b16 %v3978, %v3977
    %v5179 = vpack.c.b16 %v3980, %v3979
    %v5180 = vpack.c.b16 %v3982, %v3981
    %v5181 = vpack.c.b16 %v3984, %v3983
    %v5182 = vpack.c.b16 %v3986, %v3985
    %v5183 = vpack.c.b16 %v3988, %v3987
    %v5184 = vpack.c.b16 %v3990, %v3989
    %v5185 = vpack.c.b16 %v3992, %v3991
    %v5186 = vpack.c.b16 %v3994, %v3993
    %v5187 = vpack.c.b16 %v3996, %v3995
    %v5188 = vpack.c.b16 %v3998, %v3997
    %v5189 = vpack.c.b16 %v4000, %v3999
    %v5190 = vpack.c.b16 %v4002, %v4001
    %v5191 = vpack.c.b16 %v4004, %v4003
    %v5192 = vpack.c.b16 %v4006, %v4005
    %v5193 = vpack.c.b16 %v4008, %v4007
    %v5194 = vpack.c.b16 %v4010, %v4009
    %v5195 = vpack.c.b16 %v4012, %v4011
    %v5196 = vpack.c.b16 %v4014, %v4013
    %v5197 = vpack.c.b16 %v4016, %v4015
    %v5198 = vpack.c.b16 %v4018, %v4017
    %v5199 = vpack.c.b16 %v4020, %v4019
    %v5200 = vpack.c.b16 %v4022, %v4021
    %v5201 = vpack.c.b16 %v4024, %v4023
    %v5202 = vpack.c.b16 %v4026, %v4025
    %v5203 = vpack.c.b16 %v4028, %v4027
    %v5204 = vpack.c.b16 %v4030, %v4029
    %v5205 = vpack.c.b16 %v4032, %v4031
    %v5206 = vpack.c.b16 %v4034, %v4033
    %v5207 = vpack.c.b16 %v4036, %v4035
    %v5208 = vpack.c.b16 %v4038, %v4037
    %v5209 = vpack.c.b16 %v4040, %v4039
    %v5210 = vpack.c.b16 %v4042, %v4041
    %v5211 = vpack.c.b16 %v4044, %v4043
    %v5212 = vpack.c.b16 %v4046, %v4045
    %v5213 = vpack.c.b16 %v4048, %v4047
    %v5214 = vpack.c.b16 %v4050, %v4049
    %v5215 = vpack.c.b16 %v4052, %v4051
    %v5216 = vpack.c.b16 %v4054, %v4053
    %v5217 = vpack.c.b16 %v4056, %v4055
    %v5218 = vpack.c.b16 %v4058, %v4057
    %v5219 = vpack.c.b16 %v4060, %v4059
    %v5220 = vpack.c.b16 %v4062, %v4061
    %v5221 = vpack.c.b16 %v4064, %v4063
    %v5222 = vpack.c.b16 %v4066, %v4065
    %v5223 = vpack.c.b16 %v4068, %v4067
    %v5224 = vpack.c.b16 %v4070, %v4069
    %v5225 = vpack.c.b16 %v4072, %v4071
    %v5226 = vpack.c.b16 %v4074, %v4073
    %v5227 = vpack.c.b16 %v4076, %v4075
    %v5228 = vpack.c.b16 %v4078, %v4077
    %v5229 = vpack.c.b16 %v4080, %v4079
    %v5230 = vpack.c.b16 %v4082, %v4081
    %v5231 = vpack.c.b16 %v4084, %v4083
    %v5232 = vpack.c.b16 %v4086, %v4085
    %v5233 = vpack.c.b16 %v4088, %v4087
    %v5234 = vpack.c.b16 %v4090, %v4089
    %v5235 = vpack.c.b16 %v4092, %v4091
    %v5236 = vpack.c.b16 %v4094, %v4093
    %v5237 = vpack.c.b16 %v4096, %v4095
    %v5238 = vpack.c.b16 %v4098, %v4097
    %v5239 = vpack.c.b16 %v4100, %v4099
    %v5240 = vpack.c.b16 %v4102, %v4101
    %v5241 = vpack.c.b16 %v4104, %v4103
    %v5242 = vpack.c.b16 %v4106, %v4105
    %v5243 = vpack.c.b16 %v4108, %v4107
    %v5244 = vpack.c.b16 %v4110, %v4109
    %v5245 = vpack.c.b16 %v4112, %v4111
    %v5246 = vpack.c.b16 %v4114, %v4113
    %v5247 = vpack.c.b16 %v4116, %v4115
    %v5248 = vpack.c.b16 %v4118, %v4117
    %v5249 = vpack.c.b16 %v4120, %v4119
    %v5250 = vpack.c.b16 %v4122, %v4121
    %v5251 = vpack.c.b16 %v4124, %v4123
    %v5252 = vpack.c.b16 %v4126, %v4125
    %v5253 = vpack.c.b16 %v4128, %v4127
    %v5254 = vpack.c.b16 %v4130, %v4129
    %v5255 = vpack.c.b16 %v4132, %v4131
    %v5256 = vpack.c.b16 %v4134, %v4133
    %v5257 = vpack.c.b16 %v4136, %v4135
    %v5258 = vpack.c.b16 %v4138, %v4137
    %v5259 = vpack.c.b16 %v4140, %v4139
    %v5260 = vpack.c.b16 %v4142, %v4141
    %v5261 = vpack.c.b16 %v4144, %v4143
    %v5262 = vpack.c.b16 %v4146, %v4145
    %v5263 = vpack.c.b16 %v4148, %v4147
    %v5264 = vpack.c.b16 %v4150, %v4149
    %v5265 = vpack.c.b16 %v4152, %v4151
    %v5266 = vpack.c.b16 %v4154, %v4153
    %v5267 = vpack.c.b16 %v4156, %v4155
    %v5268 = vpack.c.b16 %v4158, %v4157
    %v5269 = vpack.c.b16 %v4160, %v4159
    %v5270 = vpack.c.b16 %v4162, %v4161
    %v5271 = vpack.c.b16 %v4164, %v4163
    %v5272 = vpack.c.b16 %v4166, %v4165
    %v5273 = vpack.c.b16 %v4168, %v4167
    %v5274 = vpack.c.b16 %v4170, %v4169
    %v5275 = vpack.c.b16 %v4172, %v4171
    %v5276 = vpack.c.b16 %v4174, %v4173
    %v5277 = vpack.c.b16 %v4176, %v4175
    %v5278 = vpack.c.b16 %v4178, %v4177
    %v5279 = vpack.c.b16 %v4180, %v4179
    %v5280 = vpack.c.b16 %v4182, %v4181
    %v5281 = vpack.c.b16 %v4184, %v4183
    %v5282 = vpack.c.b16 %v4186, %v4185
    %v5283 = vpack.c.b16 %v4188, %v4187
    %v5284 = vpack.c.b16 %v4190, %v4189
    %v5285 = vpack.c.b16 %v4192, %v4191
    %v5286 = vpack.c.b16 %v4194, %v4193
    %v5287 = vpack.c.b16 %v4196, %v4195
    %v5288 = vpack.c.b16 %v4198, %v4197
    %v5289 = vpack.c.b16 %v4200, %v4199
    %v5290 = vpack.c.b16 %v4202, %v4201
    %v5291 = vpack.c.b16 %v4204, %v4203
    %v5292 = vpack.c.b16 %v4206, %v4205
    %v5293 = vpack.c.b16 %v4208, %v4207
    %v5294 = vpack.c.b16 %v4210, %v4209
    %v5295 = vpack.c.b16 %v4212, %v4211
    %v5296 = vpack.c.b16 %v4214, %v4213
    %v5297 = vpack.c.b16 %v4216, %v4215
    %v5298 = vpack.c.b16 %v4218, %v4217
    %v5299 = vpack.c.b16 %v4220, %v4219
    %v5300 = vpack.c.b16 %v4222, %v4221
    %v5301 = vpack.c.b16 %v4224, %v4223
    %v5302 = vpack.c.b16 %v4226, %v4225
    %v5303 = vpack.c.b16 %v4228, %v4227
    %v5304 = vpack.c.b16 %v4230, %v4229
    %v5305 = vpack.c.b16 %v4232, %v4231
    %v5306 = vpack.c.b16 %v4234, %v4233
    %v5307 = vpack.c.b16 %v4236, %v4235
    %v5308 = vpack.c.b16 %v4238, %v4237
    %v5309 = vpack.c.b16 %v4240, %v4239
    %v5310 = vpack.c.b16 %v4242, %v4241
    %v5311 = vpack.c.b16 %v4244, %v4243
    %v5312 = vpack.c.b16 %v4246, %v4245
    %v5313 = vpack.c.b16 %v4248, %v4247
    %v5314 = vpack.c.b16 %v4250, %v4249
    %v5315 = vpack.c.b16 %v4252, %v4251
    %v5316 = vpack.c.b16 %v4254, %v4253
    %v5317 = vpack.c.b16 %v4256, %v4255
    %v5318 = vpack.c.b16 %v4258, %v4257
    %v5319 = vpack.c.b16 %v4260, %v4259
    %v5320 = vpack.c.b16 %v4262, %v4261
    %v5321 = vpack.c.b16 %v4264, %v4263
    %v5322 = vpack.c.b16 %v4266, %v4265
    %v5323 = vpack.c.b16 %v4268, %v4267
    %v5324 = vpack.c.b16 %v4270, %v4269
    %v5325 = vpack.c.b16 %v4272, %v4271
    %v5326 = vpack.c.b16 %v4274, %v4273
    %v5327 = vpack.c.b16 %v4276, %v4275
    %v5328 = vpack.c.b16 %v4278, %v4277
    %v5329 = vpack.c.b16 %v4280, %v4279
    %v5330 = vpack.c.b16 %v4282, %v4281
    %v5331 = vpack.c.b16 %v4284, %v4283
    %v5332 = vpack.c.b16 %v4286, %v4285
    %v5333 = vpack.c.b16 %v4288, %v4287
    %v5334 = vpack.c.b16 %v4290, %v4289
    %v5335 = vpack.c.b16 %v4292, %v4291
    %v5336 = vpack.c.b16 %v4294, %v4293
    %v5337 = vpack.c.b16 %v4296, %v4295
    %v5338 = vpack.c.b16 %v4298, %v4297
    %v5339 = vpack.c.b16 %v4300, %v4299
    %v5340 = vpack.c.b16 %v4302, %v4301
    %v5341 = vpack.c.b16 %v4304, %v4303
    %v5342 = vpack.c.b16 %v4306, %v4305
    %v5343 = vpack.c.b16 %v4308, %v4307
    %v5344 = vpack.c.b16 %v4310, %v4309
    %v5345 = vpack.c.b16 %v4312, %v4311
    %v5346 = vpack.c.b16 %v4314, %v4313
    %v5347 = vpack.c.b16 %v4316, %v4315
    %v5348 = vpack.c.b16 %v4318, %v4317
    %v5349 = vpack.c.b16 %v4320, %v4319
    %v5350 = vpack.c.b16 %v4322, %v4321
    %v5351 = vpack.c.b16 %v4324, %v4323
    %v5352 = vpack.c.b16 %v4326, %v4325
    %v5353 = vpack.c.b16 %v4328, %v4327
    %v5354 = vpack.c.b16 %v4330, %v4329
    %v5355 = vpack.c.b16 %v4332, %v4331
    %v5356 = vpack.c.b16 %v4334, %v4333
    %v5357 = vpack.c.b16 %v4336, %v4335
    %v5358 = vpack.c.b16 %v4338, %v4337
    %v5359 = vpack.c.b16 %v4340, %v4339
    %v5360 = vpack.c.b16 %v4342, %v4341
    %v5361 = vpack.c.b16 %v4344, %v4343
    %v5362 = vpack.c.b16 %v4346, %v4345
    %v5363 = vpack.c.b16 %v4348, %v4347
    %v5364 = vpack.c.b16 %v4350, %v4349
    %v5365 = vpack.c.b16 %v4352, %v4351
    %v5366 = vpack.c.b16 %v4354, %v4353
    %v5367 = vpack.c.b16 %v4356, %v4355
    %v5368 = vpack.c.b16 %v4358, %v4357
    %v5369 = vpack.c.b16 %v4360, %v4359
    %v5370 = vpack.c.b16 %v4362, %v4361
    %v5371 = vpack.c.b16 %v4364, %v4363
    %v5372 = vpack.c.b16 %v4366, %v4365
    %v5373 = vpack.c.b16 %v4368, %v4367
    %v5374 = vpack.c.b16 %v4370, %v4369
    %v5375 = vpack.c.b16 %v4372, %v4371
    %v5376 = vpack.c.b16 %v4374, %v4373
    %v5377 = vpack.c.b16 %v4376, %v4375
    %v5378 = vpack.c.b16 %v4378, %v4377
    %v5379 = vpack.c.b16 %v4380, %v4379
    %v5380 = vpack.c.b16 %v4382, %v4381
    %v5381 = vpack.c.b16 %v4384, %v4383
    %v5382 = vpack.c.b16 %v4386, %v4385
    %v5383 = vpack.c.b16 %v4388, %v4387
    %v5384 = vpack.c.b16 %v4390, %v4389
    %v5385 = vpack.c.b16 %v4392, %v4391
    %v5386 = vpack.c.b16 %v4394, %v4393
    %v5387 = vpack.c.b16 %v4396, %v4395
    %v5388 = vpack.c.b16 %v4398, %v4397
    %v5389 = vpack.c.b16 %v4400, %v4399
    %v5390 = vpack.c.b16 %v4402, %v4401
    %v5391 = vpack.c.b16 %v4404, %v4403
    %v5392 = vpack.c.b16 %v4406, %v4405
    %v5393 = vpack.c.b16 %v4408, %v4407
    %v5394 = vpack.c.b16 %v4410, %v4409
    %v5395 = vpack.c.b16 %v4412, %v4411
    %v5396 = vpack.c.b16 %v4414, %v4413
    %v5397 = vpack.c.b16 %v4416, %v4415
    %v5398 = vpack.c.b16 %v4418, %v4417
    %v5399 = vpack.c.b16 %v4420, %v4419
    %v5400 = vpack.c.b16 %v4422, %v4421
    %v5401 = vpack.c.b16 %v4424, %v4423
    %v5402 = vpack.c.b16 %v4426, %v4425
    %v5403 = vpack.c.b16 %v4428, %v4427
    %v5404 = vpack.c.b16 %v4430, %v4429
    %v5405 = vpack.c.b16 %v4432, %v4431
    %v5406 = vpack.c.b16 %v4434, %v4433
    %v5407 = vpack.c.b16 %v4436, %v4435
    %v5408 = vpack.c.b16 %v4438, %v4437
    %v5409 = vpack.c.b16 %v4440, %v4439
    %v5410 = vpack.c.b16 %v4442, %v4441
    %v5411 = vpack.c.b16 %v4444, %v4443
    %v5412 = vpack.c.b16 %v4446, %v4445
    %v5413 = vpack.c.b16 %v4448, %v4447
    %v5414 = vpack.c.b16 %v4450, %v4449
    %v5415 = vpack.c.b16 %v4452, %v4451
    %v5416 = vpack.c.b16 %v4454, %v4453
    %v5417 = vpack.c.b16 %v4456, %v4455
    %v5418 = vpack.c.b16 %v4458, %v4457
    %v5419 = vpack.c.b16 %v4460, %v4459
    %v5420 = vpack.c.b16 %v4462, %v4461
    %v5421 = vpack.c.b16 %v4464, %v4463
    %v5422 = vpack.c.b16 %v4466, %v4465
    %v5423 = vpack.c.b16 %v4468, %v4467
    %v5424 = vpack.c.b16 %v4470, %v4469
    %v5425 = vpack.c.b16 %v4472, %v4471
    %v5426 = vpack.c.b16 %v4474, %v4473
    %v5427 = vpack.c.b16 %v4476, %v4475
    %v5428 = vpack.c.b16 %v4478, %v4477
    %v5429 = vpack.c.b16 %v4480, %v4479
    %v5430 = vpack.c.b16 %v4482, %v4481
    %v5431 = vpack.c.b16 %v4484, %v4483
    %v5432 = vpack.c.b16 %v4486, %v4485
    %v5433 = vpack.c.b16 %v4488, %v4487
    %v5434 = vpack.c.b16 %v4490, %v4489
    %v5435 = vpack.c.b16 %v4492, %v4491
    %v5436 = vpack.c.b16 %v4494, %v4493
    %v5437 = vpack.c.b16 %v4496, %v4495
    %v5438 = vpack.c.b16 %v4498, %v4497
    %v5439 = vpack.c.b16 %v4500, %v4499
    %v5440 = vpack.c.b16 %v4502, %v4501
    %v5441 = vpack.c.b16 %v4504, %v4503
    %v5442 = vpack.c.b16 %v4506, %v4505
    %v5443 = vpack.c.b16 %v4508, %v4507
    %v5444 = vpack.c.b16 %v4510, %v4509
    %v5445 = vpack.c.b16 %v4512, %v4511
    %v5446 = vpack.c.b16 %v4514, %v4513
    %v5447 = vpack.c.b16 %v4516, %v4515
    %v5448 = vpack.c.b16 %v4518, %v4517
    %v5449 = vpack.c.b16 %v4520, %v4519
    %v5450 = vpack.c.b16 %v4522, %v4521
    %v5451 = vpack.c.b16 %v4524, %v4523
    %v5452 = vpack.c.b16 %v4526, %v4525
    %v5453 = vpack.c.b16 %v4528, %v4527
    %v5454 = vpack.c.b16 %v4530, %v4529
    %v5455 = vpack.c.b16 %v4532, %v4531
    %v5456 = vpack.c.b16 %v4534, %v4533
    %v5457 = vpack.c.b16 %v4536, %v4535
    %v5458 = vpack.c.b16 %v4538, %v4537
    %v5459 = vpack.c.b16 %v4540, %v4539
    %v5460 = vpack.c.b16 %v4542, %v4541
    %v5461 = vpack.c.b16 %v4544, %v4543
    %v5462 = vpack.c.b16 %v4546, %v4545
    %v5463 = vpack.c.b16 %v4548, %v4547
    %v5464 = vpack.c.b16 %v4550, %v4549
    %v5465 = vpack.c.b16 %v4552, %v4551
    %v5466 = vpack.c.b16 %v4554, %v4553
    %v5467 = vpack.c.b16 %v4556, %v4555
    %v5468 = vpack.c.b16 %v4558, %v4557
    %v5469 = vpack.c.b16 %v4560, %v4559
    %v5470 = vpack.c.b16 %v4562, %v4561
    %v5471 = vpack.c.b16 %v4564, %v4563
    %v5472 = vpack.c.b16 %v4566, %v4565
    %v5473 = vpack.c.b16 %v4568, %v4567
    %v5474 = vpack.c.b16 %v4570, %v4569
    %v5475 = vpack.c.b16 %v4572, %v4571
    %v5476 = vpack.c.b16 %v4574, %v4573
    %v5477 = vpack.c.b16 %v4576, %v4575
    %v5478 = vpack.c.b16 %v4578, %v4577
    %v5479 = vpack.c.b16 %v4580, %v4579
    %v5480 = vpack.c.b16 %v4582, %v4581
    %v5481 = vpack.c.b16 %v4584, %v4583
    %v5482 = vpack.c.b16 %v4586, %v4585
    %v5483 = vpack.c.b16 %v4588, %v4587
    %v5484 = vpack.c.b16 %v4590, %v4589
    %v5485 = vpack.c.b16 %v4592, %v4591
    %v5486 = vpack.c.b16 %v4594, %v4593
    %v5487 = vpack.c.b16 %v4596, %v4595
    %v5488 = vpack.c.b16 %v4598, %v4597
    %v5489 = vpack.c.b16 %v4600, %v4599
    %v5490 = vpack.c.b16 %v4602, %v4601
    %v5491 = vpack.c.b16 %v4604, %v4603
    %v5492 = vpack.c.b16 %v4606, %v4605
    %v5493 = vpack.c.b16 %v4608, %v4607
    %v5494 = vpack.c.b16 %v4610, %v4609
    %v5495 = vpack.c.b16 %v4612, %v4611
    %v5496 = vpack.c.b16 %v4614, %v4613
    %v5497 = vpack.c.b16 %v4616, %v4615
    %v5498 = vpack.c.b16 %v4618, %v4617
    %v5499 = vpack.c.b16 %v4620, %v4619
    %v5500 = vpack.c.b16 %v4622, %v4621
    %v5501 = vpack.c.b16 %v4624, %v4623
    %v5502 = vpack.c.b16 %v4626, %v4625
    %v5503 = vpack.c.b16 %v4628, %v4627
    %v5504 = vpack.c.b16 %v4630, %v4629
    %v5505 = vpack.c.b16 %v4632, %v4631
    %v5506 = vpack.c.b16 %v4634, %v4633
    %v5507 = vpack.c.b16 %v4636, %v4635
    %v5508 = vpack.c.b16 %v4638, %v4637
    %v5509 = vpack.c.b16 %v4640, %v4639
    %v5510 = vpack.c.b16 %v4642, %v4641
    %v5511 = vpack.c.b16 %v4644, %v4643
    %v5512 = vpack.c.b16 %v4646, %v4645
    %v5513 = vpack.c.b16 %v4648, %v4647
    %v5514 = vpack.c.b16 %v4650, %v4649
    %v5515 = vpack.c.b16 %v4652, %v4651
    %v5516 = vpack.c.b16 %v4654, %v4653
    %v5517 = vpack.c.b16 %v4656, %v4655
    %v5518 = vpack.c.b16 %v4658, %v4657
    %v5519 = vpack.c.b16 %v4660, %v4659
    %v5520 = vpack.c.b16 %v4662, %v4661
    %v5521 = vpack.c.b16 %v4664, %v4663
    %v5522 = vpack.c.b16 %v4666, %v4665
    %v5523 = vpack.c.b16 %v4668, %v4667
    %v5524 = vpack.c.b16 %v4670, %v4669
    %v5525 = vpack.c.b16 %v4672, %v4671
    %v5526 = vpack.c.b16 %v4674, %v4673
    %v5527 = vpack.c.b16 %v4676, %v4675
    %v5528 = vpack.c.b16 %v4678, %v4677
    %v5529 = vpack.c.b16 %v4680, %v4679
    %v5530 = vpack.c.b16 %v4682, %v4681
    %v5531 = vpack.c.b16 %v4684, %v4683
    %v5532 = vpack.c.b16 %v4686, %v4685
    %v5533 = vpack.c.b16 %v4688, %v4687
    %v5534 = vpack.c.b16 %v4690, %v4689
    %v5535 = vpack.c.b16 %v4692, %v4691
    %v5536 = vpack.c.b16 %v4694, %v4693
    %v5537 = vpack.c.b16 %v4696, %v4695
    %v5538 = vpack.c.b16 %v4698, %v4697
    %v5539 = vpack.c.b16 %v4700, %v4699
    %v5540 = vpack.c.b16 %v4702, %v4701
    %v5541 = vpack.c.b16 %v4704, %v4703
    %v5542 = vpack.c.b16 %v4706, %v4705
    %v5543 = vpack.c.b16 %v4708, %v4707
    %v5544 = vpack.c.b16 %v4710, %v4709
    %v5545 = vpack.c.b16 %v4712, %v4711
    %v5546 = vpack.c.b16 %v4714, %v4713
    %v5547 = vpack.c.b16 %v4716, %v4715
    %v5548 = vpack.c.b16 %v4718, %v4717
    %v5549 = vpack.c.b16 %v4720, %v4719
    %v5550 = vpack.c.b16 %v4722, %v4721
    %v5551 = vpack.c.b16 %v4724, %v4723
    %v5552 = vpack.c.b16 %v4726, %v4725
    %v5553 = vpack.c.b16 %v4728, %v4727
    %v5554 = vpack.c.b16 %v4730, %v4729
    %v5555 = vpack.c.b16 %v4732, %v4731
    %v5556 = vpack.c.b16 %v4734, %v4733
    %v5557 = vpack.c.b16 %v4736, %v4735
    %v5558 = vpack.c.b16 %v4738, %v4737
    %v5559 = vpack.c.b16 %v4740, %v4739
    %v5560 = vpack.c.b16 %v4742, %v4741
    %v5561 = vpack.c.b16 %v4744, %v4743
    %v5562 = vpack.c.b16 %v4746, %v4745
    %v5563 = vpack.c.b16 %v4748, %v4747
    %v5564 = vpack.c.b16 %v4750, %v4749
    %v5565 = vpack.c.b16 %v4752, %v4751
    %v5566 = vpack.c.b16 %v4754, %v4753
    %v5567 = vpack.c.b16 %v4756, %v4755
    %v5568 = vpack.c.b16 %v4758, %v4757
    %v5569 = vpack.c.b16 %v4760, %v4759
    %v5570 = vpack.c.b16 %v4762, %v4761
    %v5571 = vpack.c.b16 %v4764, %v4763
    %v5572 = vpack.c.b16 %v4766, %v4765
    %v5573 = vpack.c.b16 %v4768, %v4767
    %v5574 = vpack.c.b16 %v4770, %v4769
    %v5575 = vpack.c.b16 %v4772, %v4771
    %v5576 = vpack.c.b16 %v4774, %v4773
    %v5577 = vpack.c.b16 %v4776, %v4775
    %v5578 = vpack.c.b16 %v4778, %v4777
    %v5579 = vpack.c.b16 %v4780, %v4779
    %v5580 = vpack.c.b16 %v4782, %v4781
    %v5581 = vpack.c.b16 %v4784, %v4783
    %v5582 = vpack.c.b16 %v4786, %v4785
    %v5583 = vpack.c.b16 %v4788, %v4787
    %v5584 = vpack.c.b16 %v4790, %v4789
    %v5585 = vpack.c.b16 %v4792, %v4791
    %v5586 = vpack.c.b16 %v4794, %v4793
    %v5587 = vpack.c.b16 %v4796, %v4795
    %v5588 = vpack.c.b16 %v4798, %v4797
    %v5589 = vpack.c.b16 %v4800, %v4799
    %v5590 = vpack.c.b16 %v4802, %v4801
    %v5591 = vpack.c.b16 %v4804, %v4803
    %v5592 = vpack.c.b16 %v4806, %v4805
    %v5593 = vpack.c.b16 %v4808, %v4807
    %v5594 = vpack.c.b16 %v4810, %v4809
    %v5595 = vpack.c.b16 %v4812, %v4811
    %v5596 = vpack.c.b16 %v4814, %v4813
    %v5597 = vpack.c.b16 %v4816, %v4815
    %v5598 = vpack.c.b16 %v4818, %v4817
    %v5599 = vpack.c.b16 %v4820, %v4819
    %v5600 = vpack.c.b16 %v4822, %v4821
    %v5601 = vpack.c.b16 %v4824, %v4823
    %v5602 = vpack.c.b16 %v4826, %v4825
    %v5603 = vpack.c.b16 %v4828, %v4827
    %v5604 = vpack.c.b16 %v4830, %v4829
    %v5605 = vpack.c.b16 %v4832, %v4831
    %v5606 = vpack.c.b16 %v4834, %v4833
    %v5607 = vpack.c.b16 %v4836, %v4835
    %v5608 = vpack.c.b16 %v4838, %v4837
    %v5609 = vpack.c.b16 %v4840, %v4839
    %v5610 = vpack.c.b16 %v4842, %v4841
    %6379 = vmatprep.subr.bf16.mxu0 0
    %6380 = vmatpush1.bf16.msra.mxu0 %v4850
    %6381 = vmatprep.subr.bf16.mxu0 0
    %6382 = vmatpush1.bf16.msra.mxu0 %v4849
    %6383 = vmatprep.subr.bf16.mxu0 0
    %6384 = vmatpush1.bf16.msra.mxu0 %v4848
    %6385 = vmatprep.subr.bf16.mxu0 0
    %6386 = vmatpush1.bf16.msra.mxu0 %v4847
    %6387 = vmatprep.subr.bf16.mxu0 0
    %6388 = vmatpush1.bf16.msra.mxu0 %v4846
    %6389 = vmatprep.subr.bf16.mxu0 0
    %6390 = vmatpush1.bf16.msra.mxu0 %v4845
    %6391 = vmatprep.subr.bf16.mxu0 0
    %6392 = vmatpush1.bf16.msra.mxu0 %v4844
    %6393 = vmatprep.subr.bf16.mxu0 0
    %6394 = vmatpush1.bf16.msra.mxu0 %v4843
    %6395 = vmatprep.subr.bf16.mxu0 0
    %6396 = vmatpush2.bf16.msra.mxu0 %v4858
    %6397 = vmatprep.subr.bf16.mxu0 0
    %6398 = vmatpush2.bf16.msra.mxu0 %v4857
    %6399 = vmatprep.subr.bf16.mxu0 0
    %6400 = vmatpush2.bf16.msra.mxu0 %v4856
    %6401 = vmatprep.subr.bf16.mxu0 0
    %6402 = vmatpush2.bf16.msra.mxu0 %v4855
    %6403 = vmatprep.subr.bf16.mxu0 0
    %6404 = vmatpush2.bf16.msra.mxu0 %v4854
    %6405 = vmatprep.subr.bf16.mxu0 0
    %6406 = vmatpush2.bf16.msra.mxu0 %v4853
    %6407 = vmatprep.subr.bf16.mxu0 0
    %6408 = vmatpush2.bf16.msra.mxu0 %v4852
    %6409 = vmatprep.subr.bf16.mxu0 0
    %6410 = vmatpush2.bf16.msra.mxu0 %v4851
    %6411 = vmatprep.mubr.bf16.mxu0 %v133
    %6412 = vmatmul.mubr.bf16.gmra.mxu0 %v132
    %v6413 = vpop.f32.mrf.mxu0
    %v6414 = vadd.f32 %v1769, %v6413
    %v6415 = vpop.f32.mrf.mxu0
    %v6416 = vpop.f32.mrf.mxu0
    %v6417 = vpop.f32.mrf.mxu0
    %6418 = vdwg.mxu0
    %6419 = vmatprep.subr.bf16.mxu0 0
    %6420 = vmatpush1.bf16.msra.mxu0 %v4866
    %6421 = vmatprep.subr.bf16.mxu0 0
    %6422 = vmatpush1.bf16.msra.mxu0 %v4865
    %6423 = vmatprep.subr.bf16.mxu0 0
    %6424 = vmatpush1.bf16.msra.mxu0 %v4864
    %6425 = vmatprep.subr.bf16.mxu0 0
    %6426 = vmatpush1.bf16.msra.mxu0 %v4863
    %6427 = vmatprep.subr.bf16.mxu0 0
    %6428 = vmatpush1.bf16.msra.mxu0 %v4862
    %6429 = vmatprep.subr.bf16.mxu0 0
    %6430 = vmatpush1.bf16.msra.mxu0 %v4861
    %6431 = vmatprep.subr.bf16.mxu0 0
    %6432 = vmatpush1.bf16.msra.mxu0 %v4860
    %6433 = vmatprep.subr.bf16.mxu0 0
    %6434 = vmatpush1.bf16.msra.mxu0 %v4859
    %6435 = vmatprep.subr.bf16.mxu0 0
    %6436 = vmatpush2.bf16.msra.mxu0 %v4874
    %6437 = vmatprep.subr.bf16.mxu0 0
    %6438 = vmatpush2.bf16.msra.mxu0 %v4873
    %6439 = vmatprep.subr.bf16.mxu0 0
    %6440 = vmatpush2.bf16.msra.mxu0 %v4872
    %6441 = vmatprep.subr.bf16.mxu0 0
    %6442 = vmatpush2.bf16.msra.mxu0 %v4871
    %6443 = vmatprep.subr.bf16.mxu0 0
    %6444 = vmatpush2.bf16.msra.mxu0 %v4870
    %6445 = vmatprep.subr.bf16.mxu0 0
    %6446 = vmatpush2.bf16.msra.mxu0 %v4869
    %6447 = vmatprep.subr.bf16.mxu0 0
    %6448 = vmatpush2.bf16.msra.mxu0 %v4868
    %6449 = vmatprep.subr.bf16.mxu0 0
    %6450 = vmatpush2.bf16.msra.mxu0 %v4867
    %6451 = vmatprep.mubr.bf16.mxu0 %v135
    %6452 = vmatmul.mubr.bf16.gmra.mxu0 %v134
    %v6453 = vpop.f32.mrf.mxu0
    %v6454 = vadd.f32 %v6414, %v6453
    %v6455 = vpop.f32.mrf.mxu0
    %v6456 = vpop.f32.mrf.mxu0
    %v6457 = vpop.f32.mrf.mxu0
    %6458 = vdwg.mxu0
    %6459 = vmatprep.subr.bf16.mxu0 0
    %6460 = vmatpush1.bf16.msra.mxu0 %v4882
    %6461 = vmatprep.subr.bf16.mxu0 0
    %6462 = vmatpush1.bf16.msra.mxu0 %v4881
    %6463 = vmatprep.subr.bf16.mxu0 0
    %6464 = vmatpush1.bf16.msra.mxu0 %v4880
    %6465 = vmatprep.subr.bf16.mxu0 0
    %6466 = vmatpush1.bf16.msra.mxu0 %v4879
    %6467 = vmatprep.subr.bf16.mxu0 0
    %6468 = vmatpush1.bf16.msra.mxu0 %v4878
    %6469 = vmatprep.subr.bf16.mxu0 0
    %6470 = vmatpush1.bf16.msra.mxu0 %v4877
    %6471 = vmatprep.subr.bf16.mxu0 0
    %6472 = vmatpush1.bf16.msra.mxu0 %v4876
    %6473 = vmatprep.subr.bf16.mxu0 0
    %6474 = vmatpush1.bf16.msra.mxu0 %v4875
    %6475 = vmatprep.subr.bf16.mxu0 0
    %6476 = vmatpush2.bf16.msra.mxu0 %v4890
    %6477 = vmatprep.subr.bf16.mxu0 0
    %6478 = vmatpush2.bf16.msra.mxu0 %v4889
    %6479 = vmatprep.subr.bf16.mxu0 0
    %6480 = vmatpush2.bf16.msra.mxu0 %v4888
    %6481 = vmatprep.subr.bf16.mxu0 0
    %6482 = vmatpush2.bf16.msra.mxu0 %v4887
    %6483 = vmatprep.subr.bf16.mxu0 0
    %6484 = vmatpush2.bf16.msra.mxu0 %v4886
    %6485 = vmatprep.subr.bf16.mxu0 0
    %6486 = vmatpush2.bf16.msra.mxu0 %v4885
    %6487 = vmatprep.subr.bf16.mxu0 0
    %6488 = vmatpush2.bf16.msra.mxu0 %v4884
    %6489 = vmatprep.subr.bf16.mxu0 0
    %6490 = vmatpush2.bf16.msra.mxu0 %v4883
    %6491 = vmatprep.mubr.bf16.mxu0 %v137
    %6492 = vmatmul.mubr.bf16.gmra.mxu0 %v136
    %v6493 = vpop.f32.mrf.mxu0
    %v6494 = vadd.f32 %v6454, %v6493
    %v6495 = vpop.f32.mrf.mxu0
    %v6496 = vpop.f32.mrf.mxu0
    %v6497 = vpop.f32.mrf.mxu0
    %6498 = vdwg.mxu0
    %6499 = vmatprep.subr.bf16.mxu0 0
    %6500 = vmatpush1.bf16.msra.mxu0 %v4898
    %6501 = vmatprep.subr.bf16.mxu0 0
    %6502 = vmatpush1.bf16.msra.mxu0 %v4897
    %6503 = vmatprep.subr.bf16.mxu0 0
    %6504 = vmatpush1.bf16.msra.mxu0 %v4896
    %6505 = vmatprep.subr.bf16.mxu0 0
    %6506 = vmatpush1.bf16.msra.mxu0 %v4895
    %6507 = vmatprep.subr.bf16.mxu0 0
    %6508 = vmatpush1.bf16.msra.mxu0 %v4894
    %6509 = vmatprep.subr.bf16.mxu0 0
    %6510 = vmatpush1.bf16.msra.mxu0 %v4893
    %6511 = vmatprep.subr.bf16.mxu0 0
    %6512 = vmatpush1.bf16.msra.mxu0 %v4892
    %6513 = vmatprep.subr.bf16.mxu0 0
    %6514 = vmatpush1.bf16.msra.mxu0 %v4891
    %6515 = vmatprep.subr.bf16.mxu0 0
    %6516 = vmatpush2.bf16.msra.mxu0 %v4906
    %6517 = vmatprep.subr.bf16.mxu0 0
    %6518 = vmatpush2.bf16.msra.mxu0 %v4905
    %6519 = vmatprep.subr.bf16.mxu0 0
    %6520 = vmatpush2.bf16.msra.mxu0 %v4904
    %6521 = vmatprep.subr.bf16.mxu0 0
    %6522 = vmatpush2.bf16.msra.mxu0 %v4903
    %6523 = vmatprep.subr.bf16.mxu0 0
    %6524 = vmatpush2.bf16.msra.mxu0 %v4902
    %6525 = vmatprep.subr.bf16.mxu0 0
    %6526 = vmatpush2.bf16.msra.mxu0 %v4901
    %6527 = vmatprep.subr.bf16.mxu0 0
    %6528 = vmatpush2.bf16.msra.mxu0 %v4900
    %6529 = vmatprep.subr.bf16.mxu0 0
    %6530 = vmatpush2.bf16.msra.mxu0 %v4899
    %6531 = vmatprep.mubr.bf16.mxu0 %v139
    %6532 = vmatmul.mubr.bf16.gmra.mxu0 %v138
    %v6533 = vpop.f32.mrf.mxu0
    %v6534 = vadd.f32 %v6494, %v6533
    %v6535 = vpop.f32.mrf.mxu0
    %v6536 = vpop.f32.mrf.mxu0
    %v6537 = vpop.f32.mrf.mxu0
    %6538 = vdwg.mxu0
    %6539 = vmatprep.subr.bf16.mxu0 0
    %6540 = vmatpush1.bf16.msra.mxu0 %v4914
    %6541 = vmatprep.subr.bf16.mxu0 0
    %6542 = vmatpush1.bf16.msra.mxu0 %v4913
    %6543 = vmatprep.subr.bf16.mxu0 0
    %6544 = vmatpush1.bf16.msra.mxu0 %v4912
    %6545 = vmatprep.subr.bf16.mxu0 0
    %6546 = vmatpush1.bf16.msra.mxu0 %v4911
    %6547 = vmatprep.subr.bf16.mxu0 0
    %6548 = vmatpush1.bf16.msra.mxu0 %v4910
    %6549 = vmatprep.subr.bf16.mxu0 0
    %6550 = vmatpush1.bf16.msra.mxu0 %v4909
    %6551 = vmatprep.subr.bf16.mxu0 0
    %6552 = vmatpush1.bf16.msra.mxu0 %v4908
    %6553 = vmatprep.subr.bf16.mxu0 0
    %6554 = vmatpush1.bf16.msra.mxu0 %v4907
    %6555 = vmatprep.subr.bf16.mxu0 0
    %6556 = vmatpush2.bf16.msra.mxu0 %v4922
    %6557 = vmatprep.subr.bf16.mxu0 0
    %6558 = vmatpush2.bf16.msra.mxu0 %v4921
    %6559 = vmatprep.subr.bf16.mxu0 0
    %6560 = vmatpush2.bf16.msra.mxu0 %v4920
    %6561 = vmatprep.subr.bf16.mxu0 0
    %6562 = vmatpush2.bf16.msra.mxu0 %v4919
    %6563 = vmatprep.subr.bf16.mxu0 0
    %6564 = vmatpush2.bf16.msra.mxu0 %v4918
    %6565 = vmatprep.subr.bf16.mxu0 0
    %6566 = vmatpush2.bf16.msra.mxu0 %v4917
    %6567 = vmatprep.subr.bf16.mxu0 0
    %6568 = vmatpush2.bf16.msra.mxu0 %v4916
    %6569 = vmatprep.subr.bf16.mxu0 0
    %6570 = vmatpush2.bf16.msra.mxu0 %v4915
    %6571 = vmatprep.mubr.bf16.mxu0 %v141
    %6572 = vmatmul.mubr.bf16.gmra.mxu0 %v140
    %v6573 = vpop.f32.mrf.mxu0
    %v6574 = vadd.f32 %v6534, %v6573
    %v6575 = vpop.f32.mrf.mxu0
    %v6576 = vpop.f32.mrf.mxu0
    %v6577 = vpop.f32.mrf.mxu0
    %6578 = vdwg.mxu0
    %6579 = vmatprep.subr.bf16.mxu0 0
    %6580 = vmatpush1.bf16.msra.mxu0 %v4930
    %6581 = vmatprep.subr.bf16.mxu0 0
    %6582 = vmatpush1.bf16.msra.mxu0 %v4929
    %6583 = vmatprep.subr.bf16.mxu0 0
    %6584 = vmatpush1.bf16.msra.mxu0 %v4928
    %6585 = vmatprep.subr.bf16.mxu0 0
    %6586 = vmatpush1.bf16.msra.mxu0 %v4927
    %6587 = vmatprep.subr.bf16.mxu0 0
    %6588 = vmatpush1.bf16.msra.mxu0 %v4926
    %6589 = vmatprep.subr.bf16.mxu0 0
    %6590 = vmatpush1.bf16.msra.mxu0 %v4925
    %6591 = vmatprep.subr.bf16.mxu0 0
    %6592 = vmatpush1.bf16.msra.mxu0 %v4924
    %6593 = vmatprep.subr.bf16.mxu0 0
    %6594 = vmatpush1.bf16.msra.mxu0 %v4923
    %6595 = vmatprep.subr.bf16.mxu0 0
    %6596 = vmatpush2.bf16.msra.mxu0 %v4938
    %6597 = vmatprep.subr.bf16.mxu0 0
    %6598 = vmatpush2.bf16.msra.mxu0 %v4937
    %6599 = vmatprep.subr.bf16.mxu0 0
    %6600 = vmatpush2.bf16.msra.mxu0 %v4936
    %6601 = vmatprep.subr.bf16.mxu0 0
    %6602 = vmatpush2.bf16.msra.mxu0 %v4935
    %6603 = vmatprep.subr.bf16.mxu0 0
    %6604 = vmatpush2.bf16.msra.mxu0 %v4934
    %6605 = vmatprep.subr.bf16.mxu0 0
    %6606 = vmatpush2.bf16.msra.mxu0 %v4933
    %6607 = vmatprep.subr.bf16.mxu0 0
    %6608 = vmatpush2.bf16.msra.mxu0 %v4932
    %6609 = vmatprep.subr.bf16.mxu0 0
    %6610 = vmatpush2.bf16.msra.mxu0 %v4931
    %6611 = vmatprep.mubr.bf16.mxu0 %v143
    %6612 = vmatmul.mubr.bf16.gmra.mxu0 %v142
    %v6613 = vpop.f32.mrf.mxu0
    %v6614 = vadd.f32 %v6574, %v6613
    %v6615 = vpop.f32.mrf.mxu0
    %v6616 = vpop.f32.mrf.mxu0
    %v6617 = vpop.f32.mrf.mxu0
    %6618 = vdwg.mxu0
    %6619 = vmatprep.subr.bf16.mxu0 0
    %6620 = vmatpush1.bf16.msra.mxu0 %v4946
    %6621 = vmatprep.subr.bf16.mxu0 0
    %6622 = vmatpush1.bf16.msra.mxu0 %v4945
    %6623 = vmatprep.subr.bf16.mxu0 0
    %6624 = vmatpush1.bf16.msra.mxu0 %v4944
    %6625 = vmatprep.subr.bf16.mxu0 0
    %6626 = vmatpush1.bf16.msra.mxu0 %v4943
    %6627 = vmatprep.subr.bf16.mxu0 0
    %6628 = vmatpush1.bf16.msra.mxu0 %v4942
    %6629 = vmatprep.subr.bf16.mxu0 0
    %6630 = vmatpush1.bf16.msra.mxu0 %v4941
    %6631 = vmatprep.subr.bf16.mxu0 0
    %6632 = vmatpush1.bf16.msra.mxu0 %v4940
    %6633 = vmatprep.subr.bf16.mxu0 0
    %6634 = vmatpush1.bf16.msra.mxu0 %v4939
    %6635 = vmatprep.subr.bf16.mxu0 0
    %6636 = vmatpush2.bf16.msra.mxu0 %v4954
    %6637 = vmatprep.subr.bf16.mxu0 0
    %6638 = vmatpush2.bf16.msra.mxu0 %v4953
    %6639 = vmatprep.subr.bf16.mxu0 0
    %6640 = vmatpush2.bf16.msra.mxu0 %v4952
    %6641 = vmatprep.subr.bf16.mxu0 0
    %6642 = vmatpush2.bf16.msra.mxu0 %v4951
    %6643 = vmatprep.subr.bf16.mxu0 0
    %6644 = vmatpush2.bf16.msra.mxu0 %v4950
    %6645 = vmatprep.subr.bf16.mxu0 0
    %6646 = vmatpush2.bf16.msra.mxu0 %v4949
    %6647 = vmatprep.subr.bf16.mxu0 0
    %6648 = vmatpush2.bf16.msra.mxu0 %v4948
    %6649 = vmatprep.subr.bf16.mxu0 0
    %6650 = vmatpush2.bf16.msra.mxu0 %v4947
    %6651 = vmatprep.mubr.bf16.mxu0 %v145
    %6652 = vmatmul.mubr.bf16.gmra.mxu0 %v144
    %v6653 = vpop.f32.mrf.mxu0
    %v6654 = vadd.f32 %v6614, %v6653
    %v6655 = vpop.f32.mrf.mxu0
    %v6656 = vpop.f32.mrf.mxu0
    %v6657 = vpop.f32.mrf.mxu0
    %6658 = vdwg.mxu0
    %6659 = vmatprep.subr.bf16.mxu0 0
    %6660 = vmatpush1.bf16.msra.mxu0 %v4962
    %6661 = vmatprep.subr.bf16.mxu0 0
    %6662 = vmatpush1.bf16.msra.mxu0 %v4961
    %6663 = vmatprep.subr.bf16.mxu0 0
    %6664 = vmatpush1.bf16.msra.mxu0 %v4960
    %6665 = vmatprep.subr.bf16.mxu0 0
    %6666 = vmatpush1.bf16.msra.mxu0 %v4959
    %6667 = vmatprep.subr.bf16.mxu0 0
    %6668 = vmatpush1.bf16.msra.mxu0 %v4958
    %6669 = vmatprep.subr.bf16.mxu0 0
    %6670 = vmatpush1.bf16.msra.mxu0 %v4957
    %6671 = vmatprep.subr.bf16.mxu0 0
    %6672 = vmatpush1.bf16.msra.mxu0 %v4956
    %6673 = vmatprep.subr.bf16.mxu0 0
    %6674 = vmatpush1.bf16.msra.mxu0 %v4955
    %6675 = vmatprep.subr.bf16.mxu0 0
    %6676 = vmatpush2.bf16.msra.mxu0 %v4970
    %6677 = vmatprep.subr.bf16.mxu0 0
    %6678 = vmatpush2.bf16.msra.mxu0 %v4969
    %6679 = vmatprep.subr.bf16.mxu0 0
    %6680 = vmatpush2.bf16.msra.mxu0 %v4968
    %6681 = vmatprep.subr.bf16.mxu0 0
    %6682 = vmatpush2.bf16.msra.mxu0 %v4967
    %6683 = vmatprep.subr.bf16.mxu0 0
    %6684 = vmatpush2.bf16.msra.mxu0 %v4966
    %6685 = vmatprep.subr.bf16.mxu0 0
    %6686 = vmatpush2.bf16.msra.mxu0 %v4965
    %6687 = vmatprep.subr.bf16.mxu0 0
    %6688 = vmatpush2.bf16.msra.mxu0 %v4964
    %6689 = vmatprep.subr.bf16.mxu0 0
    %6690 = vmatpush2.bf16.msra.mxu0 %v4963
    %6691 = vmatprep.mubr.bf16.mxu0 %v147
    %6692 = vmatmul.mubr.bf16.gmra.mxu0 %v146
    %v6693 = vpop.f32.mrf.mxu0
    %v6694 = vadd.f32 %v6654, %v6693
    %v6695 = vpop.f32.mrf.mxu0
    %v6696 = vpop.f32.mrf.mxu0
    %v6697 = vpop.f32.mrf.mxu0
    %6698 = vdwg.mxu0
    %6699 = vmatprep.subr.bf16.mxu0 0
    %6700 = vmatpush1.bf16.msra.mxu0 %v4978
    %6701 = vmatprep.subr.bf16.mxu0 0
    %6702 = vmatpush1.bf16.msra.mxu0 %v4977
    %6703 = vmatprep.subr.bf16.mxu0 0
    %6704 = vmatpush1.bf16.msra.mxu0 %v4976
    %6705 = vmatprep.subr.bf16.mxu0 0
    %6706 = vmatpush1.bf16.msra.mxu0 %v4975
    %6707 = vmatprep.subr.bf16.mxu0 0
    %6708 = vmatpush1.bf16.msra.mxu0 %v4974
    %6709 = vmatprep.subr.bf16.mxu0 0
    %6710 = vmatpush1.bf16.msra.mxu0 %v4973
    %6711 = vmatprep.subr.bf16.mxu0 0
    %6712 = vmatpush1.bf16.msra.mxu0 %v4972
    %6713 = vmatprep.subr.bf16.mxu0 0
    %6714 = vmatpush1.bf16.msra.mxu0 %v4971
    %6715 = vmatprep.subr.bf16.mxu0 0
    %6716 = vmatpush2.bf16.msra.mxu0 %v4986
    %6717 = vmatprep.subr.bf16.mxu0 0
    %6718 = vmatpush2.bf16.msra.mxu0 %v4985
    %6719 = vmatprep.subr.bf16.mxu0 0
    %6720 = vmatpush2.bf16.msra.mxu0 %v4984
    %6721 = vmatprep.subr.bf16.mxu0 0
    %6722 = vmatpush2.bf16.msra.mxu0 %v4983
    %6723 = vmatprep.subr.bf16.mxu0 0
    %6724 = vmatpush2.bf16.msra.mxu0 %v4982
    %6725 = vmatprep.subr.bf16.mxu0 0
    %6726 = vmatpush2.bf16.msra.mxu0 %v4981
    %6727 = vmatprep.subr.bf16.mxu0 0
    %6728 = vmatpush2.bf16.msra.mxu0 %v4980
    %6729 = vmatprep.subr.bf16.mxu0 0
    %6730 = vmatpush2.bf16.msra.mxu0 %v4979
    %6731 = vmatprep.mubr.bf16.mxu0 %v149
    %6732 = vmatmul.mubr.bf16.gmra.mxu0 %v148
    %v6733 = vpop.f32.mrf.mxu0
    %v6734 = vadd.f32 %v6694, %v6733
    %v6735 = vpop.f32.mrf.mxu0
    %v6736 = vpop.f32.mrf.mxu0
    %v6737 = vpop.f32.mrf.mxu0
    %6738 = vdwg.mxu0
    %6739 = vmatprep.subr.bf16.mxu0 0
    %6740 = vmatpush1.bf16.msra.mxu0 %v4994
    %6741 = vmatprep.subr.bf16.mxu0 0
    %6742 = vmatpush1.bf16.msra.mxu0 %v4993
    %6743 = vmatprep.subr.bf16.mxu0 0
    %6744 = vmatpush1.bf16.msra.mxu0 %v4992
    %6745 = vmatprep.subr.bf16.mxu0 0
    %6746 = vmatpush1.bf16.msra.mxu0 %v4991
    %6747 = vmatprep.subr.bf16.mxu0 0
    %6748 = vmatpush1.bf16.msra.mxu0 %v4990
    %6749 = vmatprep.subr.bf16.mxu0 0
    %6750 = vmatpush1.bf16.msra.mxu0 %v4989
    %6751 = vmatprep.subr.bf16.mxu0 0
    %6752 = vmatpush1.bf16.msra.mxu0 %v4988
    %6753 = vmatprep.subr.bf16.mxu0 0
    %6754 = vmatpush1.bf16.msra.mxu0 %v4987
    %6755 = vmatprep.subr.bf16.mxu0 0
    %6756 = vmatpush2.bf16.msra.mxu0 %v5002
    %6757 = vmatprep.subr.bf16.mxu0 0
    %6758 = vmatpush2.bf16.msra.mxu0 %v5001
    %6759 = vmatprep.subr.bf16.mxu0 0
    %6760 = vmatpush2.bf16.msra.mxu0 %v5000
    %6761 = vmatprep.subr.bf16.mxu0 0
    %6762 = vmatpush2.bf16.msra.mxu0 %v4999
    %6763 = vmatprep.subr.bf16.mxu0 0
    %6764 = vmatpush2.bf16.msra.mxu0 %v4998
    %6765 = vmatprep.subr.bf16.mxu0 0
    %6766 = vmatpush2.bf16.msra.mxu0 %v4997
    %6767 = vmatprep.subr.bf16.mxu0 0
    %6768 = vmatpush2.bf16.msra.mxu0 %v4996
    %6769 = vmatprep.subr.bf16.mxu0 0
    %6770 = vmatpush2.bf16.msra.mxu0 %v4995
    %6771 = vmatprep.mubr.bf16.mxu0 %v151
    %6772 = vmatmul.mubr.bf16.gmra.mxu0 %v150
    %v6773 = vpop.f32.mrf.mxu0
    %v6774 = vadd.f32 %v6734, %v6773
    %v6775 = vpop.f32.mrf.mxu0
    %v6776 = vpop.f32.mrf.mxu0
    %v6777 = vpop.f32.mrf.mxu0
    %6778 = vdwg.mxu0
    %6779 = vmatprep.subr.bf16.mxu0 0
    %6780 = vmatpush1.bf16.msra.mxu0 %v5010
    %6781 = vmatprep.subr.bf16.mxu0 0
    %6782 = vmatpush1.bf16.msra.mxu0 %v5009
    %6783 = vmatprep.subr.bf16.mxu0 0
    %6784 = vmatpush1.bf16.msra.mxu0 %v5008
    %6785 = vmatprep.subr.bf16.mxu0 0
    %6786 = vmatpush1.bf16.msra.mxu0 %v5007
    %6787 = vmatprep.subr.bf16.mxu0 0
    %6788 = vmatpush1.bf16.msra.mxu0 %v5006
    %6789 = vmatprep.subr.bf16.mxu0 0
    %6790 = vmatpush1.bf16.msra.mxu0 %v5005
    %6791 = vmatprep.subr.bf16.mxu0 0
    %6792 = vmatpush1.bf16.msra.mxu0 %v5004
    %6793 = vmatprep.subr.bf16.mxu0 0
    %6794 = vmatpush1.bf16.msra.mxu0 %v5003
    %6795 = vmatprep.subr.bf16.mxu0 0
    %6796 = vmatpush2.bf16.msra.mxu0 %v5018
    %6797 = vmatprep.subr.bf16.mxu0 0
    %6798 = vmatpush2.bf16.msra.mxu0 %v5017
    %6799 = vmatprep.subr.bf16.mxu0 0
    %6800 = vmatpush2.bf16.msra.mxu0 %v5016
    %6801 = vmatprep.subr.bf16.mxu0 0
    %6802 = vmatpush2.bf16.msra.mxu0 %v5015
    %6803 = vmatprep.subr.bf16.mxu0 0
    %6804 = vmatpush2.bf16.msra.mxu0 %v5014
    %6805 = vmatprep.subr.bf16.mxu0 0
    %6806 = vmatpush2.bf16.msra.mxu0 %v5013
    %6807 = vmatprep.subr.bf16.mxu0 0
    %6808 = vmatpush2.bf16.msra.mxu0 %v5012
    %6809 = vmatprep.subr.bf16.mxu0 0
    %6810 = vmatpush2.bf16.msra.mxu0 %v5011
    %6811 = vmatprep.mubr.bf16.mxu0 %v153
    %6812 = vmatmul.mubr.bf16.gmra.mxu0 %v152
    %v6813 = vpop.f32.mrf.mxu0
    %v6814 = vadd.f32 %v6774, %v6813
    %v6815 = vpop.f32.mrf.mxu0
    %v6816 = vpop.f32.mrf.mxu0
    %v6817 = vpop.f32.mrf.mxu0
    %6818 = vdwg.mxu0
    %6819 = vmatprep.subr.bf16.mxu0 0
    %6820 = vmatpush1.bf16.msra.mxu0 %v5026
    %6821 = vmatprep.subr.bf16.mxu0 0
    %6822 = vmatpush1.bf16.msra.mxu0 %v5025
    %6823 = vmatprep.subr.bf16.mxu0 0
    %6824 = vmatpush1.bf16.msra.mxu0 %v5024
    %6825 = vmatprep.subr.bf16.mxu0 0
    %6826 = vmatpush1.bf16.msra.mxu0 %v5023
    %6827 = vmatprep.subr.bf16.mxu0 0
    %6828 = vmatpush1.bf16.msra.mxu0 %v5022
    %6829 = vmatprep.subr.bf16.mxu0 0
    %6830 = vmatpush1.bf16.msra.mxu0 %v5021
    %6831 = vmatprep.subr.bf16.mxu0 0
    %6832 = vmatpush1.bf16.msra.mxu0 %v5020
    %6833 = vmatprep.subr.bf16.mxu0 0
    %6834 = vmatpush1.bf16.msra.mxu0 %v5019
    %6835 = vmatprep.subr.bf16.mxu0 0
    %6836 = vmatpush2.bf16.msra.mxu0 %v5034
    %6837 = vmatprep.subr.bf16.mxu0 0
    %6838 = vmatpush2.bf16.msra.mxu0 %v5033
    %6839 = vmatprep.subr.bf16.mxu0 0
    %6840 = vmatpush2.bf16.msra.mxu0 %v5032
    %6841 = vmatprep.subr.bf16.mxu0 0
    %6842 = vmatpush2.bf16.msra.mxu0 %v5031
    %6843 = vmatprep.subr.bf16.mxu0 0
    %6844 = vmatpush2.bf16.msra.mxu0 %v5030
    %6845 = vmatprep.subr.bf16.mxu0 0
    %6846 = vmatpush2.bf16.msra.mxu0 %v5029
    %6847 = vmatprep.subr.bf16.mxu0 0
    %6848 = vmatpush2.bf16.msra.mxu0 %v5028
    %6849 = vmatprep.subr.bf16.mxu0 0
    %6850 = vmatpush2.bf16.msra.mxu0 %v5027
    %6851 = vmatprep.mubr.bf16.mxu0 %v155
    %6852 = vmatmul.mubr.bf16.gmra.mxu0 %v154
    %v6853 = vpop.f32.mrf.mxu0
    %v6854 = vadd.f32 %v6814, %v6853
    %v6855 = vpop.f32.mrf.mxu0
    %v6856 = vpop.f32.mrf.mxu0
    %v6857 = vpop.f32.mrf.mxu0
    %6858 = vdwg.mxu0
    %6859 = vmatprep.subr.bf16.mxu0 0
    %6860 = vmatpush1.bf16.msra.mxu0 %v5042
    %6861 = vmatprep.subr.bf16.mxu0 0
    %6862 = vmatpush1.bf16.msra.mxu0 %v5041
    %6863 = vmatprep.subr.bf16.mxu0 0
    %6864 = vmatpush1.bf16.msra.mxu0 %v5040
    %6865 = vmatprep.subr.bf16.mxu0 0
    %6866 = vmatpush1.bf16.msra.mxu0 %v5039
    %6867 = vmatprep.subr.bf16.mxu0 0
    %6868 = vmatpush1.bf16.msra.mxu0 %v5038
    %6869 = vmatprep.subr.bf16.mxu0 0
    %6870 = vmatpush1.bf16.msra.mxu0 %v5037
    %6871 = vmatprep.subr.bf16.mxu0 0
    %6872 = vmatpush1.bf16.msra.mxu0 %v5036
    %6873 = vmatprep.subr.bf16.mxu0 0
    %6874 = vmatpush1.bf16.msra.mxu0 %v5035
    %6875 = vmatprep.subr.bf16.mxu0 0
    %6876 = vmatpush2.bf16.msra.mxu0 %v5050
    %6877 = vmatprep.subr.bf16.mxu0 0
    %6878 = vmatpush2.bf16.msra.mxu0 %v5049
    %6879 = vmatprep.subr.bf16.mxu0 0
    %6880 = vmatpush2.bf16.msra.mxu0 %v5048
    %6881 = vmatprep.subr.bf16.mxu0 0
    %6882 = vmatpush2.bf16.msra.mxu0 %v5047
    %6883 = vmatprep.subr.bf16.mxu0 0
    %6884 = vmatpush2.bf16.msra.mxu0 %v5046
    %6885 = vmatprep.subr.bf16.mxu0 0
    %6886 = vmatpush2.bf16.msra.mxu0 %v5045
    %6887 = vmatprep.subr.bf16.mxu0 0
    %6888 = vmatpush2.bf16.msra.mxu0 %v5044
    %6889 = vmatprep.subr.bf16.mxu0 0
    %6890 = vmatpush2.bf16.msra.mxu0 %v5043
    %6891 = vmatprep.mubr.bf16.mxu0 %v157
    %6892 = vmatmul.mubr.bf16.gmra.mxu0 %v156
    %v6893 = vpop.f32.mrf.mxu0
    %v6894 = vadd.f32 %v6854, %v6893
    %v6895 = vpop.f32.mrf.mxu0
    %v6896 = vpop.f32.mrf.mxu0
    %v6897 = vpop.f32.mrf.mxu0
    %6898 = vdwg.mxu0
    %6899 = vmatprep.subr.bf16.mxu0 0
    %6900 = vmatpush1.bf16.msra.mxu0 %v5058
    %6901 = vmatprep.subr.bf16.mxu0 0
    %6902 = vmatpush1.bf16.msra.mxu0 %v5057
    %6903 = vmatprep.subr.bf16.mxu0 0
    %6904 = vmatpush1.bf16.msra.mxu0 %v5056
    %6905 = vmatprep.subr.bf16.mxu0 0
    %6906 = vmatpush1.bf16.msra.mxu0 %v5055
    %6907 = vmatprep.subr.bf16.mxu0 0
    %6908 = vmatpush1.bf16.msra.mxu0 %v5054
    %6909 = vmatprep.subr.bf16.mxu0 0
    %6910 = vmatpush1.bf16.msra.mxu0 %v5053
    %6911 = vmatprep.subr.bf16.mxu0 0
    %6912 = vmatpush1.bf16.msra.mxu0 %v5052
    %6913 = vmatprep.subr.bf16.mxu0 0
    %6914 = vmatpush1.bf16.msra.mxu0 %v5051
    %6915 = vmatprep.subr.bf16.mxu0 0
    %6916 = vmatpush2.bf16.msra.mxu0 %v5066
    %6917 = vmatprep.subr.bf16.mxu0 0
    %6918 = vmatpush2.bf16.msra.mxu0 %v5065
    %6919 = vmatprep.subr.bf16.mxu0 0
    %6920 = vmatpush2.bf16.msra.mxu0 %v5064
    %6921 = vmatprep.subr.bf16.mxu0 0
    %6922 = vmatpush2.bf16.msra.mxu0 %v5063
    %6923 = vmatprep.subr.bf16.mxu0 0
    %6924 = vmatpush2.bf16.msra.mxu0 %v5062
    %6925 = vmatprep.subr.bf16.mxu0 0
    %6926 = vmatpush2.bf16.msra.mxu0 %v5061
    %6927 = vmatprep.subr.bf16.mxu0 0
    %6928 = vmatpush2.bf16.msra.mxu0 %v5060
    %6929 = vmatprep.subr.bf16.mxu0 0
    %6930 = vmatpush2.bf16.msra.mxu0 %v5059
    %6931 = vmatprep.mubr.bf16.mxu0 %v159
    %6932 = vmatmul.mubr.bf16.gmra.mxu0 %v158
    %v6933 = vpop.f32.mrf.mxu0
    %v6934 = vadd.f32 %v6894, %v6933
    %v6935 = vpop.f32.mrf.mxu0
    %v6936 = vpop.f32.mrf.mxu0
    %v6937 = vpop.f32.mrf.mxu0
    %6938 = vdwg.mxu0
    %6939 = vmatprep.subr.bf16.mxu0 0
    %6940 = vmatpush1.bf16.msra.mxu0 %v5074
    %6941 = vmatprep.subr.bf16.mxu0 0
    %6942 = vmatpush1.bf16.msra.mxu0 %v5073
    %6943 = vmatprep.subr.bf16.mxu0 0
    %6944 = vmatpush1.bf16.msra.mxu0 %v5072
    %6945 = vmatprep.subr.bf16.mxu0 0
    %6946 = vmatpush1.bf16.msra.mxu0 %v5071
    %6947 = vmatprep.subr.bf16.mxu0 0
    %6948 = vmatpush1.bf16.msra.mxu0 %v5070
    %6949 = vmatprep.subr.bf16.mxu0 0
    %6950 = vmatpush1.bf16.msra.mxu0 %v5069
    %6951 = vmatprep.subr.bf16.mxu0 0
    %6952 = vmatpush1.bf16.msra.mxu0 %v5068
    %6953 = vmatprep.subr.bf16.mxu0 0
    %6954 = vmatpush1.bf16.msra.mxu0 %v5067
    %6955 = vmatprep.subr.bf16.mxu0 0
    %6956 = vmatpush2.bf16.msra.mxu0 %v5082
    %6957 = vmatprep.subr.bf16.mxu0 0
    %6958 = vmatpush2.bf16.msra.mxu0 %v5081
    %6959 = vmatprep.subr.bf16.mxu0 0
    %6960 = vmatpush2.bf16.msra.mxu0 %v5080
    %6961 = vmatprep.subr.bf16.mxu0 0
    %6962 = vmatpush2.bf16.msra.mxu0 %v5079
    %6963 = vmatprep.subr.bf16.mxu0 0
    %6964 = vmatpush2.bf16.msra.mxu0 %v5078
    %6965 = vmatprep.subr.bf16.mxu0 0
    %6966 = vmatpush2.bf16.msra.mxu0 %v5077
    %6967 = vmatprep.subr.bf16.mxu0 0
    %6968 = vmatpush2.bf16.msra.mxu0 %v5076
    %6969 = vmatprep.subr.bf16.mxu0 0
    %6970 = vmatpush2.bf16.msra.mxu0 %v5075
    %6971 = vmatprep.mubr.bf16.mxu0 %v161
    %6972 = vmatmul.mubr.bf16.gmra.mxu0 %v160
    %v6973 = vpop.f32.mrf.mxu0
    %v6974 = vadd.f32 %v6934, %v6973
    %v6975 = vpop.f32.mrf.mxu0
    %v6976 = vpop.f32.mrf.mxu0
    %v6977 = vpop.f32.mrf.mxu0
    %6978 = vdwg.mxu0
    %6979 = vmatprep.subr.bf16.mxu0 0
    %6980 = vmatpush1.bf16.msra.mxu0 %v5090
    %6981 = vmatprep.subr.bf16.mxu0 0
    %6982 = vmatpush1.bf16.msra.mxu0 %v5089
    %6983 = vmatprep.subr.bf16.mxu0 0
    %6984 = vmatpush1.bf16.msra.mxu0 %v5088
    %6985 = vmatprep.subr.bf16.mxu0 0
    %6986 = vmatpush1.bf16.msra.mxu0 %v5087
    %6987 = vmatprep.subr.bf16.mxu0 0
    %6988 = vmatpush1.bf16.msra.mxu0 %v5086
    %6989 = vmatprep.subr.bf16.mxu0 0
    %6990 = vmatpush1.bf16.msra.mxu0 %v5085
    %6991 = vmatprep.subr.bf16.mxu0 0
    %6992 = vmatpush1.bf16.msra.mxu0 %v5084
    %6993 = vmatprep.subr.bf16.mxu0 0
    %6994 = vmatpush1.bf16.msra.mxu0 %v5083
    %6995 = vmatprep.subr.bf16.mxu0 0
    %6996 = vmatpush2.bf16.msra.mxu0 %v5098
    %6997 = vmatprep.subr.bf16.mxu0 0
    %6998 = vmatpush2.bf16.msra.mxu0 %v5097
    %6999 = vmatprep.subr.bf16.mxu0 0
    %7000 = vmatpush2.bf16.msra.mxu0 %v5096
    %7001 = vmatprep.subr.bf16.mxu0 0
    %7002 = vmatpush2.bf16.msra.mxu0 %v5095
    %7003 = vmatprep.subr.bf16.mxu0 0
    %7004 = vmatpush2.bf16.msra.mxu0 %v5094
    %7005 = vmatprep.subr.bf16.mxu0 0
    %7006 = vmatpush2.bf16.msra.mxu0 %v5093
    %7007 = vmatprep.subr.bf16.mxu0 0
    %7008 = vmatpush2.bf16.msra.mxu0 %v5092
    %7009 = vmatprep.subr.bf16.mxu0 0
    %7010 = vmatpush2.bf16.msra.mxu0 %v5091
    %7011 = vmatprep.mubr.bf16.mxu0 %v163
    %7012 = vmatmul.mubr.bf16.gmra.mxu0 %v162
    %v7013 = vpop.f32.mrf.mxu0
    %v7014 = vadd.f32 %v6974, %v7013
    %v7015 = vpop.f32.mrf.mxu0
    %v7016 = vpop.f32.mrf.mxu0
    %v7017 = vpop.f32.mrf.mxu0
    %7018 = vdwg.mxu0
    %7019 = vmatprep.subr.bf16.mxu0 0
    %7020 = vmatpush1.bf16.msra.mxu0 %v5106
    %7021 = vmatprep.subr.bf16.mxu0 0
    %7022 = vmatpush1.bf16.msra.mxu0 %v5105
    %7023 = vmatprep.subr.bf16.mxu0 0
    %7024 = vmatpush1.bf16.msra.mxu0 %v5104
    %7025 = vmatprep.subr.bf16.mxu0 0
    %7026 = vmatpush1.bf16.msra.mxu0 %v5103
    %7027 = vmatprep.subr.bf16.mxu0 0
    %7028 = vmatpush1.bf16.msra.mxu0 %v5102
    %7029 = vmatprep.subr.bf16.mxu0 0
    %7030 = vmatpush1.bf16.msra.mxu0 %v5101
    %7031 = vmatprep.subr.bf16.mxu0 0
    %7032 = vmatpush1.bf16.msra.mxu0 %v5100
    %7033 = vmatprep.subr.bf16.mxu0 0
    %7034 = vmatpush1.bf16.msra.mxu0 %v5099
    %7035 = vmatprep.subr.bf16.mxu0 0
    %7036 = vmatpush2.bf16.msra.mxu0 %v5114
    %7037 = vmatprep.subr.bf16.mxu0 0
    %7038 = vmatpush2.bf16.msra.mxu0 %v5113
    %7039 = vmatprep.subr.bf16.mxu0 0
    %7040 = vmatpush2.bf16.msra.mxu0 %v5112
    %7041 = vmatprep.subr.bf16.mxu0 0
    %7042 = vmatpush2.bf16.msra.mxu0 %v5111
    %7043 = vmatprep.subr.bf16.mxu0 0
    %7044 = vmatpush2.bf16.msra.mxu0 %v5110
    %7045 = vmatprep.subr.bf16.mxu0 0
    %7046 = vmatpush2.bf16.msra.mxu0 %v5109
    %7047 = vmatprep.subr.bf16.mxu0 0
    %7048 = vmatpush2.bf16.msra.mxu0 %v5108
    %7049 = vmatprep.subr.bf16.mxu0 0
    %7050 = vmatpush2.bf16.msra.mxu0 %v5107
    %7051 = vmatprep.mubr.bf16.mxu0 %v165
    %7052 = vmatmul.mubr.bf16.gmra.mxu0 %v164
    %v7053 = vpop.f32.mrf.mxu0
    %v7054 = vadd.f32 %v7014, %v7053
    %v7055 = vpop.f32.mrf.mxu0
    %v7056 = vpop.f32.mrf.mxu0
    %v7057 = vpop.f32.mrf.mxu0
    %7058 = vdwg.mxu0
    %7059 = vmatprep.subr.bf16.mxu0 0
    %7060 = vmatpush1.bf16.msra.mxu0 %v5122
    %7061 = vmatprep.subr.bf16.mxu0 0
    %7062 = vmatpush1.bf16.msra.mxu0 %v5121
    %7063 = vmatprep.subr.bf16.mxu0 0
    %7064 = vmatpush1.bf16.msra.mxu0 %v5120
    %7065 = vmatprep.subr.bf16.mxu0 0
    %7066 = vmatpush1.bf16.msra.mxu0 %v5119
    %7067 = vmatprep.subr.bf16.mxu0 0
    %7068 = vmatpush1.bf16.msra.mxu0 %v5118
    %7069 = vmatprep.subr.bf16.mxu0 0
    %7070 = vmatpush1.bf16.msra.mxu0 %v5117
    %7071 = vmatprep.subr.bf16.mxu0 0
    %7072 = vmatpush1.bf16.msra.mxu0 %v5116
    %7073 = vmatprep.subr.bf16.mxu0 0
    %7074 = vmatpush1.bf16.msra.mxu0 %v5115
    %7075 = vmatprep.subr.bf16.mxu0 0
    %7076 = vmatpush2.bf16.msra.mxu0 %v5130
    %7077 = vmatprep.subr.bf16.mxu0 0
    %7078 = vmatpush2.bf16.msra.mxu0 %v5129
    %7079 = vmatprep.subr.bf16.mxu0 0
    %7080 = vmatpush2.bf16.msra.mxu0 %v5128
    %7081 = vmatprep.subr.bf16.mxu0 0
    %7082 = vmatpush2.bf16.msra.mxu0 %v5127
    %7083 = vmatprep.subr.bf16.mxu0 0
    %7084 = vmatpush2.bf16.msra.mxu0 %v5126
    %7085 = vmatprep.subr.bf16.mxu0 0
    %7086 = vmatpush2.bf16.msra.mxu0 %v5125
    %7087 = vmatprep.subr.bf16.mxu0 0
    %7088 = vmatpush2.bf16.msra.mxu0 %v5124
    %7089 = vmatprep.subr.bf16.mxu0 0
    %7090 = vmatpush2.bf16.msra.mxu0 %v5123
    %7091 = vmatprep.mubr.bf16.mxu0 %v167
    %7092 = vmatmul.mubr.bf16.gmra.mxu0 %v166
    %v7093 = vpop.f32.mrf.mxu0
    %v7094 = vadd.f32 %v7054, %v7093
    %v7095 = vpop.f32.mrf.mxu0
    %v7096 = vpop.f32.mrf.mxu0
    %v7097 = vpop.f32.mrf.mxu0
    %7098 = vdwg.mxu0
    %7099 = vmatprep.subr.bf16.mxu0 0
    %7100 = vmatpush1.bf16.msra.mxu0 %v5138
    %7101 = vmatprep.subr.bf16.mxu0 0
    %7102 = vmatpush1.bf16.msra.mxu0 %v5137
    %7103 = vmatprep.subr.bf16.mxu0 0
    %7104 = vmatpush1.bf16.msra.mxu0 %v5136
    %7105 = vmatprep.subr.bf16.mxu0 0
    %7106 = vmatpush1.bf16.msra.mxu0 %v5135
    %7107 = vmatprep.subr.bf16.mxu0 0
    %7108 = vmatpush1.bf16.msra.mxu0 %v5134
    %7109 = vmatprep.subr.bf16.mxu0 0
    %7110 = vmatpush1.bf16.msra.mxu0 %v5133
    %7111 = vmatprep.subr.bf16.mxu0 0
    %7112 = vmatpush1.bf16.msra.mxu0 %v5132
    %7113 = vmatprep.subr.bf16.mxu0 0
    %7114 = vmatpush1.bf16.msra.mxu0 %v5131
    %7115 = vmatprep.subr.bf16.mxu0 0
    %7116 = vmatpush2.bf16.msra.mxu0 %v5146
    %7117 = vmatprep.subr.bf16.mxu0 0
    %7118 = vmatpush2.bf16.msra.mxu0 %v5145
    %7119 = vmatprep.subr.bf16.mxu0 0
    %7120 = vmatpush2.bf16.msra.mxu0 %v5144
    %7121 = vmatprep.subr.bf16.mxu0 0
    %7122 = vmatpush2.bf16.msra.mxu0 %v5143
    %7123 = vmatprep.subr.bf16.mxu0 0
    %7124 = vmatpush2.bf16.msra.mxu0 %v5142
    %7125 = vmatprep.subr.bf16.mxu0 0
    %7126 = vmatpush2.bf16.msra.mxu0 %v5141
    %7127 = vmatprep.subr.bf16.mxu0 0
    %7128 = vmatpush2.bf16.msra.mxu0 %v5140
    %7129 = vmatprep.subr.bf16.mxu0 0
    %7130 = vmatpush2.bf16.msra.mxu0 %v5139
    %7131 = vmatprep.mubr.bf16.mxu0 %v169
    %7132 = vmatmul.mubr.bf16.gmra.mxu0 %v168
    %v7133 = vpop.f32.mrf.mxu0
    %v7134 = vadd.f32 %v7094, %v7133
    %v7135 = vpop.f32.mrf.mxu0
    %v7136 = vpop.f32.mrf.mxu0
    %v7137 = vpop.f32.mrf.mxu0
    %7138 = vdwg.mxu0
    %7139 = vmatprep.subr.bf16.mxu0 0
    %7140 = vmatpush1.bf16.msra.mxu0 %v5154
    %7141 = vmatprep.subr.bf16.mxu0 0
    %7142 = vmatpush1.bf16.msra.mxu0 %v5153
    %7143 = vmatprep.subr.bf16.mxu0 0
    %7144 = vmatpush1.bf16.msra.mxu0 %v5152
    %7145 = vmatprep.subr.bf16.mxu0 0
    %7146 = vmatpush1.bf16.msra.mxu0 %v5151
    %7147 = vmatprep.subr.bf16.mxu0 0
    %7148 = vmatpush1.bf16.msra.mxu0 %v5150
    %7149 = vmatprep.subr.bf16.mxu0 0
    %7150 = vmatpush1.bf16.msra.mxu0 %v5149
    %7151 = vmatprep.subr.bf16.mxu0 0
    %7152 = vmatpush1.bf16.msra.mxu0 %v5148
    %7153 = vmatprep.subr.bf16.mxu0 0
    %7154 = vmatpush1.bf16.msra.mxu0 %v5147
    %7155 = vmatprep.subr.bf16.mxu0 0
    %7156 = vmatpush2.bf16.msra.mxu0 %v5162
    %7157 = vmatprep.subr.bf16.mxu0 0
    %7158 = vmatpush2.bf16.msra.mxu0 %v5161
    %7159 = vmatprep.subr.bf16.mxu0 0
    %7160 = vmatpush2.bf16.msra.mxu0 %v5160
    %7161 = vmatprep.subr.bf16.mxu0 0
    %7162 = vmatpush2.bf16.msra.mxu0 %v5159
    %7163 = vmatprep.subr.bf16.mxu0 0
    %7164 = vmatpush2.bf16.msra.mxu0 %v5158
    %7165 = vmatprep.subr.bf16.mxu0 0
    %7166 = vmatpush2.bf16.msra.mxu0 %v5157
    %7167 = vmatprep.subr.bf16.mxu0 0
    %7168 = vmatpush2.bf16.msra.mxu0 %v5156
    %7169 = vmatprep.subr.bf16.mxu0 0
    %7170 = vmatpush2.bf16.msra.mxu0 %v5155
    %7171 = vmatprep.mubr.bf16.mxu0 %v171
    %7172 = vmatmul.mubr.bf16.gmra.mxu0 %v170
    %v7173 = vpop.f32.mrf.mxu0
    %v7174 = vadd.f32 %v7134, %v7173
    %v7175 = vpop.f32.mrf.mxu0
    %v7176 = vpop.f32.mrf.mxu0
    %v7177 = vpop.f32.mrf.mxu0
    %7178 = vdwg.mxu0
    %7179 = vmatprep.subr.bf16.mxu0 0
    %7180 = vmatpush1.bf16.msra.mxu0 %v5170
    %7181 = vmatprep.subr.bf16.mxu0 0
    %7182 = vmatpush1.bf16.msra.mxu0 %v5169
    %7183 = vmatprep.subr.bf16.mxu0 0
    %7184 = vmatpush1.bf16.msra.mxu0 %v5168
    %7185 = vmatprep.subr.bf16.mxu0 0
    %7186 = vmatpush1.bf16.msra.mxu0 %v5167
    %7187 = vmatprep.subr.bf16.mxu0 0
    %7188 = vmatpush1.bf16.msra.mxu0 %v5166
    %7189 = vmatprep.subr.bf16.mxu0 0
    %7190 = vmatpush1.bf16.msra.mxu0 %v5165
    %7191 = vmatprep.subr.bf16.mxu0 0
    %7192 = vmatpush1.bf16.msra.mxu0 %v5164
    %7193 = vmatprep.subr.bf16.mxu0 0
    %7194 = vmatpush1.bf16.msra.mxu0 %v5163
    %7195 = vmatprep.subr.bf16.mxu0 0
    %7196 = vmatpush2.bf16.msra.mxu0 %v5178
    %7197 = vmatprep.subr.bf16.mxu0 0
    %7198 = vmatpush2.bf16.msra.mxu0 %v5177
    %7199 = vmatprep.subr.bf16.mxu0 0
    %7200 = vmatpush2.bf16.msra.mxu0 %v5176
    %7201 = vmatprep.subr.bf16.mxu0 0
    %7202 = vmatpush2.bf16.msra.mxu0 %v5175
    %7203 = vmatprep.subr.bf16.mxu0 0
    %7204 = vmatpush2.bf16.msra.mxu0 %v5174
    %7205 = vmatprep.subr.bf16.mxu0 0
    %7206 = vmatpush2.bf16.msra.mxu0 %v5173
    %7207 = vmatprep.subr.bf16.mxu0 0
    %7208 = vmatpush2.bf16.msra.mxu0 %v5172
    %7209 = vmatprep.subr.bf16.mxu0 0
    %7210 = vmatpush2.bf16.msra.mxu0 %v5171
    %7211 = vmatprep.mubr.bf16.mxu0 %v173
    %7212 = vmatmul.mubr.bf16.gmra.mxu0 %v172
    %v7213 = vpop.f32.mrf.mxu0
    %v7214 = vadd.f32 %v7174, %v7213
    %v7215 = vpop.f32.mrf.mxu0
    %v7216 = vpop.f32.mrf.mxu0
    %v7217 = vpop.f32.mrf.mxu0
    %7218 = vdwg.mxu0
    %7219 = vmatprep.subr.bf16.mxu0 0
    %7220 = vmatpush1.bf16.msra.mxu0 %v5186
    %7221 = vmatprep.subr.bf16.mxu0 0
    %7222 = vmatpush1.bf16.msra.mxu0 %v5185
    %7223 = vmatprep.subr.bf16.mxu0 0
    %7224 = vmatpush1.bf16.msra.mxu0 %v5184
    %7225 = vmatprep.subr.bf16.mxu0 0
    %7226 = vmatpush1.bf16.msra.mxu0 %v5183
    %7227 = vmatprep.subr.bf16.mxu0 0
    %7228 = vmatpush1.bf16.msra.mxu0 %v5182
    %7229 = vmatprep.subr.bf16.mxu0 0
    %7230 = vmatpush1.bf16.msra.mxu0 %v5181
    %7231 = vmatprep.subr.bf16.mxu0 0
    %7232 = vmatpush1.bf16.msra.mxu0 %v5180
    %7233 = vmatprep.subr.bf16.mxu0 0
    %7234 = vmatpush1.bf16.msra.mxu0 %v5179
    %7235 = vmatprep.subr.bf16.mxu0 0
    %7236 = vmatpush2.bf16.msra.mxu0 %v5194
    %7237 = vmatprep.subr.bf16.mxu0 0
    %7238 = vmatpush2.bf16.msra.mxu0 %v5193
    %7239 = vmatprep.subr.bf16.mxu0 0
    %7240 = vmatpush2.bf16.msra.mxu0 %v5192
    %7241 = vmatprep.subr.bf16.mxu0 0
    %7242 = vmatpush2.bf16.msra.mxu0 %v5191
    %7243 = vmatprep.subr.bf16.mxu0 0
    %7244 = vmatpush2.bf16.msra.mxu0 %v5190
    %7245 = vmatprep.subr.bf16.mxu0 0
    %7246 = vmatpush2.bf16.msra.mxu0 %v5189
    %7247 = vmatprep.subr.bf16.mxu0 0
    %7248 = vmatpush2.bf16.msra.mxu0 %v5188
    %7249 = vmatprep.subr.bf16.mxu0 0
    %7250 = vmatpush2.bf16.msra.mxu0 %v5187
    %7251 = vmatprep.mubr.bf16.mxu0 %v175
    %7252 = vmatmul.mubr.bf16.gmra.mxu0 %v174
    %v7253 = vpop.f32.mrf.mxu0
    %v7254 = vadd.f32 %v7214, %v7253
    %v7255 = vpop.f32.mrf.mxu0
    %v7256 = vpop.f32.mrf.mxu0
    %v7257 = vpop.f32.mrf.mxu0
    %7258 = vdwg.mxu0
    %7259 = vmatprep.subr.bf16.mxu0 0
    %7260 = vmatpush1.bf16.msra.mxu0 %v5202
    %7261 = vmatprep.subr.bf16.mxu0 0
    %7262 = vmatpush1.bf16.msra.mxu0 %v5201
    %7263 = vmatprep.subr.bf16.mxu0 0
    %7264 = vmatpush1.bf16.msra.mxu0 %v5200
    %7265 = vmatprep.subr.bf16.mxu0 0
    %7266 = vmatpush1.bf16.msra.mxu0 %v5199
    %7267 = vmatprep.subr.bf16.mxu0 0
    %7268 = vmatpush1.bf16.msra.mxu0 %v5198
    %7269 = vmatprep.subr.bf16.mxu0 0
    %7270 = vmatpush1.bf16.msra.mxu0 %v5197
    %7271 = vmatprep.subr.bf16.mxu0 0
    %7272 = vmatpush1.bf16.msra.mxu0 %v5196
    %7273 = vmatprep.subr.bf16.mxu0 0
    %7274 = vmatpush1.bf16.msra.mxu0 %v5195
    %7275 = vmatprep.subr.bf16.mxu0 0
    %7276 = vmatpush2.bf16.msra.mxu0 %v5210
    %7277 = vmatprep.subr.bf16.mxu0 0
    %7278 = vmatpush2.bf16.msra.mxu0 %v5209
    %7279 = vmatprep.subr.bf16.mxu0 0
    %7280 = vmatpush2.bf16.msra.mxu0 %v5208
    %7281 = vmatprep.subr.bf16.mxu0 0
    %7282 = vmatpush2.bf16.msra.mxu0 %v5207
    %7283 = vmatprep.subr.bf16.mxu0 0
    %7284 = vmatpush2.bf16.msra.mxu0 %v5206
    %7285 = vmatprep.subr.bf16.mxu0 0
    %7286 = vmatpush2.bf16.msra.mxu0 %v5205
    %7287 = vmatprep.subr.bf16.mxu0 0
    %7288 = vmatpush2.bf16.msra.mxu0 %v5204
    %7289 = vmatprep.subr.bf16.mxu0 0
    %7290 = vmatpush2.bf16.msra.mxu0 %v5203
    %7291 = vmatprep.mubr.bf16.mxu0 %v177
    %7292 = vmatmul.mubr.bf16.gmra.mxu0 %v176
    %v7293 = vpop.f32.mrf.mxu0
    %v7294 = vadd.f32 %v7254, %v7293
    %v7295 = vpop.f32.mrf.mxu0
    %v7296 = vpop.f32.mrf.mxu0
    %v7297 = vpop.f32.mrf.mxu0
    %7298 = vdwg.mxu0
    %7299 = vmatprep.subr.bf16.mxu0 0
    %7300 = vmatpush1.bf16.msra.mxu0 %v5218
    %7301 = vmatprep.subr.bf16.mxu0 0
    %7302 = vmatpush1.bf16.msra.mxu0 %v5217
    %7303 = vmatprep.subr.bf16.mxu0 0
    %7304 = vmatpush1.bf16.msra.mxu0 %v5216
    %7305 = vmatprep.subr.bf16.mxu0 0
    %7306 = vmatpush1.bf16.msra.mxu0 %v5215
    %7307 = vmatprep.subr.bf16.mxu0 0
    %7308 = vmatpush1.bf16.msra.mxu0 %v5214
    %7309 = vmatprep.subr.bf16.mxu0 0
    %7310 = vmatpush1.bf16.msra.mxu0 %v5213
    %7311 = vmatprep.subr.bf16.mxu0 0
    %7312 = vmatpush1.bf16.msra.mxu0 %v5212
    %7313 = vmatprep.subr.bf16.mxu0 0
    %7314 = vmatpush1.bf16.msra.mxu0 %v5211
    %7315 = vmatprep.subr.bf16.mxu0 0
    %7316 = vmatpush2.bf16.msra.mxu0 %v5226
    %7317 = vmatprep.subr.bf16.mxu0 0
    %7318 = vmatpush2.bf16.msra.mxu0 %v5225
    %7319 = vmatprep.subr.bf16.mxu0 0
    %7320 = vmatpush2.bf16.msra.mxu0 %v5224
    %7321 = vmatprep.subr.bf16.mxu0 0
    %7322 = vmatpush2.bf16.msra.mxu0 %v5223
    %7323 = vmatprep.subr.bf16.mxu0 0
    %7324 = vmatpush2.bf16.msra.mxu0 %v5222
    %7325 = vmatprep.subr.bf16.mxu0 0
    %7326 = vmatpush2.bf16.msra.mxu0 %v5221
    %7327 = vmatprep.subr.bf16.mxu0 0
    %7328 = vmatpush2.bf16.msra.mxu0 %v5220
    %7329 = vmatprep.subr.bf16.mxu0 0
    %7330 = vmatpush2.bf16.msra.mxu0 %v5219
    %7331 = vmatprep.mubr.bf16.mxu0 %v179
    %7332 = vmatmul.mubr.bf16.gmra.mxu0 %v178
    %v7333 = vpop.f32.mrf.mxu0
    %v7334 = vadd.f32 %v7294, %v7333
    %v7335 = vpop.f32.mrf.mxu0
    %v7336 = vpop.f32.mrf.mxu0
    %v7337 = vpop.f32.mrf.mxu0
    %7338 = vdwg.mxu0
    %7339 = vmatprep.subr.bf16.mxu0 0
    %7340 = vmatpush1.bf16.msra.mxu0 %v5234
    %7341 = vmatprep.subr.bf16.mxu0 0
    %7342 = vmatpush1.bf16.msra.mxu0 %v5233
    %7343 = vmatprep.subr.bf16.mxu0 0
    %7344 = vmatpush1.bf16.msra.mxu0 %v5232
    %7345 = vmatprep.subr.bf16.mxu0 0
    %7346 = vmatpush1.bf16.msra.mxu0 %v5231
    %7347 = vmatprep.subr.bf16.mxu0 0
    %7348 = vmatpush1.bf16.msra.mxu0 %v5230
    %7349 = vmatprep.subr.bf16.mxu0 0
    %7350 = vmatpush1.bf16.msra.mxu0 %v5229
    %7351 = vmatprep.subr.bf16.mxu0 0
    %7352 = vmatpush1.bf16.msra.mxu0 %v5228
    %7353 = vmatprep.subr.bf16.mxu0 0
    %7354 = vmatpush1.bf16.msra.mxu0 %v5227
    %7355 = vmatprep.subr.bf16.mxu0 0
    %7356 = vmatpush2.bf16.msra.mxu0 %v5242
    %7357 = vmatprep.subr.bf16.mxu0 0
    %7358 = vmatpush2.bf16.msra.mxu0 %v5241
    %7359 = vmatprep.subr.bf16.mxu0 0
    %7360 = vmatpush2.bf16.msra.mxu0 %v5240
    %7361 = vmatprep.subr.bf16.mxu0 0
    %7362 = vmatpush2.bf16.msra.mxu0 %v5239
    %7363 = vmatprep.subr.bf16.mxu0 0
    %7364 = vmatpush2.bf16.msra.mxu0 %v5238
    %7365 = vmatprep.subr.bf16.mxu0 0
    %7366 = vmatpush2.bf16.msra.mxu0 %v5237
    %7367 = vmatprep.subr.bf16.mxu0 0
    %7368 = vmatpush2.bf16.msra.mxu0 %v5236
    %7369 = vmatprep.subr.bf16.mxu0 0
    %7370 = vmatpush2.bf16.msra.mxu0 %v5235
    %7371 = vmatprep.mubr.bf16.mxu0 %v181
    %7372 = vmatmul.mubr.bf16.gmra.mxu0 %v180
    %v7373 = vpop.f32.mrf.mxu0
    %v7374 = vadd.f32 %v7334, %v7373
    %v7375 = vpop.f32.mrf.mxu0
    %v7376 = vpop.f32.mrf.mxu0
    %v7377 = vpop.f32.mrf.mxu0
    %7378 = vdwg.mxu0
    %7379 = vmatprep.subr.bf16.mxu0 0
    %7380 = vmatpush1.bf16.msra.mxu0 %v5250
    %7381 = vmatprep.subr.bf16.mxu0 0
    %7382 = vmatpush1.bf16.msra.mxu0 %v5249
    %7383 = vmatprep.subr.bf16.mxu0 0
    %7384 = vmatpush1.bf16.msra.mxu0 %v5248
    %7385 = vmatprep.subr.bf16.mxu0 0
    %7386 = vmatpush1.bf16.msra.mxu0 %v5247
    %7387 = vmatprep.subr.bf16.mxu0 0
    %7388 = vmatpush1.bf16.msra.mxu0 %v5246
    %7389 = vmatprep.subr.bf16.mxu0 0
    %7390 = vmatpush1.bf16.msra.mxu0 %v5245
    %7391 = vmatprep.subr.bf16.mxu0 0
    %7392 = vmatpush1.bf16.msra.mxu0 %v5244
    %7393 = vmatprep.subr.bf16.mxu0 0
    %7394 = vmatpush1.bf16.msra.mxu0 %v5243
    %7395 = vmatprep.subr.bf16.mxu0 0
    %7396 = vmatpush2.bf16.msra.mxu0 %v5258
    %7397 = vmatprep.subr.bf16.mxu0 0
    %7398 = vmatpush2.bf16.msra.mxu0 %v5257
    %7399 = vmatprep.subr.bf16.mxu0 0
    %7400 = vmatpush2.bf16.msra.mxu0 %v5256
    %7401 = vmatprep.subr.bf16.mxu0 0
    %7402 = vmatpush2.bf16.msra.mxu0 %v5255
    %7403 = vmatprep.subr.bf16.mxu0 0
    %7404 = vmatpush2.bf16.msra.mxu0 %v5254
    %7405 = vmatprep.subr.bf16.mxu0 0
    %7406 = vmatpush2.bf16.msra.mxu0 %v5253
    %7407 = vmatprep.subr.bf16.mxu0 0
    %7408 = vmatpush2.bf16.msra.mxu0 %v5252
    %7409 = vmatprep.subr.bf16.mxu0 0
    %7410 = vmatpush2.bf16.msra.mxu0 %v5251
    %7411 = vmatprep.mubr.bf16.mxu0 %v183
    %7412 = vmatmul.mubr.bf16.gmra.mxu0 %v182
    %v7413 = vpop.f32.mrf.mxu0
    %v7414 = vadd.f32 %v7374, %v7413
    %v7415 = vpop.f32.mrf.mxu0
    %v7416 = vpop.f32.mrf.mxu0
    %v7417 = vpop.f32.mrf.mxu0
    %7418 = vdwg.mxu0
    %7419 = vmatprep.subr.bf16.mxu0 0
    %7420 = vmatpush1.bf16.msra.mxu0 %v5266
    %7421 = vmatprep.subr.bf16.mxu0 0
    %7422 = vmatpush1.bf16.msra.mxu0 %v5265
    %7423 = vmatprep.subr.bf16.mxu0 0
    %7424 = vmatpush1.bf16.msra.mxu0 %v5264
    %7425 = vmatprep.subr.bf16.mxu0 0
    %7426 = vmatpush1.bf16.msra.mxu0 %v5263
    %7427 = vmatprep.subr.bf16.mxu0 0
    %7428 = vmatpush1.bf16.msra.mxu0 %v5262
    %7429 = vmatprep.subr.bf16.mxu0 0
    %7430 = vmatpush1.bf16.msra.mxu0 %v5261
    %7431 = vmatprep.subr.bf16.mxu0 0
    %7432 = vmatpush1.bf16.msra.mxu0 %v5260
    %7433 = vmatprep.subr.bf16.mxu0 0
    %7434 = vmatpush1.bf16.msra.mxu0 %v5259
    %7435 = vmatprep.subr.bf16.mxu0 0
    %7436 = vmatpush2.bf16.msra.mxu0 %v5274
    %7437 = vmatprep.subr.bf16.mxu0 0
    %7438 = vmatpush2.bf16.msra.mxu0 %v5273
    %7439 = vmatprep.subr.bf16.mxu0 0
    %7440 = vmatpush2.bf16.msra.mxu0 %v5272
    %7441 = vmatprep.subr.bf16.mxu0 0
    %7442 = vmatpush2.bf16.msra.mxu0 %v5271
    %7443 = vmatprep.subr.bf16.mxu0 0
    %7444 = vmatpush2.bf16.msra.mxu0 %v5270
    %7445 = vmatprep.subr.bf16.mxu0 0
    %7446 = vmatpush2.bf16.msra.mxu0 %v5269
    %7447 = vmatprep.subr.bf16.mxu0 0
    %7448 = vmatpush2.bf16.msra.mxu0 %v5268
    %7449 = vmatprep.subr.bf16.mxu0 0
    %7450 = vmatpush2.bf16.msra.mxu0 %v5267
    %7451 = vmatprep.mubr.bf16.mxu0 %v185
    %7452 = vmatmul.mubr.bf16.gmra.mxu0 %v184
    %v7453 = vpop.f32.mrf.mxu0
    %v7454 = vadd.f32 %v7414, %v7453
    %v7455 = vpop.f32.mrf.mxu0
    %v7456 = vpop.f32.mrf.mxu0
    %v7457 = vpop.f32.mrf.mxu0
    %7458 = vdwg.mxu0
    %7459 = vmatprep.subr.bf16.mxu0 0
    %7460 = vmatpush1.bf16.msra.mxu0 %v5282
    %7461 = vmatprep.subr.bf16.mxu0 0
    %7462 = vmatpush1.bf16.msra.mxu0 %v5281
    %7463 = vmatprep.subr.bf16.mxu0 0
    %7464 = vmatpush1.bf16.msra.mxu0 %v5280
    %7465 = vmatprep.subr.bf16.mxu0 0
    %7466 = vmatpush1.bf16.msra.mxu0 %v5279
    %7467 = vmatprep.subr.bf16.mxu0 0
    %7468 = vmatpush1.bf16.msra.mxu0 %v5278
    %7469 = vmatprep.subr.bf16.mxu0 0
    %7470 = vmatpush1.bf16.msra.mxu0 %v5277
    %7471 = vmatprep.subr.bf16.mxu0 0
    %7472 = vmatpush1.bf16.msra.mxu0 %v5276
    %7473 = vmatprep.subr.bf16.mxu0 0
    %7474 = vmatpush1.bf16.msra.mxu0 %v5275
    %7475 = vmatprep.subr.bf16.mxu0 0
    %7476 = vmatpush2.bf16.msra.mxu0 %v5290
    %7477 = vmatprep.subr.bf16.mxu0 0
    %7478 = vmatpush2.bf16.msra.mxu0 %v5289
    %7479 = vmatprep.subr.bf16.mxu0 0
    %7480 = vmatpush2.bf16.msra.mxu0 %v5288
    %7481 = vmatprep.subr.bf16.mxu0 0
    %7482 = vmatpush2.bf16.msra.mxu0 %v5287
    %7483 = vmatprep.subr.bf16.mxu0 0
    %7484 = vmatpush2.bf16.msra.mxu0 %v5286
    %7485 = vmatprep.subr.bf16.mxu0 0
    %7486 = vmatpush2.bf16.msra.mxu0 %v5285
    %7487 = vmatprep.subr.bf16.mxu0 0
    %7488 = vmatpush2.bf16.msra.mxu0 %v5284
    %7489 = vmatprep.subr.bf16.mxu0 0
    %7490 = vmatpush2.bf16.msra.mxu0 %v5283
    %7491 = vmatprep.mubr.bf16.mxu0 %v187
    %7492 = vmatmul.mubr.bf16.gmra.mxu0 %v186
    %v7493 = vpop.f32.mrf.mxu0
    %v7494 = vadd.f32 %v7454, %v7493
    %v7495 = vpop.f32.mrf.mxu0
    %v7496 = vpop.f32.mrf.mxu0
    %v7497 = vpop.f32.mrf.mxu0
    %7498 = vdwg.mxu0
    %7499 = vmatprep.subr.bf16.mxu0 0
    %7500 = vmatpush1.bf16.msra.mxu0 %v5298
    %7501 = vmatprep.subr.bf16.mxu0 0
    %7502 = vmatpush1.bf16.msra.mxu0 %v5297
    %7503 = vmatprep.subr.bf16.mxu0 0
    %7504 = vmatpush1.bf16.msra.mxu0 %v5296
    %7505 = vmatprep.subr.bf16.mxu0 0
    %7506 = vmatpush1.bf16.msra.mxu0 %v5295
    %7507 = vmatprep.subr.bf16.mxu0 0
    %7508 = vmatpush1.bf16.msra.mxu0 %v5294
    %7509 = vmatprep.subr.bf16.mxu0 0
    %7510 = vmatpush1.bf16.msra.mxu0 %v5293
    %7511 = vmatprep.subr.bf16.mxu0 0
    %7512 = vmatpush1.bf16.msra.mxu0 %v5292
    %7513 = vmatprep.subr.bf16.mxu0 0
    %7514 = vmatpush1.bf16.msra.mxu0 %v5291
    %7515 = vmatprep.subr.bf16.mxu0 0
    %7516 = vmatpush2.bf16.msra.mxu0 %v5306
    %7517 = vmatprep.subr.bf16.mxu0 0
    %7518 = vmatpush2.bf16.msra.mxu0 %v5305
    %7519 = vmatprep.subr.bf16.mxu0 0
    %7520 = vmatpush2.bf16.msra.mxu0 %v5304
    %7521 = vmatprep.subr.bf16.mxu0 0
    %7522 = vmatpush2.bf16.msra.mxu0 %v5303
    %7523 = vmatprep.subr.bf16.mxu0 0
    %7524 = vmatpush2.bf16.msra.mxu0 %v5302
    %7525 = vmatprep.subr.bf16.mxu0 0
    %7526 = vmatpush2.bf16.msra.mxu0 %v5301
    %7527 = vmatprep.subr.bf16.mxu0 0
    %7528 = vmatpush2.bf16.msra.mxu0 %v5300
    %7529 = vmatprep.subr.bf16.mxu0 0
    %7530 = vmatpush2.bf16.msra.mxu0 %v5299
    %7531 = vmatprep.mubr.bf16.mxu0 %v189
    %7532 = vmatmul.mubr.bf16.gmra.mxu0 %v188
    %v7533 = vpop.f32.mrf.mxu0
    %v7534 = vadd.f32 %v7494, %v7533
    %v7535 = vpop.f32.mrf.mxu0
    %v7536 = vpop.f32.mrf.mxu0
    %v7537 = vpop.f32.mrf.mxu0
    %7538 = vdwg.mxu0
    %7539 = vmatprep.subr.bf16.mxu0 0
    %7540 = vmatpush1.bf16.msra.mxu0 %v5314
    %7541 = vmatprep.subr.bf16.mxu0 0
    %7542 = vmatpush1.bf16.msra.mxu0 %v5313
    %7543 = vmatprep.subr.bf16.mxu0 0
    %7544 = vmatpush1.bf16.msra.mxu0 %v5312
    %7545 = vmatprep.subr.bf16.mxu0 0
    %7546 = vmatpush1.bf16.msra.mxu0 %v5311
    %7547 = vmatprep.subr.bf16.mxu0 0
    %7548 = vmatpush1.bf16.msra.mxu0 %v5310
    %7549 = vmatprep.subr.bf16.mxu0 0
    %7550 = vmatpush1.bf16.msra.mxu0 %v5309
    %7551 = vmatprep.subr.bf16.mxu0 0
    %7552 = vmatpush1.bf16.msra.mxu0 %v5308
    %7553 = vmatprep.subr.bf16.mxu0 0
    %7554 = vmatpush1.bf16.msra.mxu0 %v5307
    %7555 = vmatprep.subr.bf16.mxu0 0
    %7556 = vmatpush2.bf16.msra.mxu0 %v5322
    %7557 = vmatprep.subr.bf16.mxu0 0
    %7558 = vmatpush2.bf16.msra.mxu0 %v5321
    %7559 = vmatprep.subr.bf16.mxu0 0
    %7560 = vmatpush2.bf16.msra.mxu0 %v5320
    %7561 = vmatprep.subr.bf16.mxu0 0
    %7562 = vmatpush2.bf16.msra.mxu0 %v5319
    %7563 = vmatprep.subr.bf16.mxu0 0
    %7564 = vmatpush2.bf16.msra.mxu0 %v5318
    %7565 = vmatprep.subr.bf16.mxu0 0
    %7566 = vmatpush2.bf16.msra.mxu0 %v5317
    %7567 = vmatprep.subr.bf16.mxu0 0
    %7568 = vmatpush2.bf16.msra.mxu0 %v5316
    %7569 = vmatprep.subr.bf16.mxu0 0
    %7570 = vmatpush2.bf16.msra.mxu0 %v5315
    %7571 = vmatprep.mubr.bf16.mxu0 %v191
    %7572 = vmatmul.mubr.bf16.gmra.mxu0 %v190
    %v7573 = vpop.f32.mrf.mxu0
    %v7574 = vadd.f32 %v7534, %v7573
    %v7575 = vpop.f32.mrf.mxu0
    %v7576 = vpop.f32.mrf.mxu0
    %v7577 = vpop.f32.mrf.mxu0
    %7578 = vdwg.mxu0
    %7579 = vmatprep.subr.bf16.mxu0 0
    %7580 = vmatpush1.bf16.msra.mxu0 %v5330
    %7581 = vmatprep.subr.bf16.mxu0 0
    %7582 = vmatpush1.bf16.msra.mxu0 %v5329
    %7583 = vmatprep.subr.bf16.mxu0 0
    %7584 = vmatpush1.bf16.msra.mxu0 %v5328
    %7585 = vmatprep.subr.bf16.mxu0 0
    %7586 = vmatpush1.bf16.msra.mxu0 %v5327
    %7587 = vmatprep.subr.bf16.mxu0 0
    %7588 = vmatpush1.bf16.msra.mxu0 %v5326
    %7589 = vmatprep.subr.bf16.mxu0 0
    %7590 = vmatpush1.bf16.msra.mxu0 %v5325
    %7591 = vmatprep.subr.bf16.mxu0 0
    %7592 = vmatpush1.bf16.msra.mxu0 %v5324
    %7593 = vmatprep.subr.bf16.mxu0 0
    %7594 = vmatpush1.bf16.msra.mxu0 %v5323
    %7595 = vmatprep.subr.bf16.mxu0 0
    %7596 = vmatpush2.bf16.msra.mxu0 %v5338
    %7597 = vmatprep.subr.bf16.mxu0 0
    %7598 = vmatpush2.bf16.msra.mxu0 %v5337
    %7599 = vmatprep.subr.bf16.mxu0 0
    %7600 = vmatpush2.bf16.msra.mxu0 %v5336
    %7601 = vmatprep.subr.bf16.mxu0 0
    %7602 = vmatpush2.bf16.msra.mxu0 %v5335
    %7603 = vmatprep.subr.bf16.mxu0 0
    %7604 = vmatpush2.bf16.msra.mxu0 %v5334
    %7605 = vmatprep.subr.bf16.mxu0 0
    %7606 = vmatpush2.bf16.msra.mxu0 %v5333
    %7607 = vmatprep.subr.bf16.mxu0 0
    %7608 = vmatpush2.bf16.msra.mxu0 %v5332
    %7609 = vmatprep.subr.bf16.mxu0 0
    %7610 = vmatpush2.bf16.msra.mxu0 %v5331
    %7611 = vmatprep.mubr.bf16.mxu0 %v193
    %7612 = vmatmul.mubr.bf16.gmra.mxu0 %v192
    %v7613 = vpop.f32.mrf.mxu0
    %v7614 = vadd.f32 %v7574, %v7613
    %v7615 = vpop.f32.mrf.mxu0
    %v7616 = vpop.f32.mrf.mxu0
    %v7617 = vpop.f32.mrf.mxu0
    %7618 = vdwg.mxu0
    %7619 = vmatprep.subr.bf16.mxu0 0
    %7620 = vmatpush1.bf16.msra.mxu0 %v5346
    %7621 = vmatprep.subr.bf16.mxu0 0
    %7622 = vmatpush1.bf16.msra.mxu0 %v5345
    %7623 = vmatprep.subr.bf16.mxu0 0
    %7624 = vmatpush1.bf16.msra.mxu0 %v5344
    %7625 = vmatprep.subr.bf16.mxu0 0
    %7626 = vmatpush1.bf16.msra.mxu0 %v5343
    %7627 = vmatprep.subr.bf16.mxu0 0
    %7628 = vmatpush1.bf16.msra.mxu0 %v5342
    %7629 = vmatprep.subr.bf16.mxu0 0
    %7630 = vmatpush1.bf16.msra.mxu0 %v5341
    %7631 = vmatprep.subr.bf16.mxu0 0
    %7632 = vmatpush1.bf16.msra.mxu0 %v5340
    %7633 = vmatprep.subr.bf16.mxu0 0
    %7634 = vmatpush1.bf16.msra.mxu0 %v5339
    %7635 = vmatprep.subr.bf16.mxu0 0
    %7636 = vmatpush2.bf16.msra.mxu0 %v5354
    %7637 = vmatprep.subr.bf16.mxu0 0
    %7638 = vmatpush2.bf16.msra.mxu0 %v5353
    %7639 = vmatprep.subr.bf16.mxu0 0
    %7640 = vmatpush2.bf16.msra.mxu0 %v5352
    %7641 = vmatprep.subr.bf16.mxu0 0
    %7642 = vmatpush2.bf16.msra.mxu0 %v5351
    %7643 = vmatprep.subr.bf16.mxu0 0
    %7644 = vmatpush2.bf16.msra.mxu0 %v5350
    %7645 = vmatprep.subr.bf16.mxu0 0
    %7646 = vmatpush2.bf16.msra.mxu0 %v5349
    %7647 = vmatprep.subr.bf16.mxu0 0
    %7648 = vmatpush2.bf16.msra.mxu0 %v5348
    %7649 = vmatprep.subr.bf16.mxu0 0
    %7650 = vmatpush2.bf16.msra.mxu0 %v5347
    %7651 = vmatprep.mubr.bf16.mxu0 %v195
    %7652 = vmatmul.mubr.bf16.gmra.mxu0 %v194
    %v7653 = vpop.f32.mrf.mxu0
    %v7654 = vadd.f32 %v7614, %v7653
    %v7655 = vpop.f32.mrf.mxu0
    %v7656 = vpop.f32.mrf.mxu0
    %v7657 = vpop.f32.mrf.mxu0
    %7658 = vdwg.mxu0
    %7659 = vmatprep.subr.bf16.mxu0 0
    %7660 = vmatpush1.bf16.msra.mxu0 %v5362
    %7661 = vmatprep.subr.bf16.mxu0 0
    %7662 = vmatpush1.bf16.msra.mxu0 %v5361
    %7663 = vmatprep.subr.bf16.mxu0 0
    %7664 = vmatpush1.bf16.msra.mxu0 %v5360
    %7665 = vmatprep.subr.bf16.mxu0 0
    %7666 = vmatpush1.bf16.msra.mxu0 %v5359
    %7667 = vmatprep.subr.bf16.mxu0 0
    %7668 = vmatpush1.bf16.msra.mxu0 %v5358
    %7669 = vmatprep.subr.bf16.mxu0 0
    %7670 = vmatpush1.bf16.msra.mxu0 %v5357
    %7671 = vmatprep.subr.bf16.mxu0 0
    %7672 = vmatpush1.bf16.msra.mxu0 %v5356
    %7673 = vmatprep.subr.bf16.mxu0 0
    %7674 = vmatpush1.bf16.msra.mxu0 %v5355
    %7675 = vmatprep.subr.bf16.mxu0 0
    %7676 = vmatpush2.bf16.msra.mxu0 %v5370
    %7677 = vmatprep.subr.bf16.mxu0 0
    %7678 = vmatpush2.bf16.msra.mxu0 %v5369
    %7679 = vmatprep.subr.bf16.mxu0 0
    %7680 = vmatpush2.bf16.msra.mxu0 %v5368
    %7681 = vmatprep.subr.bf16.mxu0 0
    %7682 = vmatpush2.bf16.msra.mxu0 %v5367
    %7683 = vmatprep.subr.bf16.mxu0 0
    %7684 = vmatpush2.bf16.msra.mxu0 %v5366
    %7685 = vmatprep.subr.bf16.mxu0 0
    %7686 = vmatpush2.bf16.msra.mxu0 %v5365
    %7687 = vmatprep.subr.bf16.mxu0 0
    %7688 = vmatpush2.bf16.msra.mxu0 %v5364
    %7689 = vmatprep.subr.bf16.mxu0 0
    %7690 = vmatpush2.bf16.msra.mxu0 %v5363
    %7691 = vmatprep.mubr.bf16.mxu0 %v197
    %7692 = vmatmul.mubr.bf16.gmra.mxu0 %v196
    %v7693 = vpop.f32.mrf.mxu0
    %v7694 = vadd.f32 %v7654, %v7693
    %v7695 = vpop.f32.mrf.mxu0
    %v7696 = vpop.f32.mrf.mxu0
    %v7697 = vpop.f32.mrf.mxu0
    %7698 = vdwg.mxu0
    %7699 = vmatprep.subr.bf16.mxu0 0
    %7700 = vmatpush1.bf16.msra.mxu0 %v5378
    %7701 = vmatprep.subr.bf16.mxu0 0
    %7702 = vmatpush1.bf16.msra.mxu0 %v5377
    %7703 = vmatprep.subr.bf16.mxu0 0
    %7704 = vmatpush1.bf16.msra.mxu0 %v5376
    %7705 = vmatprep.subr.bf16.mxu0 0
    %7706 = vmatpush1.bf16.msra.mxu0 %v5375
    %7707 = vmatprep.subr.bf16.mxu0 0
    %7708 = vmatpush1.bf16.msra.mxu0 %v5374
    %7709 = vmatprep.subr.bf16.mxu0 0
    %7710 = vmatpush1.bf16.msra.mxu0 %v5373
    %7711 = vmatprep.subr.bf16.mxu0 0
    %7712 = vmatpush1.bf16.msra.mxu0 %v5372
    %7713 = vmatprep.subr.bf16.mxu0 0
    %7714 = vmatpush1.bf16.msra.mxu0 %v5371
    %7715 = vmatprep.subr.bf16.mxu0 0
    %7716 = vmatpush2.bf16.msra.mxu0 %v5386
    %7717 = vmatprep.subr.bf16.mxu0 0
    %7718 = vmatpush2.bf16.msra.mxu0 %v5385
    %7719 = vmatprep.subr.bf16.mxu0 0
    %7720 = vmatpush2.bf16.msra.mxu0 %v5384
    %7721 = vmatprep.subr.bf16.mxu0 0
    %7722 = vmatpush2.bf16.msra.mxu0 %v5383
    %7723 = vmatprep.subr.bf16.mxu0 0
    %7724 = vmatpush2.bf16.msra.mxu0 %v5382
    %7725 = vmatprep.subr.bf16.mxu0 0
    %7726 = vmatpush2.bf16.msra.mxu0 %v5381
    %7727 = vmatprep.subr.bf16.mxu0 0
    %7728 = vmatpush2.bf16.msra.mxu0 %v5380
    %7729 = vmatprep.subr.bf16.mxu0 0
    %7730 = vmatpush2.bf16.msra.mxu0 %v5379
    %7731 = vmatprep.mubr.bf16.mxu0 %v199
    %7732 = vmatmul.mubr.bf16.gmra.mxu0 %v198
    %v7733 = vpop.f32.mrf.mxu0
    %v7734 = vadd.f32 %v7694, %v7733
    %v7735 = vpop.f32.mrf.mxu0
    %v7736 = vpop.f32.mrf.mxu0
    %v7737 = vpop.f32.mrf.mxu0
    %7738 = vdwg.mxu0
    %7739 = vmatprep.subr.bf16.mxu0 0
    %7740 = vmatpush1.bf16.msra.mxu0 %v5394
    %7741 = vmatprep.subr.bf16.mxu0 0
    %7742 = vmatpush1.bf16.msra.mxu0 %v5393
    %7743 = vmatprep.subr.bf16.mxu0 0
    %7744 = vmatpush1.bf16.msra.mxu0 %v5392
    %7745 = vmatprep.subr.bf16.mxu0 0
    %7746 = vmatpush1.bf16.msra.mxu0 %v5391
    %7747 = vmatprep.subr.bf16.mxu0 0
    %7748 = vmatpush1.bf16.msra.mxu0 %v5390
    %7749 = vmatprep.subr.bf16.mxu0 0
    %7750 = vmatpush1.bf16.msra.mxu0 %v5389
    %7751 = vmatprep.subr.bf16.mxu0 0
    %7752 = vmatpush1.bf16.msra.mxu0 %v5388
    %7753 = vmatprep.subr.bf16.mxu0 0
    %7754 = vmatpush1.bf16.msra.mxu0 %v5387
    %7755 = vmatprep.subr.bf16.mxu0 0
    %7756 = vmatpush2.bf16.msra.mxu0 %v5402
    %7757 = vmatprep.subr.bf16.mxu0 0
    %7758 = vmatpush2.bf16.msra.mxu0 %v5401
    %7759 = vmatprep.subr.bf16.mxu0 0
    %7760 = vmatpush2.bf16.msra.mxu0 %v5400
    %7761 = vmatprep.subr.bf16.mxu0 0
    %7762 = vmatpush2.bf16.msra.mxu0 %v5399
    %7763 = vmatprep.subr.bf16.mxu0 0
    %7764 = vmatpush2.bf16.msra.mxu0 %v5398
    %7765 = vmatprep.subr.bf16.mxu0 0
    %7766 = vmatpush2.bf16.msra.mxu0 %v5397
    %7767 = vmatprep.subr.bf16.mxu0 0
    %7768 = vmatpush2.bf16.msra.mxu0 %v5396
    %7769 = vmatprep.subr.bf16.mxu0 0
    %7770 = vmatpush2.bf16.msra.mxu0 %v5395
    %7771 = vmatprep.mubr.bf16.mxu0 %v201
    %7772 = vmatmul.mubr.bf16.gmra.mxu0 %v200
    %v7773 = vpop.f32.mrf.mxu0
    %v7774 = vadd.f32 %v7734, %v7773
    %v7775 = vpop.f32.mrf.mxu0
    %v7776 = vpop.f32.mrf.mxu0
    %v7777 = vpop.f32.mrf.mxu0
    %7778 = vdwg.mxu0
    %7779 = vmatprep.subr.bf16.mxu0 0
    %7780 = vmatpush1.bf16.msra.mxu0 %v5410
    %7781 = vmatprep.subr.bf16.mxu0 0
    %7782 = vmatpush1.bf16.msra.mxu0 %v5409
    %7783 = vmatprep.subr.bf16.mxu0 0
    %7784 = vmatpush1.bf16.msra.mxu0 %v5408
    %7785 = vmatprep.subr.bf16.mxu0 0
    %7786 = vmatpush1.bf16.msra.mxu0 %v5407
    %7787 = vmatprep.subr.bf16.mxu0 0
    %7788 = vmatpush1.bf16.msra.mxu0 %v5406
    %7789 = vmatprep.subr.bf16.mxu0 0
    %7790 = vmatpush1.bf16.msra.mxu0 %v5405
    %7791 = vmatprep.subr.bf16.mxu0 0
    %7792 = vmatpush1.bf16.msra.mxu0 %v5404
    %7793 = vmatprep.subr.bf16.mxu0 0
    %7794 = vmatpush1.bf16.msra.mxu0 %v5403
    %7795 = vmatprep.subr.bf16.mxu0 0
    %7796 = vmatpush2.bf16.msra.mxu0 %v5418
    %7797 = vmatprep.subr.bf16.mxu0 0
    %7798 = vmatpush2.bf16.msra.mxu0 %v5417
    %7799 = vmatprep.subr.bf16.mxu0 0
    %7800 = vmatpush2.bf16.msra.mxu0 %v5416
    %7801 = vmatprep.subr.bf16.mxu0 0
    %7802 = vmatpush2.bf16.msra.mxu0 %v5415
    %7803 = vmatprep.subr.bf16.mxu0 0
    %7804 = vmatpush2.bf16.msra.mxu0 %v5414
    %7805 = vmatprep.subr.bf16.mxu0 0
    %7806 = vmatpush2.bf16.msra.mxu0 %v5413
    %7807 = vmatprep.subr.bf16.mxu0 0
    %7808 = vmatpush2.bf16.msra.mxu0 %v5412
    %7809 = vmatprep.subr.bf16.mxu0 0
    %7810 = vmatpush2.bf16.msra.mxu0 %v5411
    %7811 = vmatprep.mubr.bf16.mxu0 %v203
    %7812 = vmatmul.mubr.bf16.gmra.mxu0 %v202
    %v7813 = vpop.f32.mrf.mxu0
    %v7814 = vadd.f32 %v7774, %v7813
    %v7815 = vpop.f32.mrf.mxu0
    %v7816 = vpop.f32.mrf.mxu0
    %v7817 = vpop.f32.mrf.mxu0
    %7818 = vdwg.mxu0
    %7819 = vmatprep.subr.bf16.mxu0 0
    %7820 = vmatpush1.bf16.msra.mxu0 %v5426
    %7821 = vmatprep.subr.bf16.mxu0 0
    %7822 = vmatpush1.bf16.msra.mxu0 %v5425
    %7823 = vmatprep.subr.bf16.mxu0 0
    %7824 = vmatpush1.bf16.msra.mxu0 %v5424
    %7825 = vmatprep.subr.bf16.mxu0 0
    %7826 = vmatpush1.bf16.msra.mxu0 %v5423
    %7827 = vmatprep.subr.bf16.mxu0 0
    %7828 = vmatpush1.bf16.msra.mxu0 %v5422
    %7829 = vmatprep.subr.bf16.mxu0 0
    %7830 = vmatpush1.bf16.msra.mxu0 %v5421
    %7831 = vmatprep.subr.bf16.mxu0 0
    %7832 = vmatpush1.bf16.msra.mxu0 %v5420
    %7833 = vmatprep.subr.bf16.mxu0 0
    %7834 = vmatpush1.bf16.msra.mxu0 %v5419
    %7835 = vmatprep.subr.bf16.mxu0 0
    %7836 = vmatpush2.bf16.msra.mxu0 %v5434
    %7837 = vmatprep.subr.bf16.mxu0 0
    %7838 = vmatpush2.bf16.msra.mxu0 %v5433
    %7839 = vmatprep.subr.bf16.mxu0 0
    %7840 = vmatpush2.bf16.msra.mxu0 %v5432
    %7841 = vmatprep.subr.bf16.mxu0 0
    %7842 = vmatpush2.bf16.msra.mxu0 %v5431
    %7843 = vmatprep.subr.bf16.mxu0 0
    %7844 = vmatpush2.bf16.msra.mxu0 %v5430
    %7845 = vmatprep.subr.bf16.mxu0 0
    %7846 = vmatpush2.bf16.msra.mxu0 %v5429
    %7847 = vmatprep.subr.bf16.mxu0 0
    %7848 = vmatpush2.bf16.msra.mxu0 %v5428
    %7849 = vmatprep.subr.bf16.mxu0 0
    %7850 = vmatpush2.bf16.msra.mxu0 %v5427
    %7851 = vmatprep.mubr.bf16.mxu0 %v205
    %7852 = vmatmul.mubr.bf16.gmra.mxu0 %v204
    %v7853 = vpop.f32.mrf.mxu0
    %v7854 = vadd.f32 %v7814, %v7853
    %v7855 = vpop.f32.mrf.mxu0
    %v7856 = vpop.f32.mrf.mxu0
    %v7857 = vpop.f32.mrf.mxu0
    %7858 = vdwg.mxu0
    %7859 = vmatprep.subr.bf16.mxu0 0
    %7860 = vmatpush1.bf16.msra.mxu0 %v5442
    %7861 = vmatprep.subr.bf16.mxu0 0
    %7862 = vmatpush1.bf16.msra.mxu0 %v5441
    %7863 = vmatprep.subr.bf16.mxu0 0
    %7864 = vmatpush1.bf16.msra.mxu0 %v5440
    %7865 = vmatprep.subr.bf16.mxu0 0
    %7866 = vmatpush1.bf16.msra.mxu0 %v5439
    %7867 = vmatprep.subr.bf16.mxu0 0
    %7868 = vmatpush1.bf16.msra.mxu0 %v5438
    %7869 = vmatprep.subr.bf16.mxu0 0
    %7870 = vmatpush1.bf16.msra.mxu0 %v5437
    %7871 = vmatprep.subr.bf16.mxu0 0
    %7872 = vmatpush1.bf16.msra.mxu0 %v5436
    %7873 = vmatprep.subr.bf16.mxu0 0
    %7874 = vmatpush1.bf16.msra.mxu0 %v5435
    %7875 = vmatprep.subr.bf16.mxu0 0
    %7876 = vmatpush2.bf16.msra.mxu0 %v5450
    %7877 = vmatprep.subr.bf16.mxu0 0
    %7878 = vmatpush2.bf16.msra.mxu0 %v5449
    %7879 = vmatprep.subr.bf16.mxu0 0
    %7880 = vmatpush2.bf16.msra.mxu0 %v5448
    %7881 = vmatprep.subr.bf16.mxu0 0
    %7882 = vmatpush2.bf16.msra.mxu0 %v5447
    %7883 = vmatprep.subr.bf16.mxu0 0
    %7884 = vmatpush2.bf16.msra.mxu0 %v5446
    %7885 = vmatprep.subr.bf16.mxu0 0
    %7886 = vmatpush2.bf16.msra.mxu0 %v5445
    %7887 = vmatprep.subr.bf16.mxu0 0
    %7888 = vmatpush2.bf16.msra.mxu0 %v5444
    %7889 = vmatprep.subr.bf16.mxu0 0
    %7890 = vmatpush2.bf16.msra.mxu0 %v5443
    %7891 = vmatprep.mubr.bf16.mxu0 %v207
    %7892 = vmatmul.mubr.bf16.gmra.mxu0 %v206
    %v7893 = vpop.f32.mrf.mxu0
    %v7894 = vadd.f32 %v7854, %v7893
    %v7895 = vpop.f32.mrf.mxu0
    %v7896 = vpop.f32.mrf.mxu0
    %v7897 = vpop.f32.mrf.mxu0
    %7898 = vdwg.mxu0
    %7899 = vmatprep.subr.bf16.mxu0 0
    %7900 = vmatpush1.bf16.msra.mxu0 %v5458
    %7901 = vmatprep.subr.bf16.mxu0 0
    %7902 = vmatpush1.bf16.msra.mxu0 %v5457
    %7903 = vmatprep.subr.bf16.mxu0 0
    %7904 = vmatpush1.bf16.msra.mxu0 %v5456
    %7905 = vmatprep.subr.bf16.mxu0 0
    %7906 = vmatpush1.bf16.msra.mxu0 %v5455
    %7907 = vmatprep.subr.bf16.mxu0 0
    %7908 = vmatpush1.bf16.msra.mxu0 %v5454
    %7909 = vmatprep.subr.bf16.mxu0 0
    %7910 = vmatpush1.bf16.msra.mxu0 %v5453
    %7911 = vmatprep.subr.bf16.mxu0 0
    %7912 = vmatpush1.bf16.msra.mxu0 %v5452
    %7913 = vmatprep.subr.bf16.mxu0 0
    %7914 = vmatpush1.bf16.msra.mxu0 %v5451
    %7915 = vmatprep.subr.bf16.mxu0 0
    %7916 = vmatpush2.bf16.msra.mxu0 %v5466
    %7917 = vmatprep.subr.bf16.mxu0 0
    %7918 = vmatpush2.bf16.msra.mxu0 %v5465
    %7919 = vmatprep.subr.bf16.mxu0 0
    %7920 = vmatpush2.bf16.msra.mxu0 %v5464
    %7921 = vmatprep.subr.bf16.mxu0 0
    %7922 = vmatpush2.bf16.msra.mxu0 %v5463
    %7923 = vmatprep.subr.bf16.mxu0 0
    %7924 = vmatpush2.bf16.msra.mxu0 %v5462
    %7925 = vmatprep.subr.bf16.mxu0 0
    %7926 = vmatpush2.bf16.msra.mxu0 %v5461
    %7927 = vmatprep.subr.bf16.mxu0 0
    %7928 = vmatpush2.bf16.msra.mxu0 %v5460
    %7929 = vmatprep.subr.bf16.mxu0 0
    %7930 = vmatpush2.bf16.msra.mxu0 %v5459
    %7931 = vmatprep.mubr.bf16.mxu0 %v209
    %7932 = vmatmul.mubr.bf16.gmra.mxu0 %v208
    %v7933 = vpop.f32.mrf.mxu0
    %v7934 = vadd.f32 %v7894, %v7933
    %v7935 = vpop.f32.mrf.mxu0
    %v7936 = vpop.f32.mrf.mxu0
    %v7937 = vpop.f32.mrf.mxu0
    %7938 = vdwg.mxu0
    %7939 = vmatprep.subr.bf16.mxu0 0
    %7940 = vmatpush1.bf16.msra.mxu0 %v5474
    %7941 = vmatprep.subr.bf16.mxu0 0
    %7942 = vmatpush1.bf16.msra.mxu0 %v5473
    %7943 = vmatprep.subr.bf16.mxu0 0
    %7944 = vmatpush1.bf16.msra.mxu0 %v5472
    %7945 = vmatprep.subr.bf16.mxu0 0
    %7946 = vmatpush1.bf16.msra.mxu0 %v5471
    %7947 = vmatprep.subr.bf16.mxu0 0
    %7948 = vmatpush1.bf16.msra.mxu0 %v5470
    %7949 = vmatprep.subr.bf16.mxu0 0
    %7950 = vmatpush1.bf16.msra.mxu0 %v5469
    %7951 = vmatprep.subr.bf16.mxu0 0
    %7952 = vmatpush1.bf16.msra.mxu0 %v5468
    %7953 = vmatprep.subr.bf16.mxu0 0
    %7954 = vmatpush1.bf16.msra.mxu0 %v5467
    %7955 = vmatprep.subr.bf16.mxu0 0
    %7956 = vmatpush2.bf16.msra.mxu0 %v5482
    %7957 = vmatprep.subr.bf16.mxu0 0
    %7958 = vmatpush2.bf16.msra.mxu0 %v5481
    %7959 = vmatprep.subr.bf16.mxu0 0
    %7960 = vmatpush2.bf16.msra.mxu0 %v5480
    %7961 = vmatprep.subr.bf16.mxu0 0
    %7962 = vmatpush2.bf16.msra.mxu0 %v5479
    %7963 = vmatprep.subr.bf16.mxu0 0
    %7964 = vmatpush2.bf16.msra.mxu0 %v5478
    %7965 = vmatprep.subr.bf16.mxu0 0
    %7966 = vmatpush2.bf16.msra.mxu0 %v5477
    %7967 = vmatprep.subr.bf16.mxu0 0
    %7968 = vmatpush2.bf16.msra.mxu0 %v5476
    %7969 = vmatprep.subr.bf16.mxu0 0
    %7970 = vmatpush2.bf16.msra.mxu0 %v5475
    %7971 = vmatprep.mubr.bf16.mxu0 %v211
    %7972 = vmatmul.mubr.bf16.gmra.mxu0 %v210
    %v7973 = vpop.f32.mrf.mxu0
    %v7974 = vadd.f32 %v7934, %v7973
    %v7975 = vpop.f32.mrf.mxu0
    %v7976 = vpop.f32.mrf.mxu0
    %v7977 = vpop.f32.mrf.mxu0
    %7978 = vdwg.mxu0
    %7979 = vmatprep.subr.bf16.mxu0 0
    %7980 = vmatpush1.bf16.msra.mxu0 %v5490
    %7981 = vmatprep.subr.bf16.mxu0 0
    %7982 = vmatpush1.bf16.msra.mxu0 %v5489
    %7983 = vmatprep.subr.bf16.mxu0 0
    %7984 = vmatpush1.bf16.msra.mxu0 %v5488
    %7985 = vmatprep.subr.bf16.mxu0 0
    %7986 = vmatpush1.bf16.msra.mxu0 %v5487
    %7987 = vmatprep.subr.bf16.mxu0 0
    %7988 = vmatpush1.bf16.msra.mxu0 %v5486
    %7989 = vmatprep.subr.bf16.mxu0 0
    %7990 = vmatpush1.bf16.msra.mxu0 %v5485
    %7991 = vmatprep.subr.bf16.mxu0 0
    %7992 = vmatpush1.bf16.msra.mxu0 %v5484
    %7993 = vmatprep.subr.bf16.mxu0 0
    %7994 = vmatpush1.bf16.msra.mxu0 %v5483
    %7995 = vmatprep.subr.bf16.mxu0 0
    %7996 = vmatpush2.bf16.msra.mxu0 %v5498
    %7997 = vmatprep.subr.bf16.mxu0 0
    %7998 = vmatpush2.bf16.msra.mxu0 %v5497
    %7999 = vmatprep.subr.bf16.mxu0 0
    %8000 = vmatpush2.bf16.msra.mxu0 %v5496
    %8001 = vmatprep.subr.bf16.mxu0 0
    %8002 = vmatpush2.bf16.msra.mxu0 %v5495
    %8003 = vmatprep.subr.bf16.mxu0 0
    %8004 = vmatpush2.bf16.msra.mxu0 %v5494
    %8005 = vmatprep.subr.bf16.mxu0 0
    %8006 = vmatpush2.bf16.msra.mxu0 %v5493
    %8007 = vmatprep.subr.bf16.mxu0 0
    %8008 = vmatpush2.bf16.msra.mxu0 %v5492
    %8009 = vmatprep.subr.bf16.mxu0 0
    %8010 = vmatpush2.bf16.msra.mxu0 %v5491
    %8011 = vmatprep.mubr.bf16.mxu0 %v213
    %8012 = vmatmul.mubr.bf16.gmra.mxu0 %v212
    %v8013 = vpop.f32.mrf.mxu0
    %v8014 = vadd.f32 %v7974, %v8013
    %v8015 = vpop.f32.mrf.mxu0
    %v8016 = vpop.f32.mrf.mxu0
    %v8017 = vpop.f32.mrf.mxu0
    %8018 = vdwg.mxu0
    %8019 = vmatprep.subr.bf16.mxu0 0
    %8020 = vmatpush1.bf16.msra.mxu0 %v5506
    %8021 = vmatprep.subr.bf16.mxu0 0
    %8022 = vmatpush1.bf16.msra.mxu0 %v5505
    %8023 = vmatprep.subr.bf16.mxu0 0
    %8024 = vmatpush1.bf16.msra.mxu0 %v5504
    %8025 = vmatprep.subr.bf16.mxu0 0
    %8026 = vmatpush1.bf16.msra.mxu0 %v5503
    %8027 = vmatprep.subr.bf16.mxu0 0
    %8028 = vmatpush1.bf16.msra.mxu0 %v5502
    %8029 = vmatprep.subr.bf16.mxu0 0
    %8030 = vmatpush1.bf16.msra.mxu0 %v5501
    %8031 = vmatprep.subr.bf16.mxu0 0
    %8032 = vmatpush1.bf16.msra.mxu0 %v5500
    %8033 = vmatprep.subr.bf16.mxu0 0
    %8034 = vmatpush1.bf16.msra.mxu0 %v5499
    %8035 = vmatprep.subr.bf16.mxu0 0
    %8036 = vmatpush2.bf16.msra.mxu0 %v5514
    %8037 = vmatprep.subr.bf16.mxu0 0
    %8038 = vmatpush2.bf16.msra.mxu0 %v5513
    %8039 = vmatprep.subr.bf16.mxu0 0
    %8040 = vmatpush2.bf16.msra.mxu0 %v5512
    %8041 = vmatprep.subr.bf16.mxu0 0
    %8042 = vmatpush2.bf16.msra.mxu0 %v5511
    %8043 = vmatprep.subr.bf16.mxu0 0
    %8044 = vmatpush2.bf16.msra.mxu0 %v5510
    %8045 = vmatprep.subr.bf16.mxu0 0
    %8046 = vmatpush2.bf16.msra.mxu0 %v5509
    %8047 = vmatprep.subr.bf16.mxu0 0
    %8048 = vmatpush2.bf16.msra.mxu0 %v5508
    %8049 = vmatprep.subr.bf16.mxu0 0
    %8050 = vmatpush2.bf16.msra.mxu0 %v5507
    %8051 = vmatprep.mubr.bf16.mxu0 %v215
    %8052 = vmatmul.mubr.bf16.gmra.mxu0 %v214
    %v8053 = vpop.f32.mrf.mxu0
    %v8054 = vadd.f32 %v8014, %v8053
    %v8055 = vpop.f32.mrf.mxu0
    %v8056 = vpop.f32.mrf.mxu0
    %v8057 = vpop.f32.mrf.mxu0
    %8058 = vdwg.mxu0
    %8059 = vmatprep.subr.bf16.mxu0 0
    %8060 = vmatpush1.bf16.msra.mxu0 %v5522
    %8061 = vmatprep.subr.bf16.mxu0 0
    %8062 = vmatpush1.bf16.msra.mxu0 %v5521
    %8063 = vmatprep.subr.bf16.mxu0 0
    %8064 = vmatpush1.bf16.msra.mxu0 %v5520
    %8065 = vmatprep.subr.bf16.mxu0 0
    %8066 = vmatpush1.bf16.msra.mxu0 %v5519
    %8067 = vmatprep.subr.bf16.mxu0 0
    %8068 = vmatpush1.bf16.msra.mxu0 %v5518
    %8069 = vmatprep.subr.bf16.mxu0 0
    %8070 = vmatpush1.bf16.msra.mxu0 %v5517
    %8071 = vmatprep.subr.bf16.mxu0 0
    %8072 = vmatpush1.bf16.msra.mxu0 %v5516
    %8073 = vmatprep.subr.bf16.mxu0 0
    %8074 = vmatpush1.bf16.msra.mxu0 %v5515
    %8075 = vmatprep.subr.bf16.mxu0 0
    %8076 = vmatpush2.bf16.msra.mxu0 %v5530
    %8077 = vmatprep.subr.bf16.mxu0 0
    %8078 = vmatpush2.bf16.msra.mxu0 %v5529
    %8079 = vmatprep.subr.bf16.mxu0 0
    %8080 = vmatpush2.bf16.msra.mxu0 %v5528
    %8081 = vmatprep.subr.bf16.mxu0 0
    %8082 = vmatpush2.bf16.msra.mxu0 %v5527
    %8083 = vmatprep.subr.bf16.mxu0 0
    %8084 = vmatpush2.bf16.msra.mxu0 %v5526
    %8085 = vmatprep.subr.bf16.mxu0 0
    %8086 = vmatpush2.bf16.msra.mxu0 %v5525
    %8087 = vmatprep.subr.bf16.mxu0 0
    %8088 = vmatpush2.bf16.msra.mxu0 %v5524
    %8089 = vmatprep.subr.bf16.mxu0 0
    %8090 = vmatpush2.bf16.msra.mxu0 %v5523
    %8091 = vmatprep.mubr.bf16.mxu0 %v217
    %8092 = vmatmul.mubr.bf16.gmra.mxu0 %v216
    %v8093 = vpop.f32.mrf.mxu0
    %v8094 = vadd.f32 %v8054, %v8093
    %v8095 = vpop.f32.mrf.mxu0
    %v8096 = vpop.f32.mrf.mxu0
    %v8097 = vpop.f32.mrf.mxu0
    %8098 = vdwg.mxu0
    %8099 = vmatprep.subr.bf16.mxu0 0
    %8100 = vmatpush1.bf16.msra.mxu0 %v5538
    %8101 = vmatprep.subr.bf16.mxu0 0
    %8102 = vmatpush1.bf16.msra.mxu0 %v5537
    %8103 = vmatprep.subr.bf16.mxu0 0
    %8104 = vmatpush1.bf16.msra.mxu0 %v5536
    %8105 = vmatprep.subr.bf16.mxu0 0
    %8106 = vmatpush1.bf16.msra.mxu0 %v5535
    %8107 = vmatprep.subr.bf16.mxu0 0
    %8108 = vmatpush1.bf16.msra.mxu0 %v5534
    %8109 = vmatprep.subr.bf16.mxu0 0
    %8110 = vmatpush1.bf16.msra.mxu0 %v5533
    %8111 = vmatprep.subr.bf16.mxu0 0
    %8112 = vmatpush1.bf16.msra.mxu0 %v5532
    %8113 = vmatprep.subr.bf16.mxu0 0
    %8114 = vmatpush1.bf16.msra.mxu0 %v5531
    %8115 = vmatprep.subr.bf16.mxu0 0
    %8116 = vmatpush2.bf16.msra.mxu0 %v5546
    %8117 = vmatprep.subr.bf16.mxu0 0
    %8118 = vmatpush2.bf16.msra.mxu0 %v5545
    %8119 = vmatprep.subr.bf16.mxu0 0
    %8120 = vmatpush2.bf16.msra.mxu0 %v5544
    %8121 = vmatprep.subr.bf16.mxu0 0
    %8122 = vmatpush2.bf16.msra.mxu0 %v5543
    %8123 = vmatprep.subr.bf16.mxu0 0
    %8124 = vmatpush2.bf16.msra.mxu0 %v5542
    %8125 = vmatprep.subr.bf16.mxu0 0
    %8126 = vmatpush2.bf16.msra.mxu0 %v5541
    %8127 = vmatprep.subr.bf16.mxu0 0
    %8128 = vmatpush2.bf16.msra.mxu0 %v5540
    %8129 = vmatprep.subr.bf16.mxu0 0
    %8130 = vmatpush2.bf16.msra.mxu0 %v5539
    %8131 = vmatprep.mubr.bf16.mxu0 %v219
    %8132 = vmatmul.mubr.bf16.gmra.mxu0 %v218
    %v8133 = vpop.f32.mrf.mxu0
    %v8134 = vadd.f32 %v8094, %v8133
    %v8135 = vpop.f32.mrf.mxu0
    %v8136 = vpop.f32.mrf.mxu0
    %v8137 = vpop.f32.mrf.mxu0
    %8138 = vdwg.mxu0
    %8139 = vmatprep.subr.bf16.mxu0 0
    %8140 = vmatpush1.bf16.msra.mxu0 %v5554
    %8141 = vmatprep.subr.bf16.mxu0 0
    %8142 = vmatpush1.bf16.msra.mxu0 %v5553
    %8143 = vmatprep.subr.bf16.mxu0 0
    %8144 = vmatpush1.bf16.msra.mxu0 %v5552
    %8145 = vmatprep.subr.bf16.mxu0 0
    %8146 = vmatpush1.bf16.msra.mxu0 %v5551
    %8147 = vmatprep.subr.bf16.mxu0 0
    %8148 = vmatpush1.bf16.msra.mxu0 %v5550
    %8149 = vmatprep.subr.bf16.mxu0 0
    %8150 = vmatpush1.bf16.msra.mxu0 %v5549
    %8151 = vmatprep.subr.bf16.mxu0 0
    %8152 = vmatpush1.bf16.msra.mxu0 %v5548
    %8153 = vmatprep.subr.bf16.mxu0 0
    %8154 = vmatpush1.bf16.msra.mxu0 %v5547
    %8155 = vmatprep.subr.bf16.mxu0 0
    %8156 = vmatpush2.bf16.msra.mxu0 %v5562
    %8157 = vmatprep.subr.bf16.mxu0 0
    %8158 = vmatpush2.bf16.msra.mxu0 %v5561
    %8159 = vmatprep.subr.bf16.mxu0 0
    %8160 = vmatpush2.bf16.msra.mxu0 %v5560
    %8161 = vmatprep.subr.bf16.mxu0 0
    %8162 = vmatpush2.bf16.msra.mxu0 %v5559
    %8163 = vmatprep.subr.bf16.mxu0 0
    %8164 = vmatpush2.bf16.msra.mxu0 %v5558
    %8165 = vmatprep.subr.bf16.mxu0 0
    %8166 = vmatpush2.bf16.msra.mxu0 %v5557
    %8167 = vmatprep.subr.bf16.mxu0 0
    %8168 = vmatpush2.bf16.msra.mxu0 %v5556
    %8169 = vmatprep.subr.bf16.mxu0 0
    %8170 = vmatpush2.bf16.msra.mxu0 %v5555
    %8171 = vmatprep.mubr.bf16.mxu0 %v221
    %8172 = vmatmul.mubr.bf16.gmra.mxu0 %v220
    %v8173 = vpop.f32.mrf.mxu0
    %v8174 = vadd.f32 %v8134, %v8173
    %v8175 = vpop.f32.mrf.mxu0
    %v8176 = vpop.f32.mrf.mxu0
    %v8177 = vpop.f32.mrf.mxu0
    %8178 = vdwg.mxu0
    %8179 = vmatprep.subr.bf16.mxu0 0
    %8180 = vmatpush1.bf16.msra.mxu0 %v5570
    %8181 = vmatprep.subr.bf16.mxu0 0
    %8182 = vmatpush1.bf16.msra.mxu0 %v5569
    %8183 = vmatprep.subr.bf16.mxu0 0
    %8184 = vmatpush1.bf16.msra.mxu0 %v5568
    %8185 = vmatprep.subr.bf16.mxu0 0
    %8186 = vmatpush1.bf16.msra.mxu0 %v5567
    %8187 = vmatprep.subr.bf16.mxu0 0
    %8188 = vmatpush1.bf16.msra.mxu0 %v5566
    %8189 = vmatprep.subr.bf16.mxu0 0
    %8190 = vmatpush1.bf16.msra.mxu0 %v5565
    %8191 = vmatprep.subr.bf16.mxu0 0
    %8192 = vmatpush1.bf16.msra.mxu0 %v5564
    %8193 = vmatprep.subr.bf16.mxu0 0
    %8194 = vmatpush1.bf16.msra.mxu0 %v5563
    %8195 = vmatprep.subr.bf16.mxu0 0
    %8196 = vmatpush2.bf16.msra.mxu0 %v5578
    %8197 = vmatprep.subr.bf16.mxu0 0
    %8198 = vmatpush2.bf16.msra.mxu0 %v5577
    %8199 = vmatprep.subr.bf16.mxu0 0
    %8200 = vmatpush2.bf16.msra.mxu0 %v5576
    %8201 = vmatprep.subr.bf16.mxu0 0
    %8202 = vmatpush2.bf16.msra.mxu0 %v5575
    %8203 = vmatprep.subr.bf16.mxu0 0
    %8204 = vmatpush2.bf16.msra.mxu0 %v5574
    %8205 = vmatprep.subr.bf16.mxu0 0
    %8206 = vmatpush2.bf16.msra.mxu0 %v5573
    %8207 = vmatprep.subr.bf16.mxu0 0
    %8208 = vmatpush2.bf16.msra.mxu0 %v5572
    %8209 = vmatprep.subr.bf16.mxu0 0
    %8210 = vmatpush2.bf16.msra.mxu0 %v5571
    %8211 = vmatprep.mubr.bf16.mxu0 %v223
    %8212 = vmatmul.mubr.bf16.gmra.mxu0 %v222
    %v8213 = vpop.f32.mrf.mxu0
    %v8214 = vadd.f32 %v8174, %v8213
    %v8215 = vpop.f32.mrf.mxu0
    %v8216 = vpop.f32.mrf.mxu0
    %v8217 = vpop.f32.mrf.mxu0
    %8218 = vdwg.mxu0
    %8219 = vmatprep.subr.bf16.mxu0 0
    %8220 = vmatpush1.bf16.msra.mxu0 %v5586
    %8221 = vmatprep.subr.bf16.mxu0 0
    %8222 = vmatpush1.bf16.msra.mxu0 %v5585
    %8223 = vmatprep.subr.bf16.mxu0 0
    %8224 = vmatpush1.bf16.msra.mxu0 %v5584
    %8225 = vmatprep.subr.bf16.mxu0 0
    %8226 = vmatpush1.bf16.msra.mxu0 %v5583
    %8227 = vmatprep.subr.bf16.mxu0 0
    %8228 = vmatpush1.bf16.msra.mxu0 %v5582
    %8229 = vmatprep.subr.bf16.mxu0 0
    %8230 = vmatpush1.bf16.msra.mxu0 %v5581
    %8231 = vmatprep.subr.bf16.mxu0 0
    %8232 = vmatpush1.bf16.msra.mxu0 %v5580
    %8233 = vmatprep.subr.bf16.mxu0 0
    %8234 = vmatpush1.bf16.msra.mxu0 %v5579
    %8235 = vmatprep.subr.bf16.mxu0 0
    %8236 = vmatpush2.bf16.msra.mxu0 %v5594
    %8237 = vmatprep.subr.bf16.mxu0 0
    %8238 = vmatpush2.bf16.msra.mxu0 %v5593
    %8239 = vmatprep.subr.bf16.mxu0 0
    %8240 = vmatpush2.bf16.msra.mxu0 %v5592
    %8241 = vmatprep.subr.bf16.mxu0 0
    %8242 = vmatpush2.bf16.msra.mxu0 %v5591
    %8243 = vmatprep.subr.bf16.mxu0 0
    %8244 = vmatpush2.bf16.msra.mxu0 %v5590
    %8245 = vmatprep.subr.bf16.mxu0 0
    %8246 = vmatpush2.bf16.msra.mxu0 %v5589
    %8247 = vmatprep.subr.bf16.mxu0 0
    %8248 = vmatpush2.bf16.msra.mxu0 %v5588
    %8249 = vmatprep.subr.bf16.mxu0 0
    %8250 = vmatpush2.bf16.msra.mxu0 %v5587
    %8251 = vmatprep.mubr.bf16.mxu0 %v225
    %8252 = vmatmul.mubr.bf16.gmra.mxu0 %v224
    %v8253 = vpop.f32.mrf.mxu0
    %v8254 = vadd.f32 %v8214, %v8253
    %v8255 = vpop.f32.mrf.mxu0
    %v8256 = vpop.f32.mrf.mxu0
    %v8257 = vpop.f32.mrf.mxu0
    %8258 = vdwg.mxu0
    %8259 = vmatprep.subr.bf16.mxu0 0
    %8260 = vmatpush1.bf16.msra.mxu0 %v5602
    %8261 = vmatprep.subr.bf16.mxu0 0
    %8262 = vmatpush1.bf16.msra.mxu0 %v5601
    %8263 = vmatprep.subr.bf16.mxu0 0
    %8264 = vmatpush1.bf16.msra.mxu0 %v5600
    %8265 = vmatprep.subr.bf16.mxu0 0
    %8266 = vmatpush1.bf16.msra.mxu0 %v5599
    %8267 = vmatprep.subr.bf16.mxu0 0
    %8268 = vmatpush1.bf16.msra.mxu0 %v5598
    %8269 = vmatprep.subr.bf16.mxu0 0
    %8270 = vmatpush1.bf16.msra.mxu0 %v5597
    %8271 = vmatprep.subr.bf16.mxu0 0
    %8272 = vmatpush1.bf16.msra.mxu0 %v5596
    %8273 = vmatprep.subr.bf16.mxu0 0
    %8274 = vmatpush1.bf16.msra.mxu0 %v5595
    %8275 = vmatprep.subr.bf16.mxu0 0
    %8276 = vmatpush2.bf16.msra.mxu0 %v5610
    %8277 = vmatprep.subr.bf16.mxu0 0
    %8278 = vmatpush2.bf16.msra.mxu0 %v5609
    %8279 = vmatprep.subr.bf16.mxu0 0
    %8280 = vmatpush2.bf16.msra.mxu0 %v5608
    %8281 = vmatprep.subr.bf16.mxu0 0
    %8282 = vmatpush2.bf16.msra.mxu0 %v5607
    %8283 = vmatprep.subr.bf16.mxu0 0
    %8284 = vmatpush2.bf16.msra.mxu0 %v5606
    %8285 = vmatprep.subr.bf16.mxu0 0
    %8286 = vmatpush2.bf16.msra.mxu0 %v5605
    %8287 = vmatprep.subr.bf16.mxu0 0
    %8288 = vmatpush2.bf16.msra.mxu0 %v5604
    %8289 = vmatprep.subr.bf16.mxu0 0
    %8290 = vmatpush2.bf16.msra.mxu0 %v5603
    %8291 = vmatprep.mubr.bf16.mxu0 %v227
    %8292 = vmatmul.mubr.bf16.gmra.mxu0 %v226
    %v8293 = vpop.f32.mrf.mxu0
    %v8294 = vadd.f32 %v8254, %v8293
    %v8295 = vpop.f32.mrf.mxu0
    %v8296 = vpop.f32.mrf.mxu0
    %v8297 = vpop.f32.mrf.mxu0
    %8298 = vdwg.mxu0
    %v8299 = vmax.f32 %v8294, 0.0
    %v8300 = vld [vmem:[%s3] sm:$0xff]
    %v8301 = vld [vmem:[%s3 + $0x8] sm:$0xff]
    %v8302 = vld [vmem:[%s3 + $0x10] sm:$0xff]
    %v8303 = vld [vmem:[%s3 + $0x18] sm:$0xff]
    %v8304 = vld [vmem:[%s3 + $0x20] sm:$0xff]
    %v8305 = vld [vmem:[%s3 + $0x28] sm:$0xff]
    %v8306 = vld [vmem:[%s3 + $0x30] sm:$0xff]
    %v8307 = vld [vmem:[%s3 + $0x38] sm:$0xff]
    %v8308 = vld [vmem:[%s4] sm:$0x1]
    %v8310 = vlaneseq
    %v8311 = vshrl.u32 %v8310, 7
    %v8312 = vsub.s32 0, %v8311
    %v8313 = vrot.slane %v8308, %v8312
    %vm8315 = vcmask 523264
    %v8317 = vsel %vm8315, %v8299, 0
    %8319 = vmatprep.subr.mxu0 0.0
    %8320 = vmatpush1.msra.mxu0 0.0
    %8321 = vmatprep.subr.mxu0 0.0
    %8322 = vmatpush1.msra.mxu0 0.0
    %8323 = vmatprep.subr.mxu0 0.0
    %8324 = vmatpush1.msra.mxu0 0.0
    %8325 = vmatprep.subr.mxu0 0.0
    %8326 = vmatpush1.msra.mxu0 0.0
    %8327 = vmatprep.subr.mxu0 0.0
    %8328 = vmatpush1.msra.mxu0 0.0
    %8329 = vmatprep.subr.mxu0 0.0
    %8330 = vmatpush1.msra.mxu0 0.0
    %8331 = vmatprep.subr.mxu0 0.0
    %8332 = vmatpush1.msra.mxu0 0.0
    %8333 = vmatprep.subr.mxu0 0.0
    %8334 = vmatpush1.msra.mxu0 0.0
    %8335 = vmatprep.subr.mxu0 0.0
    %8336 = vmatpush1.msra.mxu0 %v8307
    %8337 = vmatprep.subr.mxu0 0.0
    %8338 = vmatpush1.msra.mxu0 %v8306
    %8339 = vmatprep.subr.mxu0 0.0
    %8340 = vmatpush1.msra.mxu0 %v8305
    %8341 = vmatprep.subr.mxu0 0.0
    %8342 = vmatpush1.msra.mxu0 %v8304
    %8343 = vmatprep.subr.mxu0 0.0
    %8344 = vmatpush1.msra.mxu0 %v8303
    %8345 = vmatprep.subr.mxu0 0.0
    %8346 = vmatpush1.msra.mxu0 %v8302
    %8347 = vmatprep.subr.mxu0 0.0
    %8348 = vmatpush1.msra.mxu0 %v8301
    %8349 = vmatprep.subr.mxu0 0.0
    %8350 = vmatpush1.msra.mxu0 %v8300
    %8351 = vmatprep.subr.mxu0 0.0
    %8352 = vmatpush2.msra.mxu0 0.0
    %8353 = vmatprep.subr.mxu0 0.0
    %8354 = vmatpush2.msra.mxu0 0.0
    %8355 = vmatprep.subr.mxu0 0.0
    %8356 = vmatpush2.msra.mxu0 0.0
    %8357 = vmatprep.subr.mxu0 0.0
    %8358 = vmatpush2.msra.mxu0 0.0
    %8359 = vmatprep.subr.mxu0 0.0
    %8360 = vmatpush2.msra.mxu0 0.0
    %8361 = vmatprep.subr.mxu0 0.0
    %8362 = vmatpush2.msra.mxu0 0.0
    %8363 = vmatprep.subr.mxu0 0.0
    %8364 = vmatpush2.msra.mxu0 0.0
    %8365 = vmatprep.subr.mxu0 0.0
    %8366 = vmatpush2.msra.mxu0 0.0
    %8367 = vmatprep.subr.mxu0 0.0
    %8368 = vmatpush2.msra.mxu0 0.0
    %8369 = vmatprep.subr.mxu0 0.0
    %8370 = vmatpush2.msra.mxu0 0.0
    %8371 = vmatprep.subr.mxu0 0.0
    %8372 = vmatpush2.msra.mxu0 0.0
    %8373 = vmatprep.subr.mxu0 0.0
    %8374 = vmatpush2.msra.mxu0 0.0
    %8375 = vmatprep.subr.mxu0 0.0
    %8376 = vmatpush2.msra.mxu0 0.0
    %8377 = vmatprep.subr.mxu0 0.0
    %8378 = vmatpush2.msra.mxu0 0.0
    %8379 = vmatprep.subr.mxu0 0.0
    %8380 = vmatpush2.msra.mxu0 0.0
    %8381 = vmatprep.subr.mxu0 0.0
    %8382 = vmatpush2.msra.mxu0 0.0
    %8383 = vmatprep.mubr.f32.mxu0 0.0
    %8384 = vmatmul.mubr.f32.gmra.mxu0 %v8317
    %v8385 = vpop.f32.mrf.mxu0
    %v8386 = vadd.f32 %v8313, %v8385
    %v8387 = vpop.f32.mrf.mxu0
    %8388 = vdwg.mxu0
    %v8389 = vmax.f32 %v8386, 0.0
    %v8390 = vld [vmem:[%s5] sm:$0xff]
    %v8391 = vld [vmem:[%s5 + $0x8] sm:$0xff]
    %v8392 = vld [vmem:[%s5 + $0x10] sm:$0xff]
    %v8393 = vld [vmem:[%s5 + $0x18] sm:$0xff]
    %v8394 = vld [vmem:[%s5 + $0x20] sm:$0xff]
    %v8395 = vld [vmem:[%s5 + $0x28] sm:$0xff]
    %v8396 = vld [vmem:[%s5 + $0x30] sm:$0xff]
    %v8397 = vld [vmem:[%s5 + $0x38] sm:$0xff]
    %v8398 = vld [vmem:[%s6] sm:$0x1]
    %v8400 = vlaneseq
    %v8401 = vshrl.u32 %v8400, 7
    %v8402 = vsub.s32 0, %v8401
    %v8403 = vrot.slane %v8398, %v8402
    %v8406 = vsel %vm8315, %v8389, 0
    %8408 = vmatprep.subr.mxu0 0.0
    %8409 = vmatpush1.msra.mxu0 0.0
    %8410 = vmatprep.subr.mxu0 0.0
    %8411 = vmatpush1.msra.mxu0 0.0
    %8412 = vmatprep.subr.mxu0 0.0
    %8413 = vmatpush1.msra.mxu0 0.0
    %8414 = vmatprep.subr.mxu0 0.0
    %8415 = vmatpush1.msra.mxu0 0.0
    %8416 = vmatprep.subr.mxu0 0.0
    %8417 = vmatpush1.msra.mxu0 0.0
    %8418 = vmatprep.subr.mxu0 0.0
    %8419 = vmatpush1.msra.mxu0 0.0
    %8420 = vmatprep.subr.mxu0 0.0
    %8421 = vmatpush1.msra.mxu0 0.0
    %8422 = vmatprep.subr.mxu0 0.0
    %8423 = vmatpush1.msra.mxu0 0.0
    %8424 = vmatprep.subr.mxu0 0.0
    %8425 = vmatpush1.msra.mxu0 %v8397
    %8426 = vmatprep.subr.mxu0 0.0
    %8427 = vmatpush1.msra.mxu0 %v8396
    %8428 = vmatprep.subr.mxu0 0.0
    %8429 = vmatpush1.msra.mxu0 %v8395
    %8430 = vmatprep.subr.mxu0 0.0
    %8431 = vmatpush1.msra.mxu0 %v8394
    %8432 = vmatprep.subr.mxu0 0.0
    %8433 = vmatpush1.msra.mxu0 %v8393
    %8434 = vmatprep.subr.mxu0 0.0
    %8435 = vmatpush1.msra.mxu0 %v8392
    %8436 = vmatprep.subr.mxu0 0.0
    %8437 = vmatpush1.msra.mxu0 %v8391
    %8438 = vmatprep.subr.mxu0 0.0
    %8439 = vmatpush1.msra.mxu0 %v8390
    %8440 = vmatprep.subr.mxu0 0.0
    %8441 = vmatpush2.msra.mxu0 0.0
    %8442 = vmatprep.subr.mxu0 0.0
    %8443 = vmatpush2.msra.mxu0 0.0
    %8444 = vmatprep.subr.mxu0 0.0
    %8445 = vmatpush2.msra.mxu0 0.0
    %8446 = vmatprep.subr.mxu0 0.0
    %8447 = vmatpush2.msra.mxu0 0.0
    %8448 = vmatprep.subr.mxu0 0.0
    %8449 = vmatpush2.msra.mxu0 0.0
    %8450 = vmatprep.subr.mxu0 0.0
    %8451 = vmatpush2.msra.mxu0 0.0
    %8452 = vmatprep.subr.mxu0 0.0
    %8453 = vmatpush2.msra.mxu0 0.0
    %8454 = vmatprep.subr.mxu0 0.0
    %8455 = vmatpush2.msra.mxu0 0.0
    %8456 = vmatprep.subr.mxu0 0.0
    %8457 = vmatpush2.msra.mxu0 0.0
    %8458 = vmatprep.subr.mxu0 0.0
    %8459 = vmatpush2.msra.mxu0 0.0
    %8460 = vmatprep.subr.mxu0 0.0
    %8461 = vmatpush2.msra.mxu0 0.0
    %8462 = vmatprep.subr.mxu0 0.0
    %8463 = vmatpush2.msra.mxu0 0.0
    %8464 = vmatprep.subr.mxu0 0.0
    %8465 = vmatpush2.msra.mxu0 0.0
    %8466 = vmatprep.subr.mxu0 0.0
    %8467 = vmatpush2.msra.mxu0 0.0
    %8468 = vmatprep.subr.mxu0 0.0
    %8469 = vmatpush2.msra.mxu0 0.0
    %8470 = vmatprep.subr.mxu0 0.0
    %8471 = vmatpush2.msra.mxu0 0.0
    %8472 = vmatprep.mubr.f32.mxu0 0.0
    %8473 = vmatmul.mubr.f32.gmra.mxu0 %v8406
    %v8474 = vpop.f32.mrf.mxu0
    %v8475 = vadd.f32 %v8403, %v8474
    %v8476 = vpop.f32.mrf.mxu0
    %8477 = vdwg.mxu0
    %v8478 = vmax.f32 %v8475, 0.0
    %v8479 = vld [vmem:[%s7] sm:$0x1]
    %v8481 = vlaneseq
    %v8482 = vshrl.u32 %v8481, 7
    %v8483 = vsub.s32 0, %v8482
    %v8484 = vrot.slane %v8479, %v8483
    %v8486 = vmul.f32 %v8478, %v8484
    %vm8487 = vcmask 130048
    %v8488 = vsel %vm8487, %v8486, 0.0
    %8489 = vadd.xlane.f32.xlu0 %v8488
    %v8490 = vpop.xlane.xlu0 %8489
    %v8491 = vld [vmem:[#allocation2] sm:$0x1]
    %v8493 = vlaneseq
    %v8494 = vshrl.u32 %v8493, 7
    %v8495 = vsub.s32 0, %v8494
    %v8496 = vrot.slane %v8491, %v8495
    %v8498 = vadd.f32 %v8490, %v8496
    %v8499 = vxor.u32 %v8498, 2147483648
    %v8500 = vmul.f32 %v8499, 1.442695
    %v8501 = vpow.pop %v8500
    %v8502 = vadd.f32 %v8501, 1.0
    %v8503 = vrcp.pop %v8502
    %v8504 = vmul.f32 1.0, %v8503
    %8505 = vxpose.xlu0.b32.start [1/16] %v8504, 128
    %8506 = vxpose.xlu0.b32.cont [2/16] 0.0, 128
    %8507 = vxpose.xlu0.b32.cont [3/16] 0.0, 128
    %8508 = vxpose.xlu0.b32.cont [4/16] 0.0, 128
    %8509 = vxpose.xlu0.b32.cont [5/16] 0.0, 128
    %8510 = vxpose.xlu0.b32.cont [6/16] 0.0, 128
    %8511 = vxpose.xlu0.b32.cont [7/16] 0.0, 128
    %8512 = vxpose.xlu0.b32.cont [8/16] 0.0, 128
    %8513 = vxpose.xlu0.b32.cont [9/16] 0.0, 128
    %8514 = vxpose.xlu0.b32.cont [10/16] 0.0, 128
    %8515 = vxpose.xlu0.b32.cont [11/16] 0.0, 128
    %8516 = vxpose.xlu0.b32.cont [12/16] 0.0, 128
    %8517 = vxpose.xlu0.b32.cont [13/16] 0.0, 128
    %8518 = vxpose.xlu0.b32.cont [14/16] 0.0, 128
    %8519 = vxpose.xlu0.b32.cont [15/16] 0.0, 128
    %8520 = vxpose.xlu0.b32.end [16/16] 0.0, 128
    %v8521 = vpop.trf.xlu0
    %v8522 = vpop.trf.xlu0
    %v8523 = vpop.trf.xlu0
    %v8524 = vpop.trf.xlu0
    %v8525 = vpop.trf.xlu0
    %v8526 = vpop.trf.xlu0
    %v8527 = vpop.trf.xlu0
    %v8528 = vpop.trf.xlu0
    %v8529 = vpop.trf.xlu0
    %v8530 = vpop.trf.xlu0
    %v8531 = vpop.trf.xlu0
    %v8532 = vpop.trf.xlu0
    %v8533 = vpop.trf.xlu0
    %v8534 = vpop.trf.xlu0
    %v8535 = vpop.trf.xlu0
    %v8536 = vpop.trf.xlu0
    %vm8537 = vcmask 57344
    %8538 = vst.msk [vmem:[#allocation3] sm:$0x1] %vm8537, %v8521
    // Predicated region
    $region38: #{tpu_custom_call.1} parent=1 // pred_check
      _
    $region39: #{tpu_custom_call.1} parent=1 // pred_check_branch
      %8540 = sbr.rel (0) target = $region41
    $region40: #{tpu_custom_call.1} parent=1 // pred_region
      %s8542 = ssub.s32 16, 16
      %8543 = vsyncadd [#allocation4], %s8542
      %s8545 = sshll.u32 [#allocation3], 4
      %s8546 = int_to_ptr.vmem [resolvable:$true] %s8545
      %8548 = dma.vmem_to_hbm [thread:$0]  %s8546, 16, %s9, [#allocation4]
    $region41: #{tpu_custom_call.1} parent=1 // pred_fallthru
      _
    // Predicated region
    $region42: #{tpu_custom_call.1} parent=1 // pred_check
      _
    $region43: #{tpu_custom_call.1} parent=1 // pred_check_branch
      %8550 = sbr.rel (0) target = $region45
    $region44: #{tpu_custom_call.1} parent=1 // pred_region
      %8551 = dma.done [#allocation4], 16
    $region45: #{tpu_custom_call.1} parent=1 // pred_fallthru
      _
    %8552 = vsyncpa [#allocation4], 1

</llo_original>
